<compile_context>
chip_gen: v7x
topology: tpu7x:2x2x1
jax: 0.10.0
libtpu: 0.0.40
codegen_flags: <defaults>
</compile_context>

<pallas_src>
import math
import functools

import jax
import jax.numpy as jnp
from jax.experimental import pallas as pl
from jax.experimental.pallas import tpu as pltpu


def _layernorm(x, gamma, beta, eps=1e-5):
    mean = jnp.mean(x, axis=-1, keepdims=True)
    var = jnp.mean(jnp.square(x - mean), axis=-1, keepdims=True)
    return (x - mean) * jax.lax.rsqrt(var + eps) * gamma + beta


def _camsa_kernel(x_ref, c_ref,
                  wx, bx, wc, bc,          # fused Wq|Wk|Wv (x path), Wc_q|Wc_k|Wc_v (c path)
                  gx, bex, gc, bec,        # fused LayerNorm gamma/beta (scale folded into q slice)
                  wo, bo,
                  out_ref, attn_ref,
                  q_sc, k_sc, v_sc,        # head-major VMEM caches, persist across the q-tile axis
                  *, bt, seq_len, q_tile, n_heads, d_k, d_v, use_bf16, approx_softmax):
    L, H = seq_len, n_heads
    Dk, Dv = H * d_k, H * d_v
    rows = bt * L
    d_model = x_ref.shape[-1]
    c_feat = c_ref.shape[-1]
    j = pl.program_id(1)

    mxu = (lambda a: a.astype(jnp.bfloat16)) if use_bf16 else (lambda a: a)

    # ---- projections + LayerNorms: once per batch block (j == 0), cached in VMEM ------
    @pl.when(j == 0)
    def _project():
        x = x_ref[...].reshape(rows, d_model)              # [bt*L, d_model]
        c_rows = c_ref[...].reshape(bt, c_feat)            # [bt, c_features] (one row / batch)

        # One fused MXU pass per path (q|k|v output lanes concatenated).
        y = jnp.dot(mxu(x), mxu(wx[...]), preferred_element_type=jnp.float32) + bx[...]
        yc = jnp.dot(mxu(c_rows), mxu(wc[...]), preferred_element_type=jnp.float32) + bc[...]

        gx_v, bex_v = gx[...], bex[...]
        gc_v, bec_v = gc[...], bec[...]

        def segment(lo, width):
            xs = _layernorm(y[:, lo:lo + width], gx_v[:, lo:lo + width], bex_v[:, lo:lo + width])
            cs = _layernorm(yc[:, lo:lo + width], gc_v[:, lo:lo + width], bec_v[:, lo:lo + width])
            # Implicit broadcast of the per-batch channel row across the sequence
            # (no materialized (bt, L, width) broadcast temporary).
            return xs.reshape(bt, L, width) + cs[:, None, :]          # [bt, L, width]

        # Head-major cache: static lane slices (safe Mosaic ops) instead of a
        # minor-dim-splitting reshape + 4-D transpose.
        for lo, dh, dst in ((0, d_k, q_sc), (Dk, d_k, k_sc), (2 * Dk, d_v, v_sc)):
            seg = segment(lo, H * dh)                                 # [bt, L, H*dh]
            for h in range(H):
                dst[:, h, :, :] = seg[:, :, h * dh:(h + 1) * dh]

    # ---- attention for this query tile -------------------------------------------------
    if q_tile == L:
        qh = q_sc[...]
    else:
        q0 = pl.multiple_of(j * q_tile, q_tile)
        qh = q_sc[:, :, pl.ds(q0, q_tile), :]
    kh = k_sc[...]
    vh = v_sc[...]

    qh = qh.reshape(bt * H, q_tile, d_k)                    # merge leading dims only
    kh = kh.reshape(bt * H, L, d_k)
    vh = vh.reshape(bt * H, L, d_v)

    # scale / sqrt(d_k) is already folded into the q LayerNorm params (wrapper time).
    s = jnp.einsum('nqd,nkd->nqk', mxu(qh), mxu(kh),
                   preferred_element_type=jnp.float32)       # [bt*H, q_tile, L]
    s = s - jnp.max(s, axis=-1, keepdims=True)
    p = jnp.exp(s)
    inv = pl.reciprocal(jnp.sum(p, axis=-1, keepdims=True), approx=approx_softmax)
    attn = p * inv
    attn_ref[...] = attn.reshape(bt, H, q_tile, L).astype(attn_ref.dtype)   # one slab store

    ctx = jnp.einsum('nqk,nkd->nqd', mxu(attn), mxu(vh),
                     preferred_element_type=jnp.float32)     # [bt*H, q_tile, d_v]
    ctx = ctx.reshape(bt, H, q_tile, d_v)
    # Regroup heads on the lane axis with a single concatenate, then one output matmul.
    context = jnp.concatenate([ctx[:, h] for h in range(H)], axis=-1)       # [bt, q_tile, Dv]
    out = jnp.dot(mxu(context.reshape(bt * q_tile, Dv)), mxu(wo[...]),
                  preferred_element_type=jnp.float32) + bo[...]
    out_ref[...] = out.reshape(bt, q_tile, d_model).astype(out_ref.dtype)   # one slab store

    # TODO(synk): attn_dropout / proj_dropout are identity (p=0.0, eval mode); the
    # prev / attn_mask / key_padding_mask branches (None by default) are not implemented.
    # TODO(synk): for very long sequences, also tile the KV axis with an online softmax so
    # the (bt*H, q_tile, L) score block stays bounded.


def _device_info():
    try:
        kind = jax.devices()[0].device_kind.lower()
    except Exception:
        kind = ""
    single_tc = any(t in kind for t in ("v5e", "v5 lite", "v5lite", "v6e", "v6 lite",
                                        "v6lite", "trillium"))
    is_v7 = "v7" in kind
    return single_tc, is_v7


def _pick_vmem_limit(block_bytes, weight_bytes, scratch_bytes, is_v7):
    # double-buffered grid blocks + (possibly double-buffered) params + scratch + margin
    est = 2 * block_bytes + 2 * weight_bytes + scratch_bytes + (4 << 20)
    cap = (48 << 20) if is_v7 else (100 << 20)   # stay under v7x's 64 MiB physical VMEM
    return int(min(cap, max(32 << 20, est)))


def camsa_forward(x, c, params, *, n_heads, d_k, d_v, scale,
                  bt=None, q_tile=None, use_bf16=False, approx_softmax=False,
                  attn_dtype=None, single_buffer_params=False):
    B, L, d_model = x.shape
    H = n_heads
    Dk, Dv = H * d_k, H * d_v
    D3 = 2 * Dk + Dv
    c_features = c.shape[-1]
    attn_dtype = x.dtype if attn_dtype is None else attn_dtype

    single_tc, is_v7 = _device_info()
    if bt is None:
        # single-TC chips (v5e/v6e): one fat grid step; dual-TC chips: keep >= 2 parallel steps
        bt = B if single_tc else max(1, B // 2)
    assert B % bt == 0, "batch must be divisible by the per-step batch tile"
    if q_tile is None:
        q_tile = L
    assert L % q_tile == 0 and (q_tile == L or q_tile % 8 == 0), "bad query tile"
    n_qt = L // q_tile

    c3 = c[:, None, :]                                   # [B, 1, c_features]

    # Fold the attention scale (scale / sqrt(d_k)) into the q-segment LN affine params.
    factor = scale / math.sqrt(d_k)
    qfold = jnp.concatenate([jnp.full((1, Dk), factor, jnp.float32),
                             jnp.ones((1, Dk + Dv), jnp.float32)], axis=1)

    p = params
    w_dtype = jnp.bfloat16 if use_bf16 else x.dtype      # pre-cast MXU weights (halves DMA)
    wx = jnp.concatenate([p["wq"], p["wk"], p["wv"]], axis=1).astype(w_dtype)
    wc = jnp.concatenate([p["wcq"], p["wck"], p["wcv"]], axis=1).astype(w_dtype)
    wo = p["wo"].astype(w_dtype)
    fused = [
        wx,
        jnp.concatenate([p["bq"], p["bk"], p["bv"]], axis=1),
        wc,
        jnp.concatenate([p["bcq"], p["bck"], p["bcv"]], axis=1),
        jnp.concatenate([p["qng"], p["kng"], p["vng"]], axis=1) * qfold,
        jnp.concatenate([p["qnb"], p["knb"], p["vnb"]], axis=1) * qfold,
        jnp.concatenate([p["qcng"], p["kcng"], p["vcng"]], axis=1) * qfold,
        jnp.concatenate([p["qcnb"], p["kcnb"], p["vcnb"]], axis=1) * qfold,
        wo, p["bo"],
    ]

    def full_spec(a):
        nd = a.ndim
        if single_buffer_params:
            # grid-invariant params: a single buffer halves their VMEM footprint
            return pl.BlockSpec(a.shape, lambda i, j, nd=nd: (0,) * nd,
                                pipeline_mode=pl.Buffered(1))
        return pl.BlockSpec(a.shape, lambda i, j, nd=nd: (0,) * nd)

    in_specs = [
        pl.BlockSpec((bt, L, d_model), lambda i, j: (i, 0, 0)),
        pl.BlockSpec((bt, 1, c_features), lambda i, j: (i, 0, 0)),
    ] + [full_spec(a) for a in fused]

    out_specs = [
        pl.BlockSpec((bt, q_tile, d_model), lambda i, j: (i, j, 0)),
        pl.BlockSpec((bt, H, q_tile, L), lambda i, j: (i, 0, j, 0)),
    ]
    out_shape = (
        jax.ShapeDtypeStruct((B, L, d_model), x.dtype),
        jax.ShapeDtypeStruct((B, H, L, L), attn_dtype),
    )
    scratch_shapes = [
        pltpu.VMEM((bt, H, L, d_k), jnp.float32),
        pltpu.VMEM((bt, H, L, d_k), jnp.float32),
        pltpu.VMEM((bt, H, L, d_v), jnp.float32),
    ]

    # VMEM limit sized from the actual block footprint (capped below v7x physical VMEM).
    block_bytes = (bt * L * d_model * x.dtype.itemsize
                   + bt * c_features * x.dtype.itemsize
                   + bt * q_tile * d_model * x.dtype.itemsize
                   + bt * H * q_tile * L * jnp.dtype(attn_dtype).itemsize)
    weight_bytes = sum(int(a.size) * a.dtype.itemsize for a in fused)
    scratch_bytes = bt * H * L * (2 * max(d_k, 128) + max(d_v, 128)) * 4   # lane padding
    vmem_limit = _pick_vmem_limit(block_bytes, weight_bytes, scratch_bytes, is_v7)

    flops = (2 * B * L * d_model * D3            # fused x-path projection
             + 2 * B * c_features * D3           # c-path projection (one row / batch)
             + 2 * B * H * L * L * (d_k + d_v)   # scores + context
             + 2 * B * L * Dv * d_model)         # output projection
    transcendentals = B * H * L * L + 3 * B * (L + 1)
    bytes_accessed = int(weight_bytes
                         + int(x.size) * x.dtype.itemsize
                         + int(c3.size) * c3.dtype.itemsize
                         + B * L * d_model * x.dtype.itemsize
                         + B * H * L * L * jnp.dtype(attn_dtype).itemsize)

    kernel = functools.partial(_camsa_kernel, bt=bt, seq_len=L, q_tile=q_tile,
                               n_heads=H, d_k=d_k, d_v=d_v,
                               use_bf16=use_bf16, approx_softmax=approx_softmax)

    return pl.pallas_call(
        kernel,
        out_shape=out_shape,
        grid_spec=pltpu.PrefetchScalarGridSpec(
            num_scalar_prefetch=0,
            grid=(B // bt, n_qt),
            in_specs=in_specs,
            out_specs=out_specs,
            scratch_shapes=scratch_shapes,
        ),
        compiler_params=pltpu.CompilerParams(
            # q-tile axis is sequential (scratch K/V cache written at j == 0)
            dimension_semantics=("parallel", "arbitrary"),
            vmem_limit_bytes=vmem_limit,
        ),
        cost_estimate=pl.CostEstimate(flops=int(flops),
                                      transcendentals=int(transcendentals),
                                      bytes_accessed=bytes_accessed),
    )(x, c3, *fused)


def init_params(key, d_model, c_features, n_heads, d_k, d_v):
    """Deterministic init mirroring nn.Linear / nn.LayerNorm defaults."""
    Dk, Dv = d_k * n_heads, d_v * n_heads

    def linear(k, fan_in, fan_out):
        bound = 1.0 / math.sqrt(fan_in)
        kw, kb = jax.random.split(k)
        w = jax.random.uniform(kw, (fan_in, fan_out), jnp.float32, -bound, bound)
        b = jax.random.uniform(kb, (1, fan_out), jnp.float32, -bound, bound)
        return w, b

    ks = jax.random.split(key, 7)
    p = {}
    p["wq"], p["bq"] = linear(ks[0], d_model, Dk)
    p["wk"], p["bk"] = linear(ks[1], d_model, Dk)
    p["wv"], p["bv"] = linear(ks[2], d_model, Dv)
    p["wcq"], p["bcq"] = linear(ks[3], c_features, Dk)
    p["wck"], p["bck"] = linear(ks[4], c_features, Dk)
    p["wcv"], p["bcv"] = linear(ks[5], c_features, Dv)
    p["wo"], p["bo"] = linear(ks[6], Dv, d_model)
    for name, dim in (("qn", Dk), ("qcn", Dk), ("kn", Dk), ("kcn", Dk),
                      ("vn", Dv), ("vcn", Dv)):
        p[name + "g"] = jnp.ones((1, dim), jnp.float32)
        p[name + "b"] = jnp.zeros((1, dim), jnp.float32)
    return p


def reference(x, c, p, *, n_heads, d_k, d_v, scale):
    """Pure-JAX replica of the torch forward for verification."""
    B, L, d_model = x.shape
    c_b = jnp.broadcast_to(c[:, None, :], (B, L, c.shape[-1]))

    def ln(y, g, b, eps=1e-5):
        m = jnp.mean(y, -1, keepdims=True)
        v = jnp.mean((y - m) ** 2, -1, keepdims=True)
        return (y - m) / jnp.sqrt(v + eps) * g + b

    def proj(inp, w, b, g, beta):
        return ln(inp @ w + b, g, beta)

    q = proj(x, p["wq"], p["bq"], p["qng"], p["qnb"]) + proj(c_b, p["wcq"], p["bcq"], p["qcng"], p["qcnb"])
    k = proj(x, p["wk"], p["bk"], p["kng"], p["knb"]) + proj(c_b, p["wck"], p["bck"], p["kcng"], p["kcnb"])
    v = proj(x, p["wv"], p["bv"], p["vng"], p["vnb"]) + proj(c_b, p["wcv"], p["bcv"], p["vcng"], p["vcnb"])

    def split(t, dh):
        return t.reshape(B, L, n_heads, dh).transpose(0, 2, 1, 3)

    qh, kh, vh = split(q, d_k), split(k, d_k), split(v, d_v)
    scores = jnp.einsum("bhld,bhmd->bhlm", qh, kh) * scale / math.sqrt(d_k)
    attn = jax.nn.softmax(scores, axis=-1)
    ctx = jnp.einsum("bhlm,bhmd->bhld", attn, vh)
    ctx = ctx.transpose(0, 2, 1, 3).reshape(B, L, n_heads * d_v)
    out = ctx @ p["wo"] + p["bo"]
    return out, attn


if __name__ == "__main__":
    # Highest matmul precision so the pure-JAX reference does not silently use
    # bf16-pass matmuls: the module's scale (== 64, from the torch operator-precedence
    # expression) makes logits O(100), so exp() amplifies any operand truncation.
    jax.config.update("jax_default_matmul_precision", "highest")

    B, L = 2, 8
    d_model, c_features, n_heads = 32, 16, 4
    d_k = d_v = d_model // n_heads
    # Reproduce the torch expression exactly: d_model // n_heads ** (-0.5)  (== 64.0 here)
    scale = float(d_model // (n_heads ** -0.5))

    key = jax.random.PRNGKey(0)
    kx, kc, kp = jax.random.split(key, 3)
    x = jax.random.normal(kx, (B, L, d_model), jnp.float32)   # Q (= K = V)
    c = jax.random.normal(kc, (B, c_features), jnp.float32)   # channel-correlation embedding
    params = init_params(kp, d_model, c_features, n_heads, d_k, d_v)

    # --- exact (f32 MXU) path: checked against the pure-JAX reference -------------------
    out, attn = camsa_forward(x, c, params, n_heads=n_heads, d_k=d_k, d_v=d_v, scale=scale)
    out, attn = jax.block_until_ready((out, attn))

    out_ref, attn_ref = reference(x, c, params, n_heads=n_heads, d_k=d_k, d_v=d_v, scale=scale)
    assert out.shape == (B, L, d_model) and attn.shape == (B, n_heads, L, L)
    # Deliberate tolerance: with scale == 64 the logits are O(300), so f32 rounding on the
    # scores (± ~1e-4 absolute) is the noise floor after exp(); 1e-3 keeps ~10x margin.
    assert bool(jnp.allclose(out, out_ref, atol=1e-3, rtol=1e-3)), "output mismatch vs reference"
    assert bool(jnp.allclose(attn, attn_ref, atol=1e-3, rtol=1e-3)), "attention mismatch vs reference"

    # --- perf path (v6e/v7x-style): bf16 MXU operands, EUP reciprocal, bf16 attn output -
    out_fast, attn_fast = camsa_forward(
        x, c, params, n_heads=n_heads, d_k=d_k, d_v=d_v, scale=scale,
        use_bf16=True, approx_softmax=True, attn_dtype=jnp.bfloat16)
    out_fast, attn_fast = jax.block_until_ready((out_fast, attn_fast))
    assert out_fast.shape == (B, L, d_model) and attn_fast.shape == (B, n_heads, L, L)
    assert bool(jnp.all(jnp.isfinite(out_fast))), "bf16 path produced non-finite outputs"
    row_sums = jnp.sum(attn_fast.astype(jnp.float32), axis=-1)
    assert bool(jnp.allclose(row_sums, 1.0, atol=5e-2)), "bf16 attention rows do not sum to ~1"

    print("KERNEL_OK")
</pallas_src>

<mosaic_0001>
module attributes {stable_mosaic.version = 11 : i64} {
  func.func @_camsa_kernel(%arg0: i32, %arg1: i32, %arg2: memref<1x8x32xf32, #tpu.memory_space<vmem>>, %arg3: memref<1x1x16xf32, #tpu.memory_space<vmem>>, %arg4: memref<32x96xf32, #tpu.memory_space<vmem>>, %arg5: memref<1x96xf32, #tpu.memory_space<vmem>>, %arg6: memref<16x96xf32, #tpu.memory_space<vmem>>, %arg7: memref<1x96xf32, #tpu.memory_space<vmem>>, %arg8: memref<1x96xf32, #tpu.memory_space<vmem>>, %arg9: memref<1x96xf32, #tpu.memory_space<vmem>>, %arg10: memref<1x96xf32, #tpu.memory_space<vmem>>, %arg11: memref<1x96xf32, #tpu.memory_space<vmem>>, %arg12: memref<32x32xf32, #tpu.memory_space<vmem>>, %arg13: memref<1x32xf32, #tpu.memory_space<vmem>>, %arg14: memref<1x8x32xf32, #tpu.memory_space<vmem>>, %arg15: memref<1x4x8x8xf32, #tpu.memory_space<vmem>>, %arg16: memref<1x4x8x8xf32, #tpu.memory_space<vmem>>, %arg17: memref<1x4x8x8xf32, #tpu.memory_space<vmem>>, %arg18: memref<1x4x8x8xf32, #tpu.memory_space<vmem>>) attributes {dimension_semantics = [#tpu.dimension_semantics<parallel>, #tpu.dimension_semantics<arbitrary>], iteration_bounds = array<i64: 2, 1>, scalar_prefetch = 0 : i64, scratch_operands = 3 : i64, tpu.core_type = #tpu.core_type<tc>, window_params = [{transform_indices = @transform_0, window_bounds = array<i64: 1, 8, 32>}, {transform_indices = @transform_1, window_bounds = array<i64: 1, 1, 16>}, {pipeline_mode = #tpu.pipeline_mode<synchronous>, transform_indices = @transform_2, window_bounds = array<i64: 32, 96>}, {pipeline_mode = #tpu.pipeline_mode<synchronous>, transform_indices = @transform_3, window_bounds = array<i64: 1, 96>}, {pipeline_mode = #tpu.pipeline_mode<synchronous>, transform_indices = @transform_4, window_bounds = array<i64: 16, 96>}, {pipeline_mode = #tpu.pipeline_mode<synchronous>, transform_indices = @transform_5, window_bounds = array<i64: 1, 96>}, {pipeline_mode = #tpu.pipeline_mode<synchronous>, transform_indices = @transform_6, window_bounds = array<i64: 1, 96>}, {pipeline_mode = #tpu.pipeline_mode<synchronous>, transform_indices = @transform_7, window_bounds = array<i64: 1, 96>}, {pipeline_mode = #tpu.pipeline_mode<synchronous>, transform_indices = @transform_8, window_bounds = array<i64: 1, 96>}, {pipeline_mode = #tpu.pipeline_mode<synchronous>, transform_indices = @transform_9, window_bounds = array<i64: 1, 96>}, {pipeline_mode = #tpu.pipeline_mode<synchronous>, transform_indices = @transform_10, window_bounds = array<i64: 32, 32>}, {pipeline_mode = #tpu.pipeline_mode<synchronous>, transform_indices = @transform_11, window_bounds = array<i64: 1, 32>}, {transform_indices = @transform_12, window_bounds = array<i64: 1, 8, 32>}, {transform_indices = @transform_13, window_bounds = array<i64: 1, 4, 8, 8>}]} {
    %c0_i32 = arith.constant 0 : i32
    %0 = arith.cmpi eq, %arg1, %c0_i32 : i32
    %1 = arith.extui %0 : i1 to i32
    %c0_i32_0 = arith.constant 0 : i32
    %2 = arith.cmpi ne, %1, %c0_i32_0 : i32
    scf.if %2 {
      %c0_27 = arith.constant 0 : index
      %c0_28 = arith.constant 0 : index
      %c0_29 = arith.constant 0 : index
      %41 = vector.load %arg2[%c0_27, %c0_28, %c0_29] : memref<1x8x32xf32, #tpu.memory_space<vmem>>, vector<1x8x32xf32>
      %42 = vector.shape_cast %41 : vector<1x8x32xf32> to vector<8x32xf32>
      %c0_30 = arith.constant 0 : index
      %c0_31 = arith.constant 0 : index
      %c0_32 = arith.constant 0 : index
      %43 = vector.load %arg3[%c0_30, %c0_31, %c0_32] : memref<1x1x16xf32, #tpu.memory_space<vmem>>, vector<1x1x16xf32>
      %44 = vector.shape_cast %43 : vector<1x1x16xf32> to vector<1x16xf32>
      %c0_33 = arith.constant 0 : index
      %c0_34 = arith.constant 0 : index
      %45 = vector.load %arg4[%c0_33, %c0_34] : memref<32x96xf32, #tpu.memory_space<vmem>>, vector<32x96xf32>
      %cst_35 = arith.constant dense<0.000000e+00> : vector<8x96xf32>
      %46 = tpu.matmul %42, %45, %cst_35 {dimension_numbers = #tpu.dot_dimension_numbers<[1], [0], [0], [1], [0, 0, 1, 1], [], []>, precision = #tpu.contract_precision<fp32>} : vector<8x32xf32>, vector<32x96xf32>, vector<8x96xf32> -> vector<8x96xf32>
      %c0_36 = arith.constant 0 : index
      %c0_37 = arith.constant 0 : index
      %47 = vector.load %arg5[%c0_36, %c0_37] : memref<1x96xf32, #tpu.memory_space<vmem>>, vector<1x96xf32>
      %48 = vector.broadcast %47 : vector<1x96xf32> to vector<8x96xf32>
      %49 = arith.addf %46, %48 : vector<8x96xf32>
      %c0_38 = arith.constant 0 : index
      %c0_39 = arith.constant 0 : index
      %50 = vector.load %arg6[%c0_38, %c0_39] : memref<16x96xf32, #tpu.memory_space<vmem>>, vector<16x96xf32>
      %cst_40 = arith.constant dense<0.000000e+00> : vector<1x96xf32>
      %51 = tpu.matmul %44, %50, %cst_40 {dimension_numbers = #tpu.dot_dimension_numbers<[1], [0], [0], [1], [0, 0, 1, 1], [], []>, precision = #tpu.contract_precision<fp32>} : vector<1x16xf32>, vector<16x96xf32>, vector<1x96xf32> -> vector<1x96xf32>
      %c0_41 = arith.constant 0 : index
      %c0_42 = arith.constant 0 : index
      %52 = vector.load %arg7[%c0_41, %c0_42] : memref<1x96xf32, #tpu.memory_space<vmem>>, vector<1x96xf32>
      %53 = arith.addf %51, %52 : vector<1x96xf32>
      %c0_43 = arith.constant 0 : index
      %c0_44 = arith.constant 0 : index
      %54 = vector.load %arg8[%c0_43, %c0_44] : memref<1x96xf32, #tpu.memory_space<vmem>>, vector<1x96xf32>
      %c0_45 = arith.constant 0 : index
      %c0_46 = arith.constant 0 : index
      %55 = vector.load %arg9[%c0_45, %c0_46] : memref<1x96xf32, #tpu.memory_space<vmem>>, vector<1x96xf32>
      %c0_47 = arith.constant 0 : index
      %c0_48 = arith.constant 0 : index
      %56 = vector.load %arg10[%c0_47, %c0_48] : memref<1x96xf32, #tpu.memory_space<vmem>>, vector<1x96xf32>
      %c0_49 = arith.constant 0 : index
      %c0_50 = arith.constant 0 : index
      %57 = vector.load %arg11[%c0_49, %c0_50] : memref<1x96xf32, #tpu.memory_space<vmem>>, vector<1x96xf32>
      %58 = vector.extract_strided_slice %49 {offsets = [0, 0], sizes = [8, 32], strides = [1, 1]} : vector<8x96xf32> to vector<8x32xf32>
      %59 = vector.extract_strided_slice %54 {offsets = [0, 0], sizes = [1, 32], strides = [1, 1]} : vector<1x96xf32> to vector<1x32xf32>
      %60 = vector.extract_strided_slice %55 {offsets = [0, 0], sizes = [1, 32], strides = [1, 1]} : vector<1x96xf32> to vector<1x32xf32>
      %cst_51 = arith.constant dense<0.000000e+00> : vector<8xf32>
      %61 = vector.multi_reduction <add>, %58, %cst_51 [1] : vector<8x32xf32> to vector<8xf32>
      %62 = vector.shape_cast %61 : vector<8xf32> to vector<8x1xf32>
      %cst_52 = arith.constant 3.200000e+01 : f32
      %63 = vector.broadcast %cst_52 : f32 to vector<8x1xf32>
      %64 = arith.divf %62, %63 : vector<8x1xf32>
      %65 = vector.broadcast %64 : vector<8x1xf32> to vector<8x32xf32>
      %66 = arith.subf %58, %65 : vector<8x32xf32>
      %67 = arith.mulf %66, %66 : vector<8x32xf32>
      %cst_53 = arith.constant dense<0.000000e+00> : vector<8xf32>
      %68 = vector.multi_reduction <add>, %67, %cst_53 [1] : vector<8x32xf32> to vector<8xf32>
      %69 = vector.shape_cast %68 : vector<8xf32> to vector<8x1xf32>
      %cst_54 = arith.constant 3.200000e+01 : f32
      %70 = vector.broadcast %cst_54 : f32 to vector<8x1xf32>
      %71 = arith.divf %69, %70 : vector<8x1xf32>
      %72 = vector.broadcast %64 : vector<8x1xf32> to vector<8x32xf32>
      %73 = arith.subf %58, %72 : vector<8x32xf32>
      %cst_55 = arith.constant 9.99999974E-6 : f32
      %74 = vector.broadcast %cst_55 : f32 to vector<8x1xf32>
      %75 = arith.addf %71, %74 : vector<8x1xf32>
      %76 = math.rsqrt %75 : vector<8x1xf32>
      %77 = vector.broadcast %76 : vector<8x1xf32> to vector<8x32xf32>
      %78 = arith.mulf %73, %77 : vector<8x32xf32>
      %79 = vector.broadcast %59 : vector<1x32xf32> to vector<8x32xf32>
      %80 = arith.mulf %78, %79 : vector<8x32xf32>
      %81 = vector.broadcast %60 : vector<1x32xf32> to vector<8x32xf32>
      %82 = arith.addf %80, %81 : vector<8x32xf32>
      %83 = vector.extract_strided_slice %53 {offsets = [0, 0], sizes = [1, 32], strides = [1, 1]} : vector<1x96xf32> to vector<1x32xf32>
      %84 = vector.extract_strided_slice %56 {offsets = [0, 0], sizes = [1, 32], strides = [1, 1]} : vector<1x96xf32> to vector<1x32xf32>
      %85 = vector.extract_strided_slice %57 {offsets = [0, 0], sizes = [1, 32], strides = [1, 1]} : vector<1x96xf32> to vector<1x32xf32>
      %cst_56 = arith.constant dense<0.000000e+00> : vector<1xf32>
      %86 = vector.multi_reduction <add>, %83, %cst_56 [1] : vector<1x32xf32> to vector<1xf32>
      %87 = vector.shape_cast %86 : vector<1xf32> to vector<1x1xf32>
      %cst_57 = arith.constant 3.200000e+01 : f32
      %88 = vector.broadcast %cst_57 : f32 to vector<1x1xf32>
      %89 = arith.divf %87, %88 : vector<1x1xf32>
      %90 = vector.broadcast %89 : vector<1x1xf32> to vector<1x32xf32>
      %91 = arith.subf %83, %90 : vector<1x32xf32>
      %92 = arith.mulf %91, %91 : vector<1x32xf32>
      %cst_58 = arith.constant dense<0.000000e+00> : vector<1xf32>
      %93 = vector.multi_reduction <add>, %92, %cst_58 [1] : vector<1x32xf32> to vector<1xf32>
      %94 = vector.shape_cast %93 : vector<1xf32> to vector<1x1xf32>
      %cst_59 = arith.constant 3.200000e+01 : f32
      %95 = vector.broadcast %cst_59 : f32 to vector<1x1xf32>
      %96 = arith.divf %94, %95 : vector<1x1xf32>
      %97 = vector.broadcast %89 : vector<1x1xf32> to vector<1x32xf32>
      %98 = arith.subf %83, %97 : vector<1x32xf32>
      %cst_60 = arith.constant 9.99999974E-6 : f32
      %99 = vector.broadcast %cst_60 : f32 to vector<1x1xf32>
      %100 = arith.addf %96, %99 : vector<1x1xf32>
      %101 = math.rsqrt %100 : vector<1x1xf32>
      %102 = vector.broadcast %101 : vector<1x1xf32> to vector<1x32xf32>
      %103 = arith.mulf %98, %102 : vector<1x32xf32>
      %104 = arith.mulf %103, %84 : vector<1x32xf32>
      %105 = arith.addf %104, %85 : vector<1x32xf32>
      %106 = vector.shape_cast %82 : vector<8x32xf32> to vector<1x8x32xf32>
      %107 = vector.shape_cast %105 : vector<1x32xf32> to vector<1x1x32xf32>
      %108 = vector.broadcast %107 : vector<1x1x32xf32> to vector<1x8x32xf32>
      %109 = arith.addf %106, %108 : vector<1x8x32xf32>
      %110 = vector.extract_strided_slice %109 {offsets = [0, 0, 0], sizes = [1, 8, 8], strides = [1, 1, 1]} : vector<1x8x32xf32> to vector<1x8x8xf32>
      %c0_61 = arith.constant 0 : index
      %c0_62 = arith.constant 0 : index
      %c0_63 = arith.constant 0 : index
      %c0_64 = arith.constant 0 : index
      %111 = vector.load %arg16[%c0_61, %c0_62, %c0_63, %c0_64] : memref<1x4x8x8xf32, #tpu.memory_space<vmem>>, vector<1x1x8x8xf32>
      %112 = vector.shape_cast %111 : vector<1x1x8x8xf32> to vector<1x8x8xf32>
      %113 = vector.shape_cast %110 : vector<1x8x8xf32> to vector<1x1x8x8xf32>
      tpu.vector_store %arg16[%c0_61, %c0_62, %c0_63, %c0_64], %113 {strides = array<i32>} : memref<1x4x8x8xf32, #tpu.memory_space<vmem>>, vector<1x1x8x8xf32>,
      %114 = vector.extract_strided_slice %109 {offsets = [0, 0, 8], sizes = [1, 8, 8], strides = [1, 1, 1]} : vector<1x8x32xf32> to vector<1x8x8xf32>
      %c0_65 = arith.constant 0 : index
      %c1 = arith.constant 1 : index
      %c0_66 = arith.constant 0 : index
      %c0_67 = arith.constant 0 : index
      %115 = vector.load %arg16[%c0_65, %c1, %c0_66, %c0_67] : memref<1x4x8x8xf32, #tpu.memory_space<vmem>>, vector<1x1x8x8xf32>
      %116 = vector.shape_cast %115 : vector<1x1x8x8xf32> to vector<1x8x8xf32>
      %117 = vector.shape_cast %114 : vector<1x8x8xf32> to vector<1x1x8x8xf32>
      tpu.vector_store %arg16[%c0_65, %c1, %c0_66, %c0_67], %117 {strides = array<i32>} : memref<1x4x8x8xf32, #tpu.memory_space<vmem>>, vector<1x1x8x8xf32>,
      %118 = vector.extract_strided_slice %109 {offsets = [0, 0, 16], sizes = [1, 8, 8], strides = [1, 1, 1]} : vector<1x8x32xf32> to vector<1x8x8xf32>
      %c0_68 = arith.constant 0 : index
      %c2 = arith.constant 2 : index
      %c0_69 = arith.constant 0 : index
      %c0_70 = arith.constant 0 : index
      %119 = vector.load %arg16[%c0_68, %c2, %c0_69, %c0_70] : memref<1x4x8x8xf32, #tpu.memory_space<vmem>>, vector<1x1x8x8xf32>
      %120 = vector.shape_cast %119 : vector<1x1x8x8xf32> to vector<1x8x8xf32>
      %121 = vector.shape_cast %118 : vector<1x8x8xf32> to vector<1x1x8x8xf32>
      tpu.vector_store %arg16[%c0_68, %c2, %c0_69, %c0_70], %121 {strides = array<i32>} : memref<1x4x8x8xf32, #tpu.memory_space<vmem>>, vector<1x1x8x8xf32>,
      %122 = vector.extract_strided_slice %109 {offsets = [0, 0, 24], sizes = [1, 8, 8], strides = [1, 1, 1]} : vector<1x8x32xf32> to vector<1x8x8xf32>
      %c0_71 = arith.constant 0 : index
      %c3 = arith.constant 3 : index
      %c0_72 = arith.constant 0 : index
      %c0_73 = arith.constant 0 : index
      %123 = vector.load %arg16[%c0_71, %c3, %c0_72, %c0_73] : memref<1x4x8x8xf32, #tpu.memory_space<vmem>>, vector<1x1x8x8xf32>
      %124 = vector.shape_cast %123 : vector<1x1x8x8xf32> to vector<1x8x8xf32>
      %125 = vector.shape_cast %122 : vector<1x8x8xf32> to vector<1x1x8x8xf32>
      tpu.vector_store %arg16[%c0_71, %c3, %c0_72, %c0_73], %125 {strides = array<i32>} : memref<1x4x8x8xf32, #tpu.memory_space<vmem>>, vector<1x1x8x8xf32>,
      %126 = vector.extract_strided_slice %49 {offsets = [0, 32], sizes = [8, 32], strides = [1, 1]} : vector<8x96xf32> to vector<8x32xf32>
      %127 = vector.extract_strided_slice %54 {offsets = [0, 32], sizes = [1, 32], strides = [1, 1]} : vector<1x96xf32> to vector<1x32xf32>
      %128 = vector.extract_strided_slice %55 {offsets = [0, 32], sizes = [1, 32], strides = [1, 1]} : vector<1x96xf32> to vector<1x32xf32>
      %cst_74 = arith.constant dense<0.000000e+00> : vector<8xf32>
      %129 = vector.multi_reduction <add>, %126, %cst_74 [1] : vector<8x32xf32> to vector<8xf32>
      %130 = vector.shape_cast %129 : vector<8xf32> to vector<8x1xf32>
      %cst_75 = arith.constant 3.200000e+01 : f32
      %131 = vector.broadcast %cst_75 : f32 to vector<8x1xf32>
      %132 = arith.divf %130, %131 : vector<8x1xf32>
      %133 = vector.broadcast %132 : vector<8x1xf32> to vector<8x32xf32>
      %134 = arith.subf %126, %133 : vector<8x32xf32>
      %135 = arith.mulf %134, %134 : vector<8x32xf32>
      %cst_76 = arith.constant dense<0.000000e+00> : vector<8xf32>
      %136 = vector.multi_reduction <add>, %135, %cst_76 [1] : vector<8x32xf32> to vector<8xf32>
      %137 = vector.shape_cast %136 : vector<8xf32> to vector<8x1xf32>
      %cst_77 = arith.constant 3.200000e+01 : f32
      %138 = vector.broadcast %cst_77 : f32 to vector<8x1xf32>
      %139 = arith.divf %137, %138 : vector<8x1xf32>
      %140 = vector.broadcast %132 : vector<8x1xf32> to vector<8x32xf32>
      %141 = arith.subf %126, %140 : vector<8x32xf32>
      %cst_78 = arith.constant 9.99999974E-6 : f32
      %142 = vector.broadcast %cst_78 : f32 to vector<8x1xf32>
      %143 = arith.addf %139, %142 : vector<8x1xf32>
      %144 = math.rsqrt %143 : vector<8x1xf32>
      %145 = vector.broadcast %144 : vector<8x1xf32> to vector<8x32xf32>
      %146 = arith.mulf %141, %145 : vector<8x32xf32>
      %147 = vector.broadcast %127 : vector<1x32xf32> to vector<8x32xf32>
      %148 = arith.mulf %146, %147 : vector<8x32xf32>
      %149 = vector.broadcast %128 : vector<1x32xf32> to vector<8x32xf32>
      %150 = arith.addf %148, %149 : vector<8x32xf32>
      %151 = vector.extract_strided_slice %53 {offsets = [0, 32], sizes = [1, 32], strides = [1, 1]} : vector<1x96xf32> to vector<1x32xf32>
      %152 = vector.extract_strided_slice %56 {offsets = [0, 32], sizes = [1, 32], strides = [1, 1]} : vector<1x96xf32> to vector<1x32xf32>
      %153 = vector.extract_strided_slice %57 {offsets = [0, 32], sizes = [1, 32], strides = [1, 1]} : vector<1x96xf32> to vector<1x32xf32>
      %cst_79 = arith.constant dense<0.000000e+00> : vector<1xf32>
      %154 = vector.multi_reduction <add>, %151, %cst_79 [1] : vector<1x32xf32> to vector<1xf32>
      %155 = vector.shape_cast %154 : vector<1xf32> to vector<1x1xf32>
      %cst_80 = arith.constant 3.200000e+01 : f32
      %156 = vector.broadcast %cst_80 : f32 to vector<1x1xf32>
      %157 = arith.divf %155, %156 : vector<1x1xf32>
      %158 = vector.broadcast %157 : vector<1x1xf32> to vector<1x32xf32>
      %159 = arith.subf %151, %158 : vector<1x32xf32>
      %160 = arith.mulf %159, %159 : vector<1x32xf32>
      %cst_81 = arith.constant dense<0.000000e+00> : vector<1xf32>
      %161 = vector.multi_reduction <add>, %160, %cst_81 [1] : vector<1x32xf32> to vector<1xf32>
      %162 = vector.shape_cast %161 : vector<1xf32> to vector<1x1xf32>
      %cst_82 = arith.constant 3.200000e+01 : f32
      %163 = vector.broadcast %cst_82 : f32 to vector<1x1xf32>
      %164 = arith.divf %162, %163 : vector<1x1xf32>
      %165 = vector.broadcast %157 : vector<1x1xf32> to vector<1x32xf32>
      %166 = arith.subf %151, %165 : vector<1x32xf32>
      %cst_83 = arith.constant 9.99999974E-6 : f32
      %167 = vector.broadcast %cst_83 : f32 to vector<1x1xf32>
      %168 = arith.addf %164, %167 : vector<1x1xf32>
      %169 = math.rsqrt %168 : vector<1x1xf32>
      %170 = vector.broadcast %169 : vector<1x1xf32> to vector<1x32xf32>
      %171 = arith.mulf %166, %170 : vector<1x32xf32>
      %172 = arith.mulf %171, %152 : vector<1x32xf32>
      %173 = arith.addf %172, %153 : vector<1x32xf32>
      %174 = vector.shape_cast %150 : vector<8x32xf32> to vector<1x8x32xf32>
      %175 = vector.shape_cast %173 : vector<1x32xf32> to vector<1x1x32xf32>
      %176 = vector.broadcast %175 : vector<1x1x32xf32> to vector<1x8x32xf32>
      %177 = arith.addf %174, %176 : vector<1x8x32xf32>
      %178 = vector.extract_strided_slice %177 {offsets = [0, 0, 0], sizes = [1, 8, 8], strides = [1, 1, 1]} : vector<1x8x32xf32> to vector<1x8x8xf32>
      %c0_84 = arith.constant 0 : index
      %c0_85 = arith.constant 0 : index
      %c0_86 = arith.constant 0 : index
      %c0_87 = arith.constant 0 : index
      %179 = vector.load %arg17[%c0_84, %c0_85, %c0_86, %c0_87] : memref<1x4x8x8xf32, #tpu.memory_space<vmem>>, vector<1x1x8x8xf32>
      %180 = vector.shape_cast %179 : vector<1x1x8x8xf32> to vector<1x8x8xf32>
      %181 = vector.shape_cast %178 : vector<1x8x8xf32> to vector<1x1x8x8xf32>
      tpu.vector_store %arg17[%c0_84, %c0_85, %c0_86, %c0_87], %181 {strides = array<i32>} : memref<1x4x8x8xf32, #tpu.memory_space<vmem>>, vector<1x1x8x8xf32>,
      %182 = vector.extract_strided_slice %177 {offsets = [0, 0, 8], sizes = [1, 8, 8], strides = [1, 1, 1]} : vector<1x8x32xf32> to vector<1x8x8xf32>
      %c0_88 = arith.constant 0 : index
      %c1_89 = arith.constant 1 : index
      %c0_90 = arith.constant 0 : index
      %c0_91 = arith.constant 0 : index
      %183 = vector.load %arg17[%c0_88, %c1_89, %c0_90, %c0_91] : memref<1x4x8x8xf32, #tpu.memory_space<vmem>>, vector<1x1x8x8xf32>
      %184 = vector.shape_cast %183 : vector<1x1x8x8xf32> to vector<1x8x8xf32>
      %185 = vector.shape_cast %182 : vector<1x8x8xf32> to vector<1x1x8x8xf32>
      tpu.vector_store %arg17[%c0_88, %c1_89, %c0_90, %c0_91], %185 {strides = array<i32>} : memref<1x4x8x8xf32, #tpu.memory_space<vmem>>, vector<1x1x8x8xf32>,
      %186 = vector.extract_strided_slice %177 {offsets = [0, 0, 16], sizes = [1, 8, 8], strides = [1, 1, 1]} : vector<1x8x32xf32> to vector<1x8x8xf32>
      %c0_92 = arith.constant 0 : index
      %c2_93 = arith.constant 2 : index
      %c0_94 = arith.constant 0 : index
      %c0_95 = arith.constant 0 : index
      %187 = vector.load %arg17[%c0_92, %c2_93, %c0_94, %c0_95] : memref<1x4x8x8xf32, #tpu.memory_space<vmem>>, vector<1x1x8x8xf32>
      %188 = vector.shape_cast %187 : vector<1x1x8x8xf32> to vector<1x8x8xf32>
      %189 = vector.shape_cast %186 : vector<1x8x8xf32> to vector<1x1x8x8xf32>
      tpu.vector_store %arg17[%c0_92, %c2_93, %c0_94, %c0_95], %189 {strides = array<i32>} : memref<1x4x8x8xf32, #tpu.memory_space<vmem>>, vector<1x1x8x8xf32>,
      %190 = vector.extract_strided_slice %177 {offsets = [0, 0, 24], sizes = [1, 8, 8], strides = [1, 1, 1]} : vector<1x8x32xf32> to vector<1x8x8xf32>
      %c0_96 = arith.constant 0 : index
      %c3_97 = arith.constant 3 : index
      %c0_98 = arith.constant 0 : index
      %c0_99 = arith.constant 0 : index
      %191 = vector.load %arg17[%c0_96, %c3_97, %c0_98, %c0_99] : memref<1x4x8x8xf32, #tpu.memory_space<vmem>>, vector<1x1x8x8xf32>
      %192 = vector.shape_cast %191 : vector<1x1x8x8xf32> to vector<1x8x8xf32>
      %193 = vector.shape_cast %190 : vector<1x8x8xf32> to vector<1x1x8x8xf32>
      tpu.vector_store %arg17[%c0_96, %c3_97, %c0_98, %c0_99], %193 {strides = array<i32>} : memref<1x4x8x8xf32, #tpu.memory_space<vmem>>, vector<1x1x8x8xf32>,
      %194 = vector.extract_strided_slice %49 {offsets = [0, 64], sizes = [8, 32], strides = [1, 1]} : vector<8x96xf32> to vector<8x32xf32>
      %195 = vector.extract_strided_slice %54 {offsets = [0, 64], sizes = [1, 32], strides = [1, 1]} : vector<1x96xf32> to vector<1x32xf32>
      %196 = vector.extract_strided_slice %55 {offsets = [0, 64], sizes = [1, 32], strides = [1, 1]} : vector<1x96xf32> to vector<1x32xf32>
      %cst_100 = arith.constant dense<0.000000e+00> : vector<8xf32>
      %197 = vector.multi_reduction <add>, %194, %cst_100 [1] : vector<8x32xf32> to vector<8xf32>
      %198 = vector.shape_cast %197 : vector<8xf32> to vector<8x1xf32>
      %cst_101 = arith.constant 3.200000e+01 : f32
      %199 = vector.broadcast %cst_101 : f32 to vector<8x1xf32>
      %200 = arith.divf %198, %199 : vector<8x1xf32>
      %201 = vector.broadcast %200 : vector<8x1xf32> to vector<8x32xf32>
      %202 = arith.subf %194, %201 : vector<8x32xf32>
      %203 = arith.mulf %202, %202 : vector<8x32xf32>
      %cst_102 = arith.constant dense<0.000000e+00> : vector<8xf32>
      %204 = vector.multi_reduction <add>, %203, %cst_102 [1] : vector<8x32xf32> to vector<8xf32>
      %205 = vector.shape_cast %204 : vector<8xf32> to vector<8x1xf32>
      %cst_103 = arith.constant 3.200000e+01 : f32
      %206 = vector.broadcast %cst_103 : f32 to vector<8x1xf32>
      %207 = arith.divf %205, %206 : vector<8x1xf32>
      %208 = vector.broadcast %200 : vector<8x1xf32> to vector<8x32xf32>
      %209 = arith.subf %194, %208 : vector<8x32xf32>
      %cst_104 = arith.constant 9.99999974E-6 : f32
      %210 = vector.broadcast %cst_104 : f32 to vector<8x1xf32>
      %211 = arith.addf %207, %210 : vector<8x1xf32>
      %212 = math.rsqrt %211 : vector<8x1xf32>
      %213 = vector.broadcast %212 : vector<8x1xf32> to vector<8x32xf32>
      %214 = arith.mulf %209, %213 : vector<8x32xf32>
      %215 = vector.broadcast %195 : vector<1x32xf32> to vector<8x32xf32>
      %216 = arith.mulf %214, %215 : vector<8x32xf32>
      %217 = vector.broadcast %196 : vector<1x32xf32> to vector<8x32xf32>
      %218 = arith.addf %216, %217 : vector<8x32xf32>
      %219 = vector.extract_strided_slice %53 {offsets = [0, 64], sizes = [1, 32], strides = [1, 1]} : vector<1x96xf32> to vector<1x32xf32>
      %220 = vector.extract_strided_slice %56 {offsets = [0, 64], sizes = [1, 32], strides = [1, 1]} : vector<1x96xf32> to vector<1x32xf32>
      %221 = vector.extract_strided_slice %57 {offsets = [0, 64], sizes = [1, 32], strides = [1, 1]} : vector<1x96xf32> to vector<1x32xf32>
      %cst_105 = arith.constant dense<0.000000e+00> : vector<1xf32>
      %222 = vector.multi_reduction <add>, %219, %cst_105 [1] : vector<1x32xf32> to vector<1xf32>
      %223 = vector.shape_cast %222 : vector<1xf32> to vector<1x1xf32>
      %cst_106 = arith.constant 3.200000e+01 : f32
      %224 = vector.broadcast %cst_106 : f32 to vector<1x1xf32>
      %225 = arith.divf %223, %224 : vector<1x1xf32>
      %226 = vector.broadcast %225 : vector<1x1xf32> to vector<1x32xf32>
      %227 = arith.subf %219, %226 : vector<1x32xf32>
      %228 = arith.mulf %227, %227 : vector<1x32xf32>
      %cst_107 = arith.constant dense<0.000000e+00> : vector<1xf32>
      %229 = vector.multi_reduction <add>, %228, %cst_107 [1] : vector<1x32xf32> to vector<1xf32>
      %230 = vector.shape_cast %229 : vector<1xf32> to vector<1x1xf32>
      %cst_108 = arith.constant 3.200000e+01 : f32
      %231 = vector.broadcast %cst_108 : f32 to vector<1x1xf32>
      %232 = arith.divf %230, %231 : vector<1x1xf32>
      %233 = vector.broadcast %225 : vector<1x1xf32> to vector<1x32xf32>
      %234 = arith.subf %219, %233 : vector<1x32xf32>
      %cst_109 = arith.constant 9.99999974E-6 : f32
      %235 = vector.broadcast %cst_109 : f32 to vector<1x1xf32>
      %236 = arith.addf %232, %235 : vector<1x1xf32>
      %237 = math.rsqrt %236 : vector<1x1xf32>
      %238 = vector.broadcast %237 : vector<1x1xf32> to vector<1x32xf32>
      %239 = arith.mulf %234, %238 : vector<1x32xf32>
      %240 = arith.mulf %239, %220 : vector<1x32xf32>
      %241 = arith.addf %240, %221 : vector<1x32xf32>
      %242 = vector.shape_cast %218 : vector<8x32xf32> to vector<1x8x32xf32>
      %243 = vector.shape_cast %241 : vector<1x32xf32> to vector<1x1x32xf32>
      %244 = vector.broadcast %243 : vector<1x1x32xf32> to vector<1x8x32xf32>
      %245 = arith.addf %242, %244 : vector<1x8x32xf32>
      %246 = vector.extract_strided_slice %245 {offsets = [0, 0, 0], sizes = [1, 8, 8], strides = [1, 1, 1]} : vector<1x8x32xf32> to vector<1x8x8xf32>
      %c0_110 = arith.constant 0 : index
      %c0_111 = arith.constant 0 : index
      %c0_112 = arith.constant 0 : index
      %c0_113 = arith.constant 0 : index
      %247 = vector.load %arg18[%c0_110, %c0_111, %c0_112, %c0_113] : memref<1x4x8x8xf32, #tpu.memory_space<vmem>>, vector<1x1x8x8xf32>
      %248 = vector.shape_cast %247 : vector<1x1x8x8xf32> to vector<1x8x8xf32>
      %249 = vector.shape_cast %246 : vector<1x8x8xf32> to vector<1x1x8x8xf32>
      tpu.vector_store %arg18[%c0_110, %c0_111, %c0_112, %c0_113], %249 {strides = array<i32>} : memref<1x4x8x8xf32, #tpu.memory_space<vmem>>, vector<1x1x8x8xf32>,
      %250 = vector.extract_strided_slice %245 {offsets = [0, 0, 8], sizes = [1, 8, 8], strides = [1, 1, 1]} : vector<1x8x32xf32> to vector<1x8x8xf32>
      %c0_114 = arith.constant 0 : index
      %c1_115 = arith.constant 1 : index
      %c0_116 = arith.constant 0 : index
      %c0_117 = arith.constant 0 : index
      %251 = vector.load %arg18[%c0_114, %c1_115, %c0_116, %c0_117] : memref<1x4x8x8xf32, #tpu.memory_space<vmem>>, vector<1x1x8x8xf32>
      %252 = vector.shape_cast %251 : vector<1x1x8x8xf32> to vector<1x8x8xf32>
      %253 = vector.shape_cast %250 : vector<1x8x8xf32> to vector<1x1x8x8xf32>
      tpu.vector_store %arg18[%c0_114, %c1_115, %c0_116, %c0_117], %253 {strides = array<i32>} : memref<1x4x8x8xf32, #tpu.memory_space<vmem>>, vector<1x1x8x8xf32>,
      %254 = vector.extract_strided_slice %245 {offsets = [0, 0, 16], sizes = [1, 8, 8], strides = [1, 1, 1]} : vector<1x8x32xf32> to vector<1x8x8xf32>
      %c0_118 = arith.constant 0 : index
      %c2_119 = arith.constant 2 : index
      %c0_120 = arith.constant 0 : index
      %c0_121 = arith.constant 0 : index
      %255 = vector.load %arg18[%c0_118, %c2_119, %c0_120, %c0_121] : memref<1x4x8x8xf32, #tpu.memory_space<vmem>>, vector<1x1x8x8xf32>
      %256 = vector.shape_cast %255 : vector<1x1x8x8xf32> to vector<1x8x8xf32>
      %257 = vector.shape_cast %254 : vector<1x8x8xf32> to vector<1x1x8x8xf32>
      tpu.vector_store %arg18[%c0_118, %c2_119, %c0_120, %c0_121], %257 {strides = array<i32>} : memref<1x4x8x8xf32, #tpu.memory_space<vmem>>, vector<1x1x8x8xf32>,
      %258 = vector.extract_strided_slice %245 {offsets = [0, 0, 24], sizes = [1, 8, 8], strides = [1, 1, 1]} : vector<1x8x32xf32> to vector<1x8x8xf32>
      %c0_122 = arith.constant 0 : index
      %c3_123 = arith.constant 3 : index
      %c0_124 = arith.constant 0 : index
      %c0_125 = arith.constant 0 : index
      %259 = vector.load %arg18[%c0_122, %c3_123, %c0_124, %c0_125] : memref<1x4x8x8xf32, #tpu.memory_space<vmem>>, vector<1x1x8x8xf32>
      %260 = vector.shape_cast %259 : vector<1x1x8x8xf32> to vector<1x8x8xf32>
      %261 = vector.shape_cast %258 : vector<1x8x8xf32> to vector<1x1x8x8xf32>
      tpu.vector_store %arg18[%c0_122, %c3_123, %c0_124, %c0_125], %261 {strides = array<i32>} : memref<1x4x8x8xf32, #tpu.memory_space<vmem>>, vector<1x1x8x8xf32>,
    } else {
    }
    %c0 = arith.constant 0 : index
    %c0_1 = arith.constant 0 : index
    %c0_2 = arith.constant 0 : index
    %c0_3 = arith.constant 0 : index
    %3 = vector.load %arg16[%c0, %c0_1, %c0_2, %c0_3] : memref<1x4x8x8xf32, #tpu.memory_space<vmem>>, vector<1x4x8x8xf32>
    %c0_4 = arith.constant 0 : index
    %c0_5 = arith.constant 0 : index
    %c0_6 = arith.constant 0 : index
    %c0_7 = arith.constant 0 : index
    %4 = vector.load %arg17[%c0_4, %c0_5, %c0_6, %c0_7] : memref<1x4x8x8xf32, #tpu.memory_space<vmem>>, vector<1x4x8x8xf32>
    %c0_8 = arith.constant 0 : index
    %c0_9 = arith.constant 0 : index
    %c0_10 = arith.constant 0 : index
    %c0_11 = arith.constant 0 : index
    %5 = vector.load %arg18[%c0_8, %c0_9, %c0_10, %c0_11] : memref<1x4x8x8xf32, #tpu.memory_space<vmem>>, vector<1x4x8x8xf32>
    %6 = vector.shape_cast %3 : vector<1x4x8x8xf32> to vector<4x8x8xf32>
    %7 = vector.shape_cast %4 : vector<1x4x8x8xf32> to vector<4x8x8xf32>
    %8 = vector.shape_cast %5 : vector<1x4x8x8xf32> to vector<4x8x8xf32>
    "tpu.trace_start"() <{level = 10 : i32, message = "nqd,nkd->nqk"}> : () -> ()
    %cst = arith.constant dense<0.000000e+00> : vector<4x8x8xf32>
    %9 = tpu.matmul %6, %7, %cst {dimension_numbers = #tpu.dot_dimension_numbers<[2], [2], [1], [1], [0, 0, 0, 1, 1, 1], [0], [0]>, precision = #tpu.contract_precision<fp32>} : vector<4x8x8xf32>, vector<4x8x8xf32>, vector<4x8x8xf32> -> vector<4x8x8xf32>
    "tpu.trace_stop"() : () -> ()
    %cst_12 = arith.constant dense<0xFF800000> : vector<4x8xf32>
    %10 = vector.multi_reduction <maximumf>, %9, %cst_12 [2] : vector<4x8x8xf32> to vector<4x8xf32>
    %11 = vector.shape_cast %10 : vector<4x8xf32> to vector<4x8x1xf32>
    %12 = vector.broadcast %11 : vector<4x8x1xf32> to vector<4x8x8xf32>
    %13 = arith.subf %9, %12 : vector<4x8x8xf32>
    %14 = math.exp %13 : vector<4x8x8xf32>
    %cst_13 = arith.constant dense<0.000000e+00> : vector<4x8xf32>
    %15 = vector.multi_reduction <add>, %14, %cst_13 [2] : vector<4x8x8xf32> to vector<4x8xf32>
    %16 = vector.shape_cast %15 : vector<4x8xf32> to vector<4x8x1xf32>
    %17 = tpu.reciprocal %16 : vector<4x8x1xf32> -> vector<4x8x1xf32>
    %18 = vector.broadcast %17 : vector<4x8x1xf32> to vector<4x8x8xf32>
    %19 = arith.mulf %14, %18 : vector<4x8x8xf32>
    %20 = vector.shape_cast %19 : vector<4x8x8xf32> to vector<1x4x8x8xf32>
    %c0_14 = arith.constant 0 : index
    %c0_15 = arith.constant 0 : index
    %c0_16 = arith.constant 0 : index
    %c0_17 = arith.constant 0 : index
    %21 = vector.load %arg15[%c0_14, %c0_15, %c0_16, %c0_17] : memref<1x4x8x8xf32, #tpu.memory_space<vmem>>, vector<1x4x8x8xf32>
    tpu.vector_store %arg15[%c0_14, %c0_15, %c0_16, %c0_17], %20 {strides = array<i32>} : memref<1x4x8x8xf32, #tpu.memory_space<vmem>>, vector<1x4x8x8xf32>,
    "tpu.trace_start"() <{level = 10 : i32, message = "nqk,nkd->nqd"}> : () -> ()
    %cst_18 = arith.constant dense<0.000000e+00> : vector<4x8x8xf32>
    %22 = tpu.matmul %19, %8, %cst_18 {dimension_numbers = #tpu.dot_dimension_numbers<[2], [1], [1], [2], [0, 0, 0, 1, 1, 2], [0], [0]>, precision = #tpu.contract_precision<fp32>} : vector<4x8x8xf32>, vector<4x8x8xf32>, vector<4x8x8xf32> -> vector<4x8x8xf32>
    "tpu.trace_stop"() : () -> ()
    %23 = vector.shape_cast %22 : vector<4x8x8xf32> to vector<1x4x8x8xf32>
    %24 = vector.extract_strided_slice %23 {offsets = [0, 0, 0, 0], sizes = [1, 1, 8, 8], strides = [1, 1, 1, 1]} : vector<1x4x8x8xf32> to vector<1x1x8x8xf32>
    %25 = vector.shape_cast %24 : vector<1x1x8x8xf32> to vector<1x8x8xf32>
    %26 = vector.extract_strided_slice %23 {offsets = [0, 1, 0, 0], sizes = [1, 1, 8, 8], strides = [1, 1, 1, 1]} : vector<1x4x8x8xf32> to vector<1x1x8x8xf32>
    %27 = vector.shape_cast %26 : vector<1x1x8x8xf32> to vector<1x8x8xf32>
    %28 = vector.extract_strided_slice %23 {offsets = [0, 2, 0, 0], sizes = [1, 1, 8, 8], strides = [1, 1, 1, 1]} : vector<1x4x8x8xf32> to vector<1x1x8x8xf32>
    %29 = vector.shape_cast %28 : vector<1x1x8x8xf32> to vector<1x8x8xf32>
    %30 = vector.extract_strided_slice %23 {offsets = [0, 3, 0, 0], sizes = [1, 1, 8, 8], strides = [1, 1, 1, 1]} : vector<1x4x8x8xf32> to vector<1x1x8x8xf32>
    %31 = vector.shape_cast %30 : vector<1x1x8x8xf32> to vector<1x8x8xf32>
    %32 = tpu.concatenate %25, %27, %29, %31 in 2 : vector<1x8x8xf32>, vector<1x8x8xf32>, vector<1x8x8xf32>, vector<1x8x8xf32> -> vector<1x8x32xf32>
    %33 = vector.shape_cast %32 : vector<1x8x32xf32> to vector<8x32xf32>
    %c0_19 = arith.constant 0 : index
    %c0_20 = arith.constant 0 : index
    %34 = vector.load %arg12[%c0_19, %c0_20] : memref<32x32xf32, #tpu.memory_space<vmem>>, vector<32x32xf32>
    %cst_21 = arith.constant dense<0.000000e+00> : vector<8x32xf32>
    %35 = tpu.matmul %33, %34, %cst_21 {dimension_numbers = #tpu.dot_dimension_numbers<[1], [0], [0], [1], [0, 0, 1, 1], [], []>, precision = #tpu.contract_precision<fp32>} : vector<8x32xf32>, vector<32x32xf32>, vector<8x32xf32> -> vector<8x32xf32>
    %c0_22 = arith.constant 0 : index
    %c0_23 = arith.constant 0 : index
    %36 = vector.load %arg13[%c0_22, %c0_23] : memref<1x32xf32, #tpu.memory_space<vmem>>, vector<1x32xf32>
    %37 = vector.broadcast %36 : vector<1x32xf32> to vector<8x32xf32>
    %38 = arith.addf %35, %37 : vector<8x32xf32>
    %39 = vector.shape_cast %38 : vector<8x32xf32> to vector<1x8x32xf32>
    %c0_24 = arith.constant 0 : index
    %c0_25 = arith.constant 0 : index
    %c0_26 = arith.constant 0 : index
    %40 = vector.load %arg14[%c0_24, %c0_25, %c0_26] : memref<1x8x32xf32, #tpu.memory_space<vmem>>, vector<1x8x32xf32>
    tpu.vector_store %arg14[%c0_24, %c0_25, %c0_26], %39 {strides = array<i32>} : memref<1x8x32xf32, #tpu.memory_space<vmem>>, vector<1x8x32xf32>,
    return
  }
  func.func @transform_0(%arg0: i32, %arg1: i32) -> (i32, i32, i32) {
    %c0_i32 = arith.constant 0 : i32
    %c0_i32_0 = arith.constant 0 : i32
    %c0_i32_1 = arith.constant 0 : i32
    return %arg0, %c0_i32, %c0_i32_0 : i32, i32, i32
  }
  func.func @transform_1(%arg0: i32, %arg1: i32) -> (i32, i32, i32) {
    %c0_i32 = arith.constant 0 : i32
    %c0_i32_0 = arith.constant 0 : i32
    %c0_i32_1 = arith.constant 0 : i32
    return %arg0, %c0_i32, %c0_i32_0 : i32, i32, i32
  }
  func.func @transform_2(%arg0: i32, %arg1: i32) -> (i32, i32) {
    %c0_i32 = arith.constant 0 : i32
    %c0_i32_0 = arith.constant 0 : i32
    %c0_i32_1 = arith.constant 0 : i32
    return %c0_i32, %c0_i32_0 : i32, i32
  }
  func.func @transform_3(%arg0: i32, %arg1: i32) -> (i32, i32) {
    %c0_i32 = arith.constant 0 : i32
    %c0_i32_0 = arith.constant 0 : i32
    %c0_i32_1 = arith.constant 0 : i32
    return %c0_i32, %c0_i32_0 : i32, i32
  }
  func.func @transform_4(%arg0: i32, %arg1: i32) -> (i32, i32) {
    %c0_i32 = arith.constant 0 : i32
    %c0_i32_0 = arith.constant 0 : i32
    %c0_i32_1 = arith.constant 0 : i32
    return %c0_i32, %c0_i32_0 : i32, i32
  }
  func.func @transform_5(%arg0: i32, %arg1: i32) -> (i32, i32) {
    %c0_i32 = arith.constant 0 : i32
    %c0_i32_0 = arith.constant 0 : i32
    %c0_i32_1 = arith.constant 0 : i32
    return %c0_i32, %c0_i32_0 : i32, i32
  }
  func.func @transform_6(%arg0: i32, %arg1: i32) -> (i32, i32) {
    %c0_i32 = arith.constant 0 : i32
    %c0_i32_0 = arith.constant 0 : i32
    %c0_i32_1 = arith.constant 0 : i32
    return %c0_i32, %c0_i32_0 : i32, i32
  }
  func.func @transform_7(%arg0: i32, %arg1: i32) -> (i32, i32) {
    %c0_i32 = arith.constant 0 : i32
    %c0_i32_0 = arith.constant 0 : i32
    %c0_i32_1 = arith.constant 0 : i32
    return %c0_i32, %c0_i32_0 : i32, i32
  }
  func.func @transform_8(%arg0: i32, %arg1: i32) -> (i32, i32) {
    %c0_i32 = arith.constant 0 : i32
    %c0_i32_0 = arith.constant 0 : i32
    %c0_i32_1 = arith.constant 0 : i32
    return %c0_i32, %c0_i32_0 : i32, i32
  }
  func.func @transform_9(%arg0: i32, %arg1: i32) -> (i32, i32) {
    %c0_i32 = arith.constant 0 : i32
    %c0_i32_0 = arith.constant 0 : i32
    %c0_i32_1 = arith.constant 0 : i32
    return %c0_i32, %c0_i32_0 : i32, i32
  }
  func.func @transform_10(%arg0: i32, %arg1: i32) -> (i32, i32) {
    %c0_i32 = arith.constant 0 : i32
    %c0_i32_0 = arith.constant 0 : i32
    %c0_i32_1 = arith.constant 0 : i32
    return %c0_i32, %c0_i32_0 : i32, i32
  }
  func.func @transform_11(%arg0: i32, %arg1: i32) -> (i32, i32) {
    %c0_i32 = arith.constant 0 : i32
    %c0_i32_0 = arith.constant 0 : i32
    %c0_i32_1 = arith.constant 0 : i32
    return %c0_i32, %c0_i32_0 : i32, i32
  }
  func.func @transform_12(%arg0: i32, %arg1: i32) -> (i32, i32, i32) {
    %c0_i32 = arith.constant 0 : i32
    %c0_i32_0 = arith.constant 0 : i32
    return %arg0, %arg1, %c0_i32 : i32, i32, i32
  }
  func.func @transform_13(%arg0: i32, %arg1: i32) -> (i32, i32, i32, i32) {
    %c0_i32 = arith.constant 0 : i32
    %c0_i32_0 = arith.constant 0 : i32
    %c0_i32_1 = arith.constant 0 : i32
    return %arg0, %c0_i32, %arg1, %c0_i32_0 : i32, i32, i32, i32
  }
}

</mosaic_0001>

<llo_original>
// kernel: tpu_custom_call.1
$region0: #{tpu_custom_call.1}
  #allocation0 [shape = 'u32[]', space=smem, size = 0x4, offset = 0x4, fixed_abs, tag = 'smem constant byte address 0x4 - core index']
  #allocation1 [shape = 'u32[144,128]{1,0:T(1,128)}', space=vmem, size = 0x12000, scoped, tag = 'internal scratch']
  #allocation2 [shape = 'f32[1,4,8,8]{3,2,1,0:T(8,128)}', space=vmem, size = 0x4000, scoped, tag = 'scratch operand']
  #allocation3 [shape = 'f32[1,4,8,8]{3,2,1,0:T(8,128)}', space=vmem, size = 0x4000, scoped, tag = 'scratch operand']
  #allocation4 [shape = 'f32[1,4,8,8]{3,2,1,0:T(8,128)}', space=vmem, size = 0x4000, scoped, tag = 'scratch operand']
  %s0 = inlined_call_operand.hbm [shape: f32[2,8,32], index: 0, kind: input, shape index: {}]
  %s1 = inlined_call_operand.vmem [shape: f32[2,1,16], index: 1, kind: input, shape index: {}]
  %s2 = inlined_call_operand.hbm [shape: f32[32,96], index: 2, kind: input, shape index: {}]
  %s3 = inlined_call_operand.vmem [shape: f32[1,96], index: 3, kind: input, shape index: {}]
  %s4 = inlined_call_operand.hbm [shape: f32[16,96], index: 4, kind: input, shape index: {}]
  %s5 = inlined_call_operand.vmem [shape: f32[1,96], index: 5, kind: input, shape index: {}]
  %s6 = inlined_call_operand.vmem [shape: f32[1,96], index: 6, kind: input, shape index: {}]
  %s7 = inlined_call_operand.hbm [shape: f32[1,96], index: 7, kind: input, shape index: {}]
  %s8 = inlined_call_operand.hbm [shape: f32[1,96], index: 8, kind: input, shape index: {}]
  %s9 = inlined_call_operand.hbm [shape: f32[1,96], index: 9, kind: input, shape index: {}]
  %s10 = inlined_call_operand.vmem [shape: f32[32,32], index: 10, kind: input, shape index: {}]
  %s11 = inlined_call_operand.vmem [shape: f32[1,32], index: 11, kind: input, shape index: {}]
  %s12 = inlined_call_operand.hbm [shape: f32[2,8,32], index: 12, kind: output, shape index: {0}]
  %s13 = inlined_call_operand.hbm [shape: f32[2,4,8,8], index: 13, kind: output, shape index: {1}]
  %14 = xla_tuple %s12, %s13
  %s15 = sld [smem:[#allocation0]]
  $region117: #{tpu_custom_call.1} parent=0
    _
  %s17 = ssub.s32 1, %s15
  %s18 = scalar_select 0, %s17, %s15
  $region1: #{tpu_custom_call.1} parent=0
    #allocation5 [shape = 'u8[8192]{0}', space=vmem, size = 0x2000, scoped, tag = 'input window, operand 0']
    #allocation6 [shape = 's32[2]{0}', space=sflag, size = 0x8, scoped, tag = 'scoped memory for tpu_custom_call.1']
    #allocation7 [shape = 's32[2]{0}', space=sflag, size = 0x8, scoped, tag = 'scoped memory for tpu_custom_call.1']
    #allocation8 [shape = 'u8[16384]{0}', space=vmem, size = 0x4000, scoped, tag = 'input window, operand 2, single buffered']
    #allocation9 [shape = 's32[1]{0}', space=sflag, size = 0x4, scoped, tag = 'scoped memory for tpu_custom_call.1']
    #allocation10 [shape = 'u8[8192]{0}', space=vmem, size = 0x2000, scoped, tag = 'input window, operand 4, single buffered']
    #allocation11 [shape = 'u8[512]{0}', space=vmem, size = 0x400, scoped, tag = 'input window, operand 7, single buffered']
    #allocation12 [shape = 's32[1]{0}', space=sflag, size = 0x4, scoped, tag = 'scoped memory for tpu_custom_call.1']
    #allocation13 [shape = 'u8[512]{0}', space=vmem, size = 0x400, scoped, tag = 'input window, operand 8, single buffered']
    #allocation14 [shape = 'u8[512]{0}', space=vmem, size = 0x400, scoped, tag = 'input window, operand 9, single buffered']
    #allocation15 [shape = 's32[1]{0}', space=sflag, size = 0x4, scoped, tag = 'scoped memory for tpu_custom_call.1']
    #allocation16 [shape = 'u8[8192]{0}', space=vmem, size = 0x2000, scoped, tag = 'output window, operand 0']
    #allocation17 [shape = 'u8[32768]{0}', space=vmem, size = 0x8000, scoped, tag = 'output window, operand 1']
    #allocation18 [shape = 's32[2]{0}', space=sflag, size = 0x8, scoped, tag = 'scoped memory for tpu_custom_call.1']
    %19 = vsyncpa [#allocation6], 0
    %s20 = scalar_lea.sflag [#allocation6], 1
    %21 = vsyncpa %s20, 0
    %22 = vsyncpa [#allocation9], 0
    %23 = vsyncpa [#allocation12], 0
    %24 = vsyncpa [#allocation15], 0
    %25 = vsyncpa [#allocation7], 0
    %s26 = scalar_lea.sflag [#allocation7], 1
    %27 = vsyncpa %s26, 0
    %28 = vsyncpa [#allocation18], 0
    %s29 = scalar_lea.sflag [#allocation18], 1
    %30 = vsyncpa %s29, 0
    loop: start=0, step=1, limit=4
    $region2: #{tpu_custom_call.1} parent=1 // loop_pre_header
      _
    $region3: #{tpu_custom_call.1} parent=1 // loop_header
      %s32 = sphi 0, %s36
      %p33 = scmp.ge.s32.totalorder %s32, 4
      %s39 = sphi 0, %s51
      %s40 = sphi 0, %s47
      %s41 = sphi 0, %s39
      %s42 = sphi 0, %s40
      %s43 = sphi 0, %s41
      %s44 = sphi 0, %s42
      %s54 = sphi 0, %s56
      %s57 = sphi 0, %s54
      %s58 = sphi 0, %s57
      %s74 = sphi 0, %s58
      %s80 = sphi 0, %s82
      %s83 = sphi 0, %s80
      %s84 = sphi 0, %s83
      %s100 = sphi 0, %s84
      %s104 = sphi 0, %s104
      %s106 = sphi 0, %s104
      %s107 = sphi 0, %s106
      %s121 = sphi 0, %s107
      %s125 = sphi 0, %s125
      %s127 = sphi 0, %s125
      %s128 = sphi 0, %s127
      %s142 = sphi 0, %s128
      %s146 = sphi 0, %s146
      %s148 = sphi 0, %s146
      %s149 = sphi 0, %s148
      %s163 = sphi 0, %s149
      %s167 = sphi 0, %s167
      %s169 = sphi 0, %s167
      %s170 = sphi 0, %s169
      %s184 = sphi 0, %s170
      %s188 = sphi 0, %s188
      %s190 = sphi 0, %s188
      %s191 = sphi 0, %s190
      %s205 = sphi 0, %s191
      %s209 = sphi 0, %s209
      %s211 = sphi 0, %s209
      %s212 = sphi 0, %s211
      %s226 = sphi 0, %s212
      %s230 = sphi 0, %s230
      %s232 = sphi 0, %s230
      %s233 = sphi 0, %s232
      %s247 = sphi 0, %s233
      %s251 = sphi 0, %s251
      %s253 = sphi 0, %s251
      %s254 = sphi 0, %s253
      %s268 = sphi 0, %s254
      %s272 = sphi 0, %s272
      %s274 = sphi 0, %s272
      %s275 = sphi 0, %s274
      %s289 = sphi 0, %s275
      %s293 = sphi 0, %s293
      %s295 = sphi 0, %s293
      %s296 = sphi 0, %s295
      %s310 = sphi 0, %s296
      %s318 = sphi 0, %s320
      %s321 = sphi 0, %s318
      %s322 = sphi 0, %s321
      %s338 = sphi 0, %s322
      %s346 = sphi 0, %s348
      %s349 = sphi 0, %s346
      %s350 = sphi 0, %s349
      %s366 = sphi 0, %s350
    $region4: #{tpu_custom_call.1} parent=1 // loop_header_branch
      %35 = sbr.rel (%p33) target = $region8
    $region5: #{tpu_custom_call.1} parent=1 // loop_body
      %s37 = ssub.s32 %s32, 1
      %s38 = ssub.s32 %s32, 2
      %s45 = sadd.s32 1, %s40
      %p46 = scmp.ge.s32.totalorder %s45, 1
      %s47 = scalar_select %p46, 0, %s45
      %s48 = sadd.s32 1, %s39
      %s49 = scalar_select %p46, %s48, %s39
      %p50 = scmp.ge.s32.totalorder %s49, 2
      %s51 = scalar_select %p50, 0, %s49
      %s52 = ssub.s32 %s39, %s51
      %p53 = scmp.eq.s32.totalorder %s52, 0
      %s55 = sadd.s32 %s54, 1
      %s56 = scalar_select %p53, %s54, %s55
      %p59 = pneg %p53
      %p60 = scmp.eq.s32.totalorder %s32, 1
      %p61 = por %p59, %p60
      %p62 = scmp.ne.s32.totalorder %s54, %s57
      %p63 = scmp.eq.s32.totalorder %s32, 0
      %p64 = por %p62, %p63
      %p65 = scmp.ne.s32.totalorder %s54, %s57
      %p66 = scmp.eq.s32.totalorder %s37, 1
      %p67 = por %p65, %p66
      %p68 = scmp.ne.s32.totalorder %s57, %s58
      %p69 = scmp.eq.s32.totalorder %s37, 0
      %p70 = por %p68, %p69
      %p71 = scmp.ne.s32.totalorder %s57, %s58
      %p72 = scmp.eq.s32.totalorder %s38, 1
      %p73 = por %p71, %p72
      %p75 = scmp.ne.s32.totalorder %s58, %s74
      %p76 = scmp.eq.s32.totalorder %s38, 0
      %p77 = por %p75, %p76
      %s78 = ssub.s32 %s39, %s51
      %p79 = scmp.eq.s32.totalorder %s78, 0
      %s81 = sadd.s32 %s80, 1
      %s82 = scalar_select %p79, %s80, %s81
      %p85 = pneg %p79
      %p86 = scmp.eq.s32.totalorder %s32, 1
      %p87 = por %p85, %p86
      %p88 = scmp.ne.s32.totalorder %s80, %s83
      %p89 = scmp.eq.s32.totalorder %s32, 0
      %p90 = por %p88, %p89
      %p91 = scmp.ne.s32.totalorder %s80, %s83
      %p92 = scmp.eq.s32.totalorder %s37, 1
      %p93 = por %p91, %p92
      %p94 = scmp.ne.s32.totalorder %s83, %s84
      %p95 = scmp.eq.s32.totalorder %s37, 0
      %p96 = por %p94, %p95
      %p97 = scmp.ne.s32.totalorder %s83, %s84
      %p98 = scmp.eq.s32.totalorder %s38, 1
      %p99 = por %p97, %p98
      %p101 = scmp.ne.s32.totalorder %s84, %s100
      %p102 = scmp.eq.s32.totalorder %s38, 0
      %p103 = por %p101, %p102
      %s105 = sadd.s32 %s104, 1
      %p108 = scmp.eq.s32.totalorder %s32, 1
      %p109 = scmp.ne.s32.totalorder %s104, %s106
      %p110 = scmp.eq.s32.totalorder %s32, 0
      %p111 = por %p109, %p110
      %p112 = scmp.ne.s32.totalorder %s104, %s106
      %p113 = scmp.eq.s32.totalorder %s37, 1
      %p114 = por %p112, %p113
      %p115 = scmp.ne.s32.totalorder %s106, %s107
      %p116 = scmp.eq.s32.totalorder %s37, 0
      %p117 = por %p115, %p116
      %p118 = scmp.ne.s32.totalorder %s106, %s107
      %p119 = scmp.eq.s32.totalorder %s38, 1
      %p120 = por %p118, %p119
      %p122 = scmp.ne.s32.totalorder %s107, %s121
      %p123 = scmp.eq.s32.totalorder %s38, 0
      %p124 = por %p122, %p123
      %s126 = sadd.s32 %s125, 1
      %p129 = scmp.eq.s32.totalorder %s32, 1
      %p130 = scmp.ne.s32.totalorder %s125, %s127
      %p131 = scmp.eq.s32.totalorder %s32, 0
      %p132 = por %p130, %p131
      %p133 = scmp.ne.s32.totalorder %s125, %s127
      %p134 = scmp.eq.s32.totalorder %s37, 1
      %p135 = por %p133, %p134
      %p136 = scmp.ne.s32.totalorder %s127, %s128
      %p137 = scmp.eq.s32.totalorder %s37, 0
      %p138 = por %p136, %p137
      %p139 = scmp.ne.s32.totalorder %s127, %s128
      %p140 = scmp.eq.s32.totalorder %s38, 1
      %p141 = por %p139, %p140
      %p143 = scmp.ne.s32.totalorder %s128, %s142
      %p144 = scmp.eq.s32.totalorder %s38, 0
      %p145 = por %p143, %p144
      %s147 = sadd.s32 %s146, 1
      %p150 = scmp.eq.s32.totalorder %s32, 1
      %p151 = scmp.ne.s32.totalorder %s146, %s148
      %p152 = scmp.eq.s32.totalorder %s32, 0
      %p153 = por %p151, %p152
      %p154 = scmp.ne.s32.totalorder %s146, %s148
      %p155 = scmp.eq.s32.totalorder %s37, 1
      %p156 = por %p154, %p155
      %p157 = scmp.ne.s32.totalorder %s148, %s149
      %p158 = scmp.eq.s32.totalorder %s37, 0
      %p159 = por %p157, %p158
      %p160 = scmp.ne.s32.totalorder %s148, %s149
      %p161 = scmp.eq.s32.totalorder %s38, 1
      %p162 = por %p160, %p161
      %p164 = scmp.ne.s32.totalorder %s149, %s163
      %p165 = scmp.eq.s32.totalorder %s38, 0
      %p166 = por %p164, %p165
      %s168 = sadd.s32 %s167, 1
      %p171 = scmp.eq.s32.totalorder %s32, 1
      %p172 = scmp.ne.s32.totalorder %s167, %s169
      %p173 = scmp.eq.s32.totalorder %s32, 0
      %p174 = por %p172, %p173
      %p175 = scmp.ne.s32.totalorder %s167, %s169
      %p176 = scmp.eq.s32.totalorder %s37, 1
      %p177 = por %p175, %p176
      %p178 = scmp.ne.s32.totalorder %s169, %s170
      %p179 = scmp.eq.s32.totalorder %s37, 0
      %p180 = por %p178, %p179
      %p181 = scmp.ne.s32.totalorder %s169, %s170
      %p182 = scmp.eq.s32.totalorder %s38, 1
      %p183 = por %p181, %p182
      %p185 = scmp.ne.s32.totalorder %s170, %s184
      %p186 = scmp.eq.s32.totalorder %s38, 0
      %p187 = por %p185, %p186
      %s189 = sadd.s32 %s188, 1
      %p192 = scmp.eq.s32.totalorder %s32, 1
      %p193 = scmp.ne.s32.totalorder %s188, %s190
      %p194 = scmp.eq.s32.totalorder %s32, 0
      %p195 = por %p193, %p194
      %p196 = scmp.ne.s32.totalorder %s188, %s190
      %p197 = scmp.eq.s32.totalorder %s37, 1
      %p198 = por %p196, %p197
      %p199 = scmp.ne.s32.totalorder %s190, %s191
      %p200 = scmp.eq.s32.totalorder %s37, 0
      %p201 = por %p199, %p200
      %p202 = scmp.ne.s32.totalorder %s190, %s191
      %p203 = scmp.eq.s32.totalorder %s38, 1
      %p204 = por %p202, %p203
      %p206 = scmp.ne.s32.totalorder %s191, %s205
      %p207 = scmp.eq.s32.totalorder %s38, 0
      %p208 = por %p206, %p207
      %s210 = sadd.s32 %s209, 1
      %p213 = scmp.eq.s32.totalorder %s32, 1
      %p214 = scmp.ne.s32.totalorder %s209, %s211
      %p215 = scmp.eq.s32.totalorder %s32, 0
      %p216 = por %p214, %p215
      %p217 = scmp.ne.s32.totalorder %s209, %s211
      %p218 = scmp.eq.s32.totalorder %s37, 1
      %p219 = por %p217, %p218
      %p220 = scmp.ne.s32.totalorder %s211, %s212
      %p221 = scmp.eq.s32.totalorder %s37, 0
      %p222 = por %p220, %p221
      %p223 = scmp.ne.s32.totalorder %s211, %s212
      %p224 = scmp.eq.s32.totalorder %s38, 1
      %p225 = por %p223, %p224
      %p227 = scmp.ne.s32.totalorder %s212, %s226
      %p228 = scmp.eq.s32.totalorder %s38, 0
      %p229 = por %p227, %p228
      %s231 = sadd.s32 %s230, 1
      %p234 = scmp.eq.s32.totalorder %s32, 1
      %p235 = scmp.ne.s32.totalorder %s230, %s232
      %p236 = scmp.eq.s32.totalorder %s32, 0
      %p237 = por %p235, %p236
      %p238 = scmp.ne.s32.totalorder %s230, %s232
      %p239 = scmp.eq.s32.totalorder %s37, 1
      %p240 = por %p238, %p239
      %p241 = scmp.ne.s32.totalorder %s232, %s233
      %p242 = scmp.eq.s32.totalorder %s37, 0
      %p243 = por %p241, %p242
      %p244 = scmp.ne.s32.totalorder %s232, %s233
      %p245 = scmp.eq.s32.totalorder %s38, 1
      %p246 = por %p244, %p245
      %p248 = scmp.ne.s32.totalorder %s233, %s247
      %p249 = scmp.eq.s32.totalorder %s38, 0
      %p250 = por %p248, %p249
      %s252 = sadd.s32 %s251, 1
      %p255 = scmp.eq.s32.totalorder %s32, 1
      %p256 = scmp.ne.s32.totalorder %s251, %s253
      %p257 = scmp.eq.s32.totalorder %s32, 0
      %p258 = por %p256, %p257
      %p259 = scmp.ne.s32.totalorder %s251, %s253
      %p260 = scmp.eq.s32.totalorder %s37, 1
      %p261 = por %p259, %p260
      %p262 = scmp.ne.s32.totalorder %s253, %s254
      %p263 = scmp.eq.s32.totalorder %s37, 0
      %p264 = por %p262, %p263
      %p265 = scmp.ne.s32.totalorder %s253, %s254
      %p266 = scmp.eq.s32.totalorder %s38, 1
      %p267 = por %p265, %p266
      %p269 = scmp.ne.s32.totalorder %s254, %s268
      %p270 = scmp.eq.s32.totalorder %s38, 0
      %p271 = por %p269, %p270
      %s273 = sadd.s32 %s272, 1
      %p276 = scmp.eq.s32.totalorder %s32, 1
      %p277 = scmp.ne.s32.totalorder %s272, %s274
      %p278 = scmp.eq.s32.totalorder %s32, 0
      %p279 = por %p277, %p278
      %p280 = scmp.ne.s32.totalorder %s272, %s274
      %p281 = scmp.eq.s32.totalorder %s37, 1
      %p282 = por %p280, %p281
      %p283 = scmp.ne.s32.totalorder %s274, %s275
      %p284 = scmp.eq.s32.totalorder %s37, 0
      %p285 = por %p283, %p284
      %p286 = scmp.ne.s32.totalorder %s274, %s275
      %p287 = scmp.eq.s32.totalorder %s38, 1
      %p288 = por %p286, %p287
      %p290 = scmp.ne.s32.totalorder %s275, %s289
      %p291 = scmp.eq.s32.totalorder %s38, 0
      %p292 = por %p290, %p291
      %s294 = sadd.s32 %s293, 1
      %p297 = scmp.eq.s32.totalorder %s32, 1
      %p298 = scmp.ne.s32.totalorder %s293, %s295
      %p299 = scmp.eq.s32.totalorder %s32, 0
      %p300 = por %p298, %p299
      %p301 = scmp.ne.s32.totalorder %s293, %s295
      %p302 = scmp.eq.s32.totalorder %s37, 1
      %p303 = por %p301, %p302
      %p304 = scmp.ne.s32.totalorder %s295, %s296
      %p305 = scmp.eq.s32.totalorder %s37, 0
      %p306 = por %p304, %p305
      %p307 = scmp.ne.s32.totalorder %s295, %s296
      %p308 = scmp.eq.s32.totalorder %s38, 1
      %p309 = por %p307, %p308
      %p311 = scmp.ne.s32.totalorder %s296, %s310
      %p312 = scmp.eq.s32.totalorder %s38, 0
      %p313 = por %p311, %p312
      %s314 = ssub.s32 %s39, %s51
      %s315 = ssub.s32 %s40, %s47
      %s316 = sor.u32 %s314, %s315
      %p317 = scmp.eq.s32.totalorder %s316, 0
      %s319 = sadd.s32 %s318, 1
      %s320 = scalar_select %p317, %s318, %s319
      %p323 = pneg %p317
      %p324 = scmp.eq.s32.totalorder %s32, 1
      %p325 = por %p323, %p324
      %p326 = scmp.ne.s32.totalorder %s318, %s321
      %p327 = scmp.eq.s32.totalorder %s32, 0
      %p328 = por %p326, %p327
      %p329 = scmp.ne.s32.totalorder %s318, %s321
      %p330 = scmp.eq.s32.totalorder %s37, 1
      %p331 = por %p329, %p330
      %p332 = scmp.ne.s32.totalorder %s321, %s322
      %p333 = scmp.eq.s32.totalorder %s37, 0
      %p334 = por %p332, %p333
      %p335 = scmp.ne.s32.totalorder %s321, %s322
      %p336 = scmp.eq.s32.totalorder %s38, 1
      %p337 = por %p335, %p336
      %p339 = scmp.ne.s32.totalorder %s322, %s338
      %p340 = scmp.eq.s32.totalorder %s38, 0
      %p341 = por %p339, %p340
      %s342 = ssub.s32 %s39, %s51
      %s343 = ssub.s32 %s40, %s47
      %s344 = sor.u32 %s342, %s343
      %p345 = scmp.eq.s32.totalorder %s344, 0
      %s347 = sadd.s32 %s346, 1
      %s348 = scalar_select %p345, %s346, %s347
      %p351 = pneg %p345
      %p352 = scmp.eq.s32.totalorder %s32, 1
      %p353 = por %p351, %p352
      %p354 = scmp.ne.s32.totalorder %s346, %s349
      %p355 = scmp.eq.s32.totalorder %s32, 0
      %p356 = por %p354, %p355
      %p357 = scmp.ne.s32.totalorder %s346, %s349
      %p358 = scmp.eq.s32.totalorder %s37, 1
      %p359 = por %p357, %p358
      %p360 = scmp.ne.s32.totalorder %s349, %s350
      %p361 = scmp.eq.s32.totalorder %s37, 0
      %p362 = por %p360, %p361
      %p363 = scmp.ne.s32.totalorder %s349, %s350
      %p364 = scmp.eq.s32.totalorder %s38, 1
      %p365 = por %p363, %p364
      %p367 = scmp.ne.s32.totalorder %s350, %s366
      %p368 = scmp.eq.s32.totalorder %s38, 0
      %p369 = por %p367, %p368
      %p370 = scmp.le.s32.totalorder 1, %s32
      %p371 = scmp.lt.s32.totalorder %s32, 3
      %p372 = pnand %p370, %p371
      %p373 = pneg %p372
      // Predicated region
      $region9: #{tpu_custom_call.1} parent=5 // pred_check
        _
      $region10: #{tpu_custom_call.1} parent=5 // pred_check_branch
        %375 = sbr.rel (%p372) target = $region12
      $region11: #{tpu_custom_call.1} parent=5 // pred_region
        %s376 = ssub.s32 %s32, 1
        // Predicated region
        $region13: #{tpu_custom_call.1} parent=11 // pred_check
          %p377 = pneg %p117
        $region14: #{tpu_custom_call.1} parent=11 // pred_check_branch
          %379 = sbr.rel (%p377) target = $region16
        $region15: #{tpu_custom_call.1} parent=11 // pred_region
          %s381 = ssub.s32 512, 512
          %382 = vsyncadd [#allocation9], %s381
          %s383 = sshll.u32 [#allocation8], 4
          %s384 = int_to_ptr.vmem [resolvable:$true] %s383
          %389 = dma.hbm_to_vmem [thread:$0]  %s2, 512, %s384, [#allocation9], 128, 128, 8
        $region16: #{tpu_custom_call.1} parent=11 // pred_fallthru
          _
        // Predicated region
        $region17: #{tpu_custom_call.1} parent=11 // pred_check
          %p390 = pneg %p138
        $region18: #{tpu_custom_call.1} parent=11 // pred_check_branch
          %392 = sbr.rel (%p390) target = $region20
        $region19: #{tpu_custom_call.1} parent=11 // pred_region
          _
        $region20: #{tpu_custom_call.1} parent=11 // pred_fallthru
          _
        // Predicated region
        $region21: #{tpu_custom_call.1} parent=11 // pred_check
          %p393 = pneg %p159
        $region22: #{tpu_custom_call.1} parent=11 // pred_check_branch
          %395 = sbr.rel (%p393) target = $region24
        $region23: #{tpu_custom_call.1} parent=11 // pred_region
          %s397 = ssub.s32 256, 256
          %398 = vsyncadd [#allocation9], %s397
          %s399 = sshll.u32 [#allocation10], 4
          %s400 = int_to_ptr.vmem [resolvable:$true] %s399
          %405 = dma.hbm_to_vmem [thread:$0]  %s4, 256, %s400, [#allocation9], 128, 128, 8
        $region24: #{tpu_custom_call.1} parent=11 // pred_fallthru
          _
        // Predicated region
        $region25: #{tpu_custom_call.1} parent=11 // pred_check
          %p406 = pneg %p180
        $region26: #{tpu_custom_call.1} parent=11 // pred_check_branch
          %408 = sbr.rel (%p406) target = $region28
        $region27: #{tpu_custom_call.1} parent=11 // pred_region
          _
        $region28: #{tpu_custom_call.1} parent=11 // pred_fallthru
          _
        // Predicated region
        $region29: #{tpu_custom_call.1} parent=11 // pred_check
          %p409 = pneg %p201
        $region30: #{tpu_custom_call.1} parent=11 // pred_check_branch
          %411 = sbr.rel (%p409) target = $region32
        $region31: #{tpu_custom_call.1} parent=11 // pred_region
          _
        $region32: #{tpu_custom_call.1} parent=11 // pred_fallthru
          _
        // Predicated region
        $region33: #{tpu_custom_call.1} parent=11 // pred_check
          %p412 = pneg %p222
        $region34: #{tpu_custom_call.1} parent=11 // pred_check_branch
          %414 = sbr.rel (%p412) target = $region36
        $region35: #{tpu_custom_call.1} parent=11 // pred_region
          %s416 = ssub.s32 16, 16
          %417 = vsyncadd [#allocation12], %s416
          %s419 = sshll.u32 [#allocation11], 4
          %s420 = int_to_ptr.vmem [resolvable:$true] %s419
          %422 = dma.hbm_to_vmem [thread:$0]  %s7, 16, %s420, [#allocation12]
        $region36: #{tpu_custom_call.1} parent=11 // pred_fallthru
          _
        // Predicated region
        $region37: #{tpu_custom_call.1} parent=11 // pred_check
          %p423 = pneg %p243
        $region38: #{tpu_custom_call.1} parent=11 // pred_check_branch
          %425 = sbr.rel (%p423) target = $region40
        $region39: #{tpu_custom_call.1} parent=11 // pred_region
          %s427 = ssub.s32 16, 16
          %428 = vsyncadd [#allocation12], %s427
          %s430 = sshll.u32 [#allocation13], 4
          %s431 = int_to_ptr.vmem [resolvable:$true] %s430
          %433 = dma.hbm_to_vmem [thread:$0]  %s8, 16, %s431, [#allocation12]
        $region40: #{tpu_custom_call.1} parent=11 // pred_fallthru
          _
        // Predicated region
        $region41: #{tpu_custom_call.1} parent=11 // pred_check
          %p434 = pneg %p264
        $region42: #{tpu_custom_call.1} parent=11 // pred_check_branch
          %436 = sbr.rel (%p434) target = $region44
        $region43: #{tpu_custom_call.1} parent=11 // pred_region
          %s438 = ssub.s32 16, 16
          %439 = vsyncadd [#allocation15], %s438
          %s441 = sshll.u32 [#allocation14], 4
          %s442 = int_to_ptr.vmem [resolvable:$true] %s441
          %444 = dma.hbm_to_vmem [thread:$0]  %s9, 16, %s442, [#allocation15]
        $region44: #{tpu_custom_call.1} parent=11 // pred_fallthru
          _
        // Predicated region
        $region45: #{tpu_custom_call.1} parent=11 // pred_check
          %p445 = pneg %p285
        $region46: #{tpu_custom_call.1} parent=11 // pred_check_branch
          %447 = sbr.rel (%p445) target = $region48
        $region47: #{tpu_custom_call.1} parent=11 // pred_region
          _
        $region48: #{tpu_custom_call.1} parent=11 // pred_fallthru
          _
        // Predicated region
        $region49: #{tpu_custom_call.1} parent=11 // pred_check
          %p448 = pneg %p306
        $region50: #{tpu_custom_call.1} parent=11 // pred_check_branch
          %450 = sbr.rel (%p448) target = $region52
        $region51: #{tpu_custom_call.1} parent=11 // pred_region
          _
        $region52: #{tpu_custom_call.1} parent=11 // pred_fallthru
          _
      $region12: #{tpu_custom_call.1} parent=5 // pred_fallthru
        _
      %p451 = scmp.lt.s32.totalorder %s32, 2
      // Predicated region
      $region53: #{tpu_custom_call.1} parent=5 // pred_check
        %p452 = pneg %p451
      $region54: #{tpu_custom_call.1} parent=5 // pred_check_branch
        %454 = sbr.rel (%p452) target = $region56
      $region55: #{tpu_custom_call.1} parent=5 // pred_region
        // Predicated region
        $region57: #{tpu_custom_call.1} parent=55 // pred_check
          %p455 = pneg %p64
        $region58: #{tpu_custom_call.1} parent=55 // pred_check_branch
          %457 = sbr.rel (%p455) target = $region60
        $region59: #{tpu_custom_call.1} parent=55 // pred_region
          %s458 = sand.u32 %s54, 1
          %s459 = scalar_lea.sflag [#allocation6], %s458
          %s460 = sand.u32 %s54, 1
          %s461 = smul.addr %s460, 8
          %s462 = scalar_lea.vmem [#allocation5], %s461
          %s464 = ssub.s32 128, 128
          %465 = vsyncadd %s459, %s464
          %s466 = smul.addr %s39, 128
          %s467 = scalar_lea.hbm %s0, %s466
          %s469 = sshll.u32 %s462, 4
          %s470 = int_to_ptr.vmem [resolvable:$true] %s469
          %472 = dma.hbm_to_vmem [thread:$0]  %s467, 128, %s470, %s459
        $region60: #{tpu_custom_call.1} parent=55 // pred_fallthru
          _
        // Predicated region
        $region61: #{tpu_custom_call.1} parent=55 // pred_check
          %p473 = pneg %p90
        $region62: #{tpu_custom_call.1} parent=55 // pred_check_branch
          %475 = sbr.rel (%p473) target = $region64
        $region63: #{tpu_custom_call.1} parent=55 // pred_region
          %p476 = scmp.lt.s32.totalorder %s39, 1
          %s477 = scalar_select %p476, %s39, 1
          %s478 = scalar_lea.vmem %s1, %s477
        $region64: #{tpu_custom_call.1} parent=55 // pred_fallthru
          _
      $region56: #{tpu_custom_call.1} parent=5 // pred_fallthru
        _
      %p479 = scmp.le.s32.totalorder 1, %s32
      %p480 = scmp.lt.s32.totalorder %s32, 3
      %p481 = pnand %p479, %p480
      %p482 = pneg %p481
      // Predicated region
      $region65: #{tpu_custom_call.1} parent=5 // pred_check
        _
      $region66: #{tpu_custom_call.1} parent=5 // pred_check_branch
        %484 = sbr.rel (%p481) target = $region68
      $region67: #{tpu_custom_call.1} parent=5 // pred_region
        %s485 = ssub.s32 %s32, 1
        %s486 = sand.u32 %s57, 1
        %s487 = scalar_lea.sflag [#allocation6], %s486
        %s488 = sand.u32 %s57, 1
        %s489 = smul.addr %s488, 8
        %s490 = scalar_lea.vmem [#allocation5], %s489
        // Predicated region
        $region69: #{tpu_custom_call.1} parent=67 // pred_check
          %p491 = pneg %p70
        $region70: #{tpu_custom_call.1} parent=67 // pred_check_branch
          %493 = sbr.rel (%p491) target = $region72
        $region71: #{tpu_custom_call.1} parent=67 // pred_region
          %494 = dma.done %s487, 128
        $region72: #{tpu_custom_call.1} parent=67 // pred_fallthru
          _
        // Predicated region
        $region73: #{tpu_custom_call.1} parent=67 // pred_check
          %p495 = pneg %p117
        $region74: #{tpu_custom_call.1} parent=67 // pred_check_branch
          %497 = sbr.rel (%p495) target = $region76
        $region75: #{tpu_custom_call.1} parent=67 // pred_region
          %498 = dma.done [#allocation9], 512
        $region76: #{tpu_custom_call.1} parent=67 // pred_fallthru
          _
        // Predicated region
        $region77: #{tpu_custom_call.1} parent=67 // pred_check
          %p499 = pneg %p159
        $region78: #{tpu_custom_call.1} parent=67 // pred_check_branch
          %501 = sbr.rel (%p499) target = $region80
        $region79: #{tpu_custom_call.1} parent=67 // pred_region
          %502 = dma.done [#allocation9], 256
        $region80: #{tpu_custom_call.1} parent=67 // pred_fallthru
          _
        // Predicated region
        $region81: #{tpu_custom_call.1} parent=67 // pred_check
          %p503 = pneg %p222
        $region82: #{tpu_custom_call.1} parent=67 // pred_check_branch
          %505 = sbr.rel (%p503) target = $region84
        $region83: #{tpu_custom_call.1} parent=67 // pred_region
          %506 = dma.done [#allocation12], 16
        $region84: #{tpu_custom_call.1} parent=67 // pred_fallthru
          _
        // Predicated region
        $region85: #{tpu_custom_call.1} parent=67 // pred_check
          %p507 = pneg %p243
        $region86: #{tpu_custom_call.1} parent=67 // pred_check_branch
          %509 = sbr.rel (%p507) target = $region88
        $region87: #{tpu_custom_call.1} parent=67 // pred_region
          %510 = dma.done [#allocation12], 16
        $region88: #{tpu_custom_call.1} parent=67 // pred_fallthru
          _
        // Predicated region
        $region89: #{tpu_custom_call.1} parent=67 // pred_check
          %p511 = pneg %p264
        $region90: #{tpu_custom_call.1} parent=67 // pred_check_branch
          %513 = sbr.rel (%p511) target = $region92
        $region91: #{tpu_custom_call.1} parent=67 // pred_region
          %514 = dma.done [#allocation15], 16
        $region92: #{tpu_custom_call.1} parent=67 // pred_fallthru
          _
        %s515 = sand.u32 %s57, 1
        %s516 = scalar_lea.sflag [#allocation6], %s515
        %s517 = sand.u32 %s57, 1
        %s518 = smul.addr %s517, 8
        %s519 = scalar_lea.vmem [#allocation5], %s518
        %p520 = pneg %p70
        %p521 = pneg %p67
        %p522 = scmp.lt.s32.totalorder %s41, 1
        %s523 = scalar_select %p522, %s41, 1
        %s524 = scalar_lea.vmem %s1, %s523
        %p525 = pneg %p96
        %p526 = pneg %p93
        %p527 = pneg %p117
        %p528 = pneg %p114
        %p529 = pneg %p138
        %p530 = pneg %p135
        %p531 = pneg %p159
        %p532 = pneg %p156
        %p533 = pneg %p180
        %p534 = pneg %p177
        %p535 = pneg %p201
        %p536 = pneg %p198
        %p537 = pneg %p222
        %p538 = pneg %p219
        %p539 = pneg %p243
        %p540 = pneg %p240
        %p541 = pneg %p264
        %p542 = pneg %p261
        %p543 = pneg %p285
        %p544 = pneg %p282
        %p545 = pneg %p306
        %p546 = pneg %p303
        %p547 = pneg %p334
        %p548 = pneg %p331
        %s549 = sand.u32 %s321, 1
        %s550 = scalar_lea.sflag [#allocation7], %s549
        %s551 = sand.u32 %s321, 1
        %s552 = smul.addr %s551, 8
        %s553 = scalar_lea.vmem [#allocation16], %s552
        %p554 = pneg %p362
        %p555 = pneg %p359
        %s556 = sand.u32 %s349, 1
        %s557 = scalar_lea.sflag [#allocation18], %s556
        %s558 = sand.u32 %s349, 1
        %s559 = smul.addr %s558, 32
        %s560 = scalar_lea.vmem [#allocation17], %s559
        %p561 = scmp.lt.s32.totalorder %s41, 1
        %s562 = scalar_select %p561, %s41, 1
        %s563 = scalar_lea.vmem %s1, %s562
        %p564 = scmp.eq.s32.totalorder %s42, 0
        // Predicated region
        $region93: #{tpu_custom_call.1} parent=67 // pred_check
          %p565 = pneg %p564
        $region94: #{tpu_custom_call.1} parent=67 // pred_check_branch
          %567 = sbr.rel (%p565) target = $region96
        $region95: #{tpu_custom_call.1} parent=67 // pred_region
          %v568 = vld [vmem:[%s490] sm:$0xff]
          %v569 = vld [vmem:[%s563] sm:$0x1]
          %v570 = vld [vmem:[#allocation8] sm:$0xff]
          %v571 = vld [vmem:[#allocation8 + $0x8] sm:$0xff]
          %v572 = vld [vmem:[#allocation8 + $0x10] sm:$0xff]
          %v573 = vld [vmem:[#allocation8 + $0x18] sm:$0xff]
          %v574 = vld [vmem:[%s3] sm:$0x1]
          %v576 = vlaneseq
          %v577 = vshrl.u32 %v576, 7
          %v578 = vsub.s32 0, %v577
          %v579 = vrot.slane %v574, %v578
          %vm581 = vcmask 261120
          %v583 = vsel %vm581, %v568, 0
          %585 = vmatprep.subr.mxu0 0.0
          %v586 = vand.u32 %v570, 4294901760
          %587 = vmatpush1.msra.mxu0 %v586
          %588 = vmatprep.subr.mxu0 0.0
          %v589 = vand.u32 %v571, 4294901760
          %590 = vmatpush1.msra.mxu0 %v589
          %591 = vmatprep.subr.mxu0 0.0
          %v592 = vand.u32 %v572, 4294901760
          %593 = vmatpush1.msra.mxu0 %v592
          %594 = vmatprep.subr.mxu0 0.0
          %v595 = vand.u32 %v573, 4294901760
          %596 = vmatpush1.msra.mxu0 %v595
          %597 = vmatprep.subr.mxu0 0.0
          %598 = vmatpush1.msra.mxu0 0.0
          %599 = vmatprep.subr.mxu0 0.0
          %600 = vmatpush1.msra.mxu0 0.0
          %601 = vmatprep.subr.mxu0 0.0
          %602 = vmatpush1.msra.mxu0 0.0
          %603 = vmatprep.subr.mxu0 0.0
          %604 = vmatpush1.msra.mxu0 0.0
          %605 = vmatprep.subr.mxu0 0.0
          %606 = vmatpush1.msra.mxu0 0.0
          %607 = vmatprep.subr.mxu0 0.0
          %608 = vmatpush1.msra.mxu0 0.0
          %609 = vmatprep.subr.mxu0 0.0
          %610 = vmatpush1.msra.mxu0 0.0
          %611 = vmatprep.subr.mxu0 0.0
          %612 = vmatpush1.msra.mxu0 0.0
          %613 = vmatprep.subr.mxu0 0.0
          %614 = vmatpush1.msra.mxu0 0.0
          %615 = vmatprep.subr.mxu0 0.0
          %616 = vmatpush1.msra.mxu0 0.0
          %617 = vmatprep.subr.mxu0 0.0
          %618 = vmatpush1.msra.mxu0 0.0
          %619 = vmatprep.subr.mxu0 0.0
          %620 = vmatpush1.msra.mxu0 0.0
          %621 = vmatprep.subr.mxu0 0.0
          %622 = vmatpush1.msra.mxu0 0.0
          %623 = vmatprep.subr.mxu0 0.0
          %624 = vmatpush1.msra.mxu0 0.0
          %625 = vmatprep.subr.mxu0 0.0
          %626 = vmatpush1.msra.mxu0 0.0
          %627 = vmatprep.subr.mxu0 0.0
          %628 = vmatpush1.msra.mxu0 0.0
          %629 = vmatprep.subr.mxu0 0.0
          %630 = vmatpush1.msra.mxu0 0.0
          %631 = vmatprep.subr.mxu0 0.0
          %632 = vmatpush1.msra.mxu0 0.0
          %633 = vmatprep.subr.mxu0 0.0
          %634 = vmatpush1.msra.mxu0 0.0
          %635 = vmatprep.subr.mxu0 0.0
          %636 = vmatpush1.msra.mxu0 0.0
          %637 = vmatprep.subr.mxu0 0.0
          %638 = vmatpush1.msra.mxu0 0.0
          %639 = vmatprep.subr.mxu0 0.0
          %640 = vmatpush1.msra.mxu0 0.0
          %641 = vmatprep.subr.mxu0 0.0
          %642 = vmatpush1.msra.mxu0 0.0
          %643 = vmatprep.subr.mxu0 0.0
          %644 = vmatpush1.msra.mxu0 0.0
          %645 = vmatprep.subr.mxu0 0.0
          %646 = vmatpush1.msra.mxu0 0.0
          %647 = vmatprep.subr.mxu0 0.0
          %648 = vmatpush1.msra.mxu0 0.0
          %649 = vmatprep.subr.mxu0 0.0
          %650 = vmatpush1.msra.mxu0 0.0
          %651 = vmatprep.subr.mxu0 0.0
          %652 = vmatpush1.msra.mxu0 0.0
          %653 = vmatprep.mubr.f32.mxu0 0.0
          %v654 = vand.u32 %v583, 4294901760
          %v655 = vsub.f32 %v583, %v654
          %v656 = vand.u32 %v655, 4294901760
          %v657 = vsub.f32 %v655, %v656
          %v658 = vand.u32 %v657, 4294901760
          %659 = vmatmul.mubr.f32.gmra.mrb[0].mxu0 %v658
          %v660 = vpop.f32.mrb[0].mxu0
          %v661 = vadd.f32 %v579, %v660
          %v662 = vpop.f32.mrb[0].mxu0
          %663 = vdwg.mxu0
          %664 = vmatprep.subr.mxu0 0.0
          %v665 = vand.u32 %v570, 4294901760
          %v666 = vsub.f32 %v570, %v665
          %v667 = vand.u32 %v666, 4294901760
          %v668 = vsub.f32 %v666, %v667
          %v669 = vand.u32 %v668, 4294901760
          %670 = vmatpush1.msra.mxu0 %v669
          %671 = vmatprep.subr.mxu0 0.0
          %v672 = vand.u32 %v571, 4294901760
          %v673 = vsub.f32 %v571, %v672
          %v674 = vand.u32 %v673, 4294901760
          %v675 = vsub.f32 %v673, %v674
          %v676 = vand.u32 %v675, 4294901760
          %677 = vmatpush1.msra.mxu0 %v676
          %678 = vmatprep.subr.mxu0 0.0
          %v679 = vand.u32 %v572, 4294901760
          %v680 = vsub.f32 %v572, %v679
          %v681 = vand.u32 %v680, 4294901760
          %v682 = vsub.f32 %v680, %v681
          %v683 = vand.u32 %v682, 4294901760
          %684 = vmatpush1.msra.mxu0 %v683
          %685 = vmatprep.subr.mxu0 0.0
          %v686 = vand.u32 %v573, 4294901760
          %v687 = vsub.f32 %v573, %v686
          %v688 = vand.u32 %v687, 4294901760
          %v689 = vsub.f32 %v687, %v688
          %v690 = vand.u32 %v689, 4294901760
          %691 = vmatpush1.msra.mxu0 %v690
          %692 = vmatprep.subr.mxu0 0.0
          %693 = vmatpush1.msra.mxu0 0.0
          %694 = vmatprep.subr.mxu0 0.0
          %695 = vmatpush1.msra.mxu0 0.0
          %696 = vmatprep.subr.mxu0 0.0
          %697 = vmatpush1.msra.mxu0 0.0
          %698 = vmatprep.subr.mxu0 0.0
          %699 = vmatpush1.msra.mxu0 0.0
          %700 = vmatprep.subr.mxu0 0.0
          %701 = vmatpush1.msra.mxu0 0.0
          %702 = vmatprep.subr.mxu0 0.0
          %703 = vmatpush1.msra.mxu0 0.0
          %704 = vmatprep.subr.mxu0 0.0
          %705 = vmatpush1.msra.mxu0 0.0
          %706 = vmatprep.subr.mxu0 0.0
          %707 = vmatpush1.msra.mxu0 0.0
          %708 = vmatprep.subr.mxu0 0.0
          %709 = vmatpush1.msra.mxu0 0.0
          %710 = vmatprep.subr.mxu0 0.0
          %711 = vmatpush1.msra.mxu0 0.0
          %712 = vmatprep.subr.mxu0 0.0
          %713 = vmatpush1.msra.mxu0 0.0
          %714 = vmatprep.subr.mxu0 0.0
          %715 = vmatpush1.msra.mxu0 0.0
          %716 = vmatprep.subr.mxu0 0.0
          %717 = vmatpush1.msra.mxu0 0.0
          %718 = vmatprep.subr.mxu0 0.0
          %719 = vmatpush1.msra.mxu0 0.0
          %720 = vmatprep.subr.mxu0 0.0
          %721 = vmatpush1.msra.mxu0 0.0
          %722 = vmatprep.subr.mxu0 0.0
          %723 = vmatpush1.msra.mxu0 0.0
          %724 = vmatprep.subr.mxu0 0.0
          %725 = vmatpush1.msra.mxu0 0.0
          %726 = vmatprep.subr.mxu0 0.0
          %727 = vmatpush1.msra.mxu0 0.0
          %728 = vmatprep.subr.mxu0 0.0
          %729 = vmatpush1.msra.mxu0 0.0
          %730 = vmatprep.subr.mxu0 0.0
          %731 = vmatpush1.msra.mxu0 0.0
          %732 = vmatprep.subr.mxu0 0.0
          %733 = vmatpush1.msra.mxu0 0.0
          %734 = vmatprep.subr.mxu0 0.0
          %735 = vmatpush1.msra.mxu0 0.0
          %736 = vmatprep.subr.mxu0 0.0
          %737 = vmatpush1.msra.mxu0 0.0
          %738 = vmatprep.subr.mxu0 0.0
          %739 = vmatpush1.msra.mxu0 0.0
          %740 = vmatprep.subr.mxu0 0.0
          %741 = vmatpush1.msra.mxu0 0.0
          %742 = vmatprep.subr.mxu0 0.0
          %743 = vmatpush1.msra.mxu0 0.0
          %744 = vmatprep.subr.mxu0 0.0
          %745 = vmatpush1.msra.mxu0 0.0
          %746 = vmatprep.subr.mxu0 0.0
          %747 = vmatpush1.msra.mxu0 0.0
          %748 = vmatprep.mubr.f32.mxu0 0.0
          %v749 = vand.u32 %v583, 4294901760
          %750 = vmatmul.mubr.f32.gmra.mrb[0].mxu0 %v749
          %v751 = vpop.f32.mrb[0].mxu0
          %v752 = vadd.f32 %v661, %v751
          %v753 = vpop.f32.mrb[0].mxu0
          %754 = vdwg.mxu0
          %755 = vmatprep.subr.mxu0 0.0
          %v756 = vand.u32 %v570, 4294901760
          %v757 = vsub.f32 %v570, %v756
          %758 = vmatpush1.msra.mxu0 %v757
          %759 = vmatprep.subr.mxu0 0.0
          %v760 = vand.u32 %v571, 4294901760
          %v761 = vsub.f32 %v571, %v760
          %762 = vmatpush1.msra.mxu0 %v761
          %763 = vmatprep.subr.mxu0 0.0
          %v764 = vand.u32 %v572, 4294901760
          %v765 = vsub.f32 %v572, %v764
          %766 = vmatpush1.msra.mxu0 %v765
          %767 = vmatprep.subr.mxu0 0.0
          %v768 = vand.u32 %v573, 4294901760
          %v769 = vsub.f32 %v573, %v768
          %770 = vmatpush1.msra.mxu0 %v769
          %771 = vmatprep.subr.mxu0 0.0
          %772 = vmatpush1.msra.mxu0 0.0
          %773 = vmatprep.subr.mxu0 0.0
          %774 = vmatpush1.msra.mxu0 0.0
          %775 = vmatprep.subr.mxu0 0.0
          %776 = vmatpush1.msra.mxu0 0.0
          %777 = vmatprep.subr.mxu0 0.0
          %778 = vmatpush1.msra.mxu0 0.0
          %779 = vmatprep.subr.mxu0 0.0
          %780 = vmatpush1.msra.mxu0 0.0
          %781 = vmatprep.subr.mxu0 0.0
          %782 = vmatpush1.msra.mxu0 0.0
          %783 = vmatprep.subr.mxu0 0.0
          %784 = vmatpush1.msra.mxu0 0.0
          %785 = vmatprep.subr.mxu0 0.0
          %786 = vmatpush1.msra.mxu0 0.0
          %787 = vmatprep.subr.mxu0 0.0
          %788 = vmatpush1.msra.mxu0 0.0
          %789 = vmatprep.subr.mxu0 0.0
          %790 = vmatpush1.msra.mxu0 0.0
          %791 = vmatprep.subr.mxu0 0.0
          %792 = vmatpush1.msra.mxu0 0.0
          %793 = vmatprep.subr.mxu0 0.0
          %794 = vmatpush1.msra.mxu0 0.0
          %795 = vmatprep.subr.mxu0 0.0
          %796 = vmatpush1.msra.mxu0 0.0
          %797 = vmatprep.subr.mxu0 0.0
          %798 = vmatpush1.msra.mxu0 0.0
          %799 = vmatprep.subr.mxu0 0.0
          %800 = vmatpush1.msra.mxu0 0.0
          %801 = vmatprep.subr.mxu0 0.0
          %802 = vmatpush1.msra.mxu0 0.0
          %803 = vmatprep.subr.mxu0 0.0
          %804 = vmatpush1.msra.mxu0 0.0
          %805 = vmatprep.subr.mxu0 0.0
          %806 = vmatpush1.msra.mxu0 0.0
          %807 = vmatprep.subr.mxu0 0.0
          %808 = vmatpush1.msra.mxu0 0.0
          %809 = vmatprep.subr.mxu0 0.0
          %810 = vmatpush1.msra.mxu0 0.0
          %811 = vmatprep.subr.mxu0 0.0
          %812 = vmatpush1.msra.mxu0 0.0
          %813 = vmatprep.subr.mxu0 0.0
          %814 = vmatpush1.msra.mxu0 0.0
          %815 = vmatprep.subr.mxu0 0.0
          %816 = vmatpush1.msra.mxu0 0.0
          %817 = vmatprep.subr.mxu0 0.0
          %818 = vmatpush1.msra.mxu0 0.0
          %819 = vmatprep.subr.mxu0 0.0
          %820 = vmatpush1.msra.mxu0 0.0
          %821 = vmatprep.subr.mxu0 0.0
          %822 = vmatpush1.msra.mxu0 0.0
          %823 = vmatprep.subr.mxu0 0.0
          %824 = vmatpush1.msra.mxu0 0.0
          %825 = vmatprep.subr.mxu0 0.0
          %826 = vmatpush1.msra.mxu0 0.0
          %827 = vmatprep.mubr.f32.mxu0 0.0
          %v828 = vand.u32 %v583, 4294901760
          %v829 = vsub.f32 %v583, %v828
          %830 = vmatmul.mubr.f32.gmra.mrb[0].mxu0 %v829
          %v831 = vpop.f32.mrb[0].mxu0
          %v832 = vadd.f32 %v752, %v831
          %v833 = vpop.f32.mrb[0].mxu0
          %834 = vdwg.mxu0
          %835 = vmatprep.subr.mxu0 0.0
          %v836 = vand.u32 %v570, 4294901760
          %837 = vmatpush1.msra.mxu0 %v836
          %838 = vmatprep.subr.mxu0 0.0
          %v839 = vand.u32 %v571, 4294901760
          %840 = vmatpush1.msra.mxu0 %v839
          %841 = vmatprep.subr.mxu0 0.0
          %v842 = vand.u32 %v572, 4294901760
          %843 = vmatpush1.msra.mxu0 %v842
          %844 = vmatprep.subr.mxu0 0.0
          %v845 = vand.u32 %v573, 4294901760
          %846 = vmatpush1.msra.mxu0 %v845
          %847 = vmatprep.subr.mxu0 0.0
          %848 = vmatpush1.msra.mxu0 0.0
          %849 = vmatprep.subr.mxu0 0.0
          %850 = vmatpush1.msra.mxu0 0.0
          %851 = vmatprep.subr.mxu0 0.0
          %852 = vmatpush1.msra.mxu0 0.0
          %853 = vmatprep.subr.mxu0 0.0
          %854 = vmatpush1.msra.mxu0 0.0
          %855 = vmatprep.subr.mxu0 0.0
          %856 = vmatpush1.msra.mxu0 0.0
          %857 = vmatprep.subr.mxu0 0.0
          %858 = vmatpush1.msra.mxu0 0.0
          %859 = vmatprep.subr.mxu0 0.0
          %860 = vmatpush1.msra.mxu0 0.0
          %861 = vmatprep.subr.mxu0 0.0
          %862 = vmatpush1.msra.mxu0 0.0
          %863 = vmatprep.subr.mxu0 0.0
          %864 = vmatpush1.msra.mxu0 0.0
          %865 = vmatprep.subr.mxu0 0.0
          %866 = vmatpush1.msra.mxu0 0.0
          %867 = vmatprep.subr.mxu0 0.0
          %868 = vmatpush1.msra.mxu0 0.0
          %869 = vmatprep.subr.mxu0 0.0
          %870 = vmatpush1.msra.mxu0 0.0
          %871 = vmatprep.subr.mxu0 0.0
          %872 = vmatpush1.msra.mxu0 0.0
          %873 = vmatprep.subr.mxu0 0.0
          %874 = vmatpush1.msra.mxu0 0.0
          %875 = vmatprep.subr.mxu0 0.0
          %876 = vmatpush1.msra.mxu0 0.0
          %877 = vmatprep.subr.mxu0 0.0
          %878 = vmatpush1.msra.mxu0 0.0
          %879 = vmatprep.subr.mxu0 0.0
          %880 = vmatpush1.msra.mxu0 0.0
          %881 = vmatprep.subr.mxu0 0.0
          %882 = vmatpush1.msra.mxu0 0.0
          %883 = vmatprep.subr.mxu0 0.0
          %884 = vmatpush1.msra.mxu0 0.0
          %885 = vmatprep.subr.mxu0 0.0
          %886 = vmatpush1.msra.mxu0 0.0
          %887 = vmatprep.subr.mxu0 0.0
          %888 = vmatpush1.msra.mxu0 0.0
          %889 = vmatprep.subr.mxu0 0.0
          %890 = vmatpush1.msra.mxu0 0.0
          %891 = vmatprep.subr.mxu0 0.0
          %892 = vmatpush1.msra.mxu0 0.0
          %893 = vmatprep.subr.mxu0 0.0
          %894 = vmatpush1.msra.mxu0 0.0
          %895 = vmatprep.subr.mxu0 0.0
          %896 = vmatpush1.msra.mxu0 0.0
          %897 = vmatprep.subr.mxu0 0.0
          %898 = vmatpush1.msra.mxu0 0.0
          %899 = vmatprep.subr.mxu0 0.0
          %900 = vmatpush1.msra.mxu0 0.0
          %901 = vmatprep.subr.mxu0 0.0
          %902 = vmatpush1.msra.mxu0 0.0
          %903 = vmatprep.mubr.f32.mxu0 0.0
          %v904 = vand.u32 %v583, 4294901760
          %v905 = vsub.f32 %v583, %v904
          %v906 = vand.u32 %v905, 4294901760
          %907 = vmatmul.mubr.f32.gmra.mrb[0].mxu0 %v906
          %v908 = vpop.f32.mrb[0].mxu0
          %v909 = vadd.f32 %v832, %v908
          %v910 = vpop.f32.mrb[0].mxu0
          %911 = vdwg.mxu0
          %912 = vmatprep.subr.mxu0 0.0
          %v913 = vand.u32 %v570, 4294901760
          %v914 = vsub.f32 %v570, %v913
          %v915 = vand.u32 %v914, 4294901760
          %916 = vmatpush1.msra.mxu0 %v915
          %917 = vmatprep.subr.mxu0 0.0
          %v918 = vand.u32 %v571, 4294901760
          %v919 = vsub.f32 %v571, %v918
          %v920 = vand.u32 %v919, 4294901760
          %921 = vmatpush1.msra.mxu0 %v920
          %922 = vmatprep.subr.mxu0 0.0
          %v923 = vand.u32 %v572, 4294901760
          %v924 = vsub.f32 %v572, %v923
          %v925 = vand.u32 %v924, 4294901760
          %926 = vmatpush1.msra.mxu0 %v925
          %927 = vmatprep.subr.mxu0 0.0
          %v928 = vand.u32 %v573, 4294901760
          %v929 = vsub.f32 %v573, %v928
          %v930 = vand.u32 %v929, 4294901760
          %931 = vmatpush1.msra.mxu0 %v930
          %932 = vmatprep.subr.mxu0 0.0
          %933 = vmatpush1.msra.mxu0 0.0
          %934 = vmatprep.subr.mxu0 0.0
          %935 = vmatpush1.msra.mxu0 0.0
          %936 = vmatprep.subr.mxu0 0.0
          %937 = vmatpush1.msra.mxu0 0.0
          %938 = vmatprep.subr.mxu0 0.0
          %939 = vmatpush1.msra.mxu0 0.0
          %940 = vmatprep.subr.mxu0 0.0
          %941 = vmatpush1.msra.mxu0 0.0
          %942 = vmatprep.subr.mxu0 0.0
          %943 = vmatpush1.msra.mxu0 0.0
          %944 = vmatprep.subr.mxu0 0.0
          %945 = vmatpush1.msra.mxu0 0.0
          %946 = vmatprep.subr.mxu0 0.0
          %947 = vmatpush1.msra.mxu0 0.0
          %948 = vmatprep.subr.mxu0 0.0
          %949 = vmatpush1.msra.mxu0 0.0
          %950 = vmatprep.subr.mxu0 0.0
          %951 = vmatpush1.msra.mxu0 0.0
          %952 = vmatprep.subr.mxu0 0.0
          %953 = vmatpush1.msra.mxu0 0.0
          %954 = vmatprep.subr.mxu0 0.0
          %955 = vmatpush1.msra.mxu0 0.0
          %956 = vmatprep.subr.mxu0 0.0
          %957 = vmatpush1.msra.mxu0 0.0
          %958 = vmatprep.subr.mxu0 0.0
          %959 = vmatpush1.msra.mxu0 0.0
          %960 = vmatprep.subr.mxu0 0.0
          %961 = vmatpush1.msra.mxu0 0.0
          %962 = vmatprep.subr.mxu0 0.0
          %963 = vmatpush1.msra.mxu0 0.0
          %964 = vmatprep.subr.mxu0 0.0
          %965 = vmatpush1.msra.mxu0 0.0
          %966 = vmatprep.subr.mxu0 0.0
          %967 = vmatpush1.msra.mxu0 0.0
          %968 = vmatprep.subr.mxu0 0.0
          %969 = vmatpush1.msra.mxu0 0.0
          %970 = vmatprep.subr.mxu0 0.0
          %971 = vmatpush1.msra.mxu0 0.0
          %972 = vmatprep.subr.mxu0 0.0
          %973 = vmatpush1.msra.mxu0 0.0
          %974 = vmatprep.subr.mxu0 0.0
          %975 = vmatpush1.msra.mxu0 0.0
          %976 = vmatprep.subr.mxu0 0.0
          %977 = vmatpush1.msra.mxu0 0.0
          %978 = vmatprep.subr.mxu0 0.0
          %979 = vmatpush1.msra.mxu0 0.0
          %980 = vmatprep.subr.mxu0 0.0
          %981 = vmatpush1.msra.mxu0 0.0
          %982 = vmatprep.subr.mxu0 0.0
          %983 = vmatpush1.msra.mxu0 0.0
          %984 = vmatprep.subr.mxu0 0.0
          %985 = vmatpush1.msra.mxu0 0.0
          %986 = vmatprep.subr.mxu0 0.0
          %987 = vmatpush1.msra.mxu0 0.0
          %988 = vmatprep.mubr.f32.mxu0 0.0
          %v989 = vand.u32 %v583, 4294901760
          %990 = vmatmul.mubr.f32.gmra.mrb[0].mxu0 %v989
          %v991 = vpop.f32.mrb[0].mxu0
          %v992 = vadd.f32 %v909, %v991
          %v993 = vpop.f32.mrb[0].mxu0
          %994 = vdwg.mxu0
          %995 = vmatprep.subr.mxu0 0.0
          %v996 = vand.u32 %v570, 4294901760
          %997 = vmatpush1.msra.mxu0 %v996
          %998 = vmatprep.subr.mxu0 0.0
          %v999 = vand.u32 %v571, 4294901760
          %1000 = vmatpush1.msra.mxu0 %v999
          %1001 = vmatprep.subr.mxu0 0.0
          %v1002 = vand.u32 %v572, 4294901760
          %1003 = vmatpush1.msra.mxu0 %v1002
          %1004 = vmatprep.subr.mxu0 0.0
          %v1005 = vand.u32 %v573, 4294901760
          %1006 = vmatpush1.msra.mxu0 %v1005
          %1007 = vmatprep.subr.mxu0 0.0
          %1008 = vmatpush1.msra.mxu0 0.0
          %1009 = vmatprep.subr.mxu0 0.0
          %1010 = vmatpush1.msra.mxu0 0.0
          %1011 = vmatprep.subr.mxu0 0.0
          %1012 = vmatpush1.msra.mxu0 0.0
          %1013 = vmatprep.subr.mxu0 0.0
          %1014 = vmatpush1.msra.mxu0 0.0
          %1015 = vmatprep.subr.mxu0 0.0
          %1016 = vmatpush1.msra.mxu0 0.0
          %1017 = vmatprep.subr.mxu0 0.0
          %1018 = vmatpush1.msra.mxu0 0.0
          %1019 = vmatprep.subr.mxu0 0.0
          %1020 = vmatpush1.msra.mxu0 0.0
          %1021 = vmatprep.subr.mxu0 0.0
          %1022 = vmatpush1.msra.mxu0 0.0
          %1023 = vmatprep.subr.mxu0 0.0
          %1024 = vmatpush1.msra.mxu0 0.0
          %1025 = vmatprep.subr.mxu0 0.0
          %1026 = vmatpush1.msra.mxu0 0.0
          %1027 = vmatprep.subr.mxu0 0.0
          %1028 = vmatpush1.msra.mxu0 0.0
          %1029 = vmatprep.subr.mxu0 0.0
          %1030 = vmatpush1.msra.mxu0 0.0
          %1031 = vmatprep.subr.mxu0 0.0
          %1032 = vmatpush1.msra.mxu0 0.0
          %1033 = vmatprep.subr.mxu0 0.0
          %1034 = vmatpush1.msra.mxu0 0.0
          %1035 = vmatprep.subr.mxu0 0.0
          %1036 = vmatpush1.msra.mxu0 0.0
          %1037 = vmatprep.subr.mxu0 0.0
          %1038 = vmatpush1.msra.mxu0 0.0
          %1039 = vmatprep.subr.mxu0 0.0
          %1040 = vmatpush1.msra.mxu0 0.0
          %1041 = vmatprep.subr.mxu0 0.0
          %1042 = vmatpush1.msra.mxu0 0.0
          %1043 = vmatprep.subr.mxu0 0.0
          %1044 = vmatpush1.msra.mxu0 0.0
          %1045 = vmatprep.subr.mxu0 0.0
          %1046 = vmatpush1.msra.mxu0 0.0
          %1047 = vmatprep.subr.mxu0 0.0
          %1048 = vmatpush1.msra.mxu0 0.0
          %1049 = vmatprep.subr.mxu0 0.0
          %1050 = vmatpush1.msra.mxu0 0.0
          %1051 = vmatprep.subr.mxu0 0.0
          %1052 = vmatpush1.msra.mxu0 0.0
          %1053 = vmatprep.subr.mxu0 0.0
          %1054 = vmatpush1.msra.mxu0 0.0
          %1055 = vmatprep.subr.mxu0 0.0
          %1056 = vmatpush1.msra.mxu0 0.0
          %1057 = vmatprep.subr.mxu0 0.0
          %1058 = vmatpush1.msra.mxu0 0.0
          %1059 = vmatprep.subr.mxu0 0.0
          %1060 = vmatpush1.msra.mxu0 0.0
          %1061 = vmatprep.subr.mxu0 0.0
          %1062 = vmatpush1.msra.mxu0 0.0
          %1063 = vmatprep.mubr.f32.mxu0 0.0
          %v1064 = vand.u32 %v583, 4294901760
          %1065 = vmatmul.mubr.f32.gmra.mrb[0].mxu0 %v1064
          %v1066 = vpop.f32.mrb[0].mxu0
          %v1067 = vadd.f32 %v992, %v1066
          %v1068 = vpop.f32.mrb[0].mxu0
          %1069 = vdwg.mxu0
          %v1070 = vld [vmem:[#allocation10] sm:$0xff]
          %v1071 = vld [vmem:[#allocation10 + $0x8] sm:$0xff]
          %v1072 = vld [vmem:[%s5] sm:$0x1]
          %vm1073 = vcmask 130048
          %v1075 = vsel %vm1073, %v569, 0
          %1077 = vmatprep.subr.mxu0 0.0
          %v1078 = vand.u32 %v1070, 4294901760
          %1079 = vmatpush1.msra.mxu0 %v1078
          %1080 = vmatprep.subr.mxu0 0.0
          %v1081 = vand.u32 %v1071, 4294901760
          %1082 = vmatpush1.msra.mxu0 %v1081
          %1083 = vmatprep.subr.mxu0 0.0
          %1084 = vmatpush1.msra.mxu0 0.0
          %1085 = vmatprep.subr.mxu0 0.0
          %1086 = vmatpush1.msra.mxu0 0.0
          %1087 = vmatprep.subr.mxu0 0.0
          %1088 = vmatpush1.msra.mxu0 0.0
          %1089 = vmatprep.subr.mxu0 0.0
          %1090 = vmatpush1.msra.mxu0 0.0
          %1091 = vmatprep.subr.mxu0 0.0
          %1092 = vmatpush1.msra.mxu0 0.0
          %1093 = vmatprep.subr.mxu0 0.0
          %1094 = vmatpush1.msra.mxu0 0.0
          %1095 = vmatprep.subr.mxu0 0.0
          %1096 = vmatpush1.msra.mxu0 0.0
          %1097 = vmatprep.subr.mxu0 0.0
          %1098 = vmatpush1.msra.mxu0 0.0
          %1099 = vmatprep.subr.mxu0 0.0
          %1100 = vmatpush1.msra.mxu0 0.0
          %1101 = vmatprep.subr.mxu0 0.0
          %1102 = vmatpush1.msra.mxu0 0.0
          %1103 = vmatprep.subr.mxu0 0.0
          %1104 = vmatpush1.msra.mxu0 0.0
          %1105 = vmatprep.subr.mxu0 0.0
          %1106 = vmatpush1.msra.mxu0 0.0
          %1107 = vmatprep.subr.mxu0 0.0
          %1108 = vmatpush1.msra.mxu0 0.0
          %1109 = vmatprep.subr.mxu0 0.0
          %1110 = vmatpush1.msra.mxu0 0.0
          %1111 = vmatprep.subr.mxu0 0.0
          %1112 = vmatpush1.msra.mxu0 0.0
          %1113 = vmatprep.subr.mxu0 0.0
          %1114 = vmatpush1.msra.mxu0 0.0
          %1115 = vmatprep.subr.mxu0 0.0
          %1116 = vmatpush1.msra.mxu0 0.0
          %1117 = vmatprep.subr.mxu0 0.0
          %1118 = vmatpush1.msra.mxu0 0.0
          %1119 = vmatprep.subr.mxu0 0.0
          %1120 = vmatpush1.msra.mxu0 0.0
          %1121 = vmatprep.subr.mxu0 0.0
          %1122 = vmatpush1.msra.mxu0 0.0
          %1123 = vmatprep.subr.mxu0 0.0
          %1124 = vmatpush1.msra.mxu0 0.0
          %1125 = vmatprep.subr.mxu0 0.0
          %1126 = vmatpush1.msra.mxu0 0.0
          %1127 = vmatprep.subr.mxu0 0.0
          %1128 = vmatpush1.msra.mxu0 0.0
          %1129 = vmatprep.subr.mxu0 0.0
          %1130 = vmatpush1.msra.mxu0 0.0
          %1131 = vmatprep.subr.mxu0 0.0
          %1132 = vmatpush1.msra.mxu0 0.0
          %1133 = vmatprep.subr.mxu0 0.0
          %1134 = vmatpush1.msra.mxu0 0.0
          %1135 = vmatprep.subr.mxu0 0.0
          %1136 = vmatpush1.msra.mxu0 0.0
          %1137 = vmatprep.subr.mxu0 0.0
          %1138 = vmatpush1.msra.mxu0 0.0
          %1139 = vmatprep.subr.mxu0 0.0
          %1140 = vmatpush1.msra.mxu0 0.0
          %1141 = vmatprep.subr.mxu0 0.0
          %1142 = vmatpush1.msra.mxu0 0.0
          %1143 = vmatprep.mubr.f32.mxu0 0.0
          %v1144 = vand.u32 %v1075, 4294901760
          %v1145 = vsub.f32 %v1075, %v1144
          %v1146 = vand.u32 %v1145, 4294901760
          %v1147 = vsub.f32 %v1145, %v1146
          %v1148 = vand.u32 %v1147, 4294901760
          %1149 = vmatmul.mubr.f32.gmra.mrb[0].mxu0 %v1148
          %v1150 = vpop.f32.mrb[0].mxu0
          %v1151 = vadd.f32 %v1072, %v1150
          %v1152 = vpop.f32.mrb[0].mxu0
          %1153 = vdwg.mxu0
          %1154 = vmatprep.subr.mxu0 0.0
          %v1155 = vand.u32 %v1070, 4294901760
          %v1156 = vsub.f32 %v1070, %v1155
          %v1157 = vand.u32 %v1156, 4294901760
          %v1158 = vsub.f32 %v1156, %v1157
          %v1159 = vand.u32 %v1158, 4294901760
          %1160 = vmatpush1.msra.mxu0 %v1159
          %1161 = vmatprep.subr.mxu0 0.0
          %v1162 = vand.u32 %v1071, 4294901760
          %v1163 = vsub.f32 %v1071, %v1162
          %v1164 = vand.u32 %v1163, 4294901760
          %v1165 = vsub.f32 %v1163, %v1164
          %v1166 = vand.u32 %v1165, 4294901760
          %1167 = vmatpush1.msra.mxu0 %v1166
          %1168 = vmatprep.subr.mxu0 0.0
          %1169 = vmatpush1.msra.mxu0 0.0
          %1170 = vmatprep.subr.mxu0 0.0
          %1171 = vmatpush1.msra.mxu0 0.0
          %1172 = vmatprep.subr.mxu0 0.0
          %1173 = vmatpush1.msra.mxu0 0.0
          %1174 = vmatprep.subr.mxu0 0.0
          %1175 = vmatpush1.msra.mxu0 0.0
          %1176 = vmatprep.subr.mxu0 0.0
          %1177 = vmatpush1.msra.mxu0 0.0
          %1178 = vmatprep.subr.mxu0 0.0
          %1179 = vmatpush1.msra.mxu0 0.0
          %1180 = vmatprep.subr.mxu0 0.0
          %1181 = vmatpush1.msra.mxu0 0.0
          %1182 = vmatprep.subr.mxu0 0.0
          %1183 = vmatpush1.msra.mxu0 0.0
          %1184 = vmatprep.subr.mxu0 0.0
          %1185 = vmatpush1.msra.mxu0 0.0
          %1186 = vmatprep.subr.mxu0 0.0
          %1187 = vmatpush1.msra.mxu0 0.0
          %1188 = vmatprep.subr.mxu0 0.0
          %1189 = vmatpush1.msra.mxu0 0.0
          %1190 = vmatprep.subr.mxu0 0.0
          %1191 = vmatpush1.msra.mxu0 0.0
          %1192 = vmatprep.subr.mxu0 0.0
          %1193 = vmatpush1.msra.mxu0 0.0
          %1194 = vmatprep.subr.mxu0 0.0
          %1195 = vmatpush1.msra.mxu0 0.0
          %1196 = vmatprep.subr.mxu0 0.0
          %1197 = vmatpush1.msra.mxu0 0.0
          %1198 = vmatprep.subr.mxu0 0.0
          %1199 = vmatpush1.msra.mxu0 0.0
          %1200 = vmatprep.subr.mxu0 0.0
          %1201 = vmatpush1.msra.mxu0 0.0
          %1202 = vmatprep.subr.mxu0 0.0
          %1203 = vmatpush1.msra.mxu0 0.0
          %1204 = vmatprep.subr.mxu0 0.0
          %1205 = vmatpush1.msra.mxu0 0.0
          %1206 = vmatprep.subr.mxu0 0.0
          %1207 = vmatpush1.msra.mxu0 0.0
          %1208 = vmatprep.subr.mxu0 0.0
          %1209 = vmatpush1.msra.mxu0 0.0
          %1210 = vmatprep.subr.mxu0 0.0
          %1211 = vmatpush1.msra.mxu0 0.0
          %1212 = vmatprep.subr.mxu0 0.0
          %1213 = vmatpush1.msra.mxu0 0.0
          %1214 = vmatprep.subr.mxu0 0.0
          %1215 = vmatpush1.msra.mxu0 0.0
          %1216 = vmatprep.subr.mxu0 0.0
          %1217 = vmatpush1.msra.mxu0 0.0
          %1218 = vmatprep.subr.mxu0 0.0
          %1219 = vmatpush1.msra.mxu0 0.0
          %1220 = vmatprep.subr.mxu0 0.0
          %1221 = vmatpush1.msra.mxu0 0.0
          %1222 = vmatprep.subr.mxu0 0.0
          %1223 = vmatpush1.msra.mxu0 0.0
          %1224 = vmatprep.subr.mxu0 0.0
          %1225 = vmatpush1.msra.mxu0 0.0
          %1226 = vmatprep.subr.mxu0 0.0
          %1227 = vmatpush1.msra.mxu0 0.0
          %1228 = vmatprep.mubr.f32.mxu0 0.0
          %v1229 = vand.u32 %v1075, 4294901760
          %1230 = vmatmul.mubr.f32.gmra.mrb[0].mxu0 %v1229
          %v1231 = vpop.f32.mrb[0].mxu0
          %v1232 = vadd.f32 %v1151, %v1231
          %v1233 = vpop.f32.mrb[0].mxu0
          %1234 = vdwg.mxu0
          %1235 = vmatprep.subr.mxu0 0.0
          %v1236 = vand.u32 %v1070, 4294901760
          %v1237 = vsub.f32 %v1070, %v1236
          %1238 = vmatpush1.msra.mxu0 %v1237
          %1239 = vmatprep.subr.mxu0 0.0
          %v1240 = vand.u32 %v1071, 4294901760
          %v1241 = vsub.f32 %v1071, %v1240
          %1242 = vmatpush1.msra.mxu0 %v1241
          %1243 = vmatprep.subr.mxu0 0.0
          %1244 = vmatpush1.msra.mxu0 0.0
          %1245 = vmatprep.subr.mxu0 0.0
          %1246 = vmatpush1.msra.mxu0 0.0
          %1247 = vmatprep.subr.mxu0 0.0
          %1248 = vmatpush1.msra.mxu0 0.0
          %1249 = vmatprep.subr.mxu0 0.0
          %1250 = vmatpush1.msra.mxu0 0.0
          %1251 = vmatprep.subr.mxu0 0.0
          %1252 = vmatpush1.msra.mxu0 0.0
          %1253 = vmatprep.subr.mxu0 0.0
          %1254 = vmatpush1.msra.mxu0 0.0
          %1255 = vmatprep.subr.mxu0 0.0
          %1256 = vmatpush1.msra.mxu0 0.0
          %1257 = vmatprep.subr.mxu0 0.0
          %1258 = vmatpush1.msra.mxu0 0.0
          %1259 = vmatprep.subr.mxu0 0.0
          %1260 = vmatpush1.msra.mxu0 0.0
          %1261 = vmatprep.subr.mxu0 0.0
          %1262 = vmatpush1.msra.mxu0 0.0
          %1263 = vmatprep.subr.mxu0 0.0
          %1264 = vmatpush1.msra.mxu0 0.0
          %1265 = vmatprep.subr.mxu0 0.0
          %1266 = vmatpush1.msra.mxu0 0.0
          %1267 = vmatprep.subr.mxu0 0.0
          %1268 = vmatpush1.msra.mxu0 0.0
          %1269 = vmatprep.subr.mxu0 0.0
          %1270 = vmatpush1.msra.mxu0 0.0
          %1271 = vmatprep.subr.mxu0 0.0
          %1272 = vmatpush1.msra.mxu0 0.0
          %1273 = vmatprep.subr.mxu0 0.0
          %1274 = vmatpush1.msra.mxu0 0.0
          %1275 = vmatprep.subr.mxu0 0.0
          %1276 = vmatpush1.msra.mxu0 0.0
          %1277 = vmatprep.subr.mxu0 0.0
          %1278 = vmatpush1.msra.mxu0 0.0
          %1279 = vmatprep.subr.mxu0 0.0
          %1280 = vmatpush1.msra.mxu0 0.0
          %1281 = vmatprep.subr.mxu0 0.0
          %1282 = vmatpush1.msra.mxu0 0.0
          %1283 = vmatprep.subr.mxu0 0.0
          %1284 = vmatpush1.msra.mxu0 0.0
          %1285 = vmatprep.subr.mxu0 0.0
          %1286 = vmatpush1.msra.mxu0 0.0
          %1287 = vmatprep.subr.mxu0 0.0
          %1288 = vmatpush1.msra.mxu0 0.0
          %1289 = vmatprep.subr.mxu0 0.0
          %1290 = vmatpush1.msra.mxu0 0.0
          %1291 = vmatprep.subr.mxu0 0.0
          %1292 = vmatpush1.msra.mxu0 0.0
          %1293 = vmatprep.subr.mxu0 0.0
          %1294 = vmatpush1.msra.mxu0 0.0
          %1295 = vmatprep.subr.mxu0 0.0
          %1296 = vmatpush1.msra.mxu0 0.0
          %1297 = vmatprep.subr.mxu0 0.0
          %1298 = vmatpush1.msra.mxu0 0.0
          %1299 = vmatprep.subr.mxu0 0.0
          %1300 = vmatpush1.msra.mxu0 0.0
          %1301 = vmatprep.subr.mxu0 0.0
          %1302 = vmatpush1.msra.mxu0 0.0
          %1303 = vmatprep.mubr.f32.mxu0 0.0
          %v1304 = vand.u32 %v1075, 4294901760
          %v1305 = vsub.f32 %v1075, %v1304
          %1306 = vmatmul.mubr.f32.gmra.mrb[0].mxu0 %v1305
          %v1307 = vpop.f32.mrb[0].mxu0
          %v1308 = vadd.f32 %v1232, %v1307
          %v1309 = vpop.f32.mrb[0].mxu0
          %1310 = vdwg.mxu0
          %1311 = vmatprep.subr.mxu0 0.0
          %v1312 = vand.u32 %v1070, 4294901760
          %1313 = vmatpush1.msra.mxu0 %v1312
          %1314 = vmatprep.subr.mxu0 0.0
          %v1315 = vand.u32 %v1071, 4294901760
          %1316 = vmatpush1.msra.mxu0 %v1315
          %1317 = vmatprep.subr.mxu0 0.0
          %1318 = vmatpush1.msra.mxu0 0.0
          %1319 = vmatprep.subr.mxu0 0.0
          %1320 = vmatpush1.msra.mxu0 0.0
          %1321 = vmatprep.subr.mxu0 0.0
          %1322 = vmatpush1.msra.mxu0 0.0
          %1323 = vmatprep.subr.mxu0 0.0
          %1324 = vmatpush1.msra.mxu0 0.0
          %1325 = vmatprep.subr.mxu0 0.0
          %1326 = vmatpush1.msra.mxu0 0.0
          %1327 = vmatprep.subr.mxu0 0.0
          %1328 = vmatpush1.msra.mxu0 0.0
          %1329 = vmatprep.subr.mxu0 0.0
          %1330 = vmatpush1.msra.mxu0 0.0
          %1331 = vmatprep.subr.mxu0 0.0
          %1332 = vmatpush1.msra.mxu0 0.0
          %1333 = vmatprep.subr.mxu0 0.0
          %1334 = vmatpush1.msra.mxu0 0.0
          %1335 = vmatprep.subr.mxu0 0.0
          %1336 = vmatpush1.msra.mxu0 0.0
          %1337 = vmatprep.subr.mxu0 0.0
          %1338 = vmatpush1.msra.mxu0 0.0
          %1339 = vmatprep.subr.mxu0 0.0
          %1340 = vmatpush1.msra.mxu0 0.0
          %1341 = vmatprep.subr.mxu0 0.0
          %1342 = vmatpush1.msra.mxu0 0.0
          %1343 = vmatprep.subr.mxu0 0.0
          %1344 = vmatpush1.msra.mxu0 0.0
          %1345 = vmatprep.subr.mxu0 0.0
          %1346 = vmatpush1.msra.mxu0 0.0
          %1347 = vmatprep.subr.mxu0 0.0
          %1348 = vmatpush1.msra.mxu0 0.0
          %1349 = vmatprep.subr.mxu0 0.0
          %1350 = vmatpush1.msra.mxu0 0.0
          %1351 = vmatprep.subr.mxu0 0.0
          %1352 = vmatpush1.msra.mxu0 0.0
          %1353 = vmatprep.subr.mxu0 0.0
          %1354 = vmatpush1.msra.mxu0 0.0
          %1355 = vmatprep.subr.mxu0 0.0
          %1356 = vmatpush1.msra.mxu0 0.0
          %1357 = vmatprep.subr.mxu0 0.0
          %1358 = vmatpush1.msra.mxu0 0.0
          %1359 = vmatprep.subr.mxu0 0.0
          %1360 = vmatpush1.msra.mxu0 0.0
          %1361 = vmatprep.subr.mxu0 0.0
          %1362 = vmatpush1.msra.mxu0 0.0
          %1363 = vmatprep.subr.mxu0 0.0
          %1364 = vmatpush1.msra.mxu0 0.0
          %1365 = vmatprep.subr.mxu0 0.0
          %1366 = vmatpush1.msra.mxu0 0.0
          %1367 = vmatprep.subr.mxu0 0.0
          %1368 = vmatpush1.msra.mxu0 0.0
          %1369 = vmatprep.subr.mxu0 0.0
          %1370 = vmatpush1.msra.mxu0 0.0
          %1371 = vmatprep.subr.mxu0 0.0
          %1372 = vmatpush1.msra.mxu0 0.0
          %1373 = vmatprep.subr.mxu0 0.0
          %1374 = vmatpush1.msra.mxu0 0.0
          %1375 = vmatprep.subr.mxu0 0.0
          %1376 = vmatpush1.msra.mxu0 0.0
          %1377 = vmatprep.mubr.f32.mxu0 0.0
          %v1378 = vand.u32 %v1075, 4294901760
          %v1379 = vsub.f32 %v1075, %v1378
          %v1380 = vand.u32 %v1379, 4294901760
          %1381 = vmatmul.mubr.f32.gmra.mrb[0].mxu0 %v1380
          %v1382 = vpop.f32.mrb[0].mxu0
          %v1383 = vadd.f32 %v1308, %v1382
          %v1384 = vpop.f32.mrb[0].mxu0
          %1385 = vdwg.mxu0
          %1386 = vmatprep.subr.mxu0 0.0
          %v1387 = vand.u32 %v1070, 4294901760
          %v1388 = vsub.f32 %v1070, %v1387
          %v1389 = vand.u32 %v1388, 4294901760
          %1390 = vmatpush1.msra.mxu0 %v1389
          %1391 = vmatprep.subr.mxu0 0.0
          %v1392 = vand.u32 %v1071, 4294901760
          %v1393 = vsub.f32 %v1071, %v1392
          %v1394 = vand.u32 %v1393, 4294901760
          %1395 = vmatpush1.msra.mxu0 %v1394
          %1396 = vmatprep.subr.mxu0 0.0
          %1397 = vmatpush1.msra.mxu0 0.0
          %1398 = vmatprep.subr.mxu0 0.0
          %1399 = vmatpush1.msra.mxu0 0.0
          %1400 = vmatprep.subr.mxu0 0.0
          %1401 = vmatpush1.msra.mxu0 0.0
          %1402 = vmatprep.subr.mxu0 0.0
          %1403 = vmatpush1.msra.mxu0 0.0
          %1404 = vmatprep.subr.mxu0 0.0
          %1405 = vmatpush1.msra.mxu0 0.0
          %1406 = vmatprep.subr.mxu0 0.0
          %1407 = vmatpush1.msra.mxu0 0.0
          %1408 = vmatprep.subr.mxu0 0.0
          %1409 = vmatpush1.msra.mxu0 0.0
          %1410 = vmatprep.subr.mxu0 0.0
          %1411 = vmatpush1.msra.mxu0 0.0
          %1412 = vmatprep.subr.mxu0 0.0
          %1413 = vmatpush1.msra.mxu0 0.0
          %1414 = vmatprep.subr.mxu0 0.0
          %1415 = vmatpush1.msra.mxu0 0.0
          %1416 = vmatprep.subr.mxu0 0.0
          %1417 = vmatpush1.msra.mxu0 0.0
          %1418 = vmatprep.subr.mxu0 0.0
          %1419 = vmatpush1.msra.mxu0 0.0
          %1420 = vmatprep.subr.mxu0 0.0
          %1421 = vmatpush1.msra.mxu0 0.0
          %1422 = vmatprep.subr.mxu0 0.0
          %1423 = vmatpush1.msra.mxu0 0.0
          %1424 = vmatprep.subr.mxu0 0.0
          %1425 = vmatpush1.msra.mxu0 0.0
          %1426 = vmatprep.subr.mxu0 0.0
          %1427 = vmatpush1.msra.mxu0 0.0
          %1428 = vmatprep.subr.mxu0 0.0
          %1429 = vmatpush1.msra.mxu0 0.0
          %1430 = vmatprep.subr.mxu0 0.0
          %1431 = vmatpush1.msra.mxu0 0.0
          %1432 = vmatprep.subr.mxu0 0.0
          %1433 = vmatpush1.msra.mxu0 0.0
          %1434 = vmatprep.subr.mxu0 0.0
          %1435 = vmatpush1.msra.mxu0 0.0
          %1436 = vmatprep.subr.mxu0 0.0
          %1437 = vmatpush1.msra.mxu0 0.0
          %1438 = vmatprep.subr.mxu0 0.0
          %1439 = vmatpush1.msra.mxu0 0.0
          %1440 = vmatprep.subr.mxu0 0.0
          %1441 = vmatpush1.msra.mxu0 0.0
          %1442 = vmatprep.subr.mxu0 0.0
          %1443 = vmatpush1.msra.mxu0 0.0
          %1444 = vmatprep.subr.mxu0 0.0
          %1445 = vmatpush1.msra.mxu0 0.0
          %1446 = vmatprep.subr.mxu0 0.0
          %1447 = vmatpush1.msra.mxu0 0.0
          %1448 = vmatprep.subr.mxu0 0.0
          %1449 = vmatpush1.msra.mxu0 0.0
          %1450 = vmatprep.subr.mxu0 0.0
          %1451 = vmatpush1.msra.mxu0 0.0
          %1452 = vmatprep.subr.mxu0 0.0
          %1453 = vmatpush1.msra.mxu0 0.0
          %1454 = vmatprep.subr.mxu0 0.0
          %1455 = vmatpush1.msra.mxu0 0.0
          %1456 = vmatprep.mubr.f32.mxu0 0.0
          %v1457 = vand.u32 %v1075, 4294901760
          %1458 = vmatmul.mubr.f32.gmra.mrb[0].mxu0 %v1457
          %v1459 = vpop.f32.mrb[0].mxu0
          %v1460 = vadd.f32 %v1383, %v1459
          %v1461 = vpop.f32.mrb[0].mxu0
          %1462 = vdwg.mxu0
          %1463 = vmatprep.subr.mxu0 0.0
          %v1464 = vand.u32 %v1070, 4294901760
          %1465 = vmatpush1.msra.mxu0 %v1464
          %1466 = vmatprep.subr.mxu0 0.0
          %v1467 = vand.u32 %v1071, 4294901760
          %1468 = vmatpush1.msra.mxu0 %v1467
          %1469 = vmatprep.subr.mxu0 0.0
          %1470 = vmatpush1.msra.mxu0 0.0
          %1471 = vmatprep.subr.mxu0 0.0
          %1472 = vmatpush1.msra.mxu0 0.0
          %1473 = vmatprep.subr.mxu0 0.0
          %1474 = vmatpush1.msra.mxu0 0.0
          %1475 = vmatprep.subr.mxu0 0.0
          %1476 = vmatpush1.msra.mxu0 0.0
          %1477 = vmatprep.subr.mxu0 0.0
          %1478 = vmatpush1.msra.mxu0 0.0
          %1479 = vmatprep.subr.mxu0 0.0
          %1480 = vmatpush1.msra.mxu0 0.0
          %1481 = vmatprep.subr.mxu0 0.0
          %1482 = vmatpush1.msra.mxu0 0.0
          %1483 = vmatprep.subr.mxu0 0.0
          %1484 = vmatpush1.msra.mxu0 0.0
          %1485 = vmatprep.subr.mxu0 0.0
          %1486 = vmatpush1.msra.mxu0 0.0
          %1487 = vmatprep.subr.mxu0 0.0
          %1488 = vmatpush1.msra.mxu0 0.0
          %1489 = vmatprep.subr.mxu0 0.0
          %1490 = vmatpush1.msra.mxu0 0.0
          %1491 = vmatprep.subr.mxu0 0.0
          %1492 = vmatpush1.msra.mxu0 0.0
          %1493 = vmatprep.subr.mxu0 0.0
          %1494 = vmatpush1.msra.mxu0 0.0
          %1495 = vmatprep.subr.mxu0 0.0
          %1496 = vmatpush1.msra.mxu0 0.0
          %1497 = vmatprep.subr.mxu0 0.0
          %1498 = vmatpush1.msra.mxu0 0.0
          %1499 = vmatprep.subr.mxu0 0.0
          %1500 = vmatpush1.msra.mxu0 0.0
          %1501 = vmatprep.subr.mxu0 0.0
          %1502 = vmatpush1.msra.mxu0 0.0
          %1503 = vmatprep.subr.mxu0 0.0
          %1504 = vmatpush1.msra.mxu0 0.0
          %1505 = vmatprep.subr.mxu0 0.0
          %1506 = vmatpush1.msra.mxu0 0.0
          %1507 = vmatprep.subr.mxu0 0.0
          %1508 = vmatpush1.msra.mxu0 0.0
          %1509 = vmatprep.subr.mxu0 0.0
          %1510 = vmatpush1.msra.mxu0 0.0
          %1511 = vmatprep.subr.mxu0 0.0
          %1512 = vmatpush1.msra.mxu0 0.0
          %1513 = vmatprep.subr.mxu0 0.0
          %1514 = vmatpush1.msra.mxu0 0.0
          %1515 = vmatprep.subr.mxu0 0.0
          %1516 = vmatpush1.msra.mxu0 0.0
          %1517 = vmatprep.subr.mxu0 0.0
          %1518 = vmatpush1.msra.mxu0 0.0
          %1519 = vmatprep.subr.mxu0 0.0
          %1520 = vmatpush1.msra.mxu0 0.0
          %1521 = vmatprep.subr.mxu0 0.0
          %1522 = vmatpush1.msra.mxu0 0.0
          %1523 = vmatprep.subr.mxu0 0.0
          %1524 = vmatpush1.msra.mxu0 0.0
          %1525 = vmatprep.subr.mxu0 0.0
          %1526 = vmatpush1.msra.mxu0 0.0
          %1527 = vmatprep.subr.mxu0 0.0
          %1528 = vmatpush1.msra.mxu0 0.0
          %1529 = vmatprep.mubr.f32.mxu0 0.0
          %v1530 = vand.u32 %v1075, 4294901760
          %1531 = vmatmul.mubr.f32.gmra.mrb[0].mxu0 %v1530
          %v1532 = vpop.f32.mrb[0].mxu0
          %v1533 = vadd.f32 %v1460, %v1532
          %v1534 = vpop.f32.mrb[0].mxu0
          %1535 = vdwg.mxu0
          %v1536 = vld [vmem:[%s6] sm:$0x1]
          %v1537 = vld [vmem:[#allocation11] sm:$0x1]
          %v1538 = vld [vmem:[#allocation13] sm:$0x1]
          %v1539 = vld [vmem:[#allocation14] sm:$0x1]
          %v1540 = vsel %vm581, %v1067, 0.0
          %1541 = vadd.xlane.f32.xlu0 %v1540
          %v1542 = vpop.xlane.xlu0 %1541
          %v1543 = vrcp.pop 32.0
          %v1544 = vmul.f32 %v1542, %v1543
          %v1545 = vsub.f32 %v1067, %v1544
          %v1546 = vmul.f32 %v1545, %v1545
          %v1547 = vsel %vm581, %v1546, 0.0
          %1548 = vadd.xlane.f32.xlu0 %v1547
          %v1549 = vpop.xlane.xlu0 %1548
          %v1550 = vmul.f32 %v1549, %v1543
          %v1551 = vadd.f32 %v1550, 1e-05
          %v1552 = vrsqrt.pop %v1551
          %v1553 = vmul.f32 %v1545, %v1552
          %v1555 = vlaneseq
          %v1556 = vshrl.u32 %v1555, 7
          %v1557 = vsub.s32 0, %v1556
          %v1558 = vrot.slane %v1536, %v1557
          %v1560 = vmul.f32 %v1553, %v1558
          %v1562 = vlaneseq
          %v1563 = vshrl.u32 %v1562, 7
          %v1564 = vsub.s32 0, %v1563
          %v1565 = vrot.slane %v1537, %v1564
          %v1567 = vadd.f32 %v1560, %v1565
          %vm1568 = vcmask 253952
          %v1569 = vsel %vm1568, %v1533, 0.0
          %1570 = vadd.xlane.f32.xlu0 %v1569
          %v1571 = vpop.xlane.xlu0 %1570
          %v1572 = vmul.f32 %v1571, %v1543
          %v1573 = vsub.f32 %v1533, %v1572
          %v1574 = vmul.f32 %v1573, %v1573
          %v1575 = vsel %vm1568, %v1574, 0.0
          %1576 = vadd.xlane.f32.xlu0 %v1575
          %v1577 = vpop.xlane.xlu0 %1576
          %v1578 = vmul.f32 %v1577, %v1543
          %v1579 = vadd.f32 %v1578, 1e-05
          %v1580 = vrsqrt.pop %v1579
          %v1581 = vmul.f32 %v1573, %v1580
          %v1582 = vmul.f32 %v1581, %v1538
          %v1583 = vadd.f32 %v1582, %v1539
          %v1584 = vlaneseq
          %v1585 = vshrl.u32 %v1584, 7
          %v1586 = vsub.s32 0, %v1585
          %v1587 = vrot.slane %v1583, %v1586
          %v1588 = vadd.f32 %v1567, %v1587
          %vm1589 = vcmask 64512
          %1590 = vst.msk [vmem:[#allocation2] sm:$0xff] %vm1589, %v1588
          %1592 = vrot.lane.b32.xlu0 %v1588, 120
          %v1593 = vpop.permute.xlu0 %1592
          %s1595 = scalar_lea.vmem [#allocation2], 8
          %1596 = vst.msk [vmem:[%s1595] sm:$0xff] %vm1589, %v1593
          %1597 = vrot.lane.b32.xlu0 %v1588, 112
          %v1598 = vpop.permute.xlu0 %1597
          %s1600 = scalar_lea.vmem [#allocation2], 16
          %1601 = vst.msk [vmem:[%s1600] sm:$0xff] %vm1589, %v1598
          %1602 = vrot.lane.b32.xlu0 %v1588, 104
          %v1603 = vpop.permute.xlu0 %1602
          %s1605 = scalar_lea.vmem [#allocation2], 24
          %1606 = vst.msk [vmem:[%s1605] sm:$0xff] %vm1589, %v1603
          %1608 = vrot.lane.b32.xlu0 %v1067, 96
          %v1609 = vpop.permute.xlu0 %1608
          %v1611 = vsel %vm581, %v1609, 0.0
          %1612 = vadd.xlane.f32.xlu0 %v1611
          %v1613 = vpop.xlane.xlu0 %1612
          %v1614 = vmul.f32 %v1613, %v1543
          %v1615 = vsub.f32 %v1067, %v1614
          %v1616 = vmul.f32 %v1615, %v1615
          %1618 = vrot.lane.b32.xlu0 %v1616, 96
          %v1619 = vpop.permute.xlu0 %1618
          %v1621 = vsel %vm581, %v1619, 0.0
          %1622 = vadd.xlane.f32.xlu0 %v1621
          %v1623 = vpop.xlane.xlu0 %1622
          %v1624 = vmul.f32 %v1623, %v1543
          %v1625 = vadd.f32 %v1624, 1e-05
          %v1626 = vrsqrt.pop %v1625
          %v1627 = vmul.f32 %v1615, %v1626
          %v1628 = vmul.f32 %v1627, %v1558
          %v1629 = vadd.f32 %v1628, %v1565
          %1631 = vrot.lane.b32.xlu0 %v1533, 96
          %v1632 = vpop.permute.xlu0 %1631
          %v1634 = vsel %vm1568, %v1632, 0.0
          %1635 = vadd.xlane.f32.xlu0 %v1634
          %v1636 = vpop.xlane.xlu0 %1635
          %v1637 = vmul.f32 %v1636, %v1543
          %v1638 = vsub.f32 %v1533, %v1637
          %v1639 = vmul.f32 %v1638, %v1638
          %1641 = vrot.lane.b32.xlu0 %v1639, 96
          %v1642 = vpop.permute.xlu0 %1641
          %v1644 = vsel %vm1568, %v1642, 0.0
          %1645 = vadd.xlane.f32.xlu0 %v1644
          %v1646 = vpop.xlane.xlu0 %1645
          %v1647 = vmul.f32 %v1646, %v1543
          %v1648 = vadd.f32 %v1647, 1e-05
          %v1649 = vrsqrt.pop %v1648
          %v1650 = vmul.f32 %v1638, %v1649
          %v1651 = vmul.f32 %v1650, %v1538
          %v1652 = vadd.f32 %v1651, %v1539
          %v1653 = vlaneseq
          %v1654 = vshrl.u32 %v1653, 7
          %v1655 = vsub.s32 0, %v1654
          %v1656 = vrot.slane %v1652, %v1655
          %v1657 = vadd.f32 %v1629, %v1656
          %1659 = vrot.lane.b32.xlu0 %v1657, 96
          %v1660 = vpop.permute.xlu0 %1659
          %1662 = vst.msk [vmem:[#allocation3] sm:$0xff] %vm1589, %v1660
          %1663 = vrot.lane.b32.xlu0 %v1657, 88
          %v1664 = vpop.permute.xlu0 %1663
          %s1666 = scalar_lea.vmem [#allocation3], 8
          %1667 = vst.msk [vmem:[%s1666] sm:$0xff] %vm1589, %v1664
          %1668 = vrot.lane.b32.xlu0 %v1657, 80
          %v1669 = vpop.permute.xlu0 %1668
          %s1671 = scalar_lea.vmem [#allocation3], 16
          %1672 = vst.msk [vmem:[%s1671] sm:$0xff] %vm1589, %v1669
          %1673 = vrot.lane.b32.xlu0 %v1657, 72
          %v1674 = vpop.permute.xlu0 %1673
          %s1676 = scalar_lea.vmem [#allocation3], 24
          %1677 = vst.msk [vmem:[%s1676] sm:$0xff] %vm1589, %v1674
          %1678 = vrot.lane.b32.xlu0 %v1067, 64
          %v1679 = vpop.permute.xlu0 %1678
          %v1681 = vsel %vm581, %v1679, 0.0
          %1682 = vadd.xlane.f32.xlu0 %v1681
          %v1683 = vpop.xlane.xlu0 %1682
          %v1684 = vmul.f32 %v1683, %v1543
          %v1685 = vsub.f32 %v1067, %v1684
          %v1686 = vmul.f32 %v1685, %v1685
          %1688 = vrot.lane.b32.xlu0 %v1686, 64
          %v1689 = vpop.permute.xlu0 %1688
          %v1691 = vsel %vm581, %v1689, 0.0
          %1692 = vadd.xlane.f32.xlu0 %v1691
          %v1693 = vpop.xlane.xlu0 %1692
          %v1694 = vmul.f32 %v1693, %v1543
          %v1695 = vadd.f32 %v1694, 1e-05
          %v1696 = vrsqrt.pop %v1695
          %v1697 = vmul.f32 %v1685, %v1696
          %v1698 = vmul.f32 %v1697, %v1558
          %v1699 = vadd.f32 %v1698, %v1565
          %1700 = vrot.lane.b32.xlu0 %v1533, 64
          %v1701 = vpop.permute.xlu0 %1700
          %v1703 = vsel %vm1568, %v1701, 0.0
          %1704 = vadd.xlane.f32.xlu0 %v1703
          %v1705 = vpop.xlane.xlu0 %1704
          %v1706 = vmul.f32 %v1705, %v1543
          %v1707 = vsub.f32 %v1533, %v1706
          %v1708 = vmul.f32 %v1707, %v1707
          %1710 = vrot.lane.b32.xlu0 %v1708, 64
          %v1711 = vpop.permute.xlu0 %1710
          %v1713 = vsel %vm1568, %v1711, 0.0
          %1714 = vadd.xlane.f32.xlu0 %v1713
          %v1715 = vpop.xlane.xlu0 %1714
          %v1716 = vmul.f32 %v1715, %v1543
          %v1717 = vadd.f32 %v1716, 1e-05
          %v1718 = vrsqrt.pop %v1717
          %v1719 = vmul.f32 %v1707, %v1718
          %v1720 = vmul.f32 %v1719, %v1538
          %v1721 = vadd.f32 %v1720, %v1539
          %v1722 = vlaneseq
          %v1723 = vshrl.u32 %v1722, 7
          %v1724 = vsub.s32 0, %v1723
          %v1725 = vrot.slane %v1721, %v1724
          %v1726 = vadd.f32 %v1699, %v1725
          %1728 = vrot.lane.b32.xlu0 %v1726, 64
          %v1729 = vpop.permute.xlu0 %1728
          %1731 = vst.msk [vmem:[#allocation4] sm:$0xff] %vm1589, %v1729
          %1732 = vrot.lane.b32.xlu0 %v1726, 56
          %v1733 = vpop.permute.xlu0 %1732
          %s1735 = scalar_lea.vmem [#allocation4], 8
          %1736 = vst.msk [vmem:[%s1735] sm:$0xff] %vm1589, %v1733
          %1737 = vrot.lane.b32.xlu0 %v1726, 48
          %v1738 = vpop.permute.xlu0 %1737
          %s1740 = scalar_lea.vmem [#allocation4], 16
          %1741 = vst.msk [vmem:[%s1740] sm:$0xff] %vm1589, %v1738
          %1742 = vrot.lane.b32.xlu0 %v1726, 40
          %v1743 = vpop.permute.xlu0 %1742
          %s1745 = scalar_lea.vmem [#allocation4], 24
          %1746 = vst.msk [vmem:[%s1745] sm:$0xff] %vm1589, %v1743
        $region96: #{tpu_custom_call.1} parent=67 // pred_fallthru
          _
        %v1747 = vld [vmem:[#allocation2] sm:$0xff]
        %v1748 = vld [vmem:[#allocation2 + $0x8] sm:$0xff]
        %v1749 = vld [vmem:[#allocation2 + $0x10] sm:$0xff]
        %v1750 = vld [vmem:[#allocation2 + $0x18] sm:$0xff]
        %v1751 = vld [vmem:[#allocation3] sm:$0xff]
        %v1752 = vld [vmem:[#allocation3 + $0x8] sm:$0xff]
        %v1753 = vld [vmem:[#allocation3 + $0x10] sm:$0xff]
        %v1754 = vld [vmem:[#allocation3 + $0x18] sm:$0xff]
        %v1755 = vld [vmem:[#allocation4] sm:$0xff]
        %v1756 = vld [vmem:[#allocation4 + $0x8] sm:$0xff]
        %v1757 = vld [vmem:[#allocation4 + $0x10] sm:$0xff]
        %v1758 = vld [vmem:[#allocation4 + $0x18] sm:$0xff]
        %vm1759 = vcmask 64512
        %v1761 = vsel %vm1759, %v1747, 0
        %v1764 = vsel %vm1759, %v1751, 0
        %1766 = vmatprep.subr.mxu0 0.0
        %v1767 = vand.u32 %v1764, 4294901760
        %1768 = vmatpush1.xpose.msra.mxu0 %v1767
        %1769 = vmatprep.subr.mxu0 0.0
        %1770 = vmatpush1.xpose.msra.mxu0 0.0
        %1771 = vmatprep.subr.mxu0 0.0
        %1772 = vmatpush1.xpose.msra.mxu0 0.0
        %1773 = vmatprep.subr.mxu0 0.0
        %1774 = vmatpush1.xpose.msra.mxu0 0.0
        %1775 = vmatprep.subr.mxu0 0.0
        %1776 = vmatpush1.xpose.msra.mxu0 0.0
        %1777 = vmatprep.subr.mxu0 0.0
        %1778 = vmatpush1.xpose.msra.mxu0 0.0
        %1779 = vmatprep.subr.mxu0 0.0
        %1780 = vmatpush1.xpose.msra.mxu0 0.0
        %1781 = vmatprep.subr.mxu0 0.0
        %1782 = vmatpush1.xpose.msra.mxu0 0.0
        %1783 = vmatprep.subr.mxu0 0.0
        %1784 = vmatpush1.xpose.msra.mxu0 0.0
        %1785 = vmatprep.subr.mxu0 0.0
        %1786 = vmatpush1.xpose.msra.mxu0 0.0
        %1787 = vmatprep.subr.mxu0 0.0
        %1788 = vmatpush1.xpose.msra.mxu0 0.0
        %1789 = vmatprep.subr.mxu0 0.0
        %1790 = vmatpush1.xpose.msra.mxu0 0.0
        %1791 = vmatprep.subr.mxu0 0.0
        %1792 = vmatpush1.xpose.msra.mxu0 0.0
        %1793 = vmatprep.subr.mxu0 0.0
        %1794 = vmatpush1.xpose.msra.mxu0 0.0
        %1795 = vmatprep.subr.mxu0 0.0
        %1796 = vmatpush1.xpose.msra.mxu0 0.0
        %1797 = vmatprep.subr.mxu0 0.0
        %1798 = vmatpush1.xpose.msra.mxu0 0.0
        %1799 = vmatprep.subr.mxu0 0.0
        %1800 = vmatpush1.xpose.msra.mxu0 0.0
        %1801 = vmatprep.subr.mxu0 0.0
        %1802 = vmatpush1.xpose.msra.mxu0 0.0
        %1803 = vmatprep.subr.mxu0 0.0
        %1804 = vmatpush1.xpose.msra.mxu0 0.0
        %1805 = vmatprep.subr.mxu0 0.0
        %1806 = vmatpush1.xpose.msra.mxu0 0.0
        %1807 = vmatprep.subr.mxu0 0.0
        %1808 = vmatpush1.xpose.msra.mxu0 0.0
        %1809 = vmatprep.subr.mxu0 0.0
        %1810 = vmatpush1.xpose.msra.mxu0 0.0
        %1811 = vmatprep.subr.mxu0 0.0
        %1812 = vmatpush1.xpose.msra.mxu0 0.0
        %1813 = vmatprep.subr.mxu0 0.0
        %1814 = vmatpush1.xpose.msra.mxu0 0.0
        %1815 = vmatprep.subr.mxu0 0.0
        %1816 = vmatpush1.xpose.msra.mxu0 0.0
        %1817 = vmatprep.subr.mxu0 0.0
        %1818 = vmatpush1.xpose.msra.mxu0 0.0
        %1819 = vmatprep.subr.mxu0 0.0
        %1820 = vmatpush1.xpose.msra.mxu0 0.0
        %1821 = vmatprep.subr.mxu0 0.0
        %1822 = vmatpush1.xpose.msra.mxu0 0.0
        %1823 = vmatprep.subr.mxu0 0.0
        %1824 = vmatpush1.xpose.msra.mxu0 0.0
        %1825 = vmatprep.subr.mxu0 0.0
        %1826 = vmatpush1.xpose.msra.mxu0 0.0
        %1827 = vmatprep.subr.mxu0 0.0
        %1828 = vmatpush1.xpose.msra.mxu0 0.0
        %1829 = vmatprep.subr.mxu0 0.0
        %1830 = vmatpush1.xpose.msra.mxu0 0.0
        %1831 = vmatprep.mubr.f32.mxu0 0.0
        %v1832 = vand.u32 %v1761, 4294901760
        %v1833 = vsub.f32 %v1761, %v1832
        %v1834 = vand.u32 %v1833, 4294901760
        %v1835 = vsub.f32 %v1833, %v1834
        %v1836 = vand.u32 %v1835, 4294901760
        %1837 = vmatmul.mubr.f32.gmra.mrb[0].mxu0 %v1836
        %v1838 = vpop.f32.mrb[0].mxu0
        %v1839 = vadd.f32 0.0, %v1838
        %v1840 = vpop.f32.mrb[0].mxu0
        %1841 = vdwg.mxu0
        %1842 = vmatprep.subr.mxu0 0.0
        %v1843 = vand.u32 %v1764, 4294901760
        %v1844 = vsub.f32 %v1764, %v1843
        %v1845 = vand.u32 %v1844, 4294901760
        %v1846 = vsub.f32 %v1844, %v1845
        %v1847 = vand.u32 %v1846, 4294901760
        %1848 = vmatpush1.xpose.msra.mxu0 %v1847
        %1849 = vmatprep.subr.mxu0 0.0
        %1850 = vmatpush1.xpose.msra.mxu0 0.0
        %1851 = vmatprep.subr.mxu0 0.0
        %1852 = vmatpush1.xpose.msra.mxu0 0.0
        %1853 = vmatprep.subr.mxu0 0.0
        %1854 = vmatpush1.xpose.msra.mxu0 0.0
        %1855 = vmatprep.subr.mxu0 0.0
        %1856 = vmatpush1.xpose.msra.mxu0 0.0
        %1857 = vmatprep.subr.mxu0 0.0
        %1858 = vmatpush1.xpose.msra.mxu0 0.0
        %1859 = vmatprep.subr.mxu0 0.0
        %1860 = vmatpush1.xpose.msra.mxu0 0.0
        %1861 = vmatprep.subr.mxu0 0.0
        %1862 = vmatpush1.xpose.msra.mxu0 0.0
        %1863 = vmatprep.subr.mxu0 0.0
        %1864 = vmatpush1.xpose.msra.mxu0 0.0
        %1865 = vmatprep.subr.mxu0 0.0
        %1866 = vmatpush1.xpose.msra.mxu0 0.0
        %1867 = vmatprep.subr.mxu0 0.0
        %1868 = vmatpush1.xpose.msra.mxu0 0.0
        %1869 = vmatprep.subr.mxu0 0.0
        %1870 = vmatpush1.xpose.msra.mxu0 0.0
        %1871 = vmatprep.subr.mxu0 0.0
        %1872 = vmatpush1.xpose.msra.mxu0 0.0
        %1873 = vmatprep.subr.mxu0 0.0
        %1874 = vmatpush1.xpose.msra.mxu0 0.0
        %1875 = vmatprep.subr.mxu0 0.0
        %1876 = vmatpush1.xpose.msra.mxu0 0.0
        %1877 = vmatprep.subr.mxu0 0.0
        %1878 = vmatpush1.xpose.msra.mxu0 0.0
        %1879 = vmatprep.subr.mxu0 0.0
        %1880 = vmatpush1.xpose.msra.mxu0 0.0
        %1881 = vmatprep.subr.mxu0 0.0
        %1882 = vmatpush1.xpose.msra.mxu0 0.0
        %1883 = vmatprep.subr.mxu0 0.0
        %1884 = vmatpush1.xpose.msra.mxu0 0.0
        %1885 = vmatprep.subr.mxu0 0.0
        %1886 = vmatpush1.xpose.msra.mxu0 0.0
        %1887 = vmatprep.subr.mxu0 0.0
        %1888 = vmatpush1.xpose.msra.mxu0 0.0
        %1889 = vmatprep.subr.mxu0 0.0
        %1890 = vmatpush1.xpose.msra.mxu0 0.0
        %1891 = vmatprep.subr.mxu0 0.0
        %1892 = vmatpush1.xpose.msra.mxu0 0.0
        %1893 = vmatprep.subr.mxu0 0.0
        %1894 = vmatpush1.xpose.msra.mxu0 0.0
        %1895 = vmatprep.subr.mxu0 0.0
        %1896 = vmatpush1.xpose.msra.mxu0 0.0
        %1897 = vmatprep.subr.mxu0 0.0
        %1898 = vmatpush1.xpose.msra.mxu0 0.0
        %1899 = vmatprep.subr.mxu0 0.0
        %1900 = vmatpush1.xpose.msra.mxu0 0.0
        %1901 = vmatprep.subr.mxu0 0.0
        %1902 = vmatpush1.xpose.msra.mxu0 0.0
        %1903 = vmatprep.subr.mxu0 0.0
        %1904 = vmatpush1.xpose.msra.mxu0 0.0
        %1905 = vmatprep.subr.mxu0 0.0
        %1906 = vmatpush1.xpose.msra.mxu0 0.0
        %1907 = vmatprep.subr.mxu0 0.0
        %1908 = vmatpush1.xpose.msra.mxu0 0.0
        %1909 = vmatprep.subr.mxu0 0.0
        %1910 = vmatpush1.xpose.msra.mxu0 0.0
        %1911 = vmatprep.mubr.f32.mxu0 0.0
        %v1912 = vand.u32 %v1761, 4294901760
        %1913 = vmatmul.mubr.f32.gmra.mrb[0].mxu0 %v1912
        %v1914 = vpop.f32.mrb[0].mxu0
        %v1915 = vadd.f32 %v1839, %v1914
        %v1916 = vpop.f32.mrb[0].mxu0
        %1917 = vdwg.mxu0
        %1918 = vmatprep.subr.mxu0 0.0
        %v1919 = vand.u32 %v1764, 4294901760
        %v1920 = vsub.f32 %v1764, %v1919
        %1921 = vmatpush1.xpose.msra.mxu0 %v1920
        %1922 = vmatprep.subr.mxu0 0.0
        %1923 = vmatpush1.xpose.msra.mxu0 0.0
        %1924 = vmatprep.subr.mxu0 0.0
        %1925 = vmatpush1.xpose.msra.mxu0 0.0
        %1926 = vmatprep.subr.mxu0 0.0
        %1927 = vmatpush1.xpose.msra.mxu0 0.0
        %1928 = vmatprep.subr.mxu0 0.0
        %1929 = vmatpush1.xpose.msra.mxu0 0.0
        %1930 = vmatprep.subr.mxu0 0.0
        %1931 = vmatpush1.xpose.msra.mxu0 0.0
        %1932 = vmatprep.subr.mxu0 0.0
        %1933 = vmatpush1.xpose.msra.mxu0 0.0
        %1934 = vmatprep.subr.mxu0 0.0
        %1935 = vmatpush1.xpose.msra.mxu0 0.0
        %1936 = vmatprep.subr.mxu0 0.0
        %1937 = vmatpush1.xpose.msra.mxu0 0.0
        %1938 = vmatprep.subr.mxu0 0.0
        %1939 = vmatpush1.xpose.msra.mxu0 0.0
        %1940 = vmatprep.subr.mxu0 0.0
        %1941 = vmatpush1.xpose.msra.mxu0 0.0
        %1942 = vmatprep.subr.mxu0 0.0
        %1943 = vmatpush1.xpose.msra.mxu0 0.0
        %1944 = vmatprep.subr.mxu0 0.0
        %1945 = vmatpush1.xpose.msra.mxu0 0.0
        %1946 = vmatprep.subr.mxu0 0.0
        %1947 = vmatpush1.xpose.msra.mxu0 0.0
        %1948 = vmatprep.subr.mxu0 0.0
        %1949 = vmatpush1.xpose.msra.mxu0 0.0
        %1950 = vmatprep.subr.mxu0 0.0
        %1951 = vmatpush1.xpose.msra.mxu0 0.0
        %1952 = vmatprep.subr.mxu0 0.0
        %1953 = vmatpush1.xpose.msra.mxu0 0.0
        %1954 = vmatprep.subr.mxu0 0.0
        %1955 = vmatpush1.xpose.msra.mxu0 0.0
        %1956 = vmatprep.subr.mxu0 0.0
        %1957 = vmatpush1.xpose.msra.mxu0 0.0
        %1958 = vmatprep.subr.mxu0 0.0
        %1959 = vmatpush1.xpose.msra.mxu0 0.0
        %1960 = vmatprep.subr.mxu0 0.0
        %1961 = vmatpush1.xpose.msra.mxu0 0.0
        %1962 = vmatprep.subr.mxu0 0.0
        %1963 = vmatpush1.xpose.msra.mxu0 0.0
        %1964 = vmatprep.subr.mxu0 0.0
        %1965 = vmatpush1.xpose.msra.mxu0 0.0
        %1966 = vmatprep.subr.mxu0 0.0
        %1967 = vmatpush1.xpose.msra.mxu0 0.0
        %1968 = vmatprep.subr.mxu0 0.0
        %1969 = vmatpush1.xpose.msra.mxu0 0.0
        %1970 = vmatprep.subr.mxu0 0.0
        %1971 = vmatpush1.xpose.msra.mxu0 0.0
        %1972 = vmatprep.subr.mxu0 0.0
        %1973 = vmatpush1.xpose.msra.mxu0 0.0
        %1974 = vmatprep.subr.mxu0 0.0
        %1975 = vmatpush1.xpose.msra.mxu0 0.0
        %1976 = vmatprep.subr.mxu0 0.0
        %1977 = vmatpush1.xpose.msra.mxu0 0.0
        %1978 = vmatprep.subr.mxu0 0.0
        %1979 = vmatpush1.xpose.msra.mxu0 0.0
        %1980 = vmatprep.subr.mxu0 0.0
        %1981 = vmatpush1.xpose.msra.mxu0 0.0
        %1982 = vmatprep.subr.mxu0 0.0
        %1983 = vmatpush1.xpose.msra.mxu0 0.0
        %1984 = vmatprep.mubr.f32.mxu0 0.0
        %v1985 = vand.u32 %v1761, 4294901760
        %v1986 = vsub.f32 %v1761, %v1985
        %1987 = vmatmul.mubr.f32.gmra.mrb[0].mxu0 %v1986
        %v1988 = vpop.f32.mrb[0].mxu0
        %v1989 = vadd.f32 %v1915, %v1988
        %v1990 = vpop.f32.mrb[0].mxu0
        %1991 = vdwg.mxu0
        %1992 = vmatprep.subr.mxu0 0.0
        %v1993 = vand.u32 %v1764, 4294901760
        %1994 = vmatpush1.xpose.msra.mxu0 %v1993
        %1995 = vmatprep.subr.mxu0 0.0
        %1996 = vmatpush1.xpose.msra.mxu0 0.0
        %1997 = vmatprep.subr.mxu0 0.0
        %1998 = vmatpush1.xpose.msra.mxu0 0.0
        %1999 = vmatprep.subr.mxu0 0.0
        %2000 = vmatpush1.xpose.msra.mxu0 0.0
        %2001 = vmatprep.subr.mxu0 0.0
        %2002 = vmatpush1.xpose.msra.mxu0 0.0
        %2003 = vmatprep.subr.mxu0 0.0
        %2004 = vmatpush1.xpose.msra.mxu0 0.0
        %2005 = vmatprep.subr.mxu0 0.0
        %2006 = vmatpush1.xpose.msra.mxu0 0.0
        %2007 = vmatprep.subr.mxu0 0.0
        %2008 = vmatpush1.xpose.msra.mxu0 0.0
        %2009 = vmatprep.subr.mxu0 0.0
        %2010 = vmatpush1.xpose.msra.mxu0 0.0
        %2011 = vmatprep.subr.mxu0 0.0
        %2012 = vmatpush1.xpose.msra.mxu0 0.0
        %2013 = vmatprep.subr.mxu0 0.0
        %2014 = vmatpush1.xpose.msra.mxu0 0.0
        %2015 = vmatprep.subr.mxu0 0.0
        %2016 = vmatpush1.xpose.msra.mxu0 0.0
        %2017 = vmatprep.subr.mxu0 0.0
        %2018 = vmatpush1.xpose.msra.mxu0 0.0
        %2019 = vmatprep.subr.mxu0 0.0
        %2020 = vmatpush1.xpose.msra.mxu0 0.0
        %2021 = vmatprep.subr.mxu0 0.0
        %2022 = vmatpush1.xpose.msra.mxu0 0.0
        %2023 = vmatprep.subr.mxu0 0.0
        %2024 = vmatpush1.xpose.msra.mxu0 0.0
        %2025 = vmatprep.subr.mxu0 0.0
        %2026 = vmatpush1.xpose.msra.mxu0 0.0
        %2027 = vmatprep.subr.mxu0 0.0
        %2028 = vmatpush1.xpose.msra.mxu0 0.0
        %2029 = vmatprep.subr.mxu0 0.0
        %2030 = vmatpush1.xpose.msra.mxu0 0.0
        %2031 = vmatprep.subr.mxu0 0.0
        %2032 = vmatpush1.xpose.msra.mxu0 0.0
        %2033 = vmatprep.subr.mxu0 0.0
        %2034 = vmatpush1.xpose.msra.mxu0 0.0
        %2035 = vmatprep.subr.mxu0 0.0
        %2036 = vmatpush1.xpose.msra.mxu0 0.0
        %2037 = vmatprep.subr.mxu0 0.0
        %2038 = vmatpush1.xpose.msra.mxu0 0.0
        %2039 = vmatprep.subr.mxu0 0.0
        %2040 = vmatpush1.xpose.msra.mxu0 0.0
        %2041 = vmatprep.subr.mxu0 0.0
        %2042 = vmatpush1.xpose.msra.mxu0 0.0
        %2043 = vmatprep.subr.mxu0 0.0
        %2044 = vmatpush1.xpose.msra.mxu0 0.0
        %2045 = vmatprep.subr.mxu0 0.0
        %2046 = vmatpush1.xpose.msra.mxu0 0.0
        %2047 = vmatprep.subr.mxu0 0.0
        %2048 = vmatpush1.xpose.msra.mxu0 0.0
        %2049 = vmatprep.subr.mxu0 0.0
        %2050 = vmatpush1.xpose.msra.mxu0 0.0
        %2051 = vmatprep.subr.mxu0 0.0
        %2052 = vmatpush1.xpose.msra.mxu0 0.0
        %2053 = vmatprep.subr.mxu0 0.0
        %2054 = vmatpush1.xpose.msra.mxu0 0.0
        %2055 = vmatprep.subr.mxu0 0.0
        %2056 = vmatpush1.xpose.msra.mxu0 0.0
        %2057 = vmatprep.mubr.f32.mxu0 0.0
        %v2058 = vand.u32 %v1761, 4294901760
        %v2059 = vsub.f32 %v1761, %v2058
        %v2060 = vand.u32 %v2059, 4294901760
        %2061 = vmatmul.mubr.f32.gmra.mrb[0].mxu0 %v2060
        %v2062 = vpop.f32.mrb[0].mxu0
        %v2063 = vadd.f32 %v1989, %v2062
        %v2064 = vpop.f32.mrb[0].mxu0
        %2065 = vdwg.mxu0
        %2066 = vmatprep.subr.mxu0 0.0
        %v2067 = vand.u32 %v1764, 4294901760
        %v2068 = vsub.f32 %v1764, %v2067
        %v2069 = vand.u32 %v2068, 4294901760
        %2070 = vmatpush1.xpose.msra.mxu0 %v2069
        %2071 = vmatprep.subr.mxu0 0.0
        %2072 = vmatpush1.xpose.msra.mxu0 0.0
        %2073 = vmatprep.subr.mxu0 0.0
        %2074 = vmatpush1.xpose.msra.mxu0 0.0
        %2075 = vmatprep.subr.mxu0 0.0
        %2076 = vmatpush1.xpose.msra.mxu0 0.0
        %2077 = vmatprep.subr.mxu0 0.0
        %2078 = vmatpush1.xpose.msra.mxu0 0.0
        %2079 = vmatprep.subr.mxu0 0.0
        %2080 = vmatpush1.xpose.msra.mxu0 0.0
        %2081 = vmatprep.subr.mxu0 0.0
        %2082 = vmatpush1.xpose.msra.mxu0 0.0
        %2083 = vmatprep.subr.mxu0 0.0
        %2084 = vmatpush1.xpose.msra.mxu0 0.0
        %2085 = vmatprep.subr.mxu0 0.0
        %2086 = vmatpush1.xpose.msra.mxu0 0.0
        %2087 = vmatprep.subr.mxu0 0.0
        %2088 = vmatpush1.xpose.msra.mxu0 0.0
        %2089 = vmatprep.subr.mxu0 0.0
        %2090 = vmatpush1.xpose.msra.mxu0 0.0
        %2091 = vmatprep.subr.mxu0 0.0
        %2092 = vmatpush1.xpose.msra.mxu0 0.0
        %2093 = vmatprep.subr.mxu0 0.0
        %2094 = vmatpush1.xpose.msra.mxu0 0.0
        %2095 = vmatprep.subr.mxu0 0.0
        %2096 = vmatpush1.xpose.msra.mxu0 0.0
        %2097 = vmatprep.subr.mxu0 0.0
        %2098 = vmatpush1.xpose.msra.mxu0 0.0
        %2099 = vmatprep.subr.mxu0 0.0
        %2100 = vmatpush1.xpose.msra.mxu0 0.0
        %2101 = vmatprep.subr.mxu0 0.0
        %2102 = vmatpush1.xpose.msra.mxu0 0.0
        %2103 = vmatprep.subr.mxu0 0.0
        %2104 = vmatpush1.xpose.msra.mxu0 0.0
        %2105 = vmatprep.subr.mxu0 0.0
        %2106 = vmatpush1.xpose.msra.mxu0 0.0
        %2107 = vmatprep.subr.mxu0 0.0
        %2108 = vmatpush1.xpose.msra.mxu0 0.0
        %2109 = vmatprep.subr.mxu0 0.0
        %2110 = vmatpush1.xpose.msra.mxu0 0.0
        %2111 = vmatprep.subr.mxu0 0.0
        %2112 = vmatpush1.xpose.msra.mxu0 0.0
        %2113 = vmatprep.subr.mxu0 0.0
        %2114 = vmatpush1.xpose.msra.mxu0 0.0
        %2115 = vmatprep.subr.mxu0 0.0
        %2116 = vmatpush1.xpose.msra.mxu0 0.0
        %2117 = vmatprep.subr.mxu0 0.0
        %2118 = vmatpush1.xpose.msra.mxu0 0.0
        %2119 = vmatprep.subr.mxu0 0.0
        %2120 = vmatpush1.xpose.msra.mxu0 0.0
        %2121 = vmatprep.subr.mxu0 0.0
        %2122 = vmatpush1.xpose.msra.mxu0 0.0
        %2123 = vmatprep.subr.mxu0 0.0
        %2124 = vmatpush1.xpose.msra.mxu0 0.0
        %2125 = vmatprep.subr.mxu0 0.0
        %2126 = vmatpush1.xpose.msra.mxu0 0.0
        %2127 = vmatprep.subr.mxu0 0.0
        %2128 = vmatpush1.xpose.msra.mxu0 0.0
        %2129 = vmatprep.subr.mxu0 0.0
        %2130 = vmatpush1.xpose.msra.mxu0 0.0
        %2131 = vmatprep.subr.mxu0 0.0
        %2132 = vmatpush1.xpose.msra.mxu0 0.0
        %2133 = vmatprep.mubr.f32.mxu0 0.0
        %v2134 = vand.u32 %v1761, 4294901760
        %2135 = vmatmul.mubr.f32.gmra.mrb[0].mxu0 %v2134
        %v2136 = vpop.f32.mrb[0].mxu0
        %v2137 = vadd.f32 %v2063, %v2136
        %v2138 = vpop.f32.mrb[0].mxu0
        %2139 = vdwg.mxu0
        %2140 = vmatprep.subr.mxu0 0.0
        %v2141 = vand.u32 %v1764, 4294901760
        %2142 = vmatpush1.xpose.msra.mxu0 %v2141
        %2143 = vmatprep.subr.mxu0 0.0
        %2144 = vmatpush1.xpose.msra.mxu0 0.0
        %2145 = vmatprep.subr.mxu0 0.0
        %2146 = vmatpush1.xpose.msra.mxu0 0.0
        %2147 = vmatprep.subr.mxu0 0.0
        %2148 = vmatpush1.xpose.msra.mxu0 0.0
        %2149 = vmatprep.subr.mxu0 0.0
        %2150 = vmatpush1.xpose.msra.mxu0 0.0
        %2151 = vmatprep.subr.mxu0 0.0
        %2152 = vmatpush1.xpose.msra.mxu0 0.0
        %2153 = vmatprep.subr.mxu0 0.0
        %2154 = vmatpush1.xpose.msra.mxu0 0.0
        %2155 = vmatprep.subr.mxu0 0.0
        %2156 = vmatpush1.xpose.msra.mxu0 0.0
        %2157 = vmatprep.subr.mxu0 0.0
        %2158 = vmatpush1.xpose.msra.mxu0 0.0
        %2159 = vmatprep.subr.mxu0 0.0
        %2160 = vmatpush1.xpose.msra.mxu0 0.0
        %2161 = vmatprep.subr.mxu0 0.0
        %2162 = vmatpush1.xpose.msra.mxu0 0.0
        %2163 = vmatprep.subr.mxu0 0.0
        %2164 = vmatpush1.xpose.msra.mxu0 0.0
        %2165 = vmatprep.subr.mxu0 0.0
        %2166 = vmatpush1.xpose.msra.mxu0 0.0
        %2167 = vmatprep.subr.mxu0 0.0
        %2168 = vmatpush1.xpose.msra.mxu0 0.0
        %2169 = vmatprep.subr.mxu0 0.0
        %2170 = vmatpush1.xpose.msra.mxu0 0.0
        %2171 = vmatprep.subr.mxu0 0.0
        %2172 = vmatpush1.xpose.msra.mxu0 0.0
        %2173 = vmatprep.subr.mxu0 0.0
        %2174 = vmatpush1.xpose.msra.mxu0 0.0
        %2175 = vmatprep.subr.mxu0 0.0
        %2176 = vmatpush1.xpose.msra.mxu0 0.0
        %2177 = vmatprep.subr.mxu0 0.0
        %2178 = vmatpush1.xpose.msra.mxu0 0.0
        %2179 = vmatprep.subr.mxu0 0.0
        %2180 = vmatpush1.xpose.msra.mxu0 0.0
        %2181 = vmatprep.subr.mxu0 0.0
        %2182 = vmatpush1.xpose.msra.mxu0 0.0
        %2183 = vmatprep.subr.mxu0 0.0
        %2184 = vmatpush1.xpose.msra.mxu0 0.0
        %2185 = vmatprep.subr.mxu0 0.0
        %2186 = vmatpush1.xpose.msra.mxu0 0.0
        %2187 = vmatprep.subr.mxu0 0.0
        %2188 = vmatpush1.xpose.msra.mxu0 0.0
        %2189 = vmatprep.subr.mxu0 0.0
        %2190 = vmatpush1.xpose.msra.mxu0 0.0
        %2191 = vmatprep.subr.mxu0 0.0
        %2192 = vmatpush1.xpose.msra.mxu0 0.0
        %2193 = vmatprep.subr.mxu0 0.0
        %2194 = vmatpush1.xpose.msra.mxu0 0.0
        %2195 = vmatprep.subr.mxu0 0.0
        %2196 = vmatpush1.xpose.msra.mxu0 0.0
        %2197 = vmatprep.subr.mxu0 0.0
        %2198 = vmatpush1.xpose.msra.mxu0 0.0
        %2199 = vmatprep.subr.mxu0 0.0
        %2200 = vmatpush1.xpose.msra.mxu0 0.0
        %2201 = vmatprep.subr.mxu0 0.0
        %2202 = vmatpush1.xpose.msra.mxu0 0.0
        %2203 = vmatprep.subr.mxu0 0.0
        %2204 = vmatpush1.xpose.msra.mxu0 0.0
        %2205 = vmatprep.mubr.f32.mxu0 0.0
        %v2206 = vand.u32 %v1761, 4294901760
        %2207 = vmatmul.mubr.f32.gmra.mrb[0].mxu0 %v2206
        %v2208 = vpop.f32.mrb[0].mxu0
        %v2209 = vadd.f32 %v2137, %v2208
        %v2210 = vpop.f32.mrb[0].mxu0
        %2211 = vdwg.mxu0
        %v2213 = vsel %vm1759, %v1748, 0
        %v2216 = vsel %vm1759, %v1752, 0
        %2218 = vmatprep.subr.mxu0 0.0
        %v2219 = vand.u32 %v2216, 4294901760
        %2220 = vmatpush1.xpose.msra.mxu0 %v2219
        %2221 = vmatprep.subr.mxu0 0.0
        %2222 = vmatpush1.xpose.msra.mxu0 0.0
        %2223 = vmatprep.subr.mxu0 0.0
        %2224 = vmatpush1.xpose.msra.mxu0 0.0
        %2225 = vmatprep.subr.mxu0 0.0
        %2226 = vmatpush1.xpose.msra.mxu0 0.0
        %2227 = vmatprep.subr.mxu0 0.0
        %2228 = vmatpush1.xpose.msra.mxu0 0.0
        %2229 = vmatprep.subr.mxu0 0.0
        %2230 = vmatpush1.xpose.msra.mxu0 0.0
        %2231 = vmatprep.subr.mxu0 0.0
        %2232 = vmatpush1.xpose.msra.mxu0 0.0
        %2233 = vmatprep.subr.mxu0 0.0
        %2234 = vmatpush1.xpose.msra.mxu0 0.0
        %2235 = vmatprep.subr.mxu0 0.0
        %2236 = vmatpush1.xpose.msra.mxu0 0.0
        %2237 = vmatprep.subr.mxu0 0.0
        %2238 = vmatpush1.xpose.msra.mxu0 0.0
        %2239 = vmatprep.subr.mxu0 0.0
        %2240 = vmatpush1.xpose.msra.mxu0 0.0
        %2241 = vmatprep.subr.mxu0 0.0
        %2242 = vmatpush1.xpose.msra.mxu0 0.0
        %2243 = vmatprep.subr.mxu0 0.0
        %2244 = vmatpush1.xpose.msra.mxu0 0.0
        %2245 = vmatprep.subr.mxu0 0.0
        %2246 = vmatpush1.xpose.msra.mxu0 0.0
        %2247 = vmatprep.subr.mxu0 0.0
        %2248 = vmatpush1.xpose.msra.mxu0 0.0
        %2249 = vmatprep.subr.mxu0 0.0
        %2250 = vmatpush1.xpose.msra.mxu0 0.0
        %2251 = vmatprep.subr.mxu0 0.0
        %2252 = vmatpush1.xpose.msra.mxu0 0.0
        %2253 = vmatprep.subr.mxu0 0.0
        %2254 = vmatpush1.xpose.msra.mxu0 0.0
        %2255 = vmatprep.subr.mxu0 0.0
        %2256 = vmatpush1.xpose.msra.mxu0 0.0
        %2257 = vmatprep.subr.mxu0 0.0
        %2258 = vmatpush1.xpose.msra.mxu0 0.0
        %2259 = vmatprep.subr.mxu0 0.0
        %2260 = vmatpush1.xpose.msra.mxu0 0.0
        %2261 = vmatprep.subr.mxu0 0.0
        %2262 = vmatpush1.xpose.msra.mxu0 0.0
        %2263 = vmatprep.subr.mxu0 0.0
        %2264 = vmatpush1.xpose.msra.mxu0 0.0
        %2265 = vmatprep.subr.mxu0 0.0
        %2266 = vmatpush1.xpose.msra.mxu0 0.0
        %2267 = vmatprep.subr.mxu0 0.0
        %2268 = vmatpush1.xpose.msra.mxu0 0.0
        %2269 = vmatprep.subr.mxu0 0.0
        %2270 = vmatpush1.xpose.msra.mxu0 0.0
        %2271 = vmatprep.subr.mxu0 0.0
        %2272 = vmatpush1.xpose.msra.mxu0 0.0
        %2273 = vmatprep.subr.mxu0 0.0
        %2274 = vmatpush1.xpose.msra.mxu0 0.0
        %2275 = vmatprep.subr.mxu0 0.0
        %2276 = vmatpush1.xpose.msra.mxu0 0.0
        %2277 = vmatprep.subr.mxu0 0.0
        %2278 = vmatpush1.xpose.msra.mxu0 0.0
        %2279 = vmatprep.subr.mxu0 0.0
        %2280 = vmatpush1.xpose.msra.mxu0 0.0
        %2281 = vmatprep.subr.mxu0 0.0
        %2282 = vmatpush1.xpose.msra.mxu0 0.0
        %2283 = vmatprep.mubr.f32.mxu0 0.0
        %v2284 = vand.u32 %v2213, 4294901760
        %v2285 = vsub.f32 %v2213, %v2284
        %v2286 = vand.u32 %v2285, 4294901760
        %v2287 = vsub.f32 %v2285, %v2286
        %v2288 = vand.u32 %v2287, 4294901760
        %2289 = vmatmul.mubr.f32.gmra.mrb[0].mxu0 %v2288
        %v2290 = vpop.f32.mrb[0].mxu0
        %v2291 = vadd.f32 0.0, %v2290
        %v2292 = vpop.f32.mrb[0].mxu0
        %2293 = vdwg.mxu0
        %2294 = vmatprep.subr.mxu0 0.0
        %v2295 = vand.u32 %v2216, 4294901760
        %v2296 = vsub.f32 %v2216, %v2295
        %v2297 = vand.u32 %v2296, 4294901760
        %v2298 = vsub.f32 %v2296, %v2297
        %v2299 = vand.u32 %v2298, 4294901760
        %2300 = vmatpush1.xpose.msra.mxu0 %v2299
        %2301 = vmatprep.subr.mxu0 0.0
        %2302 = vmatpush1.xpose.msra.mxu0 0.0
        %2303 = vmatprep.subr.mxu0 0.0
        %2304 = vmatpush1.xpose.msra.mxu0 0.0
        %2305 = vmatprep.subr.mxu0 0.0
        %2306 = vmatpush1.xpose.msra.mxu0 0.0
        %2307 = vmatprep.subr.mxu0 0.0
        %2308 = vmatpush1.xpose.msra.mxu0 0.0
        %2309 = vmatprep.subr.mxu0 0.0
        %2310 = vmatpush1.xpose.msra.mxu0 0.0
        %2311 = vmatprep.subr.mxu0 0.0
        %2312 = vmatpush1.xpose.msra.mxu0 0.0
        %2313 = vmatprep.subr.mxu0 0.0
        %2314 = vmatpush1.xpose.msra.mxu0 0.0
        %2315 = vmatprep.subr.mxu0 0.0
        %2316 = vmatpush1.xpose.msra.mxu0 0.0
        %2317 = vmatprep.subr.mxu0 0.0
        %2318 = vmatpush1.xpose.msra.mxu0 0.0
        %2319 = vmatprep.subr.mxu0 0.0
        %2320 = vmatpush1.xpose.msra.mxu0 0.0
        %2321 = vmatprep.subr.mxu0 0.0
        %2322 = vmatpush1.xpose.msra.mxu0 0.0
        %2323 = vmatprep.subr.mxu0 0.0
        %2324 = vmatpush1.xpose.msra.mxu0 0.0
        %2325 = vmatprep.subr.mxu0 0.0
        %2326 = vmatpush1.xpose.msra.mxu0 0.0
        %2327 = vmatprep.subr.mxu0 0.0
        %2328 = vmatpush1.xpose.msra.mxu0 0.0
        %2329 = vmatprep.subr.mxu0 0.0
        %2330 = vmatpush1.xpose.msra.mxu0 0.0
        %2331 = vmatprep.subr.mxu0 0.0
        %2332 = vmatpush1.xpose.msra.mxu0 0.0
        %2333 = vmatprep.subr.mxu0 0.0
        %2334 = vmatpush1.xpose.msra.mxu0 0.0
        %2335 = vmatprep.subr.mxu0 0.0
        %2336 = vmatpush1.xpose.msra.mxu0 0.0
        %2337 = vmatprep.subr.mxu0 0.0
        %2338 = vmatpush1.xpose.msra.mxu0 0.0
        %2339 = vmatprep.subr.mxu0 0.0
        %2340 = vmatpush1.xpose.msra.mxu0 0.0
        %2341 = vmatprep.subr.mxu0 0.0
        %2342 = vmatpush1.xpose.msra.mxu0 0.0
        %2343 = vmatprep.subr.mxu0 0.0
        %2344 = vmatpush1.xpose.msra.mxu0 0.0
        %2345 = vmatprep.subr.mxu0 0.0
        %2346 = vmatpush1.xpose.msra.mxu0 0.0
        %2347 = vmatprep.subr.mxu0 0.0
        %2348 = vmatpush1.xpose.msra.mxu0 0.0
        %2349 = vmatprep.subr.mxu0 0.0
        %2350 = vmatpush1.xpose.msra.mxu0 0.0
        %2351 = vmatprep.subr.mxu0 0.0
        %2352 = vmatpush1.xpose.msra.mxu0 0.0
        %2353 = vmatprep.subr.mxu0 0.0
        %2354 = vmatpush1.xpose.msra.mxu0 0.0
        %2355 = vmatprep.subr.mxu0 0.0
        %2356 = vmatpush1.xpose.msra.mxu0 0.0
        %2357 = vmatprep.subr.mxu0 0.0
        %2358 = vmatpush1.xpose.msra.mxu0 0.0
        %2359 = vmatprep.subr.mxu0 0.0
        %2360 = vmatpush1.xpose.msra.mxu0 0.0
        %2361 = vmatprep.subr.mxu0 0.0
        %2362 = vmatpush1.xpose.msra.mxu0 0.0
        %2363 = vmatprep.mubr.f32.mxu0 0.0
        %v2364 = vand.u32 %v2213, 4294901760
        %2365 = vmatmul.mubr.f32.gmra.mrb[0].mxu0 %v2364
        %v2366 = vpop.f32.mrb[0].mxu0
        %v2367 = vadd.f32 %v2291, %v2366
        %v2368 = vpop.f32.mrb[0].mxu0
        %2369 = vdwg.mxu0
        %2370 = vmatprep.subr.mxu0 0.0
        %v2371 = vand.u32 %v2216, 4294901760
        %v2372 = vsub.f32 %v2216, %v2371
        %2373 = vmatpush1.xpose.msra.mxu0 %v2372
        %2374 = vmatprep.subr.mxu0 0.0
        %2375 = vmatpush1.xpose.msra.mxu0 0.0
        %2376 = vmatprep.subr.mxu0 0.0
        %2377 = vmatpush1.xpose.msra.mxu0 0.0
        %2378 = vmatprep.subr.mxu0 0.0
        %2379 = vmatpush1.xpose.msra.mxu0 0.0
        %2380 = vmatprep.subr.mxu0 0.0
        %2381 = vmatpush1.xpose.msra.mxu0 0.0
        %2382 = vmatprep.subr.mxu0 0.0
        %2383 = vmatpush1.xpose.msra.mxu0 0.0
        %2384 = vmatprep.subr.mxu0 0.0
        %2385 = vmatpush1.xpose.msra.mxu0 0.0
        %2386 = vmatprep.subr.mxu0 0.0
        %2387 = vmatpush1.xpose.msra.mxu0 0.0
        %2388 = vmatprep.subr.mxu0 0.0
        %2389 = vmatpush1.xpose.msra.mxu0 0.0
        %2390 = vmatprep.subr.mxu0 0.0
        %2391 = vmatpush1.xpose.msra.mxu0 0.0
        %2392 = vmatprep.subr.mxu0 0.0
        %2393 = vmatpush1.xpose.msra.mxu0 0.0
        %2394 = vmatprep.subr.mxu0 0.0
        %2395 = vmatpush1.xpose.msra.mxu0 0.0
        %2396 = vmatprep.subr.mxu0 0.0
        %2397 = vmatpush1.xpose.msra.mxu0 0.0
        %2398 = vmatprep.subr.mxu0 0.0
        %2399 = vmatpush1.xpose.msra.mxu0 0.0
        %2400 = vmatprep.subr.mxu0 0.0
        %2401 = vmatpush1.xpose.msra.mxu0 0.0
        %2402 = vmatprep.subr.mxu0 0.0
        %2403 = vmatpush1.xpose.msra.mxu0 0.0
        %2404 = vmatprep.subr.mxu0 0.0
        %2405 = vmatpush1.xpose.msra.mxu0 0.0
        %2406 = vmatprep.subr.mxu0 0.0
        %2407 = vmatpush1.xpose.msra.mxu0 0.0
        %2408 = vmatprep.subr.mxu0 0.0
        %2409 = vmatpush1.xpose.msra.mxu0 0.0
        %2410 = vmatprep.subr.mxu0 0.0
        %2411 = vmatpush1.xpose.msra.mxu0 0.0
        %2412 = vmatprep.subr.mxu0 0.0
        %2413 = vmatpush1.xpose.msra.mxu0 0.0
        %2414 = vmatprep.subr.mxu0 0.0
        %2415 = vmatpush1.xpose.msra.mxu0 0.0
        %2416 = vmatprep.subr.mxu0 0.0
        %2417 = vmatpush1.xpose.msra.mxu0 0.0
        %2418 = vmatprep.subr.mxu0 0.0
        %2419 = vmatpush1.xpose.msra.mxu0 0.0
        %2420 = vmatprep.subr.mxu0 0.0
        %2421 = vmatpush1.xpose.msra.mxu0 0.0
        %2422 = vmatprep.subr.mxu0 0.0
        %2423 = vmatpush1.xpose.msra.mxu0 0.0
        %2424 = vmatprep.subr.mxu0 0.0
        %2425 = vmatpush1.xpose.msra.mxu0 0.0
        %2426 = vmatprep.subr.mxu0 0.0
        %2427 = vmatpush1.xpose.msra.mxu0 0.0
        %2428 = vmatprep.subr.mxu0 0.0
        %2429 = vmatpush1.xpose.msra.mxu0 0.0
        %2430 = vmatprep.subr.mxu0 0.0
        %2431 = vmatpush1.xpose.msra.mxu0 0.0
        %2432 = vmatprep.subr.mxu0 0.0
        %2433 = vmatpush1.xpose.msra.mxu0 0.0
        %2434 = vmatprep.subr.mxu0 0.0
        %2435 = vmatpush1.xpose.msra.mxu0 0.0
        %2436 = vmatprep.mubr.f32.mxu0 0.0
        %v2437 = vand.u32 %v2213, 4294901760
        %v2438 = vsub.f32 %v2213, %v2437
        %2439 = vmatmul.mubr.f32.gmra.mrb[0].mxu0 %v2438
        %v2440 = vpop.f32.mrb[0].mxu0
        %v2441 = vadd.f32 %v2367, %v2440
        %v2442 = vpop.f32.mrb[0].mxu0
        %2443 = vdwg.mxu0
        %2444 = vmatprep.subr.mxu0 0.0
        %v2445 = vand.u32 %v2216, 4294901760
        %2446 = vmatpush1.xpose.msra.mxu0 %v2445
        %2447 = vmatprep.subr.mxu0 0.0
        %2448 = vmatpush1.xpose.msra.mxu0 0.0
        %2449 = vmatprep.subr.mxu0 0.0
        %2450 = vmatpush1.xpose.msra.mxu0 0.0
        %2451 = vmatprep.subr.mxu0 0.0
        %2452 = vmatpush1.xpose.msra.mxu0 0.0
        %2453 = vmatprep.subr.mxu0 0.0
        %2454 = vmatpush1.xpose.msra.mxu0 0.0
        %2455 = vmatprep.subr.mxu0 0.0
        %2456 = vmatpush1.xpose.msra.mxu0 0.0
        %2457 = vmatprep.subr.mxu0 0.0
        %2458 = vmatpush1.xpose.msra.mxu0 0.0
        %2459 = vmatprep.subr.mxu0 0.0
        %2460 = vmatpush1.xpose.msra.mxu0 0.0
        %2461 = vmatprep.subr.mxu0 0.0
        %2462 = vmatpush1.xpose.msra.mxu0 0.0
        %2463 = vmatprep.subr.mxu0 0.0
        %2464 = vmatpush1.xpose.msra.mxu0 0.0
        %2465 = vmatprep.subr.mxu0 0.0
        %2466 = vmatpush1.xpose.msra.mxu0 0.0
        %2467 = vmatprep.subr.mxu0 0.0
        %2468 = vmatpush1.xpose.msra.mxu0 0.0
        %2469 = vmatprep.subr.mxu0 0.0
        %2470 = vmatpush1.xpose.msra.mxu0 0.0
        %2471 = vmatprep.subr.mxu0 0.0
        %2472 = vmatpush1.xpose.msra.mxu0 0.0
        %2473 = vmatprep.subr.mxu0 0.0
        %2474 = vmatpush1.xpose.msra.mxu0 0.0
        %2475 = vmatprep.subr.mxu0 0.0
        %2476 = vmatpush1.xpose.msra.mxu0 0.0
        %2477 = vmatprep.subr.mxu0 0.0
        %2478 = vmatpush1.xpose.msra.mxu0 0.0
        %2479 = vmatprep.subr.mxu0 0.0
        %2480 = vmatpush1.xpose.msra.mxu0 0.0
        %2481 = vmatprep.subr.mxu0 0.0
        %2482 = vmatpush1.xpose.msra.mxu0 0.0
        %2483 = vmatprep.subr.mxu0 0.0
        %2484 = vmatpush1.xpose.msra.mxu0 0.0
        %2485 = vmatprep.subr.mxu0 0.0
        %2486 = vmatpush1.xpose.msra.mxu0 0.0
        %2487 = vmatprep.subr.mxu0 0.0
        %2488 = vmatpush1.xpose.msra.mxu0 0.0
        %2489 = vmatprep.subr.mxu0 0.0
        %2490 = vmatpush1.xpose.msra.mxu0 0.0
        %2491 = vmatprep.subr.mxu0 0.0
        %2492 = vmatpush1.xpose.msra.mxu0 0.0
        %2493 = vmatprep.subr.mxu0 0.0
        %2494 = vmatpush1.xpose.msra.mxu0 0.0
        %2495 = vmatprep.subr.mxu0 0.0
        %2496 = vmatpush1.xpose.msra.mxu0 0.0
        %2497 = vmatprep.subr.mxu0 0.0
        %2498 = vmatpush1.xpose.msra.mxu0 0.0
        %2499 = vmatprep.subr.mxu0 0.0
        %2500 = vmatpush1.xpose.msra.mxu0 0.0
        %2501 = vmatprep.subr.mxu0 0.0
        %2502 = vmatpush1.xpose.msra.mxu0 0.0
        %2503 = vmatprep.subr.mxu0 0.0
        %2504 = vmatpush1.xpose.msra.mxu0 0.0
        %2505 = vmatprep.subr.mxu0 0.0
        %2506 = vmatpush1.xpose.msra.mxu0 0.0
        %2507 = vmatprep.subr.mxu0 0.0
        %2508 = vmatpush1.xpose.msra.mxu0 0.0
        %2509 = vmatprep.mubr.f32.mxu0 0.0
        %v2510 = vand.u32 %v2213, 4294901760
        %v2511 = vsub.f32 %v2213, %v2510
        %v2512 = vand.u32 %v2511, 4294901760
        %2513 = vmatmul.mubr.f32.gmra.mrb[0].mxu0 %v2512
        %v2514 = vpop.f32.mrb[0].mxu0
        %v2515 = vadd.f32 %v2441, %v2514
        %v2516 = vpop.f32.mrb[0].mxu0
        %2517 = vdwg.mxu0
        %2518 = vmatprep.subr.mxu0 0.0
        %v2519 = vand.u32 %v2216, 4294901760
        %v2520 = vsub.f32 %v2216, %v2519
        %v2521 = vand.u32 %v2520, 4294901760
        %2522 = vmatpush1.xpose.msra.mxu0 %v2521
        %2523 = vmatprep.subr.mxu0 0.0
        %2524 = vmatpush1.xpose.msra.mxu0 0.0
        %2525 = vmatprep.subr.mxu0 0.0
        %2526 = vmatpush1.xpose.msra.mxu0 0.0
        %2527 = vmatprep.subr.mxu0 0.0
        %2528 = vmatpush1.xpose.msra.mxu0 0.0
        %2529 = vmatprep.subr.mxu0 0.0
        %2530 = vmatpush1.xpose.msra.mxu0 0.0
        %2531 = vmatprep.subr.mxu0 0.0
        %2532 = vmatpush1.xpose.msra.mxu0 0.0
        %2533 = vmatprep.subr.mxu0 0.0
        %2534 = vmatpush1.xpose.msra.mxu0 0.0
        %2535 = vmatprep.subr.mxu0 0.0
        %2536 = vmatpush1.xpose.msra.mxu0 0.0
        %2537 = vmatprep.subr.mxu0 0.0
        %2538 = vmatpush1.xpose.msra.mxu0 0.0
        %2539 = vmatprep.subr.mxu0 0.0
        %2540 = vmatpush1.xpose.msra.mxu0 0.0
        %2541 = vmatprep.subr.mxu0 0.0
        %2542 = vmatpush1.xpose.msra.mxu0 0.0
        %2543 = vmatprep.subr.mxu0 0.0
        %2544 = vmatpush1.xpose.msra.mxu0 0.0
        %2545 = vmatprep.subr.mxu0 0.0
        %2546 = vmatpush1.xpose.msra.mxu0 0.0
        %2547 = vmatprep.subr.mxu0 0.0
        %2548 = vmatpush1.xpose.msra.mxu0 0.0
        %2549 = vmatprep.subr.mxu0 0.0
        %2550 = vmatpush1.xpose.msra.mxu0 0.0
        %2551 = vmatprep.subr.mxu0 0.0
        %2552 = vmatpush1.xpose.msra.mxu0 0.0
        %2553 = vmatprep.subr.mxu0 0.0
        %2554 = vmatpush1.xpose.msra.mxu0 0.0
        %2555 = vmatprep.subr.mxu0 0.0
        %2556 = vmatpush1.xpose.msra.mxu0 0.0
        %2557 = vmatprep.subr.mxu0 0.0
        %2558 = vmatpush1.xpose.msra.mxu0 0.0
        %2559 = vmatprep.subr.mxu0 0.0
        %2560 = vmatpush1.xpose.msra.mxu0 0.0
        %2561 = vmatprep.subr.mxu0 0.0
        %2562 = vmatpush1.xpose.msra.mxu0 0.0
        %2563 = vmatprep.subr.mxu0 0.0
        %2564 = vmatpush1.xpose.msra.mxu0 0.0
        %2565 = vmatprep.subr.mxu0 0.0
        %2566 = vmatpush1.xpose.msra.mxu0 0.0
        %2567 = vmatprep.subr.mxu0 0.0
        %2568 = vmatpush1.xpose.msra.mxu0 0.0
        %2569 = vmatprep.subr.mxu0 0.0
        %2570 = vmatpush1.xpose.msra.mxu0 0.0
        %2571 = vmatprep.subr.mxu0 0.0
        %2572 = vmatpush1.xpose.msra.mxu0 0.0
        %2573 = vmatprep.subr.mxu0 0.0
        %2574 = vmatpush1.xpose.msra.mxu0 0.0
        %2575 = vmatprep.subr.mxu0 0.0
        %2576 = vmatpush1.xpose.msra.mxu0 0.0
        %2577 = vmatprep.subr.mxu0 0.0
        %2578 = vmatpush1.xpose.msra.mxu0 0.0
        %2579 = vmatprep.subr.mxu0 0.0
        %2580 = vmatpush1.xpose.msra.mxu0 0.0
        %2581 = vmatprep.subr.mxu0 0.0
        %2582 = vmatpush1.xpose.msra.mxu0 0.0
        %2583 = vmatprep.subr.mxu0 0.0
        %2584 = vmatpush1.xpose.msra.mxu0 0.0
        %2585 = vmatprep.mubr.f32.mxu0 0.0
        %v2586 = vand.u32 %v2213, 4294901760
        %2587 = vmatmul.mubr.f32.gmra.mrb[0].mxu0 %v2586
        %v2588 = vpop.f32.mrb[0].mxu0
        %v2589 = vadd.f32 %v2515, %v2588
        %v2590 = vpop.f32.mrb[0].mxu0
        %2591 = vdwg.mxu0
        %2592 = vmatprep.subr.mxu0 0.0
        %v2593 = vand.u32 %v2216, 4294901760
        %2594 = vmatpush1.xpose.msra.mxu0 %v2593
        %2595 = vmatprep.subr.mxu0 0.0
        %2596 = vmatpush1.xpose.msra.mxu0 0.0
        %2597 = vmatprep.subr.mxu0 0.0
        %2598 = vmatpush1.xpose.msra.mxu0 0.0
        %2599 = vmatprep.subr.mxu0 0.0
        %2600 = vmatpush1.xpose.msra.mxu0 0.0
        %2601 = vmatprep.subr.mxu0 0.0
        %2602 = vmatpush1.xpose.msra.mxu0 0.0
        %2603 = vmatprep.subr.mxu0 0.0
        %2604 = vmatpush1.xpose.msra.mxu0 0.0
        %2605 = vmatprep.subr.mxu0 0.0
        %2606 = vmatpush1.xpose.msra.mxu0 0.0
        %2607 = vmatprep.subr.mxu0 0.0
        %2608 = vmatpush1.xpose.msra.mxu0 0.0
        %2609 = vmatprep.subr.mxu0 0.0
        %2610 = vmatpush1.xpose.msra.mxu0 0.0
        %2611 = vmatprep.subr.mxu0 0.0
        %2612 = vmatpush1.xpose.msra.mxu0 0.0
        %2613 = vmatprep.subr.mxu0 0.0
        %2614 = vmatpush1.xpose.msra.mxu0 0.0
        %2615 = vmatprep.subr.mxu0 0.0
        %2616 = vmatpush1.xpose.msra.mxu0 0.0
        %2617 = vmatprep.subr.mxu0 0.0
        %2618 = vmatpush1.xpose.msra.mxu0 0.0
        %2619 = vmatprep.subr.mxu0 0.0
        %2620 = vmatpush1.xpose.msra.mxu0 0.0
        %2621 = vmatprep.subr.mxu0 0.0
        %2622 = vmatpush1.xpose.msra.mxu0 0.0
        %2623 = vmatprep.subr.mxu0 0.0
        %2624 = vmatpush1.xpose.msra.mxu0 0.0
        %2625 = vmatprep.subr.mxu0 0.0
        %2626 = vmatpush1.xpose.msra.mxu0 0.0
        %2627 = vmatprep.subr.mxu0 0.0
        %2628 = vmatpush1.xpose.msra.mxu0 0.0
        %2629 = vmatprep.subr.mxu0 0.0
        %2630 = vmatpush1.xpose.msra.mxu0 0.0
        %2631 = vmatprep.subr.mxu0 0.0
        %2632 = vmatpush1.xpose.msra.mxu0 0.0
        %2633 = vmatprep.subr.mxu0 0.0
        %2634 = vmatpush1.xpose.msra.mxu0 0.0
        %2635 = vmatprep.subr.mxu0 0.0
        %2636 = vmatpush1.xpose.msra.mxu0 0.0
        %2637 = vmatprep.subr.mxu0 0.0
        %2638 = vmatpush1.xpose.msra.mxu0 0.0
        %2639 = vmatprep.subr.mxu0 0.0
        %2640 = vmatpush1.xpose.msra.mxu0 0.0
        %2641 = vmatprep.subr.mxu0 0.0
        %2642 = vmatpush1.xpose.msra.mxu0 0.0
        %2643 = vmatprep.subr.mxu0 0.0
        %2644 = vmatpush1.xpose.msra.mxu0 0.0
        %2645 = vmatprep.subr.mxu0 0.0
        %2646 = vmatpush1.xpose.msra.mxu0 0.0
        %2647 = vmatprep.subr.mxu0 0.0
        %2648 = vmatpush1.xpose.msra.mxu0 0.0
        %2649 = vmatprep.subr.mxu0 0.0
        %2650 = vmatpush1.xpose.msra.mxu0 0.0
        %2651 = vmatprep.subr.mxu0 0.0
        %2652 = vmatpush1.xpose.msra.mxu0 0.0
        %2653 = vmatprep.subr.mxu0 0.0
        %2654 = vmatpush1.xpose.msra.mxu0 0.0
        %2655 = vmatprep.subr.mxu0 0.0
        %2656 = vmatpush1.xpose.msra.mxu0 0.0
        %2657 = vmatprep.mubr.f32.mxu0 0.0
        %v2658 = vand.u32 %v2213, 4294901760
        %2659 = vmatmul.mubr.f32.gmra.mrb[0].mxu0 %v2658
        %v2660 = vpop.f32.mrb[0].mxu0
        %v2661 = vadd.f32 %v2589, %v2660
        %v2662 = vpop.f32.mrb[0].mxu0
        %2663 = vdwg.mxu0
        %v2665 = vsel %vm1759, %v1749, 0
        %v2668 = vsel %vm1759, %v1753, 0
        %2670 = vmatprep.subr.mxu0 0.0
        %v2671 = vand.u32 %v2668, 4294901760
        %2672 = vmatpush1.xpose.msra.mxu0 %v2671
        %2673 = vmatprep.subr.mxu0 0.0
        %2674 = vmatpush1.xpose.msra.mxu0 0.0
        %2675 = vmatprep.subr.mxu0 0.0
        %2676 = vmatpush1.xpose.msra.mxu0 0.0
        %2677 = vmatprep.subr.mxu0 0.0
        %2678 = vmatpush1.xpose.msra.mxu0 0.0
        %2679 = vmatprep.subr.mxu0 0.0
        %2680 = vmatpush1.xpose.msra.mxu0 0.0
        %2681 = vmatprep.subr.mxu0 0.0
        %2682 = vmatpush1.xpose.msra.mxu0 0.0
        %2683 = vmatprep.subr.mxu0 0.0
        %2684 = vmatpush1.xpose.msra.mxu0 0.0
        %2685 = vmatprep.subr.mxu0 0.0
        %2686 = vmatpush1.xpose.msra.mxu0 0.0
        %2687 = vmatprep.subr.mxu0 0.0
        %2688 = vmatpush1.xpose.msra.mxu0 0.0
        %2689 = vmatprep.subr.mxu0 0.0
        %2690 = vmatpush1.xpose.msra.mxu0 0.0
        %2691 = vmatprep.subr.mxu0 0.0
        %2692 = vmatpush1.xpose.msra.mxu0 0.0
        %2693 = vmatprep.subr.mxu0 0.0
        %2694 = vmatpush1.xpose.msra.mxu0 0.0
        %2695 = vmatprep.subr.mxu0 0.0
        %2696 = vmatpush1.xpose.msra.mxu0 0.0
        %2697 = vmatprep.subr.mxu0 0.0
        %2698 = vmatpush1.xpose.msra.mxu0 0.0
        %2699 = vmatprep.subr.mxu0 0.0
        %2700 = vmatpush1.xpose.msra.mxu0 0.0
        %2701 = vmatprep.subr.mxu0 0.0
        %2702 = vmatpush1.xpose.msra.mxu0 0.0
        %2703 = vmatprep.subr.mxu0 0.0
        %2704 = vmatpush1.xpose.msra.mxu0 0.0
        %2705 = vmatprep.subr.mxu0 0.0
        %2706 = vmatpush1.xpose.msra.mxu0 0.0
        %2707 = vmatprep.subr.mxu0 0.0
        %2708 = vmatpush1.xpose.msra.mxu0 0.0
        %2709 = vmatprep.subr.mxu0 0.0
        %2710 = vmatpush1.xpose.msra.mxu0 0.0
        %2711 = vmatprep.subr.mxu0 0.0
        %2712 = vmatpush1.xpose.msra.mxu0 0.0
        %2713 = vmatprep.subr.mxu0 0.0
        %2714 = vmatpush1.xpose.msra.mxu0 0.0
        %2715 = vmatprep.subr.mxu0 0.0
        %2716 = vmatpush1.xpose.msra.mxu0 0.0
        %2717 = vmatprep.subr.mxu0 0.0
        %2718 = vmatpush1.xpose.msra.mxu0 0.0
        %2719 = vmatprep.subr.mxu0 0.0
        %2720 = vmatpush1.xpose.msra.mxu0 0.0
        %2721 = vmatprep.subr.mxu0 0.0
        %2722 = vmatpush1.xpose.msra.mxu0 0.0
        %2723 = vmatprep.subr.mxu0 0.0
        %2724 = vmatpush1.xpose.msra.mxu0 0.0
        %2725 = vmatprep.subr.mxu0 0.0
        %2726 = vmatpush1.xpose.msra.mxu0 0.0
        %2727 = vmatprep.subr.mxu0 0.0
        %2728 = vmatpush1.xpose.msra.mxu0 0.0
        %2729 = vmatprep.subr.mxu0 0.0
        %2730 = vmatpush1.xpose.msra.mxu0 0.0
        %2731 = vmatprep.subr.mxu0 0.0
        %2732 = vmatpush1.xpose.msra.mxu0 0.0
        %2733 = vmatprep.subr.mxu0 0.0
        %2734 = vmatpush1.xpose.msra.mxu0 0.0
        %2735 = vmatprep.mubr.f32.mxu0 0.0
        %v2736 = vand.u32 %v2665, 4294901760
        %v2737 = vsub.f32 %v2665, %v2736
        %v2738 = vand.u32 %v2737, 4294901760
        %v2739 = vsub.f32 %v2737, %v2738
        %v2740 = vand.u32 %v2739, 4294901760
        %2741 = vmatmul.mubr.f32.gmra.mrb[0].mxu0 %v2740
        %v2742 = vpop.f32.mrb[0].mxu0
        %v2743 = vadd.f32 0.0, %v2742
        %v2744 = vpop.f32.mrb[0].mxu0
        %2745 = vdwg.mxu0
        %2746 = vmatprep.subr.mxu0 0.0
        %v2747 = vand.u32 %v2668, 4294901760
        %v2748 = vsub.f32 %v2668, %v2747
        %v2749 = vand.u32 %v2748, 4294901760
        %v2750 = vsub.f32 %v2748, %v2749
        %v2751 = vand.u32 %v2750, 4294901760
        %2752 = vmatpush1.xpose.msra.mxu0 %v2751
        %2753 = vmatprep.subr.mxu0 0.0
        %2754 = vmatpush1.xpose.msra.mxu0 0.0
        %2755 = vmatprep.subr.mxu0 0.0
        %2756 = vmatpush1.xpose.msra.mxu0 0.0
        %2757 = vmatprep.subr.mxu0 0.0
        %2758 = vmatpush1.xpose.msra.mxu0 0.0
        %2759 = vmatprep.subr.mxu0 0.0
        %2760 = vmatpush1.xpose.msra.mxu0 0.0
        %2761 = vmatprep.subr.mxu0 0.0
        %2762 = vmatpush1.xpose.msra.mxu0 0.0
        %2763 = vmatprep.subr.mxu0 0.0
        %2764 = vmatpush1.xpose.msra.mxu0 0.0
        %2765 = vmatprep.subr.mxu0 0.0
        %2766 = vmatpush1.xpose.msra.mxu0 0.0
        %2767 = vmatprep.subr.mxu0 0.0
        %2768 = vmatpush1.xpose.msra.mxu0 0.0
        %2769 = vmatprep.subr.mxu0 0.0
        %2770 = vmatpush1.xpose.msra.mxu0 0.0
        %2771 = vmatprep.subr.mxu0 0.0
        %2772 = vmatpush1.xpose.msra.mxu0 0.0
        %2773 = vmatprep.subr.mxu0 0.0
        %2774 = vmatpush1.xpose.msra.mxu0 0.0
        %2775 = vmatprep.subr.mxu0 0.0
        %2776 = vmatpush1.xpose.msra.mxu0 0.0
        %2777 = vmatprep.subr.mxu0 0.0
        %2778 = vmatpush1.xpose.msra.mxu0 0.0
        %2779 = vmatprep.subr.mxu0 0.0
        %2780 = vmatpush1.xpose.msra.mxu0 0.0
        %2781 = vmatprep.subr.mxu0 0.0
        %2782 = vmatpush1.xpose.msra.mxu0 0.0
        %2783 = vmatprep.subr.mxu0 0.0
        %2784 = vmatpush1.xpose.msra.mxu0 0.0
        %2785 = vmatprep.subr.mxu0 0.0
        %2786 = vmatpush1.xpose.msra.mxu0 0.0
        %2787 = vmatprep.subr.mxu0 0.0
        %2788 = vmatpush1.xpose.msra.mxu0 0.0
        %2789 = vmatprep.subr.mxu0 0.0
        %2790 = vmatpush1.xpose.msra.mxu0 0.0
        %2791 = vmatprep.subr.mxu0 0.0
        %2792 = vmatpush1.xpose.msra.mxu0 0.0
        %2793 = vmatprep.subr.mxu0 0.0
        %2794 = vmatpush1.xpose.msra.mxu0 0.0
        %2795 = vmatprep.subr.mxu0 0.0
        %2796 = vmatpush1.xpose.msra.mxu0 0.0
        %2797 = vmatprep.subr.mxu0 0.0
        %2798 = vmatpush1.xpose.msra.mxu0 0.0
        %2799 = vmatprep.subr.mxu0 0.0
        %2800 = vmatpush1.xpose.msra.mxu0 0.0
        %2801 = vmatprep.subr.mxu0 0.0
        %2802 = vmatpush1.xpose.msra.mxu0 0.0
        %2803 = vmatprep.subr.mxu0 0.0
        %2804 = vmatpush1.xpose.msra.mxu0 0.0
        %2805 = vmatprep.subr.mxu0 0.0
        %2806 = vmatpush1.xpose.msra.mxu0 0.0
        %2807 = vmatprep.subr.mxu0 0.0
        %2808 = vmatpush1.xpose.msra.mxu0 0.0
        %2809 = vmatprep.subr.mxu0 0.0
        %2810 = vmatpush1.xpose.msra.mxu0 0.0
        %2811 = vmatprep.subr.mxu0 0.0
        %2812 = vmatpush1.xpose.msra.mxu0 0.0
        %2813 = vmatprep.subr.mxu0 0.0
        %2814 = vmatpush1.xpose.msra.mxu0 0.0
        %2815 = vmatprep.mubr.f32.mxu0 0.0
        %v2816 = vand.u32 %v2665, 4294901760
        %2817 = vmatmul.mubr.f32.gmra.mrb[0].mxu0 %v2816
        %v2818 = vpop.f32.mrb[0].mxu0
        %v2819 = vadd.f32 %v2743, %v2818
        %v2820 = vpop.f32.mrb[0].mxu0
        %2821 = vdwg.mxu0
        %2822 = vmatprep.subr.mxu0 0.0
        %v2823 = vand.u32 %v2668, 4294901760
        %v2824 = vsub.f32 %v2668, %v2823
        %2825 = vmatpush1.xpose.msra.mxu0 %v2824
        %2826 = vmatprep.subr.mxu0 0.0
        %2827 = vmatpush1.xpose.msra.mxu0 0.0
        %2828 = vmatprep.subr.mxu0 0.0
        %2829 = vmatpush1.xpose.msra.mxu0 0.0
        %2830 = vmatprep.subr.mxu0 0.0
        %2831 = vmatpush1.xpose.msra.mxu0 0.0
        %2832 = vmatprep.subr.mxu0 0.0
        %2833 = vmatpush1.xpose.msra.mxu0 0.0
        %2834 = vmatprep.subr.mxu0 0.0
        %2835 = vmatpush1.xpose.msra.mxu0 0.0
        %2836 = vmatprep.subr.mxu0 0.0
        %2837 = vmatpush1.xpose.msra.mxu0 0.0
        %2838 = vmatprep.subr.mxu0 0.0
        %2839 = vmatpush1.xpose.msra.mxu0 0.0
        %2840 = vmatprep.subr.mxu0 0.0
        %2841 = vmatpush1.xpose.msra.mxu0 0.0
        %2842 = vmatprep.subr.mxu0 0.0
        %2843 = vmatpush1.xpose.msra.mxu0 0.0
        %2844 = vmatprep.subr.mxu0 0.0
        %2845 = vmatpush1.xpose.msra.mxu0 0.0
        %2846 = vmatprep.subr.mxu0 0.0
        %2847 = vmatpush1.xpose.msra.mxu0 0.0
        %2848 = vmatprep.subr.mxu0 0.0
        %2849 = vmatpush1.xpose.msra.mxu0 0.0
        %2850 = vmatprep.subr.mxu0 0.0
        %2851 = vmatpush1.xpose.msra.mxu0 0.0
        %2852 = vmatprep.subr.mxu0 0.0
        %2853 = vmatpush1.xpose.msra.mxu0 0.0
        %2854 = vmatprep.subr.mxu0 0.0
        %2855 = vmatpush1.xpose.msra.mxu0 0.0
        %2856 = vmatprep.subr.mxu0 0.0
        %2857 = vmatpush1.xpose.msra.mxu0 0.0
        %2858 = vmatprep.subr.mxu0 0.0
        %2859 = vmatpush1.xpose.msra.mxu0 0.0
        %2860 = vmatprep.subr.mxu0 0.0
        %2861 = vmatpush1.xpose.msra.mxu0 0.0
        %2862 = vmatprep.subr.mxu0 0.0
        %2863 = vmatpush1.xpose.msra.mxu0 0.0
        %2864 = vmatprep.subr.mxu0 0.0
        %2865 = vmatpush1.xpose.msra.mxu0 0.0
        %2866 = vmatprep.subr.mxu0 0.0
        %2867 = vmatpush1.xpose.msra.mxu0 0.0
        %2868 = vmatprep.subr.mxu0 0.0
        %2869 = vmatpush1.xpose.msra.mxu0 0.0
        %2870 = vmatprep.subr.mxu0 0.0
        %2871 = vmatpush1.xpose.msra.mxu0 0.0
        %2872 = vmatprep.subr.mxu0 0.0
        %2873 = vmatpush1.xpose.msra.mxu0 0.0
        %2874 = vmatprep.subr.mxu0 0.0
        %2875 = vmatpush1.xpose.msra.mxu0 0.0
        %2876 = vmatprep.subr.mxu0 0.0
        %2877 = vmatpush1.xpose.msra.mxu0 0.0
        %2878 = vmatprep.subr.mxu0 0.0
        %2879 = vmatpush1.xpose.msra.mxu0 0.0
        %2880 = vmatprep.subr.mxu0 0.0
        %2881 = vmatpush1.xpose.msra.mxu0 0.0
        %2882 = vmatprep.subr.mxu0 0.0
        %2883 = vmatpush1.xpose.msra.mxu0 0.0
        %2884 = vmatprep.subr.mxu0 0.0
        %2885 = vmatpush1.xpose.msra.mxu0 0.0
        %2886 = vmatprep.subr.mxu0 0.0
        %2887 = vmatpush1.xpose.msra.mxu0 0.0
        %2888 = vmatprep.mubr.f32.mxu0 0.0
        %v2889 = vand.u32 %v2665, 4294901760
        %v2890 = vsub.f32 %v2665, %v2889
        %2891 = vmatmul.mubr.f32.gmra.mrb[0].mxu0 %v2890
        %v2892 = vpop.f32.mrb[0].mxu0
        %v2893 = vadd.f32 %v2819, %v2892
        %v2894 = vpop.f32.mrb[0].mxu0
        %2895 = vdwg.mxu0
        %2896 = vmatprep.subr.mxu0 0.0
        %v2897 = vand.u32 %v2668, 4294901760
        %2898 = vmatpush1.xpose.msra.mxu0 %v2897
        %2899 = vmatprep.subr.mxu0 0.0
        %2900 = vmatpush1.xpose.msra.mxu0 0.0
        %2901 = vmatprep.subr.mxu0 0.0
        %2902 = vmatpush1.xpose.msra.mxu0 0.0
        %2903 = vmatprep.subr.mxu0 0.0
        %2904 = vmatpush1.xpose.msra.mxu0 0.0
        %2905 = vmatprep.subr.mxu0 0.0
        %2906 = vmatpush1.xpose.msra.mxu0 0.0
        %2907 = vmatprep.subr.mxu0 0.0
        %2908 = vmatpush1.xpose.msra.mxu0 0.0
        %2909 = vmatprep.subr.mxu0 0.0
        %2910 = vmatpush1.xpose.msra.mxu0 0.0
        %2911 = vmatprep.subr.mxu0 0.0
        %2912 = vmatpush1.xpose.msra.mxu0 0.0
        %2913 = vmatprep.subr.mxu0 0.0
        %2914 = vmatpush1.xpose.msra.mxu0 0.0
        %2915 = vmatprep.subr.mxu0 0.0
        %2916 = vmatpush1.xpose.msra.mxu0 0.0
        %2917 = vmatprep.subr.mxu0 0.0
        %2918 = vmatpush1.xpose.msra.mxu0 0.0
        %2919 = vmatprep.subr.mxu0 0.0
        %2920 = vmatpush1.xpose.msra.mxu0 0.0
        %2921 = vmatprep.subr.mxu0 0.0
        %2922 = vmatpush1.xpose.msra.mxu0 0.0
        %2923 = vmatprep.subr.mxu0 0.0
        %2924 = vmatpush1.xpose.msra.mxu0 0.0
        %2925 = vmatprep.subr.mxu0 0.0
        %2926 = vmatpush1.xpose.msra.mxu0 0.0
        %2927 = vmatprep.subr.mxu0 0.0
        %2928 = vmatpush1.xpose.msra.mxu0 0.0
        %2929 = vmatprep.subr.mxu0 0.0
        %2930 = vmatpush1.xpose.msra.mxu0 0.0
        %2931 = vmatprep.subr.mxu0 0.0
        %2932 = vmatpush1.xpose.msra.mxu0 0.0
        %2933 = vmatprep.subr.mxu0 0.0
        %2934 = vmatpush1.xpose.msra.mxu0 0.0
        %2935 = vmatprep.subr.mxu0 0.0
        %2936 = vmatpush1.xpose.msra.mxu0 0.0
        %2937 = vmatprep.subr.mxu0 0.0
        %2938 = vmatpush1.xpose.msra.mxu0 0.0
        %2939 = vmatprep.subr.mxu0 0.0
        %2940 = vmatpush1.xpose.msra.mxu0 0.0
        %2941 = vmatprep.subr.mxu0 0.0
        %2942 = vmatpush1.xpose.msra.mxu0 0.0
        %2943 = vmatprep.subr.mxu0 0.0
        %2944 = vmatpush1.xpose.msra.mxu0 0.0
        %2945 = vmatprep.subr.mxu0 0.0
        %2946 = vmatpush1.xpose.msra.mxu0 0.0
        %2947 = vmatprep.subr.mxu0 0.0
        %2948 = vmatpush1.xpose.msra.mxu0 0.0
        %2949 = vmatprep.subr.mxu0 0.0
        %2950 = vmatpush1.xpose.msra.mxu0 0.0
        %2951 = vmatprep.subr.mxu0 0.0
        %2952 = vmatpush1.xpose.msra.mxu0 0.0
        %2953 = vmatprep.subr.mxu0 0.0
        %2954 = vmatpush1.xpose.msra.mxu0 0.0
        %2955 = vmatprep.subr.mxu0 0.0
        %2956 = vmatpush1.xpose.msra.mxu0 0.0
        %2957 = vmatprep.subr.mxu0 0.0
        %2958 = vmatpush1.xpose.msra.mxu0 0.0
        %2959 = vmatprep.subr.mxu0 0.0
        %2960 = vmatpush1.xpose.msra.mxu0 0.0
        %2961 = vmatprep.mubr.f32.mxu0 0.0
        %v2962 = vand.u32 %v2665, 4294901760
        %v2963 = vsub.f32 %v2665, %v2962
        %v2964 = vand.u32 %v2963, 4294901760
        %2965 = vmatmul.mubr.f32.gmra.mrb[0].mxu0 %v2964
        %v2966 = vpop.f32.mrb[0].mxu0
        %v2967 = vadd.f32 %v2893, %v2966
        %v2968 = vpop.f32.mrb[0].mxu0
        %2969 = vdwg.mxu0
        %2970 = vmatprep.subr.mxu0 0.0
        %v2971 = vand.u32 %v2668, 4294901760
        %v2972 = vsub.f32 %v2668, %v2971
        %v2973 = vand.u32 %v2972, 4294901760
        %2974 = vmatpush1.xpose.msra.mxu0 %v2973
        %2975 = vmatprep.subr.mxu0 0.0
        %2976 = vmatpush1.xpose.msra.mxu0 0.0
        %2977 = vmatprep.subr.mxu0 0.0
        %2978 = vmatpush1.xpose.msra.mxu0 0.0
        %2979 = vmatprep.subr.mxu0 0.0
        %2980 = vmatpush1.xpose.msra.mxu0 0.0
        %2981 = vmatprep.subr.mxu0 0.0
        %2982 = vmatpush1.xpose.msra.mxu0 0.0
        %2983 = vmatprep.subr.mxu0 0.0
        %2984 = vmatpush1.xpose.msra.mxu0 0.0
        %2985 = vmatprep.subr.mxu0 0.0
        %2986 = vmatpush1.xpose.msra.mxu0 0.0
        %2987 = vmatprep.subr.mxu0 0.0
        %2988 = vmatpush1.xpose.msra.mxu0 0.0
        %2989 = vmatprep.subr.mxu0 0.0
        %2990 = vmatpush1.xpose.msra.mxu0 0.0
        %2991 = vmatprep.subr.mxu0 0.0
        %2992 = vmatpush1.xpose.msra.mxu0 0.0
        %2993 = vmatprep.subr.mxu0 0.0
        %2994 = vmatpush1.xpose.msra.mxu0 0.0
        %2995 = vmatprep.subr.mxu0 0.0
        %2996 = vmatpush1.xpose.msra.mxu0 0.0
        %2997 = vmatprep.subr.mxu0 0.0
        %2998 = vmatpush1.xpose.msra.mxu0 0.0
        %2999 = vmatprep.subr.mxu0 0.0
        %3000 = vmatpush1.xpose.msra.mxu0 0.0
        %3001 = vmatprep.subr.mxu0 0.0
        %3002 = vmatpush1.xpose.msra.mxu0 0.0
        %3003 = vmatprep.subr.mxu0 0.0
        %3004 = vmatpush1.xpose.msra.mxu0 0.0
        %3005 = vmatprep.subr.mxu0 0.0
        %3006 = vmatpush1.xpose.msra.mxu0 0.0
        %3007 = vmatprep.subr.mxu0 0.0
        %3008 = vmatpush1.xpose.msra.mxu0 0.0
        %3009 = vmatprep.subr.mxu0 0.0
        %3010 = vmatpush1.xpose.msra.mxu0 0.0
        %3011 = vmatprep.subr.mxu0 0.0
        %3012 = vmatpush1.xpose.msra.mxu0 0.0
        %3013 = vmatprep.subr.mxu0 0.0
        %3014 = vmatpush1.xpose.msra.mxu0 0.0
        %3015 = vmatprep.subr.mxu0 0.0
        %3016 = vmatpush1.xpose.msra.mxu0 0.0
        %3017 = vmatprep.subr.mxu0 0.0
        %3018 = vmatpush1.xpose.msra.mxu0 0.0
        %3019 = vmatprep.subr.mxu0 0.0
        %3020 = vmatpush1.xpose.msra.mxu0 0.0
        %3021 = vmatprep.subr.mxu0 0.0
        %3022 = vmatpush1.xpose.msra.mxu0 0.0
        %3023 = vmatprep.subr.mxu0 0.0
        %3024 = vmatpush1.xpose.msra.mxu0 0.0
        %3025 = vmatprep.subr.mxu0 0.0
        %3026 = vmatpush1.xpose.msra.mxu0 0.0
        %3027 = vmatprep.subr.mxu0 0.0
        %3028 = vmatpush1.xpose.msra.mxu0 0.0
        %3029 = vmatprep.subr.mxu0 0.0
        %3030 = vmatpush1.xpose.msra.mxu0 0.0
        %3031 = vmatprep.subr.mxu0 0.0
        %3032 = vmatpush1.xpose.msra.mxu0 0.0
        %3033 = vmatprep.subr.mxu0 0.0
        %3034 = vmatpush1.xpose.msra.mxu0 0.0
        %3035 = vmatprep.subr.mxu0 0.0
        %3036 = vmatpush1.xpose.msra.mxu0 0.0
        %3037 = vmatprep.mubr.f32.mxu0 0.0
        %v3038 = vand.u32 %v2665, 4294901760
        %3039 = vmatmul.mubr.f32.gmra.mrb[0].mxu0 %v3038
        %v3040 = vpop.f32.mrb[0].mxu0
        %v3041 = vadd.f32 %v2967, %v3040
        %v3042 = vpop.f32.mrb[0].mxu0
        %3043 = vdwg.mxu0
        %3044 = vmatprep.subr.mxu0 0.0
        %v3045 = vand.u32 %v2668, 4294901760
        %3046 = vmatpush1.xpose.msra.mxu0 %v3045
        %3047 = vmatprep.subr.mxu0 0.0
        %3048 = vmatpush1.xpose.msra.mxu0 0.0
        %3049 = vmatprep.subr.mxu0 0.0
        %3050 = vmatpush1.xpose.msra.mxu0 0.0
        %3051 = vmatprep.subr.mxu0 0.0
        %3052 = vmatpush1.xpose.msra.mxu0 0.0
        %3053 = vmatprep.subr.mxu0 0.0
        %3054 = vmatpush1.xpose.msra.mxu0 0.0
        %3055 = vmatprep.subr.mxu0 0.0
        %3056 = vmatpush1.xpose.msra.mxu0 0.0
        %3057 = vmatprep.subr.mxu0 0.0
        %3058 = vmatpush1.xpose.msra.mxu0 0.0
        %3059 = vmatprep.subr.mxu0 0.0
        %3060 = vmatpush1.xpose.msra.mxu0 0.0
        %3061 = vmatprep.subr.mxu0 0.0
        %3062 = vmatpush1.xpose.msra.mxu0 0.0
        %3063 = vmatprep.subr.mxu0 0.0
        %3064 = vmatpush1.xpose.msra.mxu0 0.0
        %3065 = vmatprep.subr.mxu0 0.0
        %3066 = vmatpush1.xpose.msra.mxu0 0.0
        %3067 = vmatprep.subr.mxu0 0.0
        %3068 = vmatpush1.xpose.msra.mxu0 0.0
        %3069 = vmatprep.subr.mxu0 0.0
        %3070 = vmatpush1.xpose.msra.mxu0 0.0
        %3071 = vmatprep.subr.mxu0 0.0
        %3072 = vmatpush1.xpose.msra.mxu0 0.0
        %3073 = vmatprep.subr.mxu0 0.0
        %3074 = vmatpush1.xpose.msra.mxu0 0.0
        %3075 = vmatprep.subr.mxu0 0.0
        %3076 = vmatpush1.xpose.msra.mxu0 0.0
        %3077 = vmatprep.subr.mxu0 0.0
        %3078 = vmatpush1.xpose.msra.mxu0 0.0
        %3079 = vmatprep.subr.mxu0 0.0
        %3080 = vmatpush1.xpose.msra.mxu0 0.0
        %3081 = vmatprep.subr.mxu0 0.0
        %3082 = vmatpush1.xpose.msra.mxu0 0.0
        %3083 = vmatprep.subr.mxu0 0.0
        %3084 = vmatpush1.xpose.msra.mxu0 0.0
        %3085 = vmatprep.subr.mxu0 0.0
        %3086 = vmatpush1.xpose.msra.mxu0 0.0
        %3087 = vmatprep.subr.mxu0 0.0
        %3088 = vmatpush1.xpose.msra.mxu0 0.0
        %3089 = vmatprep.subr.mxu0 0.0
        %3090 = vmatpush1.xpose.msra.mxu0 0.0
        %3091 = vmatprep.subr.mxu0 0.0
        %3092 = vmatpush1.xpose.msra.mxu0 0.0
        %3093 = vmatprep.subr.mxu0 0.0
        %3094 = vmatpush1.xpose.msra.mxu0 0.0
        %3095 = vmatprep.subr.mxu0 0.0
        %3096 = vmatpush1.xpose.msra.mxu0 0.0
        %3097 = vmatprep.subr.mxu0 0.0
        %3098 = vmatpush1.xpose.msra.mxu0 0.0
        %3099 = vmatprep.subr.mxu0 0.0
        %3100 = vmatpush1.xpose.msra.mxu0 0.0
        %3101 = vmatprep.subr.mxu0 0.0
        %3102 = vmatpush1.xpose.msra.mxu0 0.0
        %3103 = vmatprep.subr.mxu0 0.0
        %3104 = vmatpush1.xpose.msra.mxu0 0.0
        %3105 = vmatprep.subr.mxu0 0.0
        %3106 = vmatpush1.xpose.msra.mxu0 0.0
        %3107 = vmatprep.subr.mxu0 0.0
        %3108 = vmatpush1.xpose.msra.mxu0 0.0
        %3109 = vmatprep.mubr.f32.mxu0 0.0
        %v3110 = vand.u32 %v2665, 4294901760
        %3111 = vmatmul.mubr.f32.gmra.mrb[0].mxu0 %v3110
        %v3112 = vpop.f32.mrb[0].mxu0
        %v3113 = vadd.f32 %v3041, %v3112
        %v3114 = vpop.f32.mrb[0].mxu0
        %3115 = vdwg.mxu0
        %v3117 = vsel %vm1759, %v1750, 0
        %v3120 = vsel %vm1759, %v1754, 0
        %3122 = vmatprep.subr.mxu0 0.0
        %v3123 = vand.u32 %v3120, 4294901760
        %3124 = vmatpush1.xpose.msra.mxu0 %v3123
        %3125 = vmatprep.subr.mxu0 0.0
        %3126 = vmatpush1.xpose.msra.mxu0 0.0
        %3127 = vmatprep.subr.mxu0 0.0
        %3128 = vmatpush1.xpose.msra.mxu0 0.0
        %3129 = vmatprep.subr.mxu0 0.0
        %3130 = vmatpush1.xpose.msra.mxu0 0.0
        %3131 = vmatprep.subr.mxu0 0.0
        %3132 = vmatpush1.xpose.msra.mxu0 0.0
        %3133 = vmatprep.subr.mxu0 0.0
        %3134 = vmatpush1.xpose.msra.mxu0 0.0
        %3135 = vmatprep.subr.mxu0 0.0
        %3136 = vmatpush1.xpose.msra.mxu0 0.0
        %3137 = vmatprep.subr.mxu0 0.0
        %3138 = vmatpush1.xpose.msra.mxu0 0.0
        %3139 = vmatprep.subr.mxu0 0.0
        %3140 = vmatpush1.xpose.msra.mxu0 0.0
        %3141 = vmatprep.subr.mxu0 0.0
        %3142 = vmatpush1.xpose.msra.mxu0 0.0
        %3143 = vmatprep.subr.mxu0 0.0
        %3144 = vmatpush1.xpose.msra.mxu0 0.0
        %3145 = vmatprep.subr.mxu0 0.0
        %3146 = vmatpush1.xpose.msra.mxu0 0.0
        %3147 = vmatprep.subr.mxu0 0.0
        %3148 = vmatpush1.xpose.msra.mxu0 0.0
        %3149 = vmatprep.subr.mxu0 0.0
        %3150 = vmatpush1.xpose.msra.mxu0 0.0
        %3151 = vmatprep.subr.mxu0 0.0
        %3152 = vmatpush1.xpose.msra.mxu0 0.0
        %3153 = vmatprep.subr.mxu0 0.0
        %3154 = vmatpush1.xpose.msra.mxu0 0.0
        %3155 = vmatprep.subr.mxu0 0.0
        %3156 = vmatpush1.xpose.msra.mxu0 0.0
        %3157 = vmatprep.subr.mxu0 0.0
        %3158 = vmatpush1.xpose.msra.mxu0 0.0
        %3159 = vmatprep.subr.mxu0 0.0
        %3160 = vmatpush1.xpose.msra.mxu0 0.0
        %3161 = vmatprep.subr.mxu0 0.0
        %3162 = vmatpush1.xpose.msra.mxu0 0.0
        %3163 = vmatprep.subr.mxu0 0.0
        %3164 = vmatpush1.xpose.msra.mxu0 0.0
        %3165 = vmatprep.subr.mxu0 0.0
        %3166 = vmatpush1.xpose.msra.mxu0 0.0
        %3167 = vmatprep.subr.mxu0 0.0
        %3168 = vmatpush1.xpose.msra.mxu0 0.0
        %3169 = vmatprep.subr.mxu0 0.0
        %3170 = vmatpush1.xpose.msra.mxu0 0.0
        %3171 = vmatprep.subr.mxu0 0.0
        %3172 = vmatpush1.xpose.msra.mxu0 0.0
        %3173 = vmatprep.subr.mxu0 0.0
        %3174 = vmatpush1.xpose.msra.mxu0 0.0
        %3175 = vmatprep.subr.mxu0 0.0
        %3176 = vmatpush1.xpose.msra.mxu0 0.0
        %3177 = vmatprep.subr.mxu0 0.0
        %3178 = vmatpush1.xpose.msra.mxu0 0.0
        %3179 = vmatprep.subr.mxu0 0.0
        %3180 = vmatpush1.xpose.msra.mxu0 0.0
        %3181 = vmatprep.subr.mxu0 0.0
        %3182 = vmatpush1.xpose.msra.mxu0 0.0
        %3183 = vmatprep.subr.mxu0 0.0
        %3184 = vmatpush1.xpose.msra.mxu0 0.0
        %3185 = vmatprep.subr.mxu0 0.0
        %3186 = vmatpush1.xpose.msra.mxu0 0.0
        %3187 = vmatprep.mubr.f32.mxu0 0.0
        %v3188 = vand.u32 %v3117, 4294901760
        %v3189 = vsub.f32 %v3117, %v3188
        %v3190 = vand.u32 %v3189, 4294901760
        %v3191 = vsub.f32 %v3189, %v3190
        %v3192 = vand.u32 %v3191, 4294901760
        %3193 = vmatmul.mubr.f32.gmra.mrb[0].mxu0 %v3192
        %v3194 = vpop.f32.mrb[0].mxu0
        %v3195 = vadd.f32 0.0, %v3194
        %v3196 = vpop.f32.mrb[0].mxu0
        %3197 = vdwg.mxu0
        %3198 = vmatprep.subr.mxu0 0.0
        %v3199 = vand.u32 %v3120, 4294901760
        %v3200 = vsub.f32 %v3120, %v3199
        %v3201 = vand.u32 %v3200, 4294901760
        %v3202 = vsub.f32 %v3200, %v3201
        %v3203 = vand.u32 %v3202, 4294901760
        %3204 = vmatpush1.xpose.msra.mxu0 %v3203
        %3205 = vmatprep.subr.mxu0 0.0
        %3206 = vmatpush1.xpose.msra.mxu0 0.0
        %3207 = vmatprep.subr.mxu0 0.0
        %3208 = vmatpush1.xpose.msra.mxu0 0.0
        %3209 = vmatprep.subr.mxu0 0.0
        %3210 = vmatpush1.xpose.msra.mxu0 0.0
        %3211 = vmatprep.subr.mxu0 0.0
        %3212 = vmatpush1.xpose.msra.mxu0 0.0
        %3213 = vmatprep.subr.mxu0 0.0
        %3214 = vmatpush1.xpose.msra.mxu0 0.0
        %3215 = vmatprep.subr.mxu0 0.0
        %3216 = vmatpush1.xpose.msra.mxu0 0.0
        %3217 = vmatprep.subr.mxu0 0.0
        %3218 = vmatpush1.xpose.msra.mxu0 0.0
        %3219 = vmatprep.subr.mxu0 0.0
        %3220 = vmatpush1.xpose.msra.mxu0 0.0
        %3221 = vmatprep.subr.mxu0 0.0
        %3222 = vmatpush1.xpose.msra.mxu0 0.0
        %3223 = vmatprep.subr.mxu0 0.0
        %3224 = vmatpush1.xpose.msra.mxu0 0.0
        %3225 = vmatprep.subr.mxu0 0.0
        %3226 = vmatpush1.xpose.msra.mxu0 0.0
        %3227 = vmatprep.subr.mxu0 0.0
        %3228 = vmatpush1.xpose.msra.mxu0 0.0
        %3229 = vmatprep.subr.mxu0 0.0
        %3230 = vmatpush1.xpose.msra.mxu0 0.0
        %3231 = vmatprep.subr.mxu0 0.0
        %3232 = vmatpush1.xpose.msra.mxu0 0.0
        %3233 = vmatprep.subr.mxu0 0.0
        %3234 = vmatpush1.xpose.msra.mxu0 0.0
        %3235 = vmatprep.subr.mxu0 0.0
        %3236 = vmatpush1.xpose.msra.mxu0 0.0
        %3237 = vmatprep.subr.mxu0 0.0
        %3238 = vmatpush1.xpose.msra.mxu0 0.0
        %3239 = vmatprep.subr.mxu0 0.0
        %3240 = vmatpush1.xpose.msra.mxu0 0.0
        %3241 = vmatprep.subr.mxu0 0.0
        %3242 = vmatpush1.xpose.msra.mxu0 0.0
        %3243 = vmatprep.subr.mxu0 0.0
        %3244 = vmatpush1.xpose.msra.mxu0 0.0
        %3245 = vmatprep.subr.mxu0 0.0
        %3246 = vmatpush1.xpose.msra.mxu0 0.0
        %3247 = vmatprep.subr.mxu0 0.0
        %3248 = vmatpush1.xpose.msra.mxu0 0.0
        %3249 = vmatprep.subr.mxu0 0.0
        %3250 = vmatpush1.xpose.msra.mxu0 0.0
        %3251 = vmatprep.subr.mxu0 0.0
        %3252 = vmatpush1.xpose.msra.mxu0 0.0
        %3253 = vmatprep.subr.mxu0 0.0
        %3254 = vmatpush1.xpose.msra.mxu0 0.0
        %3255 = vmatprep.subr.mxu0 0.0
        %3256 = vmatpush1.xpose.msra.mxu0 0.0
        %3257 = vmatprep.subr.mxu0 0.0
        %3258 = vmatpush1.xpose.msra.mxu0 0.0
        %3259 = vmatprep.subr.mxu0 0.0
        %3260 = vmatpush1.xpose.msra.mxu0 0.0
        %3261 = vmatprep.subr.mxu0 0.0
        %3262 = vmatpush1.xpose.msra.mxu0 0.0
        %3263 = vmatprep.subr.mxu0 0.0
        %3264 = vmatpush1.xpose.msra.mxu0 0.0
        %3265 = vmatprep.subr.mxu0 0.0
        %3266 = vmatpush1.xpose.msra.mxu0 0.0
        %3267 = vmatprep.mubr.f32.mxu0 0.0
        %v3268 = vand.u32 %v3117, 4294901760
        %3269 = vmatmul.mubr.f32.gmra.mrb[0].mxu0 %v3268
        %v3270 = vpop.f32.mrb[0].mxu0
        %v3271 = vadd.f32 %v3195, %v3270
        %v3272 = vpop.f32.mrb[0].mxu0
        %3273 = vdwg.mxu0
        %3274 = vmatprep.subr.mxu0 0.0
        %v3275 = vand.u32 %v3120, 4294901760
        %v3276 = vsub.f32 %v3120, %v3275
        %3277 = vmatpush1.xpose.msra.mxu0 %v3276
        %3278 = vmatprep.subr.mxu0 0.0
        %3279 = vmatpush1.xpose.msra.mxu0 0.0
        %3280 = vmatprep.subr.mxu0 0.0
        %3281 = vmatpush1.xpose.msra.mxu0 0.0
        %3282 = vmatprep.subr.mxu0 0.0
        %3283 = vmatpush1.xpose.msra.mxu0 0.0
        %3284 = vmatprep.subr.mxu0 0.0
        %3285 = vmatpush1.xpose.msra.mxu0 0.0
        %3286 = vmatprep.subr.mxu0 0.0
        %3287 = vmatpush1.xpose.msra.mxu0 0.0
        %3288 = vmatprep.subr.mxu0 0.0
        %3289 = vmatpush1.xpose.msra.mxu0 0.0
        %3290 = vmatprep.subr.mxu0 0.0
        %3291 = vmatpush1.xpose.msra.mxu0 0.0
        %3292 = vmatprep.subr.mxu0 0.0
        %3293 = vmatpush1.xpose.msra.mxu0 0.0
        %3294 = vmatprep.subr.mxu0 0.0
        %3295 = vmatpush1.xpose.msra.mxu0 0.0
        %3296 = vmatprep.subr.mxu0 0.0
        %3297 = vmatpush1.xpose.msra.mxu0 0.0
        %3298 = vmatprep.subr.mxu0 0.0
        %3299 = vmatpush1.xpose.msra.mxu0 0.0
        %3300 = vmatprep.subr.mxu0 0.0
        %3301 = vmatpush1.xpose.msra.mxu0 0.0
        %3302 = vmatprep.subr.mxu0 0.0
        %3303 = vmatpush1.xpose.msra.mxu0 0.0
        %3304 = vmatprep.subr.mxu0 0.0
        %3305 = vmatpush1.xpose.msra.mxu0 0.0
        %3306 = vmatprep.subr.mxu0 0.0
        %3307 = vmatpush1.xpose.msra.mxu0 0.0
        %3308 = vmatprep.subr.mxu0 0.0
        %3309 = vmatpush1.xpose.msra.mxu0 0.0
        %3310 = vmatprep.subr.mxu0 0.0
        %3311 = vmatpush1.xpose.msra.mxu0 0.0
        %3312 = vmatprep.subr.mxu0 0.0
        %3313 = vmatpush1.xpose.msra.mxu0 0.0
        %3314 = vmatprep.subr.mxu0 0.0
        %3315 = vmatpush1.xpose.msra.mxu0 0.0
        %3316 = vmatprep.subr.mxu0 0.0
        %3317 = vmatpush1.xpose.msra.mxu0 0.0
        %3318 = vmatprep.subr.mxu0 0.0
        %3319 = vmatpush1.xpose.msra.mxu0 0.0
        %3320 = vmatprep.subr.mxu0 0.0
        %3321 = vmatpush1.xpose.msra.mxu0 0.0
        %3322 = vmatprep.subr.mxu0 0.0
        %3323 = vmatpush1.xpose.msra.mxu0 0.0
        %3324 = vmatprep.subr.mxu0 0.0
        %3325 = vmatpush1.xpose.msra.mxu0 0.0
        %3326 = vmatprep.subr.mxu0 0.0
        %3327 = vmatpush1.xpose.msra.mxu0 0.0
        %3328 = vmatprep.subr.mxu0 0.0
        %3329 = vmatpush1.xpose.msra.mxu0 0.0
        %3330 = vmatprep.subr.mxu0 0.0
        %3331 = vmatpush1.xpose.msra.mxu0 0.0
        %3332 = vmatprep.subr.mxu0 0.0
        %3333 = vmatpush1.xpose.msra.mxu0 0.0
        %3334 = vmatprep.subr.mxu0 0.0
        %3335 = vmatpush1.xpose.msra.mxu0 0.0
        %3336 = vmatprep.subr.mxu0 0.0
        %3337 = vmatpush1.xpose.msra.mxu0 0.0
        %3338 = vmatprep.subr.mxu0 0.0
        %3339 = vmatpush1.xpose.msra.mxu0 0.0
        %3340 = vmatprep.mubr.f32.mxu0 0.0
        %v3341 = vand.u32 %v3117, 4294901760
        %v3342 = vsub.f32 %v3117, %v3341
        %3343 = vmatmul.mubr.f32.gmra.mrb[0].mxu0 %v3342
        %v3344 = vpop.f32.mrb[0].mxu0
        %v3345 = vadd.f32 %v3271, %v3344
        %v3346 = vpop.f32.mrb[0].mxu0
        %3347 = vdwg.mxu0
        %3348 = vmatprep.subr.mxu0 0.0
        %v3349 = vand.u32 %v3120, 4294901760
        %3350 = vmatpush1.xpose.msra.mxu0 %v3349
        %3351 = vmatprep.subr.mxu0 0.0
        %3352 = vmatpush1.xpose.msra.mxu0 0.0
        %3353 = vmatprep.subr.mxu0 0.0
        %3354 = vmatpush1.xpose.msra.mxu0 0.0
        %3355 = vmatprep.subr.mxu0 0.0
        %3356 = vmatpush1.xpose.msra.mxu0 0.0
        %3357 = vmatprep.subr.mxu0 0.0
        %3358 = vmatpush1.xpose.msra.mxu0 0.0
        %3359 = vmatprep.subr.mxu0 0.0
        %3360 = vmatpush1.xpose.msra.mxu0 0.0
        %3361 = vmatprep.subr.mxu0 0.0
        %3362 = vmatpush1.xpose.msra.mxu0 0.0
        %3363 = vmatprep.subr.mxu0 0.0
        %3364 = vmatpush1.xpose.msra.mxu0 0.0
        %3365 = vmatprep.subr.mxu0 0.0
        %3366 = vmatpush1.xpose.msra.mxu0 0.0
        %3367 = vmatprep.subr.mxu0 0.0
        %3368 = vmatpush1.xpose.msra.mxu0 0.0
        %3369 = vmatprep.subr.mxu0 0.0
        %3370 = vmatpush1.xpose.msra.mxu0 0.0
        %3371 = vmatprep.subr.mxu0 0.0
        %3372 = vmatpush1.xpose.msra.mxu0 0.0
        %3373 = vmatprep.subr.mxu0 0.0
        %3374 = vmatpush1.xpose.msra.mxu0 0.0
        %3375 = vmatprep.subr.mxu0 0.0
        %3376 = vmatpush1.xpose.msra.mxu0 0.0
        %3377 = vmatprep.subr.mxu0 0.0
        %3378 = vmatpush1.xpose.msra.mxu0 0.0
        %3379 = vmatprep.subr.mxu0 0.0
        %3380 = vmatpush1.xpose.msra.mxu0 0.0
        %3381 = vmatprep.subr.mxu0 0.0
        %3382 = vmatpush1.xpose.msra.mxu0 0.0
        %3383 = vmatprep.subr.mxu0 0.0
        %3384 = vmatpush1.xpose.msra.mxu0 0.0
        %3385 = vmatprep.subr.mxu0 0.0
        %3386 = vmatpush1.xpose.msra.mxu0 0.0
        %3387 = vmatprep.subr.mxu0 0.0
        %3388 = vmatpush1.xpose.msra.mxu0 0.0
        %3389 = vmatprep.subr.mxu0 0.0
        %3390 = vmatpush1.xpose.msra.mxu0 0.0
        %3391 = vmatprep.subr.mxu0 0.0
        %3392 = vmatpush1.xpose.msra.mxu0 0.0
        %3393 = vmatprep.subr.mxu0 0.0
        %3394 = vmatpush1.xpose.msra.mxu0 0.0
        %3395 = vmatprep.subr.mxu0 0.0
        %3396 = vmatpush1.xpose.msra.mxu0 0.0
        %3397 = vmatprep.subr.mxu0 0.0
        %3398 = vmatpush1.xpose.msra.mxu0 0.0
        %3399 = vmatprep.subr.mxu0 0.0
        %3400 = vmatpush1.xpose.msra.mxu0 0.0
        %3401 = vmatprep.subr.mxu0 0.0
        %3402 = vmatpush1.xpose.msra.mxu0 0.0
        %3403 = vmatprep.subr.mxu0 0.0
        %3404 = vmatpush1.xpose.msra.mxu0 0.0
        %3405 = vmatprep.subr.mxu0 0.0
        %3406 = vmatpush1.xpose.msra.mxu0 0.0
        %3407 = vmatprep.subr.mxu0 0.0
        %3408 = vmatpush1.xpose.msra.mxu0 0.0
        %3409 = vmatprep.subr.mxu0 0.0
        %3410 = vmatpush1.xpose.msra.mxu0 0.0
        %3411 = vmatprep.subr.mxu0 0.0
        %3412 = vmatpush1.xpose.msra.mxu0 0.0
        %3413 = vmatprep.mubr.f32.mxu0 0.0
        %v3414 = vand.u32 %v3117, 4294901760
        %v3415 = vsub.f32 %v3117, %v3414
        %v3416 = vand.u32 %v3415, 4294901760
        %3417 = vmatmul.mubr.f32.gmra.mrb[0].mxu0 %v3416
        %v3418 = vpop.f32.mrb[0].mxu0
        %v3419 = vadd.f32 %v3345, %v3418
        %v3420 = vpop.f32.mrb[0].mxu0
        %3421 = vdwg.mxu0
        %3422 = vmatprep.subr.mxu0 0.0
        %v3423 = vand.u32 %v3120, 4294901760
        %v3424 = vsub.f32 %v3120, %v3423
        %v3425 = vand.u32 %v3424, 4294901760
        %3426 = vmatpush1.xpose.msra.mxu0 %v3425
        %3427 = vmatprep.subr.mxu0 0.0
        %3428 = vmatpush1.xpose.msra.mxu0 0.0
        %3429 = vmatprep.subr.mxu0 0.0
        %3430 = vmatpush1.xpose.msra.mxu0 0.0
        %3431 = vmatprep.subr.mxu0 0.0
        %3432 = vmatpush1.xpose.msra.mxu0 0.0
        %3433 = vmatprep.subr.mxu0 0.0
        %3434 = vmatpush1.xpose.msra.mxu0 0.0
        %3435 = vmatprep.subr.mxu0 0.0
        %3436 = vmatpush1.xpose.msra.mxu0 0.0
        %3437 = vmatprep.subr.mxu0 0.0
        %3438 = vmatpush1.xpose.msra.mxu0 0.0
        %3439 = vmatprep.subr.mxu0 0.0
        %3440 = vmatpush1.xpose.msra.mxu0 0.0
        %3441 = vmatprep.subr.mxu0 0.0
        %3442 = vmatpush1.xpose.msra.mxu0 0.0
        %3443 = vmatprep.subr.mxu0 0.0
        %3444 = vmatpush1.xpose.msra.mxu0 0.0
        %3445 = vmatprep.subr.mxu0 0.0
        %3446 = vmatpush1.xpose.msra.mxu0 0.0
        %3447 = vmatprep.subr.mxu0 0.0
        %3448 = vmatpush1.xpose.msra.mxu0 0.0
        %3449 = vmatprep.subr.mxu0 0.0
        %3450 = vmatpush1.xpose.msra.mxu0 0.0
        %3451 = vmatprep.subr.mxu0 0.0
        %3452 = vmatpush1.xpose.msra.mxu0 0.0
        %3453 = vmatprep.subr.mxu0 0.0
        %3454 = vmatpush1.xpose.msra.mxu0 0.0
        %3455 = vmatprep.subr.mxu0 0.0
        %3456 = vmatpush1.xpose.msra.mxu0 0.0
        %3457 = vmatprep.subr.mxu0 0.0
        %3458 = vmatpush1.xpose.msra.mxu0 0.0
        %3459 = vmatprep.subr.mxu0 0.0
        %3460 = vmatpush1.xpose.msra.mxu0 0.0
        %3461 = vmatprep.subr.mxu0 0.0
        %3462 = vmatpush1.xpose.msra.mxu0 0.0
        %3463 = vmatprep.subr.mxu0 0.0
        %3464 = vmatpush1.xpose.msra.mxu0 0.0
        %3465 = vmatprep.subr.mxu0 0.0
        %3466 = vmatpush1.xpose.msra.mxu0 0.0
        %3467 = vmatprep.subr.mxu0 0.0
        %3468 = vmatpush1.xpose.msra.mxu0 0.0
        %3469 = vmatprep.subr.mxu0 0.0
        %3470 = vmatpush1.xpose.msra.mxu0 0.0
        %3471 = vmatprep.subr.mxu0 0.0
        %3472 = vmatpush1.xpose.msra.mxu0 0.0
        %3473 = vmatprep.subr.mxu0 0.0
        %3474 = vmatpush1.xpose.msra.mxu0 0.0
        %3475 = vmatprep.subr.mxu0 0.0
        %3476 = vmatpush1.xpose.msra.mxu0 0.0
        %3477 = vmatprep.subr.mxu0 0.0
        %3478 = vmatpush1.xpose.msra.mxu0 0.0
        %3479 = vmatprep.subr.mxu0 0.0
        %3480 = vmatpush1.xpose.msra.mxu0 0.0
        %3481 = vmatprep.subr.mxu0 0.0
        %3482 = vmatpush1.xpose.msra.mxu0 0.0
        %3483 = vmatprep.subr.mxu0 0.0
        %3484 = vmatpush1.xpose.msra.mxu0 0.0
        %3485 = vmatprep.subr.mxu0 0.0
        %3486 = vmatpush1.xpose.msra.mxu0 0.0
        %3487 = vmatprep.subr.mxu0 0.0
        %3488 = vmatpush1.xpose.msra.mxu0 0.0
        %3489 = vmatprep.mubr.f32.mxu0 0.0
        %v3490 = vand.u32 %v3117, 4294901760
        %3491 = vmatmul.mubr.f32.gmra.mrb[0].mxu0 %v3490
        %v3492 = vpop.f32.mrb[0].mxu0
        %v3493 = vadd.f32 %v3419, %v3492
        %v3494 = vpop.f32.mrb[0].mxu0
        %3495 = vdwg.mxu0
        %3496 = vmatprep.subr.mxu0 0.0
        %v3497 = vand.u32 %v3120, 4294901760
        %3498 = vmatpush1.xpose.msra.mxu0 %v3497
        %3499 = vmatprep.subr.mxu0 0.0
        %3500 = vmatpush1.xpose.msra.mxu0 0.0
        %3501 = vmatprep.subr.mxu0 0.0
        %3502 = vmatpush1.xpose.msra.mxu0 0.0
        %3503 = vmatprep.subr.mxu0 0.0
        %3504 = vmatpush1.xpose.msra.mxu0 0.0
        %3505 = vmatprep.subr.mxu0 0.0
        %3506 = vmatpush1.xpose.msra.mxu0 0.0
        %3507 = vmatprep.subr.mxu0 0.0
        %3508 = vmatpush1.xpose.msra.mxu0 0.0
        %3509 = vmatprep.subr.mxu0 0.0
        %3510 = vmatpush1.xpose.msra.mxu0 0.0
        %3511 = vmatprep.subr.mxu0 0.0
        %3512 = vmatpush1.xpose.msra.mxu0 0.0
        %3513 = vmatprep.subr.mxu0 0.0
        %3514 = vmatpush1.xpose.msra.mxu0 0.0
        %3515 = vmatprep.subr.mxu0 0.0
        %3516 = vmatpush1.xpose.msra.mxu0 0.0
        %3517 = vmatprep.subr.mxu0 0.0
        %3518 = vmatpush1.xpose.msra.mxu0 0.0
        %3519 = vmatprep.subr.mxu0 0.0
        %3520 = vmatpush1.xpose.msra.mxu0 0.0
        %3521 = vmatprep.subr.mxu0 0.0
        %3522 = vmatpush1.xpose.msra.mxu0 0.0
        %3523 = vmatprep.subr.mxu0 0.0
        %3524 = vmatpush1.xpose.msra.mxu0 0.0
        %3525 = vmatprep.subr.mxu0 0.0
        %3526 = vmatpush1.xpose.msra.mxu0 0.0
        %3527 = vmatprep.subr.mxu0 0.0
        %3528 = vmatpush1.xpose.msra.mxu0 0.0
        %3529 = vmatprep.subr.mxu0 0.0
        %3530 = vmatpush1.xpose.msra.mxu0 0.0
        %3531 = vmatprep.subr.mxu0 0.0
        %3532 = vmatpush1.xpose.msra.mxu0 0.0
        %3533 = vmatprep.subr.mxu0 0.0
        %3534 = vmatpush1.xpose.msra.mxu0 0.0
        %3535 = vmatprep.subr.mxu0 0.0
        %3536 = vmatpush1.xpose.msra.mxu0 0.0
        %3537 = vmatprep.subr.mxu0 0.0
        %3538 = vmatpush1.xpose.msra.mxu0 0.0
        %3539 = vmatprep.subr.mxu0 0.0
        %3540 = vmatpush1.xpose.msra.mxu0 0.0
        %3541 = vmatprep.subr.mxu0 0.0
        %3542 = vmatpush1.xpose.msra.mxu0 0.0
        %3543 = vmatprep.subr.mxu0 0.0
        %3544 = vmatpush1.xpose.msra.mxu0 0.0
        %3545 = vmatprep.subr.mxu0 0.0
        %3546 = vmatpush1.xpose.msra.mxu0 0.0
        %3547 = vmatprep.subr.mxu0 0.0
        %3548 = vmatpush1.xpose.msra.mxu0 0.0
        %3549 = vmatprep.subr.mxu0 0.0
        %3550 = vmatpush1.xpose.msra.mxu0 0.0
        %3551 = vmatprep.subr.mxu0 0.0
        %3552 = vmatpush1.xpose.msra.mxu0 0.0
        %3553 = vmatprep.subr.mxu0 0.0
        %3554 = vmatpush1.xpose.msra.mxu0 0.0
        %3555 = vmatprep.subr.mxu0 0.0
        %3556 = vmatpush1.xpose.msra.mxu0 0.0
        %3557 = vmatprep.subr.mxu0 0.0
        %3558 = vmatpush1.xpose.msra.mxu0 0.0
        %3559 = vmatprep.subr.mxu0 0.0
        %3560 = vmatpush1.xpose.msra.mxu0 0.0
        %3561 = vmatprep.mubr.f32.mxu0 0.0
        %v3562 = vand.u32 %v3117, 4294901760
        %3563 = vmatmul.mubr.f32.gmra.mrb[0].mxu0 %v3562
        %v3564 = vpop.f32.mrb[0].mxu0
        %v3565 = vadd.f32 %v3493, %v3564
        %v3566 = vpop.f32.mrb[0].mxu0
        %3567 = vdwg.mxu0
        %v3568 = vsel %vm1759, %v2209, -inf
        %3569 = vmax.xlane.f32.xlu0 %v3568
        %v3570 = vpop.xlane.xlu0 %3569
        %v3571 = vsel %vm1759, %v2661, -inf
        %3572 = vmax.xlane.f32.xlu0 %v3571
        %v3573 = vpop.xlane.xlu0 %3572
        %v3574 = vsel %vm1759, %v3113, -inf
        %3575 = vmax.xlane.f32.xlu0 %v3574
        %v3576 = vpop.xlane.xlu0 %3575
        %v3577 = vsel %vm1759, %v3565, -inf
        %3578 = vmax.xlane.f32.xlu0 %v3577
        %v3579 = vpop.xlane.xlu0 %3578
        %v3580 = vsub.f32 %v2209, %v3570
        %v3581 = vsub.f32 %v2661, %v3573
        %v3582 = vsub.f32 %v3113, %v3576
        %v3583 = vsub.f32 %v3565, %v3579
        %v3584 = vmul.f32 %v3580, 1.442695
        %v3585 = vpow.pop %v3584
        %v3586 = vmul.f32 %v3581, 1.442695
        %v3587 = vpow.pop %v3586
        %v3588 = vmul.f32 %v3582, 1.442695
        %v3589 = vpow.pop %v3588
        %v3590 = vmul.f32 %v3583, 1.442695
        %v3591 = vpow.pop %v3590
        %v3592 = vsel %vm1759, %v3585, 0.0
        %3593 = vadd.xlane.f32.xlu0 %v3592
        %v3594 = vpop.xlane.xlu0 %3593
        %v3595 = vsel %vm1759, %v3587, 0.0
        %3596 = vadd.xlane.f32.xlu0 %v3595
        %v3597 = vpop.xlane.xlu0 %3596
        %v3598 = vsel %vm1759, %v3589, 0.0
        %3599 = vadd.xlane.f32.xlu0 %v3598
        %v3600 = vpop.xlane.xlu0 %3599
        %v3601 = vsel %vm1759, %v3591, 0.0
        %3602 = vadd.xlane.f32.xlu0 %v3601
        %v3603 = vpop.xlane.xlu0 %3602
        %v3604 = vrcp.pop %v3594
        %v3605 = vrcp.pop %v3597
        %v3606 = vrcp.pop %v3600
        %v3607 = vrcp.pop %v3603
        %v3608 = vmul.f32 %v3585, %v3604
        %v3609 = vmul.f32 %v3587, %v3605
        %v3610 = vmul.f32 %v3589, %v3606
        %v3611 = vmul.f32 %v3591, %v3607
        %3612 = vst.msk [vmem:[%s560] sm:$0xff] %vm1759, %v3608
        %3613 = vst.msk [vmem:[%s560 + $0x8] sm:$0xff] %vm1759, %v3609
        %3614 = vst.msk [vmem:[%s560 + $0x10] sm:$0xff] %vm1759, %v3610
        %3615 = vst.msk [vmem:[%s560 + $0x18] sm:$0xff] %vm1759, %v3611
        %v3617 = vsel %vm1759, %v3608, 0
        %3619 = vmatprep.subr.mxu0 0.0
        %v3620 = vand.u32 %v1755, 4294901760
        %3621 = vmatpush1.msra.mxu0 %v3620
        %3622 = vmatprep.subr.mxu0 0.0
        %3623 = vmatpush1.msra.mxu0 0.0
        %3624 = vmatprep.subr.mxu0 0.0
        %3625 = vmatpush1.msra.mxu0 0.0
        %3626 = vmatprep.subr.mxu0 0.0
        %3627 = vmatpush1.msra.mxu0 0.0
        %3628 = vmatprep.subr.mxu0 0.0
        %3629 = vmatpush1.msra.mxu0 0.0
        %3630 = vmatprep.subr.mxu0 0.0
        %3631 = vmatpush1.msra.mxu0 0.0
        %3632 = vmatprep.subr.mxu0 0.0
        %3633 = vmatpush1.msra.mxu0 0.0
        %3634 = vmatprep.subr.mxu0 0.0
        %3635 = vmatpush1.msra.mxu0 0.0
        %3636 = vmatprep.subr.mxu0 0.0
        %3637 = vmatpush1.msra.mxu0 0.0
        %3638 = vmatprep.subr.mxu0 0.0
        %3639 = vmatpush1.msra.mxu0 0.0
        %3640 = vmatprep.subr.mxu0 0.0
        %3641 = vmatpush1.msra.mxu0 0.0
        %3642 = vmatprep.subr.mxu0 0.0
        %3643 = vmatpush1.msra.mxu0 0.0
        %3644 = vmatprep.subr.mxu0 0.0
        %3645 = vmatpush1.msra.mxu0 0.0
        %3646 = vmatprep.subr.mxu0 0.0
        %3647 = vmatpush1.msra.mxu0 0.0
        %3648 = vmatprep.subr.mxu0 0.0
        %3649 = vmatpush1.msra.mxu0 0.0
        %3650 = vmatprep.subr.mxu0 0.0
        %3651 = vmatpush1.msra.mxu0 0.0
        %3652 = vmatprep.subr.mxu0 0.0
        %3653 = vmatpush1.msra.mxu0 0.0
        %3654 = vmatprep.subr.mxu0 0.0
        %3655 = vmatpush1.msra.mxu0 0.0
        %3656 = vmatprep.subr.mxu0 0.0
        %3657 = vmatpush1.msra.mxu0 0.0
        %3658 = vmatprep.subr.mxu0 0.0
        %3659 = vmatpush1.msra.mxu0 0.0
        %3660 = vmatprep.subr.mxu0 0.0
        %3661 = vmatpush1.msra.mxu0 0.0
        %3662 = vmatprep.subr.mxu0 0.0
        %3663 = vmatpush1.msra.mxu0 0.0
        %3664 = vmatprep.subr.mxu0 0.0
        %3665 = vmatpush1.msra.mxu0 0.0
        %3666 = vmatprep.subr.mxu0 0.0
        %3667 = vmatpush1.msra.mxu0 0.0
        %3668 = vmatprep.subr.mxu0 0.0
        %3669 = vmatpush1.msra.mxu0 0.0
        %3670 = vmatprep.subr.mxu0 0.0
        %3671 = vmatpush1.msra.mxu0 0.0
        %3672 = vmatprep.subr.mxu0 0.0
        %3673 = vmatpush1.msra.mxu0 0.0
        %3674 = vmatprep.subr.mxu0 0.0
        %3675 = vmatpush1.msra.mxu0 0.0
        %3676 = vmatprep.subr.mxu0 0.0
        %3677 = vmatpush1.msra.mxu0 0.0
        %3678 = vmatprep.subr.mxu0 0.0
        %3679 = vmatpush1.msra.mxu0 0.0
        %3680 = vmatprep.subr.mxu0 0.0
        %3681 = vmatpush1.msra.mxu0 0.0
        %3682 = vmatprep.subr.mxu0 0.0
        %3683 = vmatpush1.msra.mxu0 0.0
        %3684 = vmatprep.mubr.f32.mxu0 0.0
        %v3685 = vand.u32 %v3617, 4294901760
        %v3686 = vsub.f32 %v3617, %v3685
        %v3687 = vand.u32 %v3686, 4294901760
        %v3688 = vsub.f32 %v3686, %v3687
        %v3689 = vand.u32 %v3688, 4294901760
        %3690 = vmatmul.mubr.f32.gmra.mrb[0].mxu0 %v3689
        %v3691 = vpop.f32.mrb[0].mxu0
        %v3692 = vadd.f32 0.0, %v3691
        %v3693 = vpop.f32.mrb[0].mxu0
        %3694 = vdwg.mxu0
        %3695 = vmatprep.subr.mxu0 0.0
        %v3696 = vand.u32 %v1755, 4294901760
        %v3697 = vsub.f32 %v1755, %v3696
        %v3698 = vand.u32 %v3697, 4294901760
        %v3699 = vsub.f32 %v3697, %v3698
        %v3700 = vand.u32 %v3699, 4294901760
        %3701 = vmatpush1.msra.mxu0 %v3700
        %3702 = vmatprep.subr.mxu0 0.0
        %3703 = vmatpush1.msra.mxu0 0.0
        %3704 = vmatprep.subr.mxu0 0.0
        %3705 = vmatpush1.msra.mxu0 0.0
        %3706 = vmatprep.subr.mxu0 0.0
        %3707 = vmatpush1.msra.mxu0 0.0
        %3708 = vmatprep.subr.mxu0 0.0
        %3709 = vmatpush1.msra.mxu0 0.0
        %3710 = vmatprep.subr.mxu0 0.0
        %3711 = vmatpush1.msra.mxu0 0.0
        %3712 = vmatprep.subr.mxu0 0.0
        %3713 = vmatpush1.msra.mxu0 0.0
        %3714 = vmatprep.subr.mxu0 0.0
        %3715 = vmatpush1.msra.mxu0 0.0
        %3716 = vmatprep.subr.mxu0 0.0
        %3717 = vmatpush1.msra.mxu0 0.0
        %3718 = vmatprep.subr.mxu0 0.0
        %3719 = vmatpush1.msra.mxu0 0.0
        %3720 = vmatprep.subr.mxu0 0.0
        %3721 = vmatpush1.msra.mxu0 0.0
        %3722 = vmatprep.subr.mxu0 0.0
        %3723 = vmatpush1.msra.mxu0 0.0
        %3724 = vmatprep.subr.mxu0 0.0
        %3725 = vmatpush1.msra.mxu0 0.0
        %3726 = vmatprep.subr.mxu0 0.0
        %3727 = vmatpush1.msra.mxu0 0.0
        %3728 = vmatprep.subr.mxu0 0.0
        %3729 = vmatpush1.msra.mxu0 0.0
        %3730 = vmatprep.subr.mxu0 0.0
        %3731 = vmatpush1.msra.mxu0 0.0
        %3732 = vmatprep.subr.mxu0 0.0
        %3733 = vmatpush1.msra.mxu0 0.0
        %3734 = vmatprep.subr.mxu0 0.0
        %3735 = vmatpush1.msra.mxu0 0.0
        %3736 = vmatprep.subr.mxu0 0.0
        %3737 = vmatpush1.msra.mxu0 0.0
        %3738 = vmatprep.subr.mxu0 0.0
        %3739 = vmatpush1.msra.mxu0 0.0
        %3740 = vmatprep.subr.mxu0 0.0
        %3741 = vmatpush1.msra.mxu0 0.0
        %3742 = vmatprep.subr.mxu0 0.0
        %3743 = vmatpush1.msra.mxu0 0.0
        %3744 = vmatprep.subr.mxu0 0.0
        %3745 = vmatpush1.msra.mxu0 0.0
        %3746 = vmatprep.subr.mxu0 0.0
        %3747 = vmatpush1.msra.mxu0 0.0
        %3748 = vmatprep.subr.mxu0 0.0
        %3749 = vmatpush1.msra.mxu0 0.0
        %3750 = vmatprep.subr.mxu0 0.0
        %3751 = vmatpush1.msra.mxu0 0.0
        %3752 = vmatprep.subr.mxu0 0.0
        %3753 = vmatpush1.msra.mxu0 0.0
        %3754 = vmatprep.subr.mxu0 0.0
        %3755 = vmatpush1.msra.mxu0 0.0
        %3756 = vmatprep.subr.mxu0 0.0
        %3757 = vmatpush1.msra.mxu0 0.0
        %3758 = vmatprep.subr.mxu0 0.0
        %3759 = vmatpush1.msra.mxu0 0.0
        %3760 = vmatprep.subr.mxu0 0.0
        %3761 = vmatpush1.msra.mxu0 0.0
        %3762 = vmatprep.subr.mxu0 0.0
        %3763 = vmatpush1.msra.mxu0 0.0
        %3764 = vmatprep.mubr.f32.mxu0 0.0
        %v3765 = vand.u32 %v3617, 4294901760
        %3766 = vmatmul.mubr.f32.gmra.mrb[0].mxu0 %v3765
        %v3767 = vpop.f32.mrb[0].mxu0
        %v3768 = vadd.f32 %v3692, %v3767
        %v3769 = vpop.f32.mrb[0].mxu0
        %3770 = vdwg.mxu0
        %3771 = vmatprep.subr.mxu0 0.0
        %v3772 = vand.u32 %v1755, 4294901760
        %v3773 = vsub.f32 %v1755, %v3772
        %3774 = vmatpush1.msra.mxu0 %v3773
        %3775 = vmatprep.subr.mxu0 0.0
        %3776 = vmatpush1.msra.mxu0 0.0
        %3777 = vmatprep.subr.mxu0 0.0
        %3778 = vmatpush1.msra.mxu0 0.0
        %3779 = vmatprep.subr.mxu0 0.0
        %3780 = vmatpush1.msra.mxu0 0.0
        %3781 = vmatprep.subr.mxu0 0.0
        %3782 = vmatpush1.msra.mxu0 0.0
        %3783 = vmatprep.subr.mxu0 0.0
        %3784 = vmatpush1.msra.mxu0 0.0
        %3785 = vmatprep.subr.mxu0 0.0
        %3786 = vmatpush1.msra.mxu0 0.0
        %3787 = vmatprep.subr.mxu0 0.0
        %3788 = vmatpush1.msra.mxu0 0.0
        %3789 = vmatprep.subr.mxu0 0.0
        %3790 = vmatpush1.msra.mxu0 0.0
        %3791 = vmatprep.subr.mxu0 0.0
        %3792 = vmatpush1.msra.mxu0 0.0
        %3793 = vmatprep.subr.mxu0 0.0
        %3794 = vmatpush1.msra.mxu0 0.0
        %3795 = vmatprep.subr.mxu0 0.0
        %3796 = vmatpush1.msra.mxu0 0.0
        %3797 = vmatprep.subr.mxu0 0.0
        %3798 = vmatpush1.msra.mxu0 0.0
        %3799 = vmatprep.subr.mxu0 0.0
        %3800 = vmatpush1.msra.mxu0 0.0
        %3801 = vmatprep.subr.mxu0 0.0
        %3802 = vmatpush1.msra.mxu0 0.0
        %3803 = vmatprep.subr.mxu0 0.0
        %3804 = vmatpush1.msra.mxu0 0.0
        %3805 = vmatprep.subr.mxu0 0.0
        %3806 = vmatpush1.msra.mxu0 0.0
        %3807 = vmatprep.subr.mxu0 0.0
        %3808 = vmatpush1.msra.mxu0 0.0
        %3809 = vmatprep.subr.mxu0 0.0
        %3810 = vmatpush1.msra.mxu0 0.0
        %3811 = vmatprep.subr.mxu0 0.0
        %3812 = vmatpush1.msra.mxu0 0.0
        %3813 = vmatprep.subr.mxu0 0.0
        %3814 = vmatpush1.msra.mxu0 0.0
        %3815 = vmatprep.subr.mxu0 0.0
        %3816 = vmatpush1.msra.mxu0 0.0
        %3817 = vmatprep.subr.mxu0 0.0
        %3818 = vmatpush1.msra.mxu0 0.0
        %3819 = vmatprep.subr.mxu0 0.0
        %3820 = vmatpush1.msra.mxu0 0.0
        %3821 = vmatprep.subr.mxu0 0.0
        %3822 = vmatpush1.msra.mxu0 0.0
        %3823 = vmatprep.subr.mxu0 0.0
        %3824 = vmatpush1.msra.mxu0 0.0
        %3825 = vmatprep.subr.mxu0 0.0
        %3826 = vmatpush1.msra.mxu0 0.0
        %3827 = vmatprep.subr.mxu0 0.0
        %3828 = vmatpush1.msra.mxu0 0.0
        %3829 = vmatprep.subr.mxu0 0.0
        %3830 = vmatpush1.msra.mxu0 0.0
        %3831 = vmatprep.subr.mxu0 0.0
        %3832 = vmatpush1.msra.mxu0 0.0
        %3833 = vmatprep.subr.mxu0 0.0
        %3834 = vmatpush1.msra.mxu0 0.0
        %3835 = vmatprep.subr.mxu0 0.0
        %3836 = vmatpush1.msra.mxu0 0.0
        %3837 = vmatprep.mubr.f32.mxu0 0.0
        %v3838 = vand.u32 %v3617, 4294901760
        %v3839 = vsub.f32 %v3617, %v3838
        %3840 = vmatmul.mubr.f32.gmra.mrb[0].mxu0 %v3839
        %v3841 = vpop.f32.mrb[0].mxu0
        %v3842 = vadd.f32 %v3768, %v3841
        %v3843 = vpop.f32.mrb[0].mxu0
        %3844 = vdwg.mxu0
        %3845 = vmatprep.subr.mxu0 0.0
        %v3846 = vand.u32 %v1755, 4294901760
        %3847 = vmatpush1.msra.mxu0 %v3846
        %3848 = vmatprep.subr.mxu0 0.0
        %3849 = vmatpush1.msra.mxu0 0.0
        %3850 = vmatprep.subr.mxu0 0.0
        %3851 = vmatpush1.msra.mxu0 0.0
        %3852 = vmatprep.subr.mxu0 0.0
        %3853 = vmatpush1.msra.mxu0 0.0
        %3854 = vmatprep.subr.mxu0 0.0
        %3855 = vmatpush1.msra.mxu0 0.0
        %3856 = vmatprep.subr.mxu0 0.0
        %3857 = vmatpush1.msra.mxu0 0.0
        %3858 = vmatprep.subr.mxu0 0.0
        %3859 = vmatpush1.msra.mxu0 0.0
        %3860 = vmatprep.subr.mxu0 0.0
        %3861 = vmatpush1.msra.mxu0 0.0
        %3862 = vmatprep.subr.mxu0 0.0
        %3863 = vmatpush1.msra.mxu0 0.0
        %3864 = vmatprep.subr.mxu0 0.0
        %3865 = vmatpush1.msra.mxu0 0.0
        %3866 = vmatprep.subr.mxu0 0.0
        %3867 = vmatpush1.msra.mxu0 0.0
        %3868 = vmatprep.subr.mxu0 0.0
        %3869 = vmatpush1.msra.mxu0 0.0
        %3870 = vmatprep.subr.mxu0 0.0
        %3871 = vmatpush1.msra.mxu0 0.0
        %3872 = vmatprep.subr.mxu0 0.0
        %3873 = vmatpush1.msra.mxu0 0.0
        %3874 = vmatprep.subr.mxu0 0.0
        %3875 = vmatpush1.msra.mxu0 0.0
        %3876 = vmatprep.subr.mxu0 0.0
        %3877 = vmatpush1.msra.mxu0 0.0
        %3878 = vmatprep.subr.mxu0 0.0
        %3879 = vmatpush1.msra.mxu0 0.0
        %3880 = vmatprep.subr.mxu0 0.0
        %3881 = vmatpush1.msra.mxu0 0.0
        %3882 = vmatprep.subr.mxu0 0.0
        %3883 = vmatpush1.msra.mxu0 0.0
        %3884 = vmatprep.subr.mxu0 0.0
        %3885 = vmatpush1.msra.mxu0 0.0
        %3886 = vmatprep.subr.mxu0 0.0
        %3887 = vmatpush1.msra.mxu0 0.0
        %3888 = vmatprep.subr.mxu0 0.0
        %3889 = vmatpush1.msra.mxu0 0.0
        %3890 = vmatprep.subr.mxu0 0.0
        %3891 = vmatpush1.msra.mxu0 0.0
        %3892 = vmatprep.subr.mxu0 0.0
        %3893 = vmatpush1.msra.mxu0 0.0
        %3894 = vmatprep.subr.mxu0 0.0
        %3895 = vmatpush1.msra.mxu0 0.0
        %3896 = vmatprep.subr.mxu0 0.0
        %3897 = vmatpush1.msra.mxu0 0.0
        %3898 = vmatprep.subr.mxu0 0.0
        %3899 = vmatpush1.msra.mxu0 0.0
        %3900 = vmatprep.subr.mxu0 0.0
        %3901 = vmatpush1.msra.mxu0 0.0
        %3902 = vmatprep.subr.mxu0 0.0
        %3903 = vmatpush1.msra.mxu0 0.0
        %3904 = vmatprep.subr.mxu0 0.0
        %3905 = vmatpush1.msra.mxu0 0.0
        %3906 = vmatprep.subr.mxu0 0.0
        %3907 = vmatpush1.msra.mxu0 0.0
        %3908 = vmatprep.subr.mxu0 0.0
        %3909 = vmatpush1.msra.mxu0 0.0
        %3910 = vmatprep.mubr.f32.mxu0 0.0
        %v3911 = vand.u32 %v3617, 4294901760
        %v3912 = vsub.f32 %v3617, %v3911
        %v3913 = vand.u32 %v3912, 4294901760
        %3914 = vmatmul.mubr.f32.gmra.mrb[0].mxu0 %v3913
        %v3915 = vpop.f32.mrb[0].mxu0
        %v3916 = vadd.f32 %v3842, %v3915
        %v3917 = vpop.f32.mrb[0].mxu0
        %3918 = vdwg.mxu0
        %3919 = vmatprep.subr.mxu0 0.0
        %v3920 = vand.u32 %v1755, 4294901760
        %v3921 = vsub.f32 %v1755, %v3920
        %v3922 = vand.u32 %v3921, 4294901760
        %3923 = vmatpush1.msra.mxu0 %v3922
        %3924 = vmatprep.subr.mxu0 0.0
        %3925 = vmatpush1.msra.mxu0 0.0
        %3926 = vmatprep.subr.mxu0 0.0
        %3927 = vmatpush1.msra.mxu0 0.0
        %3928 = vmatprep.subr.mxu0 0.0
        %3929 = vmatpush1.msra.mxu0 0.0
        %3930 = vmatprep.subr.mxu0 0.0
        %3931 = vmatpush1.msra.mxu0 0.0
        %3932 = vmatprep.subr.mxu0 0.0
        %3933 = vmatpush1.msra.mxu0 0.0
        %3934 = vmatprep.subr.mxu0 0.0
        %3935 = vmatpush1.msra.mxu0 0.0
        %3936 = vmatprep.subr.mxu0 0.0
        %3937 = vmatpush1.msra.mxu0 0.0
        %3938 = vmatprep.subr.mxu0 0.0
        %3939 = vmatpush1.msra.mxu0 0.0
        %3940 = vmatprep.subr.mxu0 0.0
        %3941 = vmatpush1.msra.mxu0 0.0
        %3942 = vmatprep.subr.mxu0 0.0
        %3943 = vmatpush1.msra.mxu0 0.0
        %3944 = vmatprep.subr.mxu0 0.0
        %3945 = vmatpush1.msra.mxu0 0.0
        %3946 = vmatprep.subr.mxu0 0.0
        %3947 = vmatpush1.msra.mxu0 0.0
        %3948 = vmatprep.subr.mxu0 0.0
        %3949 = vmatpush1.msra.mxu0 0.0
        %3950 = vmatprep.subr.mxu0 0.0
        %3951 = vmatpush1.msra.mxu0 0.0
        %3952 = vmatprep.subr.mxu0 0.0
        %3953 = vmatpush1.msra.mxu0 0.0
        %3954 = vmatprep.subr.mxu0 0.0
        %3955 = vmatpush1.msra.mxu0 0.0
        %3956 = vmatprep.subr.mxu0 0.0
        %3957 = vmatpush1.msra.mxu0 0.0
        %3958 = vmatprep.subr.mxu0 0.0
        %3959 = vmatpush1.msra.mxu0 0.0
        %3960 = vmatprep.subr.mxu0 0.0
        %3961 = vmatpush1.msra.mxu0 0.0
        %3962 = vmatprep.subr.mxu0 0.0
        %3963 = vmatpush1.msra.mxu0 0.0
        %3964 = vmatprep.subr.mxu0 0.0
        %3965 = vmatpush1.msra.mxu0 0.0
        %3966 = vmatprep.subr.mxu0 0.0
        %3967 = vmatpush1.msra.mxu0 0.0
        %3968 = vmatprep.subr.mxu0 0.0
        %3969 = vmatpush1.msra.mxu0 0.0
        %3970 = vmatprep.subr.mxu0 0.0
        %3971 = vmatpush1.msra.mxu0 0.0
        %3972 = vmatprep.subr.mxu0 0.0
        %3973 = vmatpush1.msra.mxu0 0.0
        %3974 = vmatprep.subr.mxu0 0.0
        %3975 = vmatpush1.msra.mxu0 0.0
        %3976 = vmatprep.subr.mxu0 0.0
        %3977 = vmatpush1.msra.mxu0 0.0
        %3978 = vmatprep.subr.mxu0 0.0
        %3979 = vmatpush1.msra.mxu0 0.0
        %3980 = vmatprep.subr.mxu0 0.0
        %3981 = vmatpush1.msra.mxu0 0.0
        %3982 = vmatprep.subr.mxu0 0.0
        %3983 = vmatpush1.msra.mxu0 0.0
        %3984 = vmatprep.subr.mxu0 0.0
        %3985 = vmatpush1.msra.mxu0 0.0
        %3986 = vmatprep.mubr.f32.mxu0 0.0
        %v3987 = vand.u32 %v3617, 4294901760
        %3988 = vmatmul.mubr.f32.gmra.mrb[0].mxu0 %v3987
        %v3989 = vpop.f32.mrb[0].mxu0
        %v3990 = vadd.f32 %v3916, %v3989
        %v3991 = vpop.f32.mrb[0].mxu0
        %3992 = vdwg.mxu0
        %3993 = vmatprep.subr.mxu0 0.0
        %v3994 = vand.u32 %v1755, 4294901760
        %3995 = vmatpush1.msra.mxu0 %v3994
        %3996 = vmatprep.subr.mxu0 0.0
        %3997 = vmatpush1.msra.mxu0 0.0
        %3998 = vmatprep.subr.mxu0 0.0
        %3999 = vmatpush1.msra.mxu0 0.0
        %4000 = vmatprep.subr.mxu0 0.0
        %4001 = vmatpush1.msra.mxu0 0.0
        %4002 = vmatprep.subr.mxu0 0.0
        %4003 = vmatpush1.msra.mxu0 0.0
        %4004 = vmatprep.subr.mxu0 0.0
        %4005 = vmatpush1.msra.mxu0 0.0
        %4006 = vmatprep.subr.mxu0 0.0
        %4007 = vmatpush1.msra.mxu0 0.0
        %4008 = vmatprep.subr.mxu0 0.0
        %4009 = vmatpush1.msra.mxu0 0.0
        %4010 = vmatprep.subr.mxu0 0.0
        %4011 = vmatpush1.msra.mxu0 0.0
        %4012 = vmatprep.subr.mxu0 0.0
        %4013 = vmatpush1.msra.mxu0 0.0
        %4014 = vmatprep.subr.mxu0 0.0
        %4015 = vmatpush1.msra.mxu0 0.0
        %4016 = vmatprep.subr.mxu0 0.0
        %4017 = vmatpush1.msra.mxu0 0.0
        %4018 = vmatprep.subr.mxu0 0.0
        %4019 = vmatpush1.msra.mxu0 0.0
        %4020 = vmatprep.subr.mxu0 0.0
        %4021 = vmatpush1.msra.mxu0 0.0
        %4022 = vmatprep.subr.mxu0 0.0
        %4023 = vmatpush1.msra.mxu0 0.0
        %4024 = vmatprep.subr.mxu0 0.0
        %4025 = vmatpush1.msra.mxu0 0.0
        %4026 = vmatprep.subr.mxu0 0.0
        %4027 = vmatpush1.msra.mxu0 0.0
        %4028 = vmatprep.subr.mxu0 0.0
        %4029 = vmatpush1.msra.mxu0 0.0
        %4030 = vmatprep.subr.mxu0 0.0
        %4031 = vmatpush1.msra.mxu0 0.0
        %4032 = vmatprep.subr.mxu0 0.0
        %4033 = vmatpush1.msra.mxu0 0.0
        %4034 = vmatprep.subr.mxu0 0.0
        %4035 = vmatpush1.msra.mxu0 0.0
        %4036 = vmatprep.subr.mxu0 0.0
        %4037 = vmatpush1.msra.mxu0 0.0
        %4038 = vmatprep.subr.mxu0 0.0
        %4039 = vmatpush1.msra.mxu0 0.0
        %4040 = vmatprep.subr.mxu0 0.0
        %4041 = vmatpush1.msra.mxu0 0.0
        %4042 = vmatprep.subr.mxu0 0.0
        %4043 = vmatpush1.msra.mxu0 0.0
        %4044 = vmatprep.subr.mxu0 0.0
        %4045 = vmatpush1.msra.mxu0 0.0
        %4046 = vmatprep.subr.mxu0 0.0
        %4047 = vmatpush1.msra.mxu0 0.0
        %4048 = vmatprep.subr.mxu0 0.0
        %4049 = vmatpush1.msra.mxu0 0.0
        %4050 = vmatprep.subr.mxu0 0.0
        %4051 = vmatpush1.msra.mxu0 0.0
        %4052 = vmatprep.subr.mxu0 0.0
        %4053 = vmatpush1.msra.mxu0 0.0
        %4054 = vmatprep.subr.mxu0 0.0
        %4055 = vmatpush1.msra.mxu0 0.0
        %4056 = vmatprep.subr.mxu0 0.0
        %4057 = vmatpush1.msra.mxu0 0.0
        %4058 = vmatprep.mubr.f32.mxu0 0.0
        %v4059 = vand.u32 %v3617, 4294901760
        %4060 = vmatmul.mubr.f32.gmra.mrb[0].mxu0 %v4059
        %v4061 = vpop.f32.mrb[0].mxu0
        %v4062 = vadd.f32 %v3990, %v4061
        %v4063 = vpop.f32.mrb[0].mxu0
        %4064 = vdwg.mxu0
        %v4066 = vsel %vm1759, %v3609, 0
        %4068 = vmatprep.subr.mxu0 0.0
        %v4069 = vand.u32 %v1756, 4294901760
        %4070 = vmatpush1.msra.mxu0 %v4069
        %4071 = vmatprep.subr.mxu0 0.0
        %4072 = vmatpush1.msra.mxu0 0.0
        %4073 = vmatprep.subr.mxu0 0.0
        %4074 = vmatpush1.msra.mxu0 0.0
        %4075 = vmatprep.subr.mxu0 0.0
        %4076 = vmatpush1.msra.mxu0 0.0
        %4077 = vmatprep.subr.mxu0 0.0
        %4078 = vmatpush1.msra.mxu0 0.0
        %4079 = vmatprep.subr.mxu0 0.0
        %4080 = vmatpush1.msra.mxu0 0.0
        %4081 = vmatprep.subr.mxu0 0.0
        %4082 = vmatpush1.msra.mxu0 0.0
        %4083 = vmatprep.subr.mxu0 0.0
        %4084 = vmatpush1.msra.mxu0 0.0
        %4085 = vmatprep.subr.mxu0 0.0
        %4086 = vmatpush1.msra.mxu0 0.0
        %4087 = vmatprep.subr.mxu0 0.0
        %4088 = vmatpush1.msra.mxu0 0.0
        %4089 = vmatprep.subr.mxu0 0.0
        %4090 = vmatpush1.msra.mxu0 0.0
        %4091 = vmatprep.subr.mxu0 0.0
        %4092 = vmatpush1.msra.mxu0 0.0
        %4093 = vmatprep.subr.mxu0 0.0
        %4094 = vmatpush1.msra.mxu0 0.0
        %4095 = vmatprep.subr.mxu0 0.0
        %4096 = vmatpush1.msra.mxu0 0.0
        %4097 = vmatprep.subr.mxu0 0.0
        %4098 = vmatpush1.msra.mxu0 0.0
        %4099 = vmatprep.subr.mxu0 0.0
        %4100 = vmatpush1.msra.mxu0 0.0
        %4101 = vmatprep.subr.mxu0 0.0
        %4102 = vmatpush1.msra.mxu0 0.0
        %4103 = vmatprep.subr.mxu0 0.0
        %4104 = vmatpush1.msra.mxu0 0.0
        %4105 = vmatprep.subr.mxu0 0.0
        %4106 = vmatpush1.msra.mxu0 0.0
        %4107 = vmatprep.subr.mxu0 0.0
        %4108 = vmatpush1.msra.mxu0 0.0
        %4109 = vmatprep.subr.mxu0 0.0
        %4110 = vmatpush1.msra.mxu0 0.0
        %4111 = vmatprep.subr.mxu0 0.0
        %4112 = vmatpush1.msra.mxu0 0.0
        %4113 = vmatprep.subr.mxu0 0.0
        %4114 = vmatpush1.msra.mxu0 0.0
        %4115 = vmatprep.subr.mxu0 0.0
        %4116 = vmatpush1.msra.mxu0 0.0
        %4117 = vmatprep.subr.mxu0 0.0
        %4118 = vmatpush1.msra.mxu0 0.0
        %4119 = vmatprep.subr.mxu0 0.0
        %4120 = vmatpush1.msra.mxu0 0.0
        %4121 = vmatprep.subr.mxu0 0.0
        %4122 = vmatpush1.msra.mxu0 0.0
        %4123 = vmatprep.subr.mxu0 0.0
        %4124 = vmatpush1.msra.mxu0 0.0
        %4125 = vmatprep.subr.mxu0 0.0
        %4126 = vmatpush1.msra.mxu0 0.0
        %4127 = vmatprep.subr.mxu0 0.0
        %4128 = vmatpush1.msra.mxu0 0.0
        %4129 = vmatprep.subr.mxu0 0.0
        %4130 = vmatpush1.msra.mxu0 0.0
        %4131 = vmatprep.subr.mxu0 0.0
        %4132 = vmatpush1.msra.mxu0 0.0
        %4133 = vmatprep.mubr.f32.mxu0 0.0
        %v4134 = vand.u32 %v4066, 4294901760
        %v4135 = vsub.f32 %v4066, %v4134
        %v4136 = vand.u32 %v4135, 4294901760
        %v4137 = vsub.f32 %v4135, %v4136
        %v4138 = vand.u32 %v4137, 4294901760
        %4139 = vmatmul.mubr.f32.gmra.mrb[0].mxu0 %v4138
        %v4140 = vpop.f32.mrb[0].mxu0
        %v4141 = vadd.f32 0.0, %v4140
        %v4142 = vpop.f32.mrb[0].mxu0
        %4143 = vdwg.mxu0
        %4144 = vmatprep.subr.mxu0 0.0
        %v4145 = vand.u32 %v1756, 4294901760
        %v4146 = vsub.f32 %v1756, %v4145
        %v4147 = vand.u32 %v4146, 4294901760
        %v4148 = vsub.f32 %v4146, %v4147
        %v4149 = vand.u32 %v4148, 4294901760
        %4150 = vmatpush1.msra.mxu0 %v4149
        %4151 = vmatprep.subr.mxu0 0.0
        %4152 = vmatpush1.msra.mxu0 0.0
        %4153 = vmatprep.subr.mxu0 0.0
        %4154 = vmatpush1.msra.mxu0 0.0
        %4155 = vmatprep.subr.mxu0 0.0
        %4156 = vmatpush1.msra.mxu0 0.0
        %4157 = vmatprep.subr.mxu0 0.0
        %4158 = vmatpush1.msra.mxu0 0.0
        %4159 = vmatprep.subr.mxu0 0.0
        %4160 = vmatpush1.msra.mxu0 0.0
        %4161 = vmatprep.subr.mxu0 0.0
        %4162 = vmatpush1.msra.mxu0 0.0
        %4163 = vmatprep.subr.mxu0 0.0
        %4164 = vmatpush1.msra.mxu0 0.0
        %4165 = vmatprep.subr.mxu0 0.0
        %4166 = vmatpush1.msra.mxu0 0.0
        %4167 = vmatprep.subr.mxu0 0.0
        %4168 = vmatpush1.msra.mxu0 0.0
        %4169 = vmatprep.subr.mxu0 0.0
        %4170 = vmatpush1.msra.mxu0 0.0
        %4171 = vmatprep.subr.mxu0 0.0
        %4172 = vmatpush1.msra.mxu0 0.0
        %4173 = vmatprep.subr.mxu0 0.0
        %4174 = vmatpush1.msra.mxu0 0.0
        %4175 = vmatprep.subr.mxu0 0.0
        %4176 = vmatpush1.msra.mxu0 0.0
        %4177 = vmatprep.subr.mxu0 0.0
        %4178 = vmatpush1.msra.mxu0 0.0
        %4179 = vmatprep.subr.mxu0 0.0
        %4180 = vmatpush1.msra.mxu0 0.0
        %4181 = vmatprep.subr.mxu0 0.0
        %4182 = vmatpush1.msra.mxu0 0.0
        %4183 = vmatprep.subr.mxu0 0.0
        %4184 = vmatpush1.msra.mxu0 0.0
        %4185 = vmatprep.subr.mxu0 0.0
        %4186 = vmatpush1.msra.mxu0 0.0
        %4187 = vmatprep.subr.mxu0 0.0
        %4188 = vmatpush1.msra.mxu0 0.0
        %4189 = vmatprep.subr.mxu0 0.0
        %4190 = vmatpush1.msra.mxu0 0.0
        %4191 = vmatprep.subr.mxu0 0.0
        %4192 = vmatpush1.msra.mxu0 0.0
        %4193 = vmatprep.subr.mxu0 0.0
        %4194 = vmatpush1.msra.mxu0 0.0
        %4195 = vmatprep.subr.mxu0 0.0
        %4196 = vmatpush1.msra.mxu0 0.0
        %4197 = vmatprep.subr.mxu0 0.0
        %4198 = vmatpush1.msra.mxu0 0.0
        %4199 = vmatprep.subr.mxu0 0.0
        %4200 = vmatpush1.msra.mxu0 0.0
        %4201 = vmatprep.subr.mxu0 0.0
        %4202 = vmatpush1.msra.mxu0 0.0
        %4203 = vmatprep.subr.mxu0 0.0
        %4204 = vmatpush1.msra.mxu0 0.0
        %4205 = vmatprep.subr.mxu0 0.0
        %4206 = vmatpush1.msra.mxu0 0.0
        %4207 = vmatprep.subr.mxu0 0.0
        %4208 = vmatpush1.msra.mxu0 0.0
        %4209 = vmatprep.subr.mxu0 0.0
        %4210 = vmatpush1.msra.mxu0 0.0
        %4211 = vmatprep.subr.mxu0 0.0
        %4212 = vmatpush1.msra.mxu0 0.0
        %4213 = vmatprep.mubr.f32.mxu0 0.0
        %v4214 = vand.u32 %v4066, 4294901760
        %4215 = vmatmul.mubr.f32.gmra.mrb[0].mxu0 %v4214
        %v4216 = vpop.f32.mrb[0].mxu0
        %v4217 = vadd.f32 %v4141, %v4216
        %v4218 = vpop.f32.mrb[0].mxu0
        %4219 = vdwg.mxu0
        %4220 = vmatprep.subr.mxu0 0.0
        %v4221 = vand.u32 %v1756, 4294901760
        %v4222 = vsub.f32 %v1756, %v4221
        %4223 = vmatpush1.msra.mxu0 %v4222
        %4224 = vmatprep.subr.mxu0 0.0
        %4225 = vmatpush1.msra.mxu0 0.0
        %4226 = vmatprep.subr.mxu0 0.0
        %4227 = vmatpush1.msra.mxu0 0.0
        %4228 = vmatprep.subr.mxu0 0.0
        %4229 = vmatpush1.msra.mxu0 0.0
        %4230 = vmatprep.subr.mxu0 0.0
        %4231 = vmatpush1.msra.mxu0 0.0
        %4232 = vmatprep.subr.mxu0 0.0
        %4233 = vmatpush1.msra.mxu0 0.0
        %4234 = vmatprep.subr.mxu0 0.0
        %4235 = vmatpush1.msra.mxu0 0.0
        %4236 = vmatprep.subr.mxu0 0.0
        %4237 = vmatpush1.msra.mxu0 0.0
        %4238 = vmatprep.subr.mxu0 0.0
        %4239 = vmatpush1.msra.mxu0 0.0
        %4240 = vmatprep.subr.mxu0 0.0
        %4241 = vmatpush1.msra.mxu0 0.0
        %4242 = vmatprep.subr.mxu0 0.0
        %4243 = vmatpush1.msra.mxu0 0.0
        %4244 = vmatprep.subr.mxu0 0.0
        %4245 = vmatpush1.msra.mxu0 0.0
        %4246 = vmatprep.subr.mxu0 0.0
        %4247 = vmatpush1.msra.mxu0 0.0
        %4248 = vmatprep.subr.mxu0 0.0
        %4249 = vmatpush1.msra.mxu0 0.0
        %4250 = vmatprep.subr.mxu0 0.0
        %4251 = vmatpush1.msra.mxu0 0.0
        %4252 = vmatprep.subr.mxu0 0.0
        %4253 = vmatpush1.msra.mxu0 0.0
        %4254 = vmatprep.subr.mxu0 0.0
        %4255 = vmatpush1.msra.mxu0 0.0
        %4256 = vmatprep.subr.mxu0 0.0
        %4257 = vmatpush1.msra.mxu0 0.0
        %4258 = vmatprep.subr.mxu0 0.0
        %4259 = vmatpush1.msra.mxu0 0.0
        %4260 = vmatprep.subr.mxu0 0.0
        %4261 = vmatpush1.msra.mxu0 0.0
        %4262 = vmatprep.subr.mxu0 0.0
        %4263 = vmatpush1.msra.mxu0 0.0
        %4264 = vmatprep.subr.mxu0 0.0
        %4265 = vmatpush1.msra.mxu0 0.0
        %4266 = vmatprep.subr.mxu0 0.0
        %4267 = vmatpush1.msra.mxu0 0.0
        %4268 = vmatprep.subr.mxu0 0.0
        %4269 = vmatpush1.msra.mxu0 0.0
        %4270 = vmatprep.subr.mxu0 0.0
        %4271 = vmatpush1.msra.mxu0 0.0
        %4272 = vmatprep.subr.mxu0 0.0
        %4273 = vmatpush1.msra.mxu0 0.0
        %4274 = vmatprep.subr.mxu0 0.0
        %4275 = vmatpush1.msra.mxu0 0.0
        %4276 = vmatprep.subr.mxu0 0.0
        %4277 = vmatpush1.msra.mxu0 0.0
        %4278 = vmatprep.subr.mxu0 0.0
        %4279 = vmatpush1.msra.mxu0 0.0
        %4280 = vmatprep.subr.mxu0 0.0
        %4281 = vmatpush1.msra.mxu0 0.0
        %4282 = vmatprep.subr.mxu0 0.0
        %4283 = vmatpush1.msra.mxu0 0.0
        %4284 = vmatprep.subr.mxu0 0.0
        %4285 = vmatpush1.msra.mxu0 0.0
        %4286 = vmatprep.mubr.f32.mxu0 0.0
        %v4287 = vand.u32 %v4066, 4294901760
        %v4288 = vsub.f32 %v4066, %v4287
        %4289 = vmatmul.mubr.f32.gmra.mrb[0].mxu0 %v4288
        %v4290 = vpop.f32.mrb[0].mxu0
        %v4291 = vadd.f32 %v4217, %v4290
        %v4292 = vpop.f32.mrb[0].mxu0
        %4293 = vdwg.mxu0
        %4294 = vmatprep.subr.mxu0 0.0
        %v4295 = vand.u32 %v1756, 4294901760
        %4296 = vmatpush1.msra.mxu0 %v4295
        %4297 = vmatprep.subr.mxu0 0.0
        %4298 = vmatpush1.msra.mxu0 0.0
        %4299 = vmatprep.subr.mxu0 0.0
        %4300 = vmatpush1.msra.mxu0 0.0
        %4301 = vmatprep.subr.mxu0 0.0
        %4302 = vmatpush1.msra.mxu0 0.0
        %4303 = vmatprep.subr.mxu0 0.0
        %4304 = vmatpush1.msra.mxu0 0.0
        %4305 = vmatprep.subr.mxu0 0.0
        %4306 = vmatpush1.msra.mxu0 0.0
        %4307 = vmatprep.subr.mxu0 0.0
        %4308 = vmatpush1.msra.mxu0 0.0
        %4309 = vmatprep.subr.mxu0 0.0
        %4310 = vmatpush1.msra.mxu0 0.0
        %4311 = vmatprep.subr.mxu0 0.0
        %4312 = vmatpush1.msra.mxu0 0.0
        %4313 = vmatprep.subr.mxu0 0.0
        %4314 = vmatpush1.msra.mxu0 0.0
        %4315 = vmatprep.subr.mxu0 0.0
        %4316 = vmatpush1.msra.mxu0 0.0
        %4317 = vmatprep.subr.mxu0 0.0
        %4318 = vmatpush1.msra.mxu0 0.0
        %4319 = vmatprep.subr.mxu0 0.0
        %4320 = vmatpush1.msra.mxu0 0.0
        %4321 = vmatprep.subr.mxu0 0.0
        %4322 = vmatpush1.msra.mxu0 0.0
        %4323 = vmatprep.subr.mxu0 0.0
        %4324 = vmatpush1.msra.mxu0 0.0
        %4325 = vmatprep.subr.mxu0 0.0
        %4326 = vmatpush1.msra.mxu0 0.0
        %4327 = vmatprep.subr.mxu0 0.0
        %4328 = vmatpush1.msra.mxu0 0.0
        %4329 = vmatprep.subr.mxu0 0.0
        %4330 = vmatpush1.msra.mxu0 0.0
        %4331 = vmatprep.subr.mxu0 0.0
        %4332 = vmatpush1.msra.mxu0 0.0
        %4333 = vmatprep.subr.mxu0 0.0
        %4334 = vmatpush1.msra.mxu0 0.0
        %4335 = vmatprep.subr.mxu0 0.0
        %4336 = vmatpush1.msra.mxu0 0.0
        %4337 = vmatprep.subr.mxu0 0.0
        %4338 = vmatpush1.msra.mxu0 0.0
        %4339 = vmatprep.subr.mxu0 0.0
        %4340 = vmatpush1.msra.mxu0 0.0
        %4341 = vmatprep.subr.mxu0 0.0
        %4342 = vmatpush1.msra.mxu0 0.0
        %4343 = vmatprep.subr.mxu0 0.0
        %4344 = vmatpush1.msra.mxu0 0.0
        %4345 = vmatprep.subr.mxu0 0.0
        %4346 = vmatpush1.msra.mxu0 0.0
        %4347 = vmatprep.subr.mxu0 0.0
        %4348 = vmatpush1.msra.mxu0 0.0
        %4349 = vmatprep.subr.mxu0 0.0
        %4350 = vmatpush1.msra.mxu0 0.0
        %4351 = vmatprep.subr.mxu0 0.0
        %4352 = vmatpush1.msra.mxu0 0.0
        %4353 = vmatprep.subr.mxu0 0.0
        %4354 = vmatpush1.msra.mxu0 0.0
        %4355 = vmatprep.subr.mxu0 0.0
        %4356 = vmatpush1.msra.mxu0 0.0
        %4357 = vmatprep.subr.mxu0 0.0
        %4358 = vmatpush1.msra.mxu0 0.0
        %4359 = vmatprep.mubr.f32.mxu0 0.0
        %v4360 = vand.u32 %v4066, 4294901760
        %v4361 = vsub.f32 %v4066, %v4360
        %v4362 = vand.u32 %v4361, 4294901760
        %4363 = vmatmul.mubr.f32.gmra.mrb[0].mxu0 %v4362
        %v4364 = vpop.f32.mrb[0].mxu0
        %v4365 = vadd.f32 %v4291, %v4364
        %v4366 = vpop.f32.mrb[0].mxu0
        %4367 = vdwg.mxu0
        %4368 = vmatprep.subr.mxu0 0.0
        %v4369 = vand.u32 %v1756, 4294901760
        %v4370 = vsub.f32 %v1756, %v4369
        %v4371 = vand.u32 %v4370, 4294901760
        %4372 = vmatpush1.msra.mxu0 %v4371
        %4373 = vmatprep.subr.mxu0 0.0
        %4374 = vmatpush1.msra.mxu0 0.0
        %4375 = vmatprep.subr.mxu0 0.0
        %4376 = vmatpush1.msra.mxu0 0.0
        %4377 = vmatprep.subr.mxu0 0.0
        %4378 = vmatpush1.msra.mxu0 0.0
        %4379 = vmatprep.subr.mxu0 0.0
        %4380 = vmatpush1.msra.mxu0 0.0
        %4381 = vmatprep.subr.mxu0 0.0
        %4382 = vmatpush1.msra.mxu0 0.0
        %4383 = vmatprep.subr.mxu0 0.0
        %4384 = vmatpush1.msra.mxu0 0.0
        %4385 = vmatprep.subr.mxu0 0.0
        %4386 = vmatpush1.msra.mxu0 0.0
        %4387 = vmatprep.subr.mxu0 0.0
        %4388 = vmatpush1.msra.mxu0 0.0
        %4389 = vmatprep.subr.mxu0 0.0
        %4390 = vmatpush1.msra.mxu0 0.0
        %4391 = vmatprep.subr.mxu0 0.0
        %4392 = vmatpush1.msra.mxu0 0.0
        %4393 = vmatprep.subr.mxu0 0.0
        %4394 = vmatpush1.msra.mxu0 0.0
        %4395 = vmatprep.subr.mxu0 0.0
        %4396 = vmatpush1.msra.mxu0 0.0
        %4397 = vmatprep.subr.mxu0 0.0
        %4398 = vmatpush1.msra.mxu0 0.0
        %4399 = vmatprep.subr.mxu0 0.0
        %4400 = vmatpush1.msra.mxu0 0.0
        %4401 = vmatprep.subr.mxu0 0.0
        %4402 = vmatpush1.msra.mxu0 0.0
        %4403 = vmatprep.subr.mxu0 0.0
        %4404 = vmatpush1.msra.mxu0 0.0
        %4405 = vmatprep.subr.mxu0 0.0
        %4406 = vmatpush1.msra.mxu0 0.0
        %4407 = vmatprep.subr.mxu0 0.0
        %4408 = vmatpush1.msra.mxu0 0.0
        %4409 = vmatprep.subr.mxu0 0.0
        %4410 = vmatpush1.msra.mxu0 0.0
        %4411 = vmatprep.subr.mxu0 0.0
        %4412 = vmatpush1.msra.mxu0 0.0
        %4413 = vmatprep.subr.mxu0 0.0
        %4414 = vmatpush1.msra.mxu0 0.0
        %4415 = vmatprep.subr.mxu0 0.0
        %4416 = vmatpush1.msra.mxu0 0.0
        %4417 = vmatprep.subr.mxu0 0.0
        %4418 = vmatpush1.msra.mxu0 0.0
        %4419 = vmatprep.subr.mxu0 0.0
        %4420 = vmatpush1.msra.mxu0 0.0
        %4421 = vmatprep.subr.mxu0 0.0
        %4422 = vmatpush1.msra.mxu0 0.0
        %4423 = vmatprep.subr.mxu0 0.0
        %4424 = vmatpush1.msra.mxu0 0.0
        %4425 = vmatprep.subr.mxu0 0.0
        %4426 = vmatpush1.msra.mxu0 0.0
        %4427 = vmatprep.subr.mxu0 0.0
        %4428 = vmatpush1.msra.mxu0 0.0
        %4429 = vmatprep.subr.mxu0 0.0
        %4430 = vmatpush1.msra.mxu0 0.0
        %4431 = vmatprep.subr.mxu0 0.0
        %4432 = vmatpush1.msra.mxu0 0.0
        %4433 = vmatprep.subr.mxu0 0.0
        %4434 = vmatpush1.msra.mxu0 0.0
        %4435 = vmatprep.mubr.f32.mxu0 0.0
        %v4436 = vand.u32 %v4066, 4294901760
        %4437 = vmatmul.mubr.f32.gmra.mrb[0].mxu0 %v4436
        %v4438 = vpop.f32.mrb[0].mxu0
        %v4439 = vadd.f32 %v4365, %v4438
        %v4440 = vpop.f32.mrb[0].mxu0
        %4441 = vdwg.mxu0
        %4442 = vmatprep.subr.mxu0 0.0
        %v4443 = vand.u32 %v1756, 4294901760
        %4444 = vmatpush1.msra.mxu0 %v4443
        %4445 = vmatprep.subr.mxu0 0.0
        %4446 = vmatpush1.msra.mxu0 0.0
        %4447 = vmatprep.subr.mxu0 0.0
        %4448 = vmatpush1.msra.mxu0 0.0
        %4449 = vmatprep.subr.mxu0 0.0
        %4450 = vmatpush1.msra.mxu0 0.0
        %4451 = vmatprep.subr.mxu0 0.0
        %4452 = vmatpush1.msra.mxu0 0.0
        %4453 = vmatprep.subr.mxu0 0.0
        %4454 = vmatpush1.msra.mxu0 0.0
        %4455 = vmatprep.subr.mxu0 0.0
        %4456 = vmatpush1.msra.mxu0 0.0
        %4457 = vmatprep.subr.mxu0 0.0
        %4458 = vmatpush1.msra.mxu0 0.0
        %4459 = vmatprep.subr.mxu0 0.0
        %4460 = vmatpush1.msra.mxu0 0.0
        %4461 = vmatprep.subr.mxu0 0.0
        %4462 = vmatpush1.msra.mxu0 0.0
        %4463 = vmatprep.subr.mxu0 0.0
        %4464 = vmatpush1.msra.mxu0 0.0
        %4465 = vmatprep.subr.mxu0 0.0
        %4466 = vmatpush1.msra.mxu0 0.0
        %4467 = vmatprep.subr.mxu0 0.0
        %4468 = vmatpush1.msra.mxu0 0.0
        %4469 = vmatprep.subr.mxu0 0.0
        %4470 = vmatpush1.msra.mxu0 0.0
        %4471 = vmatprep.subr.mxu0 0.0
        %4472 = vmatpush1.msra.mxu0 0.0
        %4473 = vmatprep.subr.mxu0 0.0
        %4474 = vmatpush1.msra.mxu0 0.0
        %4475 = vmatprep.subr.mxu0 0.0
        %4476 = vmatpush1.msra.mxu0 0.0
        %4477 = vmatprep.subr.mxu0 0.0
        %4478 = vmatpush1.msra.mxu0 0.0
        %4479 = vmatprep.subr.mxu0 0.0
        %4480 = vmatpush1.msra.mxu0 0.0
        %4481 = vmatprep.subr.mxu0 0.0
        %4482 = vmatpush1.msra.mxu0 0.0
        %4483 = vmatprep.subr.mxu0 0.0
        %4484 = vmatpush1.msra.mxu0 0.0
        %4485 = vmatprep.subr.mxu0 0.0
        %4486 = vmatpush1.msra.mxu0 0.0
        %4487 = vmatprep.subr.mxu0 0.0
        %4488 = vmatpush1.msra.mxu0 0.0
        %4489 = vmatprep.subr.mxu0 0.0
        %4490 = vmatpush1.msra.mxu0 0.0
        %4491 = vmatprep.subr.mxu0 0.0
        %4492 = vmatpush1.msra.mxu0 0.0
        %4493 = vmatprep.subr.mxu0 0.0
        %4494 = vmatpush1.msra.mxu0 0.0
        %4495 = vmatprep.subr.mxu0 0.0
        %4496 = vmatpush1.msra.mxu0 0.0
        %4497 = vmatprep.subr.mxu0 0.0
        %4498 = vmatpush1.msra.mxu0 0.0
        %4499 = vmatprep.subr.mxu0 0.0
        %4500 = vmatpush1.msra.mxu0 0.0
        %4501 = vmatprep.subr.mxu0 0.0
        %4502 = vmatpush1.msra.mxu0 0.0
        %4503 = vmatprep.subr.mxu0 0.0
        %4504 = vmatpush1.msra.mxu0 0.0
        %4505 = vmatprep.subr.mxu0 0.0
        %4506 = vmatpush1.msra.mxu0 0.0
        %4507 = vmatprep.mubr.f32.mxu0 0.0
        %v4508 = vand.u32 %v4066, 4294901760
        %4509 = vmatmul.mubr.f32.gmra.mrb[0].mxu0 %v4508
        %v4510 = vpop.f32.mrb[0].mxu0
        %v4511 = vadd.f32 %v4439, %v4510
        %v4512 = vpop.f32.mrb[0].mxu0
        %4513 = vdwg.mxu0
        %v4515 = vsel %vm1759, %v3610, 0
        %4517 = vmatprep.subr.mxu0 0.0
        %v4518 = vand.u32 %v1757, 4294901760
        %4519 = vmatpush1.msra.mxu0 %v4518
        %4520 = vmatprep.subr.mxu0 0.0
        %4521 = vmatpush1.msra.mxu0 0.0
        %4522 = vmatprep.subr.mxu0 0.0
        %4523 = vmatpush1.msra.mxu0 0.0
        %4524 = vmatprep.subr.mxu0 0.0
        %4525 = vmatpush1.msra.mxu0 0.0
        %4526 = vmatprep.subr.mxu0 0.0
        %4527 = vmatpush1.msra.mxu0 0.0
        %4528 = vmatprep.subr.mxu0 0.0
        %4529 = vmatpush1.msra.mxu0 0.0
        %4530 = vmatprep.subr.mxu0 0.0
        %4531 = vmatpush1.msra.mxu0 0.0
        %4532 = vmatprep.subr.mxu0 0.0
        %4533 = vmatpush1.msra.mxu0 0.0
        %4534 = vmatprep.subr.mxu0 0.0
        %4535 = vmatpush1.msra.mxu0 0.0
        %4536 = vmatprep.subr.mxu0 0.0
        %4537 = vmatpush1.msra.mxu0 0.0
        %4538 = vmatprep.subr.mxu0 0.0
        %4539 = vmatpush1.msra.mxu0 0.0
        %4540 = vmatprep.subr.mxu0 0.0
        %4541 = vmatpush1.msra.mxu0 0.0
        %4542 = vmatprep.subr.mxu0 0.0
        %4543 = vmatpush1.msra.mxu0 0.0
        %4544 = vmatprep.subr.mxu0 0.0
        %4545 = vmatpush1.msra.mxu0 0.0
        %4546 = vmatprep.subr.mxu0 0.0
        %4547 = vmatpush1.msra.mxu0 0.0
        %4548 = vmatprep.subr.mxu0 0.0
        %4549 = vmatpush1.msra.mxu0 0.0
        %4550 = vmatprep.subr.mxu0 0.0
        %4551 = vmatpush1.msra.mxu0 0.0
        %4552 = vmatprep.subr.mxu0 0.0
        %4553 = vmatpush1.msra.mxu0 0.0
        %4554 = vmatprep.subr.mxu0 0.0
        %4555 = vmatpush1.msra.mxu0 0.0
        %4556 = vmatprep.subr.mxu0 0.0
        %4557 = vmatpush1.msra.mxu0 0.0
        %4558 = vmatprep.subr.mxu0 0.0
        %4559 = vmatpush1.msra.mxu0 0.0
        %4560 = vmatprep.subr.mxu0 0.0
        %4561 = vmatpush1.msra.mxu0 0.0
        %4562 = vmatprep.subr.mxu0 0.0
        %4563 = vmatpush1.msra.mxu0 0.0
        %4564 = vmatprep.subr.mxu0 0.0
        %4565 = vmatpush1.msra.mxu0 0.0
        %4566 = vmatprep.subr.mxu0 0.0
        %4567 = vmatpush1.msra.mxu0 0.0
        %4568 = vmatprep.subr.mxu0 0.0
        %4569 = vmatpush1.msra.mxu0 0.0
        %4570 = vmatprep.subr.mxu0 0.0
        %4571 = vmatpush1.msra.mxu0 0.0
        %4572 = vmatprep.subr.mxu0 0.0
        %4573 = vmatpush1.msra.mxu0 0.0
        %4574 = vmatprep.subr.mxu0 0.0
        %4575 = vmatpush1.msra.mxu0 0.0
        %4576 = vmatprep.subr.mxu0 0.0
        %4577 = vmatpush1.msra.mxu0 0.0
        %4578 = vmatprep.subr.mxu0 0.0
        %4579 = vmatpush1.msra.mxu0 0.0
        %4580 = vmatprep.subr.mxu0 0.0
        %4581 = vmatpush1.msra.mxu0 0.0
        %4582 = vmatprep.mubr.f32.mxu0 0.0
        %v4583 = vand.u32 %v4515, 4294901760
        %v4584 = vsub.f32 %v4515, %v4583
        %v4585 = vand.u32 %v4584, 4294901760
        %v4586 = vsub.f32 %v4584, %v4585
        %v4587 = vand.u32 %v4586, 4294901760
        %4588 = vmatmul.mubr.f32.gmra.mrb[0].mxu0 %v4587
        %v4589 = vpop.f32.mrb[0].mxu0
        %v4590 = vadd.f32 0.0, %v4589
        %v4591 = vpop.f32.mrb[0].mxu0
        %4592 = vdwg.mxu0
        %4593 = vmatprep.subr.mxu0 0.0
        %v4594 = vand.u32 %v1757, 4294901760
        %v4595 = vsub.f32 %v1757, %v4594
        %v4596 = vand.u32 %v4595, 4294901760
        %v4597 = vsub.f32 %v4595, %v4596
        %v4598 = vand.u32 %v4597, 4294901760
        %4599 = vmatpush1.msra.mxu0 %v4598
        %4600 = vmatprep.subr.mxu0 0.0
        %4601 = vmatpush1.msra.mxu0 0.0
        %4602 = vmatprep.subr.mxu0 0.0
        %4603 = vmatpush1.msra.mxu0 0.0
        %4604 = vmatprep.subr.mxu0 0.0
        %4605 = vmatpush1.msra.mxu0 0.0
        %4606 = vmatprep.subr.mxu0 0.0
        %4607 = vmatpush1.msra.mxu0 0.0
        %4608 = vmatprep.subr.mxu0 0.0
        %4609 = vmatpush1.msra.mxu0 0.0
        %4610 = vmatprep.subr.mxu0 0.0
        %4611 = vmatpush1.msra.mxu0 0.0
        %4612 = vmatprep.subr.mxu0 0.0
        %4613 = vmatpush1.msra.mxu0 0.0
        %4614 = vmatprep.subr.mxu0 0.0
        %4615 = vmatpush1.msra.mxu0 0.0
        %4616 = vmatprep.subr.mxu0 0.0
        %4617 = vmatpush1.msra.mxu0 0.0
        %4618 = vmatprep.subr.mxu0 0.0
        %4619 = vmatpush1.msra.mxu0 0.0
        %4620 = vmatprep.subr.mxu0 0.0
        %4621 = vmatpush1.msra.mxu0 0.0
        %4622 = vmatprep.subr.mxu0 0.0
        %4623 = vmatpush1.msra.mxu0 0.0
        %4624 = vmatprep.subr.mxu0 0.0
        %4625 = vmatpush1.msra.mxu0 0.0
        %4626 = vmatprep.subr.mxu0 0.0
        %4627 = vmatpush1.msra.mxu0 0.0
        %4628 = vmatprep.subr.mxu0 0.0
        %4629 = vmatpush1.msra.mxu0 0.0
        %4630 = vmatprep.subr.mxu0 0.0
        %4631 = vmatpush1.msra.mxu0 0.0
        %4632 = vmatprep.subr.mxu0 0.0
        %4633 = vmatpush1.msra.mxu0 0.0
        %4634 = vmatprep.subr.mxu0 0.0
        %4635 = vmatpush1.msra.mxu0 0.0
        %4636 = vmatprep.subr.mxu0 0.0
        %4637 = vmatpush1.msra.mxu0 0.0
        %4638 = vmatprep.subr.mxu0 0.0
        %4639 = vmatpush1.msra.mxu0 0.0
        %4640 = vmatprep.subr.mxu0 0.0
        %4641 = vmatpush1.msra.mxu0 0.0
        %4642 = vmatprep.subr.mxu0 0.0
        %4643 = vmatpush1.msra.mxu0 0.0
        %4644 = vmatprep.subr.mxu0 0.0
        %4645 = vmatpush1.msra.mxu0 0.0
        %4646 = vmatprep.subr.mxu0 0.0
        %4647 = vmatpush1.msra.mxu0 0.0
        %4648 = vmatprep.subr.mxu0 0.0
        %4649 = vmatpush1.msra.mxu0 0.0
        %4650 = vmatprep.subr.mxu0 0.0
        %4651 = vmatpush1.msra.mxu0 0.0
        %4652 = vmatprep.subr.mxu0 0.0
        %4653 = vmatpush1.msra.mxu0 0.0
        %4654 = vmatprep.subr.mxu0 0.0
        %4655 = vmatpush1.msra.mxu0 0.0
        %4656 = vmatprep.subr.mxu0 0.0
        %4657 = vmatpush1.msra.mxu0 0.0
        %4658 = vmatprep.subr.mxu0 0.0
        %4659 = vmatpush1.msra.mxu0 0.0
        %4660 = vmatprep.subr.mxu0 0.0
        %4661 = vmatpush1.msra.mxu0 0.0
        %4662 = vmatprep.mubr.f32.mxu0 0.0
        %v4663 = vand.u32 %v4515, 4294901760
        %4664 = vmatmul.mubr.f32.gmra.mrb[0].mxu0 %v4663
        %v4665 = vpop.f32.mrb[0].mxu0
        %v4666 = vadd.f32 %v4590, %v4665
        %v4667 = vpop.f32.mrb[0].mxu0
        %4668 = vdwg.mxu0
        %4669 = vmatprep.subr.mxu0 0.0
        %v4670 = vand.u32 %v1757, 4294901760
        %v4671 = vsub.f32 %v1757, %v4670
        %4672 = vmatpush1.msra.mxu0 %v4671
        %4673 = vmatprep.subr.mxu0 0.0
        %4674 = vmatpush1.msra.mxu0 0.0
        %4675 = vmatprep.subr.mxu0 0.0
        %4676 = vmatpush1.msra.mxu0 0.0
        %4677 = vmatprep.subr.mxu0 0.0
        %4678 = vmatpush1.msra.mxu0 0.0
        %4679 = vmatprep.subr.mxu0 0.0
        %4680 = vmatpush1.msra.mxu0 0.0
        %4681 = vmatprep.subr.mxu0 0.0
        %4682 = vmatpush1.msra.mxu0 0.0
        %4683 = vmatprep.subr.mxu0 0.0
        %4684 = vmatpush1.msra.mxu0 0.0
        %4685 = vmatprep.subr.mxu0 0.0
        %4686 = vmatpush1.msra.mxu0 0.0
        %4687 = vmatprep.subr.mxu0 0.0
        %4688 = vmatpush1.msra.mxu0 0.0
        %4689 = vmatprep.subr.mxu0 0.0
        %4690 = vmatpush1.msra.mxu0 0.0
        %4691 = vmatprep.subr.mxu0 0.0
        %4692 = vmatpush1.msra.mxu0 0.0
        %4693 = vmatprep.subr.mxu0 0.0
        %4694 = vmatpush1.msra.mxu0 0.0
        %4695 = vmatprep.subr.mxu0 0.0
        %4696 = vmatpush1.msra.mxu0 0.0
        %4697 = vmatprep.subr.mxu0 0.0
        %4698 = vmatpush1.msra.mxu0 0.0
        %4699 = vmatprep.subr.mxu0 0.0
        %4700 = vmatpush1.msra.mxu0 0.0
        %4701 = vmatprep.subr.mxu0 0.0
        %4702 = vmatpush1.msra.mxu0 0.0
        %4703 = vmatprep.subr.mxu0 0.0
        %4704 = vmatpush1.msra.mxu0 0.0
        %4705 = vmatprep.subr.mxu0 0.0
        %4706 = vmatpush1.msra.mxu0 0.0
        %4707 = vmatprep.subr.mxu0 0.0
        %4708 = vmatpush1.msra.mxu0 0.0
        %4709 = vmatprep.subr.mxu0 0.0
        %4710 = vmatpush1.msra.mxu0 0.0
        %4711 = vmatprep.subr.mxu0 0.0
        %4712 = vmatpush1.msra.mxu0 0.0
        %4713 = vmatprep.subr.mxu0 0.0
        %4714 = vmatpush1.msra.mxu0 0.0
        %4715 = vmatprep.subr.mxu0 0.0
        %4716 = vmatpush1.msra.mxu0 0.0
        %4717 = vmatprep.subr.mxu0 0.0
        %4718 = vmatpush1.msra.mxu0 0.0
        %4719 = vmatprep.subr.mxu0 0.0
        %4720 = vmatpush1.msra.mxu0 0.0
        %4721 = vmatprep.subr.mxu0 0.0
        %4722 = vmatpush1.msra.mxu0 0.0
        %4723 = vmatprep.subr.mxu0 0.0
        %4724 = vmatpush1.msra.mxu0 0.0
        %4725 = vmatprep.subr.mxu0 0.0
        %4726 = vmatpush1.msra.mxu0 0.0
        %4727 = vmatprep.subr.mxu0 0.0
        %4728 = vmatpush1.msra.mxu0 0.0
        %4729 = vmatprep.subr.mxu0 0.0
        %4730 = vmatpush1.msra.mxu0 0.0
        %4731 = vmatprep.subr.mxu0 0.0
        %4732 = vmatpush1.msra.mxu0 0.0
        %4733 = vmatprep.subr.mxu0 0.0
        %4734 = vmatpush1.msra.mxu0 0.0
        %4735 = vmatprep.mubr.f32.mxu0 0.0
        %v4736 = vand.u32 %v4515, 4294901760
        %v4737 = vsub.f32 %v4515, %v4736
        %4738 = vmatmul.mubr.f32.gmra.mrb[0].mxu0 %v4737
        %v4739 = vpop.f32.mrb[0].mxu0
        %v4740 = vadd.f32 %v4666, %v4739
        %v4741 = vpop.f32.mrb[0].mxu0
        %4742 = vdwg.mxu0
        %4743 = vmatprep.subr.mxu0 0.0
        %v4744 = vand.u32 %v1757, 4294901760
        %4745 = vmatpush1.msra.mxu0 %v4744
        %4746 = vmatprep.subr.mxu0 0.0
        %4747 = vmatpush1.msra.mxu0 0.0
        %4748 = vmatprep.subr.mxu0 0.0
        %4749 = vmatpush1.msra.mxu0 0.0
        %4750 = vmatprep.subr.mxu0 0.0
        %4751 = vmatpush1.msra.mxu0 0.0
        %4752 = vmatprep.subr.mxu0 0.0
        %4753 = vmatpush1.msra.mxu0 0.0
        %4754 = vmatprep.subr.mxu0 0.0
        %4755 = vmatpush1.msra.mxu0 0.0
        %4756 = vmatprep.subr.mxu0 0.0
        %4757 = vmatpush1.msra.mxu0 0.0
        %4758 = vmatprep.subr.mxu0 0.0
        %4759 = vmatpush1.msra.mxu0 0.0
        %4760 = vmatprep.subr.mxu0 0.0
        %4761 = vmatpush1.msra.mxu0 0.0
        %4762 = vmatprep.subr.mxu0 0.0
        %4763 = vmatpush1.msra.mxu0 0.0
        %4764 = vmatprep.subr.mxu0 0.0
        %4765 = vmatpush1.msra.mxu0 0.0
        %4766 = vmatprep.subr.mxu0 0.0
        %4767 = vmatpush1.msra.mxu0 0.0
        %4768 = vmatprep.subr.mxu0 0.0
        %4769 = vmatpush1.msra.mxu0 0.0
        %4770 = vmatprep.subr.mxu0 0.0
        %4771 = vmatpush1.msra.mxu0 0.0
        %4772 = vmatprep.subr.mxu0 0.0
        %4773 = vmatpush1.msra.mxu0 0.0
        %4774 = vmatprep.subr.mxu0 0.0
        %4775 = vmatpush1.msra.mxu0 0.0
        %4776 = vmatprep.subr.mxu0 0.0
        %4777 = vmatpush1.msra.mxu0 0.0
        %4778 = vmatprep.subr.mxu0 0.0
        %4779 = vmatpush1.msra.mxu0 0.0
        %4780 = vmatprep.subr.mxu0 0.0
        %4781 = vmatpush1.msra.mxu0 0.0
        %4782 = vmatprep.subr.mxu0 0.0
        %4783 = vmatpush1.msra.mxu0 0.0
        %4784 = vmatprep.subr.mxu0 0.0
        %4785 = vmatpush1.msra.mxu0 0.0
        %4786 = vmatprep.subr.mxu0 0.0
        %4787 = vmatpush1.msra.mxu0 0.0
        %4788 = vmatprep.subr.mxu0 0.0
        %4789 = vmatpush1.msra.mxu0 0.0
        %4790 = vmatprep.subr.mxu0 0.0
        %4791 = vmatpush1.msra.mxu0 0.0
        %4792 = vmatprep.subr.mxu0 0.0
        %4793 = vmatpush1.msra.mxu0 0.0
        %4794 = vmatprep.subr.mxu0 0.0
        %4795 = vmatpush1.msra.mxu0 0.0
        %4796 = vmatprep.subr.mxu0 0.0
        %4797 = vmatpush1.msra.mxu0 0.0
        %4798 = vmatprep.subr.mxu0 0.0
        %4799 = vmatpush1.msra.mxu0 0.0
        %4800 = vmatprep.subr.mxu0 0.0
        %4801 = vmatpush1.msra.mxu0 0.0
        %4802 = vmatprep.subr.mxu0 0.0
        %4803 = vmatpush1.msra.mxu0 0.0
        %4804 = vmatprep.subr.mxu0 0.0
        %4805 = vmatpush1.msra.mxu0 0.0
        %4806 = vmatprep.subr.mxu0 0.0
        %4807 = vmatpush1.msra.mxu0 0.0
        %4808 = vmatprep.mubr.f32.mxu0 0.0
        %v4809 = vand.u32 %v4515, 4294901760
        %v4810 = vsub.f32 %v4515, %v4809
        %v4811 = vand.u32 %v4810, 4294901760
        %4812 = vmatmul.mubr.f32.gmra.mrb[0].mxu0 %v4811
        %v4813 = vpop.f32.mrb[0].mxu0
        %v4814 = vadd.f32 %v4740, %v4813
        %v4815 = vpop.f32.mrb[0].mxu0
        %4816 = vdwg.mxu0
        %4817 = vmatprep.subr.mxu0 0.0
        %v4818 = vand.u32 %v1757, 4294901760
        %v4819 = vsub.f32 %v1757, %v4818
        %v4820 = vand.u32 %v4819, 4294901760
        %4821 = vmatpush1.msra.mxu0 %v4820
        %4822 = vmatprep.subr.mxu0 0.0
        %4823 = vmatpush1.msra.mxu0 0.0
        %4824 = vmatprep.subr.mxu0 0.0
        %4825 = vmatpush1.msra.mxu0 0.0
        %4826 = vmatprep.subr.mxu0 0.0
        %4827 = vmatpush1.msra.mxu0 0.0
        %4828 = vmatprep.subr.mxu0 0.0
        %4829 = vmatpush1.msra.mxu0 0.0
        %4830 = vmatprep.subr.mxu0 0.0
        %4831 = vmatpush1.msra.mxu0 0.0
        %4832 = vmatprep.subr.mxu0 0.0
        %4833 = vmatpush1.msra.mxu0 0.0
        %4834 = vmatprep.subr.mxu0 0.0
        %4835 = vmatpush1.msra.mxu0 0.0
        %4836 = vmatprep.subr.mxu0 0.0
        %4837 = vmatpush1.msra.mxu0 0.0
        %4838 = vmatprep.subr.mxu0 0.0
        %4839 = vmatpush1.msra.mxu0 0.0
        %4840 = vmatprep.subr.mxu0 0.0
        %4841 = vmatpush1.msra.mxu0 0.0
        %4842 = vmatprep.subr.mxu0 0.0
        %4843 = vmatpush1.msra.mxu0 0.0
        %4844 = vmatprep.subr.mxu0 0.0
        %4845 = vmatpush1.msra.mxu0 0.0
        %4846 = vmatprep.subr.mxu0 0.0
        %4847 = vmatpush1.msra.mxu0 0.0
        %4848 = vmatprep.subr.mxu0 0.0
        %4849 = vmatpush1.msra.mxu0 0.0
        %4850 = vmatprep.subr.mxu0 0.0
        %4851 = vmatpush1.msra.mxu0 0.0
        %4852 = vmatprep.subr.mxu0 0.0
        %4853 = vmatpush1.msra.mxu0 0.0
        %4854 = vmatprep.subr.mxu0 0.0
        %4855 = vmatpush1.msra.mxu0 0.0
        %4856 = vmatprep.subr.mxu0 0.0
        %4857 = vmatpush1.msra.mxu0 0.0
        %4858 = vmatprep.subr.mxu0 0.0
        %4859 = vmatpush1.msra.mxu0 0.0
        %4860 = vmatprep.subr.mxu0 0.0
        %4861 = vmatpush1.msra.mxu0 0.0
        %4862 = vmatprep.subr.mxu0 0.0
        %4863 = vmatpush1.msra.mxu0 0.0
        %4864 = vmatprep.subr.mxu0 0.0
        %4865 = vmatpush1.msra.mxu0 0.0
        %4866 = vmatprep.subr.mxu0 0.0
        %4867 = vmatpush1.msra.mxu0 0.0
        %4868 = vmatprep.subr.mxu0 0.0
        %4869 = vmatpush1.msra.mxu0 0.0
        %4870 = vmatprep.subr.mxu0 0.0
        %4871 = vmatpush1.msra.mxu0 0.0
        %4872 = vmatprep.subr.mxu0 0.0
        %4873 = vmatpush1.msra.mxu0 0.0
        %4874 = vmatprep.subr.mxu0 0.0
        %4875 = vmatpush1.msra.mxu0 0.0
        %4876 = vmatprep.subr.mxu0 0.0
        %4877 = vmatpush1.msra.mxu0 0.0
        %4878 = vmatprep.subr.mxu0 0.0
        %4879 = vmatpush1.msra.mxu0 0.0
        %4880 = vmatprep.subr.mxu0 0.0
        %4881 = vmatpush1.msra.mxu0 0.0
        %4882 = vmatprep.subr.mxu0 0.0
        %4883 = vmatpush1.msra.mxu0 0.0
        %4884 = vmatprep.mubr.f32.mxu0 0.0
        %v4885 = vand.u32 %v4515, 4294901760
        %4886 = vmatmul.mubr.f32.gmra.mrb[0].mxu0 %v4885
        %v4887 = vpop.f32.mrb[0].mxu0
        %v4888 = vadd.f32 %v4814, %v4887
        %v4889 = vpop.f32.mrb[0].mxu0
        %4890 = vdwg.mxu0
        %4891 = vmatprep.subr.mxu0 0.0
        %v4892 = vand.u32 %v1757, 4294901760
        %4893 = vmatpush1.msra.mxu0 %v4892
        %4894 = vmatprep.subr.mxu0 0.0
        %4895 = vmatpush1.msra.mxu0 0.0
        %4896 = vmatprep.subr.mxu0 0.0
        %4897 = vmatpush1.msra.mxu0 0.0
        %4898 = vmatprep.subr.mxu0 0.0
        %4899 = vmatpush1.msra.mxu0 0.0
        %4900 = vmatprep.subr.mxu0 0.0
        %4901 = vmatpush1.msra.mxu0 0.0
        %4902 = vmatprep.subr.mxu0 0.0
        %4903 = vmatpush1.msra.mxu0 0.0
        %4904 = vmatprep.subr.mxu0 0.0
        %4905 = vmatpush1.msra.mxu0 0.0
        %4906 = vmatprep.subr.mxu0 0.0
        %4907 = vmatpush1.msra.mxu0 0.0
        %4908 = vmatprep.subr.mxu0 0.0
        %4909 = vmatpush1.msra.mxu0 0.0
        %4910 = vmatprep.subr.mxu0 0.0
        %4911 = vmatpush1.msra.mxu0 0.0
        %4912 = vmatprep.subr.mxu0 0.0
        %4913 = vmatpush1.msra.mxu0 0.0
        %4914 = vmatprep.subr.mxu0 0.0
        %4915 = vmatpush1.msra.mxu0 0.0
        %4916 = vmatprep.subr.mxu0 0.0
        %4917 = vmatpush1.msra.mxu0 0.0
        %4918 = vmatprep.subr.mxu0 0.0
        %4919 = vmatpush1.msra.mxu0 0.0
        %4920 = vmatprep.subr.mxu0 0.0
        %4921 = vmatpush1.msra.mxu0 0.0
        %4922 = vmatprep.subr.mxu0 0.0
        %4923 = vmatpush1.msra.mxu0 0.0
        %4924 = vmatprep.subr.mxu0 0.0
        %4925 = vmatpush1.msra.mxu0 0.0
        %4926 = vmatprep.subr.mxu0 0.0
        %4927 = vmatpush1.msra.mxu0 0.0
        %4928 = vmatprep.subr.mxu0 0.0
        %4929 = vmatpush1.msra.mxu0 0.0
        %4930 = vmatprep.subr.mxu0 0.0
        %4931 = vmatpush1.msra.mxu0 0.0
        %4932 = vmatprep.subr.mxu0 0.0
        %4933 = vmatpush1.msra.mxu0 0.0
        %4934 = vmatprep.subr.mxu0 0.0
        %4935 = vmatpush1.msra.mxu0 0.0
        %4936 = vmatprep.subr.mxu0 0.0
        %4937 = vmatpush1.msra.mxu0 0.0
        %4938 = vmatprep.subr.mxu0 0.0
        %4939 = vmatpush1.msra.mxu0 0.0
        %4940 = vmatprep.subr.mxu0 0.0
        %4941 = vmatpush1.msra.mxu0 0.0
        %4942 = vmatprep.subr.mxu0 0.0
        %4943 = vmatpush1.msra.mxu0 0.0
        %4944 = vmatprep.subr.mxu0 0.0
        %4945 = vmatpush1.msra.mxu0 0.0
        %4946 = vmatprep.subr.mxu0 0.0
        %4947 = vmatpush1.msra.mxu0 0.0
        %4948 = vmatprep.subr.mxu0 0.0
        %4949 = vmatpush1.msra.mxu0 0.0
        %4950 = vmatprep.subr.mxu0 0.0
        %4951 = vmatpush1.msra.mxu0 0.0
        %4952 = vmatprep.subr.mxu0 0.0
        %4953 = vmatpush1.msra.mxu0 0.0
        %4954 = vmatprep.subr.mxu0 0.0
        %4955 = vmatpush1.msra.mxu0 0.0
        %4956 = vmatprep.mubr.f32.mxu0 0.0
        %v4957 = vand.u32 %v4515, 4294901760
        %4958 = vmatmul.mubr.f32.gmra.mrb[0].mxu0 %v4957
        %v4959 = vpop.f32.mrb[0].mxu0
        %v4960 = vadd.f32 %v4888, %v4959
        %v4961 = vpop.f32.mrb[0].mxu0
        %4962 = vdwg.mxu0
        %v4964 = vsel %vm1759, %v3611, 0
        %4966 = vmatprep.subr.mxu0 0.0
        %v4967 = vand.u32 %v1758, 4294901760
        %4968 = vmatpush1.msra.mxu0 %v4967
        %4969 = vmatprep.subr.mxu0 0.0
        %4970 = vmatpush1.msra.mxu0 0.0
        %4971 = vmatprep.subr.mxu0 0.0
        %4972 = vmatpush1.msra.mxu0 0.0
        %4973 = vmatprep.subr.mxu0 0.0
        %4974 = vmatpush1.msra.mxu0 0.0
        %4975 = vmatprep.subr.mxu0 0.0
        %4976 = vmatpush1.msra.mxu0 0.0
        %4977 = vmatprep.subr.mxu0 0.0
        %4978 = vmatpush1.msra.mxu0 0.0
        %4979 = vmatprep.subr.mxu0 0.0
        %4980 = vmatpush1.msra.mxu0 0.0
        %4981 = vmatprep.subr.mxu0 0.0
        %4982 = vmatpush1.msra.mxu0 0.0
        %4983 = vmatprep.subr.mxu0 0.0
        %4984 = vmatpush1.msra.mxu0 0.0
        %4985 = vmatprep.subr.mxu0 0.0
        %4986 = vmatpush1.msra.mxu0 0.0
        %4987 = vmatprep.subr.mxu0 0.0
        %4988 = vmatpush1.msra.mxu0 0.0
        %4989 = vmatprep.subr.mxu0 0.0
        %4990 = vmatpush1.msra.mxu0 0.0
        %4991 = vmatprep.subr.mxu0 0.0
        %4992 = vmatpush1.msra.mxu0 0.0
        %4993 = vmatprep.subr.mxu0 0.0
        %4994 = vmatpush1.msra.mxu0 0.0
        %4995 = vmatprep.subr.mxu0 0.0
        %4996 = vmatpush1.msra.mxu0 0.0
        %4997 = vmatprep.subr.mxu0 0.0
        %4998 = vmatpush1.msra.mxu0 0.0
        %4999 = vmatprep.subr.mxu0 0.0
        %5000 = vmatpush1.msra.mxu0 0.0
        %5001 = vmatprep.subr.mxu0 0.0
        %5002 = vmatpush1.msra.mxu0 0.0
        %5003 = vmatprep.subr.mxu0 0.0
        %5004 = vmatpush1.msra.mxu0 0.0
        %5005 = vmatprep.subr.mxu0 0.0
        %5006 = vmatpush1.msra.mxu0 0.0
        %5007 = vmatprep.subr.mxu0 0.0
        %5008 = vmatpush1.msra.mxu0 0.0
        %5009 = vmatprep.subr.mxu0 0.0
        %5010 = vmatpush1.msra.mxu0 0.0
        %5011 = vmatprep.subr.mxu0 0.0
        %5012 = vmatpush1.msra.mxu0 0.0
        %5013 = vmatprep.subr.mxu0 0.0
        %5014 = vmatpush1.msra.mxu0 0.0
        %5015 = vmatprep.subr.mxu0 0.0
        %5016 = vmatpush1.msra.mxu0 0.0
        %5017 = vmatprep.subr.mxu0 0.0
        %5018 = vmatpush1.msra.mxu0 0.0
        %5019 = vmatprep.subr.mxu0 0.0
        %5020 = vmatpush1.msra.mxu0 0.0
        %5021 = vmatprep.subr.mxu0 0.0
        %5022 = vmatpush1.msra.mxu0 0.0
        %5023 = vmatprep.subr.mxu0 0.0
        %5024 = vmatpush1.msra.mxu0 0.0
        %5025 = vmatprep.subr.mxu0 0.0
        %5026 = vmatpush1.msra.mxu0 0.0
        %5027 = vmatprep.subr.mxu0 0.0
        %5028 = vmatpush1.msra.mxu0 0.0
        %5029 = vmatprep.subr.mxu0 0.0
        %5030 = vmatpush1.msra.mxu0 0.0
        %5031 = vmatprep.mubr.f32.mxu0 0.0
        %v5032 = vand.u32 %v4964, 4294901760
        %v5033 = vsub.f32 %v4964, %v5032
        %v5034 = vand.u32 %v5033, 4294901760
        %v5035 = vsub.f32 %v5033, %v5034
        %v5036 = vand.u32 %v5035, 4294901760
        %5037 = vmatmul.mubr.f32.gmra.mrb[0].mxu0 %v5036
        %v5038 = vpop.f32.mrb[0].mxu0
        %v5039 = vadd.f32 0.0, %v5038
        %v5040 = vpop.f32.mrb[0].mxu0
        %5041 = vdwg.mxu0
        %5042 = vmatprep.subr.mxu0 0.0
        %v5043 = vand.u32 %v1758, 4294901760
        %v5044 = vsub.f32 %v1758, %v5043
        %v5045 = vand.u32 %v5044, 4294901760
        %v5046 = vsub.f32 %v5044, %v5045
        %v5047 = vand.u32 %v5046, 4294901760
        %5048 = vmatpush1.msra.mxu0 %v5047
        %5049 = vmatprep.subr.mxu0 0.0
        %5050 = vmatpush1.msra.mxu0 0.0
        %5051 = vmatprep.subr.mxu0 0.0
        %5052 = vmatpush1.msra.mxu0 0.0
        %5053 = vmatprep.subr.mxu0 0.0
        %5054 = vmatpush1.msra.mxu0 0.0
        %5055 = vmatprep.subr.mxu0 0.0
        %5056 = vmatpush1.msra.mxu0 0.0
        %5057 = vmatprep.subr.mxu0 0.0
        %5058 = vmatpush1.msra.mxu0 0.0
        %5059 = vmatprep.subr.mxu0 0.0
        %5060 = vmatpush1.msra.mxu0 0.0
        %5061 = vmatprep.subr.mxu0 0.0
        %5062 = vmatpush1.msra.mxu0 0.0
        %5063 = vmatprep.subr.mxu0 0.0
        %5064 = vmatpush1.msra.mxu0 0.0
        %5065 = vmatprep.subr.mxu0 0.0
        %5066 = vmatpush1.msra.mxu0 0.0
        %5067 = vmatprep.subr.mxu0 0.0
        %5068 = vmatpush1.msra.mxu0 0.0
        %5069 = vmatprep.subr.mxu0 0.0
        %5070 = vmatpush1.msra.mxu0 0.0
        %5071 = vmatprep.subr.mxu0 0.0
        %5072 = vmatpush1.msra.mxu0 0.0
        %5073 = vmatprep.subr.mxu0 0.0
        %5074 = vmatpush1.msra.mxu0 0.0
        %5075 = vmatprep.subr.mxu0 0.0
        %5076 = vmatpush1.msra.mxu0 0.0
        %5077 = vmatprep.subr.mxu0 0.0
        %5078 = vmatpush1.msra.mxu0 0.0
        %5079 = vmatprep.subr.mxu0 0.0
        %5080 = vmatpush1.msra.mxu0 0.0
        %5081 = vmatprep.subr.mxu0 0.0
        %5082 = vmatpush1.msra.mxu0 0.0
        %5083 = vmatprep.subr.mxu0 0.0
        %5084 = vmatpush1.msra.mxu0 0.0
        %5085 = vmatprep.subr.mxu0 0.0
        %5086 = vmatpush1.msra.mxu0 0.0
        %5087 = vmatprep.subr.mxu0 0.0
        %5088 = vmatpush1.msra.mxu0 0.0
        %5089 = vmatprep.subr.mxu0 0.0
        %5090 = vmatpush1.msra.mxu0 0.0
        %5091 = vmatprep.subr.mxu0 0.0
        %5092 = vmatpush1.msra.mxu0 0.0
        %5093 = vmatprep.subr.mxu0 0.0
        %5094 = vmatpush1.msra.mxu0 0.0
        %5095 = vmatprep.subr.mxu0 0.0
        %5096 = vmatpush1.msra.mxu0 0.0
        %5097 = vmatprep.subr.mxu0 0.0
        %5098 = vmatpush1.msra.mxu0 0.0
        %5099 = vmatprep.subr.mxu0 0.0
        %5100 = vmatpush1.msra.mxu0 0.0
        %5101 = vmatprep.subr.mxu0 0.0
        %5102 = vmatpush1.msra.mxu0 0.0
        %5103 = vmatprep.subr.mxu0 0.0
        %5104 = vmatpush1.msra.mxu0 0.0
        %5105 = vmatprep.subr.mxu0 0.0
        %5106 = vmatpush1.msra.mxu0 0.0
        %5107 = vmatprep.subr.mxu0 0.0
        %5108 = vmatpush1.msra.mxu0 0.0
        %5109 = vmatprep.subr.mxu0 0.0
        %5110 = vmatpush1.msra.mxu0 0.0
        %5111 = vmatprep.mubr.f32.mxu0 0.0
        %v5112 = vand.u32 %v4964, 4294901760
        %5113 = vmatmul.mubr.f32.gmra.mrb[0].mxu0 %v5112
        %v5114 = vpop.f32.mrb[0].mxu0
        %v5115 = vadd.f32 %v5039, %v5114
        %v5116 = vpop.f32.mrb[0].mxu0
        %5117 = vdwg.mxu0
        %5118 = vmatprep.subr.mxu0 0.0
        %v5119 = vand.u32 %v1758, 4294901760
        %v5120 = vsub.f32 %v1758, %v5119
        %5121 = vmatpush1.msra.mxu0 %v5120
        %5122 = vmatprep.subr.mxu0 0.0
        %5123 = vmatpush1.msra.mxu0 0.0
        %5124 = vmatprep.subr.mxu0 0.0
        %5125 = vmatpush1.msra.mxu0 0.0
        %5126 = vmatprep.subr.mxu0 0.0
        %5127 = vmatpush1.msra.mxu0 0.0
        %5128 = vmatprep.subr.mxu0 0.0
        %5129 = vmatpush1.msra.mxu0 0.0
        %5130 = vmatprep.subr.mxu0 0.0
        %5131 = vmatpush1.msra.mxu0 0.0
        %5132 = vmatprep.subr.mxu0 0.0
        %5133 = vmatpush1.msra.mxu0 0.0
        %5134 = vmatprep.subr.mxu0 0.0
        %5135 = vmatpush1.msra.mxu0 0.0
        %5136 = vmatprep.subr.mxu0 0.0
        %5137 = vmatpush1.msra.mxu0 0.0
        %5138 = vmatprep.subr.mxu0 0.0
        %5139 = vmatpush1.msra.mxu0 0.0
        %5140 = vmatprep.subr.mxu0 0.0
        %5141 = vmatpush1.msra.mxu0 0.0
        %5142 = vmatprep.subr.mxu0 0.0
        %5143 = vmatpush1.msra.mxu0 0.0
        %5144 = vmatprep.subr.mxu0 0.0
        %5145 = vmatpush1.msra.mxu0 0.0
        %5146 = vmatprep.subr.mxu0 0.0
        %5147 = vmatpush1.msra.mxu0 0.0
        %5148 = vmatprep.subr.mxu0 0.0
        %5149 = vmatpush1.msra.mxu0 0.0
        %5150 = vmatprep.subr.mxu0 0.0
        %5151 = vmatpush1.msra.mxu0 0.0
        %5152 = vmatprep.subr.mxu0 0.0
        %5153 = vmatpush1.msra.mxu0 0.0
        %5154 = vmatprep.subr.mxu0 0.0
        %5155 = vmatpush1.msra.mxu0 0.0
        %5156 = vmatprep.subr.mxu0 0.0
        %5157 = vmatpush1.msra.mxu0 0.0
        %5158 = vmatprep.subr.mxu0 0.0
        %5159 = vmatpush1.msra.mxu0 0.0
        %5160 = vmatprep.subr.mxu0 0.0
        %5161 = vmatpush1.msra.mxu0 0.0
        %5162 = vmatprep.subr.mxu0 0.0
        %5163 = vmatpush1.msra.mxu0 0.0
        %5164 = vmatprep.subr.mxu0 0.0
        %5165 = vmatpush1.msra.mxu0 0.0
        %5166 = vmatprep.subr.mxu0 0.0
        %5167 = vmatpush1.msra.mxu0 0.0
        %5168 = vmatprep.subr.mxu0 0.0
        %5169 = vmatpush1.msra.mxu0 0.0
        %5170 = vmatprep.subr.mxu0 0.0
        %5171 = vmatpush1.msra.mxu0 0.0
        %5172 = vmatprep.subr.mxu0 0.0
        %5173 = vmatpush1.msra.mxu0 0.0
        %5174 = vmatprep.subr.mxu0 0.0
        %5175 = vmatpush1.msra.mxu0 0.0
        %5176 = vmatprep.subr.mxu0 0.0
        %5177 = vmatpush1.msra.mxu0 0.0
        %5178 = vmatprep.subr.mxu0 0.0
        %5179 = vmatpush1.msra.mxu0 0.0
        %5180 = vmatprep.subr.mxu0 0.0
        %5181 = vmatpush1.msra.mxu0 0.0
        %5182 = vmatprep.subr.mxu0 0.0
        %5183 = vmatpush1.msra.mxu0 0.0
        %5184 = vmatprep.mubr.f32.mxu0 0.0
        %v5185 = vand.u32 %v4964, 4294901760
        %v5186 = vsub.f32 %v4964, %v5185
        %5187 = vmatmul.mubr.f32.gmra.mrb[0].mxu0 %v5186
        %v5188 = vpop.f32.mrb[0].mxu0
        %v5189 = vadd.f32 %v5115, %v5188
        %v5190 = vpop.f32.mrb[0].mxu0
        %5191 = vdwg.mxu0
        %5192 = vmatprep.subr.mxu0 0.0
        %v5193 = vand.u32 %v1758, 4294901760
        %5194 = vmatpush1.msra.mxu0 %v5193
        %5195 = vmatprep.subr.mxu0 0.0
        %5196 = vmatpush1.msra.mxu0 0.0
        %5197 = vmatprep.subr.mxu0 0.0
        %5198 = vmatpush1.msra.mxu0 0.0
        %5199 = vmatprep.subr.mxu0 0.0
        %5200 = vmatpush1.msra.mxu0 0.0
        %5201 = vmatprep.subr.mxu0 0.0
        %5202 = vmatpush1.msra.mxu0 0.0
        %5203 = vmatprep.subr.mxu0 0.0
        %5204 = vmatpush1.msra.mxu0 0.0
        %5205 = vmatprep.subr.mxu0 0.0
        %5206 = vmatpush1.msra.mxu0 0.0
        %5207 = vmatprep.subr.mxu0 0.0
        %5208 = vmatpush1.msra.mxu0 0.0
        %5209 = vmatprep.subr.mxu0 0.0
        %5210 = vmatpush1.msra.mxu0 0.0
        %5211 = vmatprep.subr.mxu0 0.0
        %5212 = vmatpush1.msra.mxu0 0.0
        %5213 = vmatprep.subr.mxu0 0.0
        %5214 = vmatpush1.msra.mxu0 0.0
        %5215 = vmatprep.subr.mxu0 0.0
        %5216 = vmatpush1.msra.mxu0 0.0
        %5217 = vmatprep.subr.mxu0 0.0
        %5218 = vmatpush1.msra.mxu0 0.0
        %5219 = vmatprep.subr.mxu0 0.0
        %5220 = vmatpush1.msra.mxu0 0.0
        %5221 = vmatprep.subr.mxu0 0.0
        %5222 = vmatpush1.msra.mxu0 0.0
        %5223 = vmatprep.subr.mxu0 0.0
        %5224 = vmatpush1.msra.mxu0 0.0
        %5225 = vmatprep.subr.mxu0 0.0
        %5226 = vmatpush1.msra.mxu0 0.0
        %5227 = vmatprep.subr.mxu0 0.0
        %5228 = vmatpush1.msra.mxu0 0.0
        %5229 = vmatprep.subr.mxu0 0.0
        %5230 = vmatpush1.msra.mxu0 0.0
        %5231 = vmatprep.subr.mxu0 0.0
        %5232 = vmatpush1.msra.mxu0 0.0
        %5233 = vmatprep.subr.mxu0 0.0
        %5234 = vmatpush1.msra.mxu0 0.0
        %5235 = vmatprep.subr.mxu0 0.0
        %5236 = vmatpush1.msra.mxu0 0.0
        %5237 = vmatprep.subr.mxu0 0.0
        %5238 = vmatpush1.msra.mxu0 0.0
        %5239 = vmatprep.subr.mxu0 0.0
        %5240 = vmatpush1.msra.mxu0 0.0
        %5241 = vmatprep.subr.mxu0 0.0
        %5242 = vmatpush1.msra.mxu0 0.0
        %5243 = vmatprep.subr.mxu0 0.0
        %5244 = vmatpush1.msra.mxu0 0.0
        %5245 = vmatprep.subr.mxu0 0.0
        %5246 = vmatpush1.msra.mxu0 0.0
        %5247 = vmatprep.subr.mxu0 0.0
        %5248 = vmatpush1.msra.mxu0 0.0
        %5249 = vmatprep.subr.mxu0 0.0
        %5250 = vmatpush1.msra.mxu0 0.0
        %5251 = vmatprep.subr.mxu0 0.0
        %5252 = vmatpush1.msra.mxu0 0.0
        %5253 = vmatprep.subr.mxu0 0.0
        %5254 = vmatpush1.msra.mxu0 0.0
        %5255 = vmatprep.subr.mxu0 0.0
        %5256 = vmatpush1.msra.mxu0 0.0
        %5257 = vmatprep.mubr.f32.mxu0 0.0
        %v5258 = vand.u32 %v4964, 4294901760
        %v5259 = vsub.f32 %v4964, %v5258
        %v5260 = vand.u32 %v5259, 4294901760
        %5261 = vmatmul.mubr.f32.gmra.mrb[0].mxu0 %v5260
        %v5262 = vpop.f32.mrb[0].mxu0
        %v5263 = vadd.f32 %v5189, %v5262
        %v5264 = vpop.f32.mrb[0].mxu0
        %5265 = vdwg.mxu0
        %5266 = vmatprep.subr.mxu0 0.0
        %v5267 = vand.u32 %v1758, 4294901760
        %v5268 = vsub.f32 %v1758, %v5267
        %v5269 = vand.u32 %v5268, 4294901760
        %5270 = vmatpush1.msra.mxu0 %v5269
        %5271 = vmatprep.subr.mxu0 0.0
        %5272 = vmatpush1.msra.mxu0 0.0
        %5273 = vmatprep.subr.mxu0 0.0
        %5274 = vmatpush1.msra.mxu0 0.0
        %5275 = vmatprep.subr.mxu0 0.0
        %5276 = vmatpush1.msra.mxu0 0.0
        %5277 = vmatprep.subr.mxu0 0.0
        %5278 = vmatpush1.msra.mxu0 0.0
        %5279 = vmatprep.subr.mxu0 0.0
        %5280 = vmatpush1.msra.mxu0 0.0
        %5281 = vmatprep.subr.mxu0 0.0
        %5282 = vmatpush1.msra.mxu0 0.0
        %5283 = vmatprep.subr.mxu0 0.0
        %5284 = vmatpush1.msra.mxu0 0.0
        %5285 = vmatprep.subr.mxu0 0.0
        %5286 = vmatpush1.msra.mxu0 0.0
        %5287 = vmatprep.subr.mxu0 0.0
        %5288 = vmatpush1.msra.mxu0 0.0
        %5289 = vmatprep.subr.mxu0 0.0
        %5290 = vmatpush1.msra.mxu0 0.0
        %5291 = vmatprep.subr.mxu0 0.0
        %5292 = vmatpush1.msra.mxu0 0.0
        %5293 = vmatprep.subr.mxu0 0.0
        %5294 = vmatpush1.msra.mxu0 0.0
        %5295 = vmatprep.subr.mxu0 0.0
        %5296 = vmatpush1.msra.mxu0 0.0
        %5297 = vmatprep.subr.mxu0 0.0
        %5298 = vmatpush1.msra.mxu0 0.0
        %5299 = vmatprep.subr.mxu0 0.0
        %5300 = vmatpush1.msra.mxu0 0.0
        %5301 = vmatprep.subr.mxu0 0.0
        %5302 = vmatpush1.msra.mxu0 0.0
        %5303 = vmatprep.subr.mxu0 0.0
        %5304 = vmatpush1.msra.mxu0 0.0
        %5305 = vmatprep.subr.mxu0 0.0
        %5306 = vmatpush1.msra.mxu0 0.0
        %5307 = vmatprep.subr.mxu0 0.0
        %5308 = vmatpush1.msra.mxu0 0.0
        %5309 = vmatprep.subr.mxu0 0.0
        %5310 = vmatpush1.msra.mxu0 0.0
        %5311 = vmatprep.subr.mxu0 0.0
        %5312 = vmatpush1.msra.mxu0 0.0
        %5313 = vmatprep.subr.mxu0 0.0
        %5314 = vmatpush1.msra.mxu0 0.0
        %5315 = vmatprep.subr.mxu0 0.0
        %5316 = vmatpush1.msra.mxu0 0.0
        %5317 = vmatprep.subr.mxu0 0.0
        %5318 = vmatpush1.msra.mxu0 0.0
        %5319 = vmatprep.subr.mxu0 0.0
        %5320 = vmatpush1.msra.mxu0 0.0
        %5321 = vmatprep.subr.mxu0 0.0
        %5322 = vmatpush1.msra.mxu0 0.0
        %5323 = vmatprep.subr.mxu0 0.0
        %5324 = vmatpush1.msra.mxu0 0.0
        %5325 = vmatprep.subr.mxu0 0.0
        %5326 = vmatpush1.msra.mxu0 0.0
        %5327 = vmatprep.subr.mxu0 0.0
        %5328 = vmatpush1.msra.mxu0 0.0
        %5329 = vmatprep.subr.mxu0 0.0
        %5330 = vmatpush1.msra.mxu0 0.0
        %5331 = vmatprep.subr.mxu0 0.0
        %5332 = vmatpush1.msra.mxu0 0.0
        %5333 = vmatprep.mubr.f32.mxu0 0.0
        %v5334 = vand.u32 %v4964, 4294901760
        %5335 = vmatmul.mubr.f32.gmra.mrb[0].mxu0 %v5334
        %v5336 = vpop.f32.mrb[0].mxu0
        %v5337 = vadd.f32 %v5263, %v5336
        %v5338 = vpop.f32.mrb[0].mxu0
        %5339 = vdwg.mxu0
        %5340 = vmatprep.subr.mxu0 0.0
        %v5341 = vand.u32 %v1758, 4294901760
        %5342 = vmatpush1.msra.mxu0 %v5341
        %5343 = vmatprep.subr.mxu0 0.0
        %5344 = vmatpush1.msra.mxu0 0.0
        %5345 = vmatprep.subr.mxu0 0.0
        %5346 = vmatpush1.msra.mxu0 0.0
        %5347 = vmatprep.subr.mxu0 0.0
        %5348 = vmatpush1.msra.mxu0 0.0
        %5349 = vmatprep.subr.mxu0 0.0
        %5350 = vmatpush1.msra.mxu0 0.0
        %5351 = vmatprep.subr.mxu0 0.0
        %5352 = vmatpush1.msra.mxu0 0.0
        %5353 = vmatprep.subr.mxu0 0.0
        %5354 = vmatpush1.msra.mxu0 0.0
        %5355 = vmatprep.subr.mxu0 0.0
        %5356 = vmatpush1.msra.mxu0 0.0
        %5357 = vmatprep.subr.mxu0 0.0
        %5358 = vmatpush1.msra.mxu0 0.0
        %5359 = vmatprep.subr.mxu0 0.0
        %5360 = vmatpush1.msra.mxu0 0.0
        %5361 = vmatprep.subr.mxu0 0.0
        %5362 = vmatpush1.msra.mxu0 0.0
        %5363 = vmatprep.subr.mxu0 0.0
        %5364 = vmatpush1.msra.mxu0 0.0
        %5365 = vmatprep.subr.mxu0 0.0
        %5366 = vmatpush1.msra.mxu0 0.0
        %5367 = vmatprep.subr.mxu0 0.0
        %5368 = vmatpush1.msra.mxu0 0.0
        %5369 = vmatprep.subr.mxu0 0.0
        %5370 = vmatpush1.msra.mxu0 0.0
        %5371 = vmatprep.subr.mxu0 0.0
        %5372 = vmatpush1.msra.mxu0 0.0
        %5373 = vmatprep.subr.mxu0 0.0
        %5374 = vmatpush1.msra.mxu0 0.0
        %5375 = vmatprep.subr.mxu0 0.0
        %5376 = vmatpush1.msra.mxu0 0.0
        %5377 = vmatprep.subr.mxu0 0.0
        %5378 = vmatpush1.msra.mxu0 0.0
        %5379 = vmatprep.subr.mxu0 0.0
        %5380 = vmatpush1.msra.mxu0 0.0
        %5381 = vmatprep.subr.mxu0 0.0
        %5382 = vmatpush1.msra.mxu0 0.0
        %5383 = vmatprep.subr.mxu0 0.0
        %5384 = vmatpush1.msra.mxu0 0.0
        %5385 = vmatprep.subr.mxu0 0.0
        %5386 = vmatpush1.msra.mxu0 0.0
        %5387 = vmatprep.subr.mxu0 0.0
        %5388 = vmatpush1.msra.mxu0 0.0
        %5389 = vmatprep.subr.mxu0 0.0
        %5390 = vmatpush1.msra.mxu0 0.0
        %5391 = vmatprep.subr.mxu0 0.0
        %5392 = vmatpush1.msra.mxu0 0.0
        %5393 = vmatprep.subr.mxu0 0.0
        %5394 = vmatpush1.msra.mxu0 0.0
        %5395 = vmatprep.subr.mxu0 0.0
        %5396 = vmatpush1.msra.mxu0 0.0
        %5397 = vmatprep.subr.mxu0 0.0
        %5398 = vmatpush1.msra.mxu0 0.0
        %5399 = vmatprep.subr.mxu0 0.0
        %5400 = vmatpush1.msra.mxu0 0.0
        %5401 = vmatprep.subr.mxu0 0.0
        %5402 = vmatpush1.msra.mxu0 0.0
        %5403 = vmatprep.subr.mxu0 0.0
        %5404 = vmatpush1.msra.mxu0 0.0
        %5405 = vmatprep.mubr.f32.mxu0 0.0
        %v5406 = vand.u32 %v4964, 4294901760
        %5407 = vmatmul.mubr.f32.gmra.mrb[0].mxu0 %v5406
        %v5408 = vpop.f32.mrb[0].mxu0
        %v5409 = vadd.f32 %v5337, %v5408
        %v5410 = vpop.f32.mrb[0].mxu0
        %5411 = vdwg.mxu0
        %5413 = vrot.lane.b32.xlu0 %v4511, 8
        %v5414 = vpop.permute.xlu0 %5413
        %5417 = vrot.lane.b32.xlu0 %v4960, 16
        %v5418 = vpop.permute.xlu0 %5417
        %5421 = vrot.lane.b32.xlu0 %v5409, 24
        %v5422 = vpop.permute.xlu0 %5421
        %v5424 = vsel %vm1759, %v4062, %v5414
        %vm5425 = vcmask 130048
        %v5426 = vsel %vm5425, %v5424, %v5418
        %vm5427 = vcmask 195584
        %v5428 = vsel %vm5427, %v5426, %v5422
        %v5429 = vld [vmem:[%s10] sm:$0xff]
        %v5430 = vld [vmem:[%s10 + $0x8] sm:$0xff]
        %v5431 = vld [vmem:[%s10 + $0x10] sm:$0xff]
        %v5432 = vld [vmem:[%s10 + $0x18] sm:$0xff]
        %v5433 = vld [vmem:[%s11] sm:$0x1]
        %v5435 = vlaneseq
        %v5436 = vshrl.u32 %v5435, 7
        %v5437 = vsub.s32 0, %v5436
        %v5438 = vrot.slane %v5433, %v5437
        %vm5440 = vcmask 261120
        %v5442 = vsel %vm5440, %v5428, 0
        %5444 = vmatprep.subr.mxu0 0.0
        %v5445 = vand.u32 %v5429, 4294901760
        %5446 = vmatpush1.msra.mxu0 %v5445
        %5447 = vmatprep.subr.mxu0 0.0
        %v5448 = vand.u32 %v5430, 4294901760
        %5449 = vmatpush1.msra.mxu0 %v5448
        %5450 = vmatprep.subr.mxu0 0.0
        %v5451 = vand.u32 %v5431, 4294901760
        %5452 = vmatpush1.msra.mxu0 %v5451
        %5453 = vmatprep.subr.mxu0 0.0
        %v5454 = vand.u32 %v5432, 4294901760
        %5455 = vmatpush1.msra.mxu0 %v5454
        %5456 = vmatprep.subr.mxu0 0.0
        %5457 = vmatpush1.msra.mxu0 0.0
        %5458 = vmatprep.subr.mxu0 0.0
        %5459 = vmatpush1.msra.mxu0 0.0
        %5460 = vmatprep.subr.mxu0 0.0
        %5461 = vmatpush1.msra.mxu0 0.0
        %5462 = vmatprep.subr.mxu0 0.0
        %5463 = vmatpush1.msra.mxu0 0.0
        %5464 = vmatprep.subr.mxu0 0.0
        %5465 = vmatpush1.msra.mxu0 0.0
        %5466 = vmatprep.subr.mxu0 0.0
        %5467 = vmatpush1.msra.mxu0 0.0
        %5468 = vmatprep.subr.mxu0 0.0
        %5469 = vmatpush1.msra.mxu0 0.0
        %5470 = vmatprep.subr.mxu0 0.0
        %5471 = vmatpush1.msra.mxu0 0.0
        %5472 = vmatprep.subr.mxu0 0.0
        %5473 = vmatpush1.msra.mxu0 0.0
        %5474 = vmatprep.subr.mxu0 0.0
        %5475 = vmatpush1.msra.mxu0 0.0
        %5476 = vmatprep.subr.mxu0 0.0
        %5477 = vmatpush1.msra.mxu0 0.0
        %5478 = vmatprep.subr.mxu0 0.0
        %5479 = vmatpush1.msra.mxu0 0.0
        %5480 = vmatprep.subr.mxu0 0.0
        %5481 = vmatpush1.msra.mxu0 0.0
        %5482 = vmatprep.subr.mxu0 0.0
        %5483 = vmatpush1.msra.mxu0 0.0
        %5484 = vmatprep.subr.mxu0 0.0
        %5485 = vmatpush1.msra.mxu0 0.0
        %5486 = vmatprep.subr.mxu0 0.0
        %5487 = vmatpush1.msra.mxu0 0.0
        %5488 = vmatprep.subr.mxu0 0.0
        %5489 = vmatpush1.msra.mxu0 0.0
        %5490 = vmatprep.subr.mxu0 0.0
        %5491 = vmatpush1.msra.mxu0 0.0
        %5492 = vmatprep.subr.mxu0 0.0
        %5493 = vmatpush1.msra.mxu0 0.0
        %5494 = vmatprep.subr.mxu0 0.0
        %5495 = vmatpush1.msra.mxu0 0.0
        %5496 = vmatprep.subr.mxu0 0.0
        %5497 = vmatpush1.msra.mxu0 0.0
        %5498 = vmatprep.subr.mxu0 0.0
        %5499 = vmatpush1.msra.mxu0 0.0
        %5500 = vmatprep.subr.mxu0 0.0
        %5501 = vmatpush1.msra.mxu0 0.0
        %5502 = vmatprep.subr.mxu0 0.0
        %5503 = vmatpush1.msra.mxu0 0.0
        %5504 = vmatprep.subr.mxu0 0.0
        %5505 = vmatpush1.msra.mxu0 0.0
        %5506 = vmatprep.subr.mxu0 0.0
        %5507 = vmatpush1.msra.mxu0 0.0
        %5508 = vmatprep.subr.mxu0 0.0
        %5509 = vmatpush1.msra.mxu0 0.0
        %5510 = vmatprep.subr.mxu0 0.0
        %5511 = vmatpush1.msra.mxu0 0.0
        %5512 = vmatprep.mubr.f32.mxu0 0.0
        %v5513 = vand.u32 %v5442, 4294901760
        %v5514 = vsub.f32 %v5442, %v5513
        %v5515 = vand.u32 %v5514, 4294901760
        %v5516 = vsub.f32 %v5514, %v5515
        %v5517 = vand.u32 %v5516, 4294901760
        %5518 = vmatmul.mubr.f32.gmra.mrb[0].mxu0 %v5517
        %v5519 = vpop.f32.mrb[0].mxu0
        %v5520 = vadd.f32 %v5438, %v5519
        %v5521 = vpop.f32.mrb[0].mxu0
        %5522 = vdwg.mxu0
        %5523 = vmatprep.subr.mxu0 0.0
        %v5524 = vand.u32 %v5429, 4294901760
        %v5525 = vsub.f32 %v5429, %v5524
        %v5526 = vand.u32 %v5525, 4294901760
        %v5527 = vsub.f32 %v5525, %v5526
        %v5528 = vand.u32 %v5527, 4294901760
        %5529 = vmatpush1.msra.mxu0 %v5528
        %5530 = vmatprep.subr.mxu0 0.0
        %v5531 = vand.u32 %v5430, 4294901760
        %v5532 = vsub.f32 %v5430, %v5531
        %v5533 = vand.u32 %v5532, 4294901760
        %v5534 = vsub.f32 %v5532, %v5533
        %v5535 = vand.u32 %v5534, 4294901760
        %5536 = vmatpush1.msra.mxu0 %v5535
        %5537 = vmatprep.subr.mxu0 0.0
        %v5538 = vand.u32 %v5431, 4294901760
        %v5539 = vsub.f32 %v5431, %v5538
        %v5540 = vand.u32 %v5539, 4294901760
        %v5541 = vsub.f32 %v5539, %v5540
        %v5542 = vand.u32 %v5541, 4294901760
        %5543 = vmatpush1.msra.mxu0 %v5542
        %5544 = vmatprep.subr.mxu0 0.0
        %v5545 = vand.u32 %v5432, 4294901760
        %v5546 = vsub.f32 %v5432, %v5545
        %v5547 = vand.u32 %v5546, 4294901760
        %v5548 = vsub.f32 %v5546, %v5547
        %v5549 = vand.u32 %v5548, 4294901760
        %5550 = vmatpush1.msra.mxu0 %v5549
        %5551 = vmatprep.subr.mxu0 0.0
        %5552 = vmatpush1.msra.mxu0 0.0
        %5553 = vmatprep.subr.mxu0 0.0
        %5554 = vmatpush1.msra.mxu0 0.0
        %5555 = vmatprep.subr.mxu0 0.0
        %5556 = vmatpush1.msra.mxu0 0.0
        %5557 = vmatprep.subr.mxu0 0.0
        %5558 = vmatpush1.msra.mxu0 0.0
        %5559 = vmatprep.subr.mxu0 0.0
        %5560 = vmatpush1.msra.mxu0 0.0
        %5561 = vmatprep.subr.mxu0 0.0
        %5562 = vmatpush1.msra.mxu0 0.0
        %5563 = vmatprep.subr.mxu0 0.0
        %5564 = vmatpush1.msra.mxu0 0.0
        %5565 = vmatprep.subr.mxu0 0.0
        %5566 = vmatpush1.msra.mxu0 0.0
        %5567 = vmatprep.subr.mxu0 0.0
        %5568 = vmatpush1.msra.mxu0 0.0
        %5569 = vmatprep.subr.mxu0 0.0
        %5570 = vmatpush1.msra.mxu0 0.0
        %5571 = vmatprep.subr.mxu0 0.0
        %5572 = vmatpush1.msra.mxu0 0.0
        %5573 = vmatprep.subr.mxu0 0.0
        %5574 = vmatpush1.msra.mxu0 0.0
        %5575 = vmatprep.subr.mxu0 0.0
        %5576 = vmatpush1.msra.mxu0 0.0
        %5577 = vmatprep.subr.mxu0 0.0
        %5578 = vmatpush1.msra.mxu0 0.0
        %5579 = vmatprep.subr.mxu0 0.0
        %5580 = vmatpush1.msra.mxu0 0.0
        %5581 = vmatprep.subr.mxu0 0.0
        %5582 = vmatpush1.msra.mxu0 0.0
        %5583 = vmatprep.subr.mxu0 0.0
        %5584 = vmatpush1.msra.mxu0 0.0
        %5585 = vmatprep.subr.mxu0 0.0
        %5586 = vmatpush1.msra.mxu0 0.0
        %5587 = vmatprep.subr.mxu0 0.0
        %5588 = vmatpush1.msra.mxu0 0.0
        %5589 = vmatprep.subr.mxu0 0.0
        %5590 = vmatpush1.msra.mxu0 0.0
        %5591 = vmatprep.subr.mxu0 0.0
        %5592 = vmatpush1.msra.mxu0 0.0
        %5593 = vmatprep.subr.mxu0 0.0
        %5594 = vmatpush1.msra.mxu0 0.0
        %5595 = vmatprep.subr.mxu0 0.0
        %5596 = vmatpush1.msra.mxu0 0.0
        %5597 = vmatprep.subr.mxu0 0.0
        %5598 = vmatpush1.msra.mxu0 0.0
        %5599 = vmatprep.subr.mxu0 0.0
        %5600 = vmatpush1.msra.mxu0 0.0
        %5601 = vmatprep.subr.mxu0 0.0
        %5602 = vmatpush1.msra.mxu0 0.0
        %5603 = vmatprep.subr.mxu0 0.0
        %5604 = vmatpush1.msra.mxu0 0.0
        %5605 = vmatprep.subr.mxu0 0.0
        %5606 = vmatpush1.msra.mxu0 0.0
        %5607 = vmatprep.mubr.f32.mxu0 0.0
        %v5608 = vand.u32 %v5442, 4294901760
        %5609 = vmatmul.mubr.f32.gmra.mrb[0].mxu0 %v5608
        %v5610 = vpop.f32.mrb[0].mxu0
        %v5611 = vadd.f32 %v5520, %v5610
        %v5612 = vpop.f32.mrb[0].mxu0
        %5613 = vdwg.mxu0
        %5614 = vmatprep.subr.mxu0 0.0
        %v5615 = vand.u32 %v5429, 4294901760
        %v5616 = vsub.f32 %v5429, %v5615
        %5617 = vmatpush1.msra.mxu0 %v5616
        %5618 = vmatprep.subr.mxu0 0.0
        %v5619 = vand.u32 %v5430, 4294901760
        %v5620 = vsub.f32 %v5430, %v5619
        %5621 = vmatpush1.msra.mxu0 %v5620
        %5622 = vmatprep.subr.mxu0 0.0
        %v5623 = vand.u32 %v5431, 4294901760
        %v5624 = vsub.f32 %v5431, %v5623
        %5625 = vmatpush1.msra.mxu0 %v5624
        %5626 = vmatprep.subr.mxu0 0.0
        %v5627 = vand.u32 %v5432, 4294901760
        %v5628 = vsub.f32 %v5432, %v5627
        %5629 = vmatpush1.msra.mxu0 %v5628
        %5630 = vmatprep.subr.mxu0 0.0
        %5631 = vmatpush1.msra.mxu0 0.0
        %5632 = vmatprep.subr.mxu0 0.0
        %5633 = vmatpush1.msra.mxu0 0.0
        %5634 = vmatprep.subr.mxu0 0.0
        %5635 = vmatpush1.msra.mxu0 0.0
        %5636 = vmatprep.subr.mxu0 0.0
        %5637 = vmatpush1.msra.mxu0 0.0
        %5638 = vmatprep.subr.mxu0 0.0
        %5639 = vmatpush1.msra.mxu0 0.0
        %5640 = vmatprep.subr.mxu0 0.0
        %5641 = vmatpush1.msra.mxu0 0.0
        %5642 = vmatprep.subr.mxu0 0.0
        %5643 = vmatpush1.msra.mxu0 0.0
        %5644 = vmatprep.subr.mxu0 0.0
        %5645 = vmatpush1.msra.mxu0 0.0
        %5646 = vmatprep.subr.mxu0 0.0
        %5647 = vmatpush1.msra.mxu0 0.0
        %5648 = vmatprep.subr.mxu0 0.0
        %5649 = vmatpush1.msra.mxu0 0.0
        %5650 = vmatprep.subr.mxu0 0.0
        %5651 = vmatpush1.msra.mxu0 0.0
        %5652 = vmatprep.subr.mxu0 0.0
        %5653 = vmatpush1.msra.mxu0 0.0
        %5654 = vmatprep.subr.mxu0 0.0
        %5655 = vmatpush1.msra.mxu0 0.0
        %5656 = vmatprep.subr.mxu0 0.0
        %5657 = vmatpush1.msra.mxu0 0.0
        %5658 = vmatprep.subr.mxu0 0.0
        %5659 = vmatpush1.msra.mxu0 0.0
        %5660 = vmatprep.subr.mxu0 0.0
        %5661 = vmatpush1.msra.mxu0 0.0
        %5662 = vmatprep.subr.mxu0 0.0
        %5663 = vmatpush1.msra.mxu0 0.0
        %5664 = vmatprep.subr.mxu0 0.0
        %5665 = vmatpush1.msra.mxu0 0.0
        %5666 = vmatprep.subr.mxu0 0.0
        %5667 = vmatpush1.msra.mxu0 0.0
        %5668 = vmatprep.subr.mxu0 0.0
        %5669 = vmatpush1.msra.mxu0 0.0
        %5670 = vmatprep.subr.mxu0 0.0
        %5671 = vmatpush1.msra.mxu0 0.0
        %5672 = vmatprep.subr.mxu0 0.0
        %5673 = vmatpush1.msra.mxu0 0.0
        %5674 = vmatprep.subr.mxu0 0.0
        %5675 = vmatpush1.msra.mxu0 0.0
        %5676 = vmatprep.subr.mxu0 0.0
        %5677 = vmatpush1.msra.mxu0 0.0
        %5678 = vmatprep.subr.mxu0 0.0
        %5679 = vmatpush1.msra.mxu0 0.0
        %5680 = vmatprep.subr.mxu0 0.0
        %5681 = vmatpush1.msra.mxu0 0.0
        %5682 = vmatprep.subr.mxu0 0.0
        %5683 = vmatpush1.msra.mxu0 0.0
        %5684 = vmatprep.subr.mxu0 0.0
        %5685 = vmatpush1.msra.mxu0 0.0
        %5686 = vmatprep.mubr.f32.mxu0 0.0
        %v5687 = vand.u32 %v5442, 4294901760
        %v5688 = vsub.f32 %v5442, %v5687
        %5689 = vmatmul.mubr.f32.gmra.mrb[0].mxu0 %v5688
        %v5690 = vpop.f32.mrb[0].mxu0
        %v5691 = vadd.f32 %v5611, %v5690
        %v5692 = vpop.f32.mrb[0].mxu0
        %5693 = vdwg.mxu0
        %5694 = vmatprep.subr.mxu0 0.0
        %v5695 = vand.u32 %v5429, 4294901760
        %5696 = vmatpush1.msra.mxu0 %v5695
        %5697 = vmatprep.subr.mxu0 0.0
        %v5698 = vand.u32 %v5430, 4294901760
        %5699 = vmatpush1.msra.mxu0 %v5698
        %5700 = vmatprep.subr.mxu0 0.0
        %v5701 = vand.u32 %v5431, 4294901760
        %5702 = vmatpush1.msra.mxu0 %v5701
        %5703 = vmatprep.subr.mxu0 0.0
        %v5704 = vand.u32 %v5432, 4294901760
        %5705 = vmatpush1.msra.mxu0 %v5704
        %5706 = vmatprep.subr.mxu0 0.0
        %5707 = vmatpush1.msra.mxu0 0.0
        %5708 = vmatprep.subr.mxu0 0.0
        %5709 = vmatpush1.msra.mxu0 0.0
        %5710 = vmatprep.subr.mxu0 0.0
        %5711 = vmatpush1.msra.mxu0 0.0
        %5712 = vmatprep.subr.mxu0 0.0
        %5713 = vmatpush1.msra.mxu0 0.0
        %5714 = vmatprep.subr.mxu0 0.0
        %5715 = vmatpush1.msra.mxu0 0.0
        %5716 = vmatprep.subr.mxu0 0.0
        %5717 = vmatpush1.msra.mxu0 0.0
        %5718 = vmatprep.subr.mxu0 0.0
        %5719 = vmatpush1.msra.mxu0 0.0
        %5720 = vmatprep.subr.mxu0 0.0
        %5721 = vmatpush1.msra.mxu0 0.0
        %5722 = vmatprep.subr.mxu0 0.0
        %5723 = vmatpush1.msra.mxu0 0.0
        %5724 = vmatprep.subr.mxu0 0.0
        %5725 = vmatpush1.msra.mxu0 0.0
        %5726 = vmatprep.subr.mxu0 0.0
        %5727 = vmatpush1.msra.mxu0 0.0
        %5728 = vmatprep.subr.mxu0 0.0
        %5729 = vmatpush1.msra.mxu0 0.0
        %5730 = vmatprep.subr.mxu0 0.0
        %5731 = vmatpush1.msra.mxu0 0.0
        %5732 = vmatprep.subr.mxu0 0.0
        %5733 = vmatpush1.msra.mxu0 0.0
        %5734 = vmatprep.subr.mxu0 0.0
        %5735 = vmatpush1.msra.mxu0 0.0
        %5736 = vmatprep.subr.mxu0 0.0
        %5737 = vmatpush1.msra.mxu0 0.0
        %5738 = vmatprep.subr.mxu0 0.0
        %5739 = vmatpush1.msra.mxu0 0.0
        %5740 = vmatprep.subr.mxu0 0.0
        %5741 = vmatpush1.msra.mxu0 0.0
        %5742 = vmatprep.subr.mxu0 0.0
        %5743 = vmatpush1.msra.mxu0 0.0
        %5744 = vmatprep.subr.mxu0 0.0
        %5745 = vmatpush1.msra.mxu0 0.0
        %5746 = vmatprep.subr.mxu0 0.0
        %5747 = vmatpush1.msra.mxu0 0.0
        %5748 = vmatprep.subr.mxu0 0.0
        %5749 = vmatpush1.msra.mxu0 0.0
        %5750 = vmatprep.subr.mxu0 0.0
        %5751 = vmatpush1.msra.mxu0 0.0
        %5752 = vmatprep.subr.mxu0 0.0
        %5753 = vmatpush1.msra.mxu0 0.0
        %5754 = vmatprep.subr.mxu0 0.0
        %5755 = vmatpush1.msra.mxu0 0.0
        %5756 = vmatprep.subr.mxu0 0.0
        %5757 = vmatpush1.msra.mxu0 0.0
        %5758 = vmatprep.subr.mxu0 0.0
        %5759 = vmatpush1.msra.mxu0 0.0
        %5760 = vmatprep.subr.mxu0 0.0
        %5761 = vmatpush1.msra.mxu0 0.0
        %5762 = vmatprep.mubr.f32.mxu0 0.0
        %v5763 = vand.u32 %v5442, 4294901760
        %v5764 = vsub.f32 %v5442, %v5763
        %v5765 = vand.u32 %v5764, 4294901760
        %5766 = vmatmul.mubr.f32.gmra.mrb[0].mxu0 %v5765
        %v5767 = vpop.f32.mrb[0].mxu0
        %v5768 = vadd.f32 %v5691, %v5767
        %v5769 = vpop.f32.mrb[0].mxu0
        %5770 = vdwg.mxu0
        %5771 = vmatprep.subr.mxu0 0.0
        %v5772 = vand.u32 %v5429, 4294901760
        %v5773 = vsub.f32 %v5429, %v5772
        %v5774 = vand.u32 %v5773, 4294901760
        %5775 = vmatpush1.msra.mxu0 %v5774
        %5776 = vmatprep.subr.mxu0 0.0
        %v5777 = vand.u32 %v5430, 4294901760
        %v5778 = vsub.f32 %v5430, %v5777
        %v5779 = vand.u32 %v5778, 4294901760
        %5780 = vmatpush1.msra.mxu0 %v5779
        %5781 = vmatprep.subr.mxu0 0.0
        %v5782 = vand.u32 %v5431, 4294901760
        %v5783 = vsub.f32 %v5431, %v5782
        %v5784 = vand.u32 %v5783, 4294901760
        %5785 = vmatpush1.msra.mxu0 %v5784
        %5786 = vmatprep.subr.mxu0 0.0
        %v5787 = vand.u32 %v5432, 4294901760
        %v5788 = vsub.f32 %v5432, %v5787
        %v5789 = vand.u32 %v5788, 4294901760
        %5790 = vmatpush1.msra.mxu0 %v5789
        %5791 = vmatprep.subr.mxu0 0.0
        %5792 = vmatpush1.msra.mxu0 0.0
        %5793 = vmatprep.subr.mxu0 0.0
        %5794 = vmatpush1.msra.mxu0 0.0
        %5795 = vmatprep.subr.mxu0 0.0
        %5796 = vmatpush1.msra.mxu0 0.0
        %5797 = vmatprep.subr.mxu0 0.0
        %5798 = vmatpush1.msra.mxu0 0.0
        %5799 = vmatprep.subr.mxu0 0.0
        %5800 = vmatpush1.msra.mxu0 0.0
        %5801 = vmatprep.subr.mxu0 0.0
        %5802 = vmatpush1.msra.mxu0 0.0
        %5803 = vmatprep.subr.mxu0 0.0
        %5804 = vmatpush1.msra.mxu0 0.0
        %5805 = vmatprep.subr.mxu0 0.0
        %5806 = vmatpush1.msra.mxu0 0.0
        %5807 = vmatprep.subr.mxu0 0.0
        %5808 = vmatpush1.msra.mxu0 0.0
        %5809 = vmatprep.subr.mxu0 0.0
        %5810 = vmatpush1.msra.mxu0 0.0
        %5811 = vmatprep.subr.mxu0 0.0
        %5812 = vmatpush1.msra.mxu0 0.0
        %5813 = vmatprep.subr.mxu0 0.0
        %5814 = vmatpush1.msra.mxu0 0.0
        %5815 = vmatprep.subr.mxu0 0.0
        %5816 = vmatpush1.msra.mxu0 0.0
        %5817 = vmatprep.subr.mxu0 0.0
        %5818 = vmatpush1.msra.mxu0 0.0
        %5819 = vmatprep.subr.mxu0 0.0
        %5820 = vmatpush1.msra.mxu0 0.0
        %5821 = vmatprep.subr.mxu0 0.0
        %5822 = vmatpush1.msra.mxu0 0.0
        %5823 = vmatprep.subr.mxu0 0.0
        %5824 = vmatpush1.msra.mxu0 0.0
        %5825 = vmatprep.subr.mxu0 0.0
        %5826 = vmatpush1.msra.mxu0 0.0
        %5827 = vmatprep.subr.mxu0 0.0
        %5828 = vmatpush1.msra.mxu0 0.0
        %5829 = vmatprep.subr.mxu0 0.0
        %5830 = vmatpush1.msra.mxu0 0.0
        %5831 = vmatprep.subr.mxu0 0.0
        %5832 = vmatpush1.msra.mxu0 0.0
        %5833 = vmatprep.subr.mxu0 0.0
        %5834 = vmatpush1.msra.mxu0 0.0
        %5835 = vmatprep.subr.mxu0 0.0
        %5836 = vmatpush1.msra.mxu0 0.0
        %5837 = vmatprep.subr.mxu0 0.0
        %5838 = vmatpush1.msra.mxu0 0.0
        %5839 = vmatprep.subr.mxu0 0.0
        %5840 = vmatpush1.msra.mxu0 0.0
        %5841 = vmatprep.subr.mxu0 0.0
        %5842 = vmatpush1.msra.mxu0 0.0
        %5843 = vmatprep.subr.mxu0 0.0
        %5844 = vmatpush1.msra.mxu0 0.0
        %5845 = vmatprep.subr.mxu0 0.0
        %5846 = vmatpush1.msra.mxu0 0.0
        %5847 = vmatprep.mubr.f32.mxu0 0.0
        %v5848 = vand.u32 %v5442, 4294901760
        %5849 = vmatmul.mubr.f32.gmra.mrb[0].mxu0 %v5848
        %v5850 = vpop.f32.mrb[0].mxu0
        %v5851 = vadd.f32 %v5768, %v5850
        %v5852 = vpop.f32.mrb[0].mxu0
        %5853 = vdwg.mxu0
        %5854 = vmatprep.subr.mxu0 0.0
        %v5855 = vand.u32 %v5429, 4294901760
        %5856 = vmatpush1.msra.mxu0 %v5855
        %5857 = vmatprep.subr.mxu0 0.0
        %v5858 = vand.u32 %v5430, 4294901760
        %5859 = vmatpush1.msra.mxu0 %v5858
        %5860 = vmatprep.subr.mxu0 0.0
        %v5861 = vand.u32 %v5431, 4294901760
        %5862 = vmatpush1.msra.mxu0 %v5861
        %5863 = vmatprep.subr.mxu0 0.0
        %v5864 = vand.u32 %v5432, 4294901760
        %5865 = vmatpush1.msra.mxu0 %v5864
        %5866 = vmatprep.subr.mxu0 0.0
        %5867 = vmatpush1.msra.mxu0 0.0
        %5868 = vmatprep.subr.mxu0 0.0
        %5869 = vmatpush1.msra.mxu0 0.0
        %5870 = vmatprep.subr.mxu0 0.0
        %5871 = vmatpush1.msra.mxu0 0.0
        %5872 = vmatprep.subr.mxu0 0.0
        %5873 = vmatpush1.msra.mxu0 0.0
        %5874 = vmatprep.subr.mxu0 0.0
        %5875 = vmatpush1.msra.mxu0 0.0
        %5876 = vmatprep.subr.mxu0 0.0
        %5877 = vmatpush1.msra.mxu0 0.0
        %5878 = vmatprep.subr.mxu0 0.0
        %5879 = vmatpush1.msra.mxu0 0.0
        %5880 = vmatprep.subr.mxu0 0.0
        %5881 = vmatpush1.msra.mxu0 0.0
        %5882 = vmatprep.subr.mxu0 0.0
        %5883 = vmatpush1.msra.mxu0 0.0
        %5884 = vmatprep.subr.mxu0 0.0
        %5885 = vmatpush1.msra.mxu0 0.0
        %5886 = vmatprep.subr.mxu0 0.0
        %5887 = vmatpush1.msra.mxu0 0.0
        %5888 = vmatprep.subr.mxu0 0.0
        %5889 = vmatpush1.msra.mxu0 0.0
        %5890 = vmatprep.subr.mxu0 0.0
        %5891 = vmatpush1.msra.mxu0 0.0
        %5892 = vmatprep.subr.mxu0 0.0
        %5893 = vmatpush1.msra.mxu0 0.0
        %5894 = vmatprep.subr.mxu0 0.0
        %5895 = vmatpush1.msra.mxu0 0.0
        %5896 = vmatprep.subr.mxu0 0.0
        %5897 = vmatpush1.msra.mxu0 0.0
        %5898 = vmatprep.subr.mxu0 0.0
        %5899 = vmatpush1.msra.mxu0 0.0
        %5900 = vmatprep.subr.mxu0 0.0
        %5901 = vmatpush1.msra.mxu0 0.0
        %5902 = vmatprep.subr.mxu0 0.0
        %5903 = vmatpush1.msra.mxu0 0.0
        %5904 = vmatprep.subr.mxu0 0.0
        %5905 = vmatpush1.msra.mxu0 0.0
        %5906 = vmatprep.subr.mxu0 0.0
        %5907 = vmatpush1.msra.mxu0 0.0
        %5908 = vmatprep.subr.mxu0 0.0
        %5909 = vmatpush1.msra.mxu0 0.0
        %5910 = vmatprep.subr.mxu0 0.0
        %5911 = vmatpush1.msra.mxu0 0.0
        %5912 = vmatprep.subr.mxu0 0.0
        %5913 = vmatpush1.msra.mxu0 0.0
        %5914 = vmatprep.subr.mxu0 0.0
        %5915 = vmatpush1.msra.mxu0 0.0
        %5916 = vmatprep.subr.mxu0 0.0
        %5917 = vmatpush1.msra.mxu0 0.0
        %5918 = vmatprep.subr.mxu0 0.0
        %5919 = vmatpush1.msra.mxu0 0.0
        %5920 = vmatprep.subr.mxu0 0.0
        %5921 = vmatpush1.msra.mxu0 0.0
        %5922 = vmatprep.mubr.f32.mxu0 0.0
        %v5923 = vand.u32 %v5442, 4294901760
        %5924 = vmatmul.mubr.f32.gmra.mrb[0].mxu0 %v5923
        %v5925 = vpop.f32.mrb[0].mxu0
        %v5926 = vadd.f32 %v5851, %v5925
        %v5927 = vpop.f32.mrb[0].mxu0
        %5928 = vdwg.mxu0
        %5929 = vst.msk [vmem:[%s553] sm:$0xff] %vm5440, %v5926
        %s5930 = sand.u32 %s321, 1
        %s5931 = scalar_lea.sflag [#allocation7], %s5930
        %s5932 = sand.u32 %s321, 1
        %s5933 = smul.addr %s5932, 8
        %s5934 = scalar_lea.vmem [#allocation16], %s5933
        %s5935 = sand.u32 %s349, 1
        %s5936 = scalar_lea.sflag [#allocation18], %s5935
        %s5937 = sand.u32 %s349, 1
        %s5938 = smul.addr %s5937, 32
        %s5939 = scalar_lea.vmem [#allocation17], %s5938
        // Predicated region
        $region97: #{tpu_custom_call.1} parent=67 // pred_check
          %p5940 = pneg %p331
        $region98: #{tpu_custom_call.1} parent=67 // pred_check_branch
          %5942 = sbr.rel (%p5940) target = $region100
        $region99: #{tpu_custom_call.1} parent=67 // pred_region
          %s5944 = ssub.s32 128, 128
          %5945 = vsyncadd %s5931, %s5944
          %s5946 = sadd.s32 %s42, %s41
          %s5947 = smul.addr %s5946, 128
          %s5948 = scalar_lea.hbm %s12, %s5947
          %s5950 = sshll.u32 %s5934, 4
          %s5951 = int_to_ptr.vmem [resolvable:$true] %s5950
          %5953 = dma.vmem_to_hbm [thread:$0]  %s5951, 128, %s5948, %s5931
        $region100: #{tpu_custom_call.1} parent=67 // pred_fallthru
          _
        // Predicated region
        $region101: #{tpu_custom_call.1} parent=67 // pred_check
          %p5954 = pneg %p359
        $region102: #{tpu_custom_call.1} parent=67 // pred_check_branch
          %5956 = sbr.rel (%p5954) target = $region104
        $region103: #{tpu_custom_call.1} parent=67 // pred_region
          %s5958 = ssub.s32 512, 512
          %5959 = vsyncadd %s5936, %s5958
          %s5960 = smul.addr %s41, 4
          %s5961 = sadd.s32 %s42, %s5960
          %s5962 = smul.addr %s5961, 128
          %s5963 = scalar_lea.hbm %s13, %s5962
          %s5964 = sshll.u32 %s5939, 4
          %s5965 = int_to_ptr.vmem [resolvable:$true] %s5964
          %5970 = dma.vmem_to_hbm [thread:$0]  %s5965, 512, %s5963, %s5936, 128, 128, 8
        $region104: #{tpu_custom_call.1} parent=67 // pred_fallthru
          _
      $region68: #{tpu_custom_call.1} parent=5 // pred_fallthru
        _
      %p5971 = scmp.le.s32.totalorder 2, %s32
      // Predicated region
      $region105: #{tpu_custom_call.1} parent=5 // pred_check
        %p5972 = pneg %p5971
      $region106: #{tpu_custom_call.1} parent=5 // pred_check_branch
        %5974 = sbr.rel (%p5972) target = $region108
      $region107: #{tpu_custom_call.1} parent=5 // pred_region
        %s5975 = ssub.s32 %s32, 2
        // Predicated region
        $region109: #{tpu_custom_call.1} parent=107 // pred_check
          %p5976 = pneg %p337
        $region110: #{tpu_custom_call.1} parent=107 // pred_check_branch
          %5978 = sbr.rel (%p5976) target = $region112
        $region111: #{tpu_custom_call.1} parent=107 // pred_region
          %s5979 = sand.u32 %s322, 1
          %s5980 = scalar_lea.sflag [#allocation7], %s5979
          %s5981 = sand.u32 %s322, 1
          %s5982 = smul.addr %s5981, 8
          %s5983 = scalar_lea.vmem [#allocation16], %s5982
          %5984 = dma.done %s5980, 128
        $region112: #{tpu_custom_call.1} parent=107 // pred_fallthru
          _
        // Predicated region
        $region113: #{tpu_custom_call.1} parent=107 // pred_check
          %p5985 = pneg %p365
        $region114: #{tpu_custom_call.1} parent=107 // pred_check_branch
          %5987 = sbr.rel (%p5985) target = $region116
        $region115: #{tpu_custom_call.1} parent=107 // pred_region
          %s5988 = sand.u32 %s350, 1
          %s5989 = scalar_lea.sflag [#allocation18], %s5988
          %s5990 = sand.u32 %s350, 1
          %s5991 = smul.addr %s5990, 32
          %s5992 = scalar_lea.vmem [#allocation17], %s5991
          %5993 = dma.done %s5989, 512
        $region116: #{tpu_custom_call.1} parent=107 // pred_fallthru
          _
      $region108: #{tpu_custom_call.1} parent=5 // pred_fallthru
        _
    $region6: #{tpu_custom_call.1} parent=1 // loop_footer
      %s36 = sadd.s32 1, %s32
    $region7: #{tpu_custom_call.1} parent=1 // loop_footer_branch
      %31 = sbr.rel target = $region3
    $region8: #{tpu_custom_call.1} parent=1 // loop_exit
      _
    %5994 = vsyncpa [#allocation6], 1
    %s5995 = scalar_lea.sflag [#allocation6], 1
    %5996 = vsyncpa %s5995, 1
    %5997 = vsyncpa [#allocation9], 1
    %5998 = vsyncpa [#allocation12], 1
    %5999 = vsyncpa [#allocation15], 1
    %6000 = vsyncpa [#allocation7], 1
    %s6001 = scalar_lea.sflag [#allocation7], 1
    %6002 = vsyncpa %s6001, 1
    %6003 = vsyncpa [#allocation18], 1
    %s6004 = scalar_lea.sflag [#allocation18], 1
    %6005 = vsyncpa %s6004, 1

</llo_original>
